<compile_context>
chip_gen: v5e
topology: v5e:2x2
jax: 0.10.0
libtpu: 0.0.40
codegen_flags: <defaults>
</compile_context>

<pallas_src>
import jax
import jax.numpy as jnp
from jax.experimental import pallas as pl
from jax.experimental.pallas import tpu as pltpu

D_I = 784      # 28*28 flattened image
D_H = 256
N_PAD = 128    # lane-padded width of the final 256 -> 1 head


def _leaky_relu(x, slope=0.2):
    return jnp.where(x > 0, x, slope * x)


def discriminator_kernel(x_ref,
                         w1_ref, b1_ref,
                         w2_ref, b2_ref,
                         w3_ref, b3_ref,
                         w4_ref, b4_ref,
                         o_ref):
    # Entire 4-layer MLP fused: 4 bf16 MXU matmuls (f32 accumulation) + VPU
    # bias / LeakyReLU epilogues in f32.
    # x arrives as f32 straight from HBM; the bf16 cast for the MXU happens
    # here (no separate wrapper-side HBM cast pass).
    x = x_ref[...].astype(jnp.bfloat16)                                # (tb, 784)

    h = jnp.dot(x, w1_ref[...], preferred_element_type=jnp.float32) + b1_ref[...]
    h = _leaky_relu(h).astype(jnp.bfloat16)                            # (tb, 1024)

    h = jnp.dot(h, w2_ref[...], preferred_element_type=jnp.float32) + b2_ref[...]
    h = _leaky_relu(h).astype(jnp.bfloat16)                            # (tb, 512)

    h = jnp.dot(h, w3_ref[...], preferred_element_type=jnp.float32) + b3_ref[...]
    h = _leaky_relu(h).astype(jnp.bfloat16)                            # (tb, 256)

    # 256 -> 1 head, padded to 128 output lanes (real logit lives in lane 0).
    out = jnp.dot(h, w4_ref[...], preferred_element_type=jnp.float32) + b4_ref[...]
    o_ref[...] = out.astype(o_ref.dtype)                               # (tb, 128) bf16


def _choose_tile_b(batch):
    """Largest tile in {512, 256, 128} that still yields >= 2 grid steps.

    >= 2 steps keeps both v7x TensorCores fed via the 'parallel' batch axis
    and lets the input/output DMA pipeline overlap with compute; the 512 cap
    keeps VMEM (incl. double-buffered f32 x tiles and f32 intermediates) well
    under every generation's scoped limit.
    """
    for tb in (512, 256, 128):
        if batch >= 2 * tb:
            return tb
    return 128   # tiny batch: a single (zero-padded) tile


def discriminator_forward(x, params, *, tile_b=None):
    """x: (B, 784) float32.  params: output of `prepare_params` / `init_params`.

    Returns (B, 1) float32 logits.
    """
    B, d_i = x.shape
    assert d_i == D_I
    if tile_b is None:
        tile_b = _choose_tile_b(B)

    # Pad batch to a tile multiple (padded rows are sliced off below).
    b_pad = pl.cdiv(B, tile_b) * tile_b
    if b_pad != B:
        x = jnp.pad(x, ((0, b_pad - B), (0, 0)))

    w1, b1 = params["w1"], params["b1"]
    w2, b2 = params["w2"], params["b2"]
    w3, b3 = params["w3"], params["b3"]
    w4, b4 = params["w4"], params["b4"]     # already padded to N_PAD lanes

    def resident_spec(arr):
        # Weights/biases: whole array resident in VMEM, constant block index so
        # the pipeline never re-fetches them across grid steps.
        return pl.BlockSpec(arr.shape, lambda i: (0, 0))

    out = pl.pallas_call(
        discriminator_kernel,
        out_shape=jax.ShapeDtypeStruct((b_pad, N_PAD), jnp.bfloat16),
        grid_spec=pltpu.PrefetchScalarGridSpec(
            num_scalar_prefetch=0,
            grid=(b_pad // tile_b,),
            in_specs=[
                pl.BlockSpec((tile_b, D_I), lambda i: (i, 0)),   # x tile (f32)
                resident_spec(w1), resident_spec(b1),
                resident_spec(w2), resident_spec(b2),
                resident_spec(w3), resident_spec(b3),
                resident_spec(w4), resident_spec(b4),
            ],
            out_specs=pl.BlockSpec((tile_b, N_PAD), lambda i: (i, 0)),
        ),
        compiler_params=pltpu.CompilerParams(
            dimension_semantics=("parallel",),     # megacore / v7x: shard batch tiles
            vmem_limit_bytes=32 * 1024 * 1024,     # headroom for tile_b=512
        ),
    )(x, w1, b1, w2, b2, w3, b3, w4, b4)

    # Slice off batch padding and the 127 zero lanes; logits back to f32.
    return out[:B, :1].astype(jnp.float32)


def prepare_params(raw_params):
    """One-time prep (do NOT re-run per forward): bf16 (in, out) weights,
    f32 (1, out) biases, and the 256->1 head zero-padded to N_PAD lanes."""
    prepared = {}
    for idx in range(1, 5):
        w = raw_params[f"w{idx}"]
        b = raw_params[f"b{idx}"].reshape(1, -1)
        if idx == 4:
            w = jnp.pad(w, ((0, 0), (0, N_PAD - w.shape[1])))
            b = jnp.pad(b, ((0, 0), (0, N_PAD - b.shape[1])))
        prepared[f"w{idx}"] = w.astype(jnp.bfloat16)
        prepared[f"b{idx}"] = b.astype(jnp.float32)
    return prepared


def init_params(key, d_i=D_I, d_h=D_H):
    """Mirror nn.Linear's U(-1/sqrt(fan_in), 1/sqrt(fan_in)), then prep once."""
    dims = [(d_i, d_h * 4), (d_h * 4, d_h * 2), (d_h * 2, d_h), (d_h, 1)]
    raw = {}
    for idx, (fan_in, fan_out) in enumerate(dims, start=1):
        key, kw, kb = jax.random.split(key, 3)
        bound = 1.0 / (fan_in ** 0.5)
        raw[f"w{idx}"] = jax.random.uniform(
            kw, (fan_in, fan_out), jnp.float32, -bound, bound)
        raw[f"b{idx}"] = jax.random.uniform(
            kb, (1, fan_out), jnp.float32, -bound, bound)
    return prepare_params(raw)


def _reference_forward(x, params):
    # Mirrors the kernel's numerics: bf16 matmul inputs, f32 accumulation,
    # f32 bias + LeakyReLU epilogues. Uses the padded head (extra lanes are
    # zero) and slices column 0, exactly like the wrapper.
    h = x.astype(jnp.bfloat16)
    for idx in range(1, 4):
        h = jnp.dot(h, params[f"w{idx}"], preferred_element_type=jnp.float32)
        h = h + params[f"b{idx}"]
        h = jnp.where(h > 0, h, 0.2 * h).astype(jnp.bfloat16)
    out = jnp.dot(h, params["w4"], preferred_element_type=jnp.float32)
    out = out + params["b4"]
    return out[:, :1]


if __name__ == "__main__":
    key = jax.random.PRNGKey(0)
    key, kx = jax.random.split(key)

    B = 256  # typical GAN batch of flattened 28x28 images -> 2 grid steps of 128
    x = jax.random.normal(kx, (B, D_I), jnp.float32)
    params = init_params(key)

    out = discriminator_forward(x, params)
    out = jax.block_until_ready(out)

    ref = _reference_forward(x, params)
    assert out.shape == (B, 1)
    assert jnp.allclose(out, ref, atol=2e-2, rtol=2e-2), "mismatch vs reference"

    print("KERNEL_OK")
</pallas_src>

<mosaic_0001>
module attributes {stable_mosaic.version = 11 : i64} {
  func.func @discriminator_kernel(%arg0: i32, %arg1: memref<128x784xf32, #tpu.memory_space<vmem>>, %arg2: memref<784x1024xbf16, #tpu.memory_space<vmem>>, %arg3: memref<1x1024xf32, #tpu.memory_space<vmem>>, %arg4: memref<1024x512xbf16, #tpu.memory_space<vmem>>, %arg5: memref<1x512xf32, #tpu.memory_space<vmem>>, %arg6: memref<512x256xbf16, #tpu.memory_space<vmem>>, %arg7: memref<1x256xf32, #tpu.memory_space<vmem>>, %arg8: memref<256x128xbf16, #tpu.memory_space<vmem>>, %arg9: memref<1x128xf32, #tpu.memory_space<vmem>>, %arg10: memref<128x128xbf16, #tpu.memory_space<vmem>>) attributes {dimension_semantics = [#tpu.dimension_semantics<parallel>], iteration_bounds = array<i64: 2>, scalar_prefetch = 0 : i64, scratch_operands = 0 : i64, tpu.core_type = #tpu.core_type<tc>, window_params = [{transform_indices = @transform_0, window_bounds = array<i64: 128, 784>}, {pipeline_mode = #tpu.pipeline_mode<synchronous>, transform_indices = @transform_1, window_bounds = array<i64: 784, 1024>}, {pipeline_mode = #tpu.pipeline_mode<synchronous>, transform_indices = @transform_2, window_bounds = array<i64: 1, 1024>}, {pipeline_mode = #tpu.pipeline_mode<synchronous>, transform_indices = @transform_3, window_bounds = array<i64: 1024, 512>}, {pipeline_mode = #tpu.pipeline_mode<synchronous>, transform_indices = @transform_4, window_bounds = array<i64: 1, 512>}, {pipeline_mode = #tpu.pipeline_mode<synchronous>, transform_indices = @transform_5, window_bounds = array<i64: 512, 256>}, {pipeline_mode = #tpu.pipeline_mode<synchronous>, transform_indices = @transform_6, window_bounds = array<i64: 1, 256>}, {pipeline_mode = #tpu.pipeline_mode<synchronous>, transform_indices = @transform_7, window_bounds = array<i64: 256, 128>}, {pipeline_mode = #tpu.pipeline_mode<synchronous>, transform_indices = @transform_8, window_bounds = array<i64: 1, 128>}, {transform_indices = @transform_9, window_bounds = array<i64: 128, 128>}]} {
    %c0 = arith.constant 0 : index
    %c0_0 = arith.constant 0 : index
    %0 = vector.load %arg1[%c0, %c0_0] : memref<128x784xf32, #tpu.memory_space<vmem>>, vector<128x784xf32>
    %1 = arith.truncf %0 : vector<128x784xf32> to vector<128x784xbf16>
    %c0_1 = arith.constant 0 : index
    %c0_2 = arith.constant 0 : index
    %2 = vector.load %arg2[%c0_1, %c0_2] : memref<784x1024xbf16, #tpu.memory_space<vmem>>, vector<784x1024xbf16>
    %cst = arith.constant dense<0.000000e+00> : vector<128x1024xf32>
    %3 = tpu.matmul %1, %2, %cst {dimension_numbers = #tpu.dot_dimension_numbers<[1], [0], [0], [1], [0, 0, 1, 1], [], []>} : vector<128x784xbf16>, vector<784x1024xbf16>, vector<128x1024xf32> -> vector<128x1024xf32>
    %c0_3 = arith.constant 0 : index
    %c0_4 = arith.constant 0 : index
    %4 = vector.load %arg3[%c0_3, %c0_4] : memref<1x1024xf32, #tpu.memory_space<vmem>>, vector<1x1024xf32>
    %5 = vector.broadcast %4 : vector<1x1024xf32> to vector<128x1024xf32>
    %6 = arith.addf %3, %5 : vector<128x1024xf32>
    %cst_5 = arith.constant 0.000000e+00 : f32
    %7 = vector.broadcast %cst_5 : f32 to vector<128x1024xf32>
    %8 = arith.cmpf ogt, %6, %7 : vector<128x1024xf32>
    %cst_6 = arith.constant 2.000000e-01 : f32
    %9 = vector.broadcast %cst_6 : f32 to vector<128x1024xf32>
    %10 = arith.mulf %9, %6 : vector<128x1024xf32>
    %11 = arith.select %8, %6, %10 : vector<128x1024xi1>, vector<128x1024xf32>
    %12 = arith.truncf %11 : vector<128x1024xf32> to vector<128x1024xbf16>
    %c0_7 = arith.constant 0 : index
    %c0_8 = arith.constant 0 : index
    %13 = vector.load %arg4[%c0_7, %c0_8] : memref<1024x512xbf16, #tpu.memory_space<vmem>>, vector<1024x512xbf16>
    %cst_9 = arith.constant dense<0.000000e+00> : vector<128x512xf32>
    %14 = tpu.matmul %12, %13, %cst_9 {dimension_numbers = #tpu.dot_dimension_numbers<[1], [0], [0], [1], [0, 0, 1, 1], [], []>} : vector<128x1024xbf16>, vector<1024x512xbf16>, vector<128x512xf32> -> vector<128x512xf32>
    %c0_10 = arith.constant 0 : index
    %c0_11 = arith.constant 0 : index
    %15 = vector.load %arg5[%c0_10, %c0_11] : memref<1x512xf32, #tpu.memory_space<vmem>>, vector<1x512xf32>
    %16 = vector.broadcast %15 : vector<1x512xf32> to vector<128x512xf32>
    %17 = arith.addf %14, %16 : vector<128x512xf32>
    %cst_12 = arith.constant 0.000000e+00 : f32
    %18 = vector.broadcast %cst_12 : f32 to vector<128x512xf32>
    %19 = arith.cmpf ogt, %17, %18 : vector<128x512xf32>
    %cst_13 = arith.constant 2.000000e-01 : f32
    %20 = vector.broadcast %cst_13 : f32 to vector<128x512xf32>
    %21 = arith.mulf %20, %17 : vector<128x512xf32>
    %22 = arith.select %19, %17, %21 : vector<128x512xi1>, vector<128x512xf32>
    %23 = arith.truncf %22 : vector<128x512xf32> to vector<128x512xbf16>
    %c0_14 = arith.constant 0 : index
    %c0_15 = arith.constant 0 : index
    %24 = vector.load %arg6[%c0_14, %c0_15] : memref<512x256xbf16, #tpu.memory_space<vmem>>, vector<512x256xbf16>
    %cst_16 = arith.constant dense<0.000000e+00> : vector<128x256xf32>
    %25 = tpu.matmul %23, %24, %cst_16 {dimension_numbers = #tpu.dot_dimension_numbers<[1], [0], [0], [1], [0, 0, 1, 1], [], []>} : vector<128x512xbf16>, vector<512x256xbf16>, vector<128x256xf32> -> vector<128x256xf32>
    %c0_17 = arith.constant 0 : index
    %c0_18 = arith.constant 0 : index
    %26 = vector.load %arg7[%c0_17, %c0_18] : memref<1x256xf32, #tpu.memory_space<vmem>>, vector<1x256xf32>
    %27 = vector.broadcast %26 : vector<1x256xf32> to vector<128x256xf32>
    %28 = arith.addf %25, %27 : vector<128x256xf32>
    %cst_19 = arith.constant 0.000000e+00 : f32
    %29 = vector.broadcast %cst_19 : f32 to vector<128x256xf32>
    %30 = arith.cmpf ogt, %28, %29 : vector<128x256xf32>
    %cst_20 = arith.constant 2.000000e-01 : f32
    %31 = vector.broadcast %cst_20 : f32 to vector<128x256xf32>
    %32 = arith.mulf %31, %28 : vector<128x256xf32>
    %33 = arith.select %30, %28, %32 : vector<128x256xi1>, vector<128x256xf32>
    %34 = arith.truncf %33 : vector<128x256xf32> to vector<128x256xbf16>
    %c0_21 = arith.constant 0 : index
    %c0_22 = arith.constant 0 : index
    %35 = vector.load %arg8[%c0_21, %c0_22] : memref<256x128xbf16, #tpu.memory_space<vmem>>, vector<256x128xbf16>
    %cst_23 = arith.constant dense<0.000000e+00> : vector<128x128xf32>
    %36 = tpu.matmul %34, %35, %cst_23 {dimension_numbers = #tpu.dot_dimension_numbers<[1], [0], [0], [1], [0, 0, 1, 1], [], []>} : vector<128x256xbf16>, vector<256x128xbf16>, vector<128x128xf32> -> vector<128x128xf32>
    %c0_24 = arith.constant 0 : index
    %c0_25 = arith.constant 0 : index
    %37 = vector.load %arg9[%c0_24, %c0_25] : memref<1x128xf32, #tpu.memory_space<vmem>>, vector<1x128xf32>
    %38 = vector.broadcast %37 : vector<1x128xf32> to vector<128x128xf32>
    %39 = arith.addf %36, %38 : vector<128x128xf32>
    %40 = arith.truncf %39 : vector<128x128xf32> to vector<128x128xbf16>
    %c0_26 = arith.constant 0 : index
    %c0_27 = arith.constant 0 : index
    %41 = vector.load %arg10[%c0_26, %c0_27] : memref<128x128xbf16, #tpu.memory_space<vmem>>, vector<128x128xbf16>
    tpu.vector_store %arg10[%c0_26, %c0_27], %40 {strides = array<i32>} : memref<128x128xbf16, #tpu.memory_space<vmem>>, vector<128x128xbf16>,
    return
  }
  func.func @transform_0(%arg0: i32) -> (i32, i32) {
    %c0_i32 = arith.constant 0 : i32
    %c0_i32_0 = arith.constant 0 : i32
    return %arg0, %c0_i32 : i32, i32
  }
  func.func @transform_1(%arg0: i32) -> (i32, i32) {
    %c0_i32 = arith.constant 0 : i32
    %c0_i32_0 = arith.constant 0 : i32
    %c0_i32_1 = arith.constant 0 : i32
    return %c0_i32, %c0_i32_0 : i32, i32
  }
  func.func @transform_2(%arg0: i32) -> (i32, i32) {
    %c0_i32 = arith.constant 0 : i32
    %c0_i32_0 = arith.constant 0 : i32
    %c0_i32_1 = arith.constant 0 : i32
    return %c0_i32, %c0_i32_0 : i32, i32
  }
  func.func @transform_3(%arg0: i32) -> (i32, i32) {
    %c0_i32 = arith.constant 0 : i32
    %c0_i32_0 = arith.constant 0 : i32
    %c0_i32_1 = arith.constant 0 : i32
    return %c0_i32, %c0_i32_0 : i32, i32
  }
  func.func @transform_4(%arg0: i32) -> (i32, i32) {
    %c0_i32 = arith.constant 0 : i32
    %c0_i32_0 = arith.constant 0 : i32
    %c0_i32_1 = arith.constant 0 : i32
    return %c0_i32, %c0_i32_0 : i32, i32
  }
  func.func @transform_5(%arg0: i32) -> (i32, i32) {
    %c0_i32 = arith.constant 0 : i32
    %c0_i32_0 = arith.constant 0 : i32
    %c0_i32_1 = arith.constant 0 : i32
    return %c0_i32, %c0_i32_0 : i32, i32
  }
  func.func @transform_6(%arg0: i32) -> (i32, i32) {
    %c0_i32 = arith.constant 0 : i32
    %c0_i32_0 = arith.constant 0 : i32
    %c0_i32_1 = arith.constant 0 : i32
    return %c0_i32, %c0_i32_0 : i32, i32
  }
  func.func @transform_7(%arg0: i32) -> (i32, i32) {
    %c0_i32 = arith.constant 0 : i32
    %c0_i32_0 = arith.constant 0 : i32
    %c0_i32_1 = arith.constant 0 : i32
    return %c0_i32, %c0_i32_0 : i32, i32
  }
  func.func @transform_8(%arg0: i32) -> (i32, i32) {
    %c0_i32 = arith.constant 0 : i32
    %c0_i32_0 = arith.constant 0 : i32
    %c0_i32_1 = arith.constant 0 : i32
    return %c0_i32, %c0_i32_0 : i32, i32
  }
  func.func @transform_9(%arg0: i32) -> (i32, i32) {
    %c0_i32 = arith.constant 0 : i32
    %c0_i32_0 = arith.constant 0 : i32
    return %arg0, %c0_i32 : i32, i32
  }
}

</mosaic_0001>

<llo_original>
// kernel: tpu_custom_call.1
$region0: #{tpu_custom_call.1}
  #allocation0 [shape = 'u32[]', space=smem, size = 0x4, offset = 0x4, fixed_abs, tag = 'smem constant byte address 0x4 - core index']
  #allocation1 [shape = 'u32[72,128]{1,0:T(1,128)}', space=vmem, size = 0x9000, scoped, tag = 'internal scratch']
  %s0 = inlined_call_operand.vmem [shape: f32[256,784], index: 0, kind: input, shape index: {}]
  %s1 = inlined_call_operand.vmem [shape: bf16[784,1024], index: 1, kind: input, shape index: {}]
  %s2 = inlined_call_operand.vmem [shape: f32[1,1024], index: 2, kind: input, shape index: {}]
  %s3 = inlined_call_operand.hbm [shape: bf16[1024,512], index: 3, kind: input, shape index: {}]
  %s4 = inlined_call_operand.vmem [shape: f32[1,512], index: 4, kind: input, shape index: {}]
  %s5 = inlined_call_operand.hbm [shape: bf16[512,256], index: 5, kind: input, shape index: {}]
  %s6 = inlined_call_operand.vmem [shape: f32[1,256], index: 6, kind: input, shape index: {}]
  %s7 = inlined_call_operand.vmem [shape: bf16[256,128], index: 7, kind: input, shape index: {}]
  %s8 = inlined_call_operand.vmem [shape: f32[1,128], index: 8, kind: input, shape index: {}]
  %s9 = inlined_call_operand.hbm [shape: bf16[256,128], index: 9, kind: output, shape index: {}]
  %s10 = sld [smem:[#allocation0]]
  $region77: #{tpu_custom_call.1} parent=0
    _
  %s12 = ssub.s32 1, %s10
  %s13 = scalar_select 0, %s12, %s10
  $region1: #{tpu_custom_call.1} parent=0
    #allocation2 [shape = 'u8[1048576]{0}', space=vmem, size = 0x100000, scoped, tag = 'input window, operand 3, single buffered']
    #allocation3 [shape = 's32[2]{0}', space=sflag, size = 0x8, scoped, tag = 'scoped memory for tpu_custom_call.1']
    #allocation4 [shape = 's32[2]{0}', space=sflag, size = 0x8, scoped, tag = 'scoped memory for tpu_custom_call.1']
    #allocation5 [shape = 'u8[262144]{0}', space=vmem, size = 0x40000, scoped, tag = 'input window, operand 5, single buffered']
    #allocation6 [shape = 's32[1]{0}', space=sflag, size = 0x4, scoped, tag = 'scoped memory for tpu_custom_call.1']
    #allocation7 [shape = 'u8[65536]{0}', space=vmem, size = 0x10000, scoped, tag = 'output window, operand 0']
    %14 = vsyncpa [#allocation3], 0
    %15 = vsyncpa [#allocation6], 0
    %16 = vsyncpa [#allocation4], 0
    %s17 = scalar_lea.sflag [#allocation4], 1
    %18 = vsyncpa %s17, 0
    loop: start=0, step=1, limit=4
    $region2: #{tpu_custom_call.1} parent=1 // loop_pre_header
      _
    $region3: #{tpu_custom_call.1} parent=1 // loop_header
      %s20 = sphi 0, %s24
      %p21 = scmp.ge.s32.totalorder %s20, 4
      %s30 = sphi 0, %s32
      %s33 = sphi 0, %s30
      %s34 = sphi 0, %s33
      %s50 = sphi 0, %s34
      %s54 = sphi 0, %s54
      %s56 = sphi 0, %s54
      %s57 = sphi 0, %s56
      %s71 = sphi 0, %s57
      %s75 = sphi 0, %s75
      %s77 = sphi 0, %s75
      %s78 = sphi 0, %s77
      %s92 = sphi 0, %s78
      %s96 = sphi 0, %s96
      %s98 = sphi 0, %s96
      %s99 = sphi 0, %s98
      %s113 = sphi 0, %s99
      %s117 = sphi 0, %s117
      %s119 = sphi 0, %s117
      %s120 = sphi 0, %s119
      %s134 = sphi 0, %s120
      %s138 = sphi 0, %s138
      %s140 = sphi 0, %s138
      %s141 = sphi 0, %s140
      %s155 = sphi 0, %s141
      %s159 = sphi 0, %s159
      %s161 = sphi 0, %s159
      %s162 = sphi 0, %s161
      %s176 = sphi 0, %s162
      %s180 = sphi 0, %s180
      %s182 = sphi 0, %s180
      %s183 = sphi 0, %s182
      %s197 = sphi 0, %s183
      %s201 = sphi 0, %s201
      %s203 = sphi 0, %s201
      %s204 = sphi 0, %s203
      %s218 = sphi 0, %s204
      %s224 = sphi 0, %s226
      %s227 = sphi 0, %s224
      %s228 = sphi 0, %s227
      %s244 = sphi 0, %s228
    $region4: #{tpu_custom_call.1} parent=1 // loop_header_branch
      %23 = sbr.rel (%p21) target = $region8
    $region5: #{tpu_custom_call.1} parent=1 // loop_body
      %s25 = ssub.s32 %s20, 1
      %s26 = ssub.s32 %s20, 2
      %s27 = sadd.s32 %s20, 1
      %s28 = ssub.s32 %s20, %s27
      %p29 = scmp.eq.s32.totalorder %s28, 0
      %s31 = sadd.s32 %s30, 1
      %s32 = scalar_select %p29, %s30, %s31
      %p35 = pneg %p29
      %p36 = scmp.eq.s32.totalorder %s20, 1
      %p37 = por %p35, %p36
      %p38 = scmp.ne.s32.totalorder %s30, %s33
      %p39 = scmp.eq.s32.totalorder %s20, 0
      %p40 = por %p38, %p39
      %p41 = scmp.ne.s32.totalorder %s30, %s33
      %p42 = scmp.eq.s32.totalorder %s25, 1
      %p43 = por %p41, %p42
      %p44 = scmp.ne.s32.totalorder %s33, %s34
      %p45 = scmp.eq.s32.totalorder %s25, 0
      %p46 = por %p44, %p45
      %p47 = scmp.ne.s32.totalorder %s33, %s34
      %p48 = scmp.eq.s32.totalorder %s26, 1
      %p49 = por %p47, %p48
      %p51 = scmp.ne.s32.totalorder %s34, %s50
      %p52 = scmp.eq.s32.totalorder %s26, 0
      %p53 = por %p51, %p52
      %s55 = sadd.s32 %s54, 1
      %p58 = scmp.eq.s32.totalorder %s20, 1
      %p59 = scmp.ne.s32.totalorder %s54, %s56
      %p60 = scmp.eq.s32.totalorder %s20, 0
      %p61 = por %p59, %p60
      %p62 = scmp.ne.s32.totalorder %s54, %s56
      %p63 = scmp.eq.s32.totalorder %s25, 1
      %p64 = por %p62, %p63
      %p65 = scmp.ne.s32.totalorder %s56, %s57
      %p66 = scmp.eq.s32.totalorder %s25, 0
      %p67 = por %p65, %p66
      %p68 = scmp.ne.s32.totalorder %s56, %s57
      %p69 = scmp.eq.s32.totalorder %s26, 1
      %p70 = por %p68, %p69
      %p72 = scmp.ne.s32.totalorder %s57, %s71
      %p73 = scmp.eq.s32.totalorder %s26, 0
      %p74 = por %p72, %p73
      %s76 = sadd.s32 %s75, 1
      %p79 = scmp.eq.s32.totalorder %s20, 1
      %p80 = scmp.ne.s32.totalorder %s75, %s77
      %p81 = scmp.eq.s32.totalorder %s20, 0
      %p82 = por %p80, %p81
      %p83 = scmp.ne.s32.totalorder %s75, %s77
      %p84 = scmp.eq.s32.totalorder %s25, 1
      %p85 = por %p83, %p84
      %p86 = scmp.ne.s32.totalorder %s77, %s78
      %p87 = scmp.eq.s32.totalorder %s25, 0
      %p88 = por %p86, %p87
      %p89 = scmp.ne.s32.totalorder %s77, %s78
      %p90 = scmp.eq.s32.totalorder %s26, 1
      %p91 = por %p89, %p90
      %p93 = scmp.ne.s32.totalorder %s78, %s92
      %p94 = scmp.eq.s32.totalorder %s26, 0
      %p95 = por %p93, %p94
      %s97 = sadd.s32 %s96, 1
      %p100 = scmp.eq.s32.totalorder %s20, 1
      %p101 = scmp.ne.s32.totalorder %s96, %s98
      %p102 = scmp.eq.s32.totalorder %s20, 0
      %p103 = por %p101, %p102
      %p104 = scmp.ne.s32.totalorder %s96, %s98
      %p105 = scmp.eq.s32.totalorder %s25, 1
      %p106 = por %p104, %p105
      %p107 = scmp.ne.s32.totalorder %s98, %s99
      %p108 = scmp.eq.s32.totalorder %s25, 0
      %p109 = por %p107, %p108
      %p110 = scmp.ne.s32.totalorder %s98, %s99
      %p111 = scmp.eq.s32.totalorder %s26, 1
      %p112 = por %p110, %p111
      %p114 = scmp.ne.s32.totalorder %s99, %s113
      %p115 = scmp.eq.s32.totalorder %s26, 0
      %p116 = por %p114, %p115
      %s118 = sadd.s32 %s117, 1
      %p121 = scmp.eq.s32.totalorder %s20, 1
      %p122 = scmp.ne.s32.totalorder %s117, %s119
      %p123 = scmp.eq.s32.totalorder %s20, 0
      %p124 = por %p122, %p123
      %p125 = scmp.ne.s32.totalorder %s117, %s119
      %p126 = scmp.eq.s32.totalorder %s25, 1
      %p127 = por %p125, %p126
      %p128 = scmp.ne.s32.totalorder %s119, %s120
      %p129 = scmp.eq.s32.totalorder %s25, 0
      %p130 = por %p128, %p129
      %p131 = scmp.ne.s32.totalorder %s119, %s120
      %p132 = scmp.eq.s32.totalorder %s26, 1
      %p133 = por %p131, %p132
      %p135 = scmp.ne.s32.totalorder %s120, %s134
      %p136 = scmp.eq.s32.totalorder %s26, 0
      %p137 = por %p135, %p136
      %s139 = sadd.s32 %s138, 1
      %p142 = scmp.eq.s32.totalorder %s20, 1
      %p143 = scmp.ne.s32.totalorder %s138, %s140
      %p144 = scmp.eq.s32.totalorder %s20, 0
      %p145 = por %p143, %p144
      %p146 = scmp.ne.s32.totalorder %s138, %s140
      %p147 = scmp.eq.s32.totalorder %s25, 1
      %p148 = por %p146, %p147
      %p149 = scmp.ne.s32.totalorder %s140, %s141
      %p150 = scmp.eq.s32.totalorder %s25, 0
      %p151 = por %p149, %p150
      %p152 = scmp.ne.s32.totalorder %s140, %s141
      %p153 = scmp.eq.s32.totalorder %s26, 1
      %p154 = por %p152, %p153
      %p156 = scmp.ne.s32.totalorder %s141, %s155
      %p157 = scmp.eq.s32.totalorder %s26, 0
      %p158 = por %p156, %p157
      %s160 = sadd.s32 %s159, 1
      %p163 = scmp.eq.s32.totalorder %s20, 1
      %p164 = scmp.ne.s32.totalorder %s159, %s161
      %p165 = scmp.eq.s32.totalorder %s20, 0
      %p166 = por %p164, %p165
      %p167 = scmp.ne.s32.totalorder %s159, %s161
      %p168 = scmp.eq.s32.totalorder %s25, 1
      %p169 = por %p167, %p168
      %p170 = scmp.ne.s32.totalorder %s161, %s162
      %p171 = scmp.eq.s32.totalorder %s25, 0
      %p172 = por %p170, %p171
      %p173 = scmp.ne.s32.totalorder %s161, %s162
      %p174 = scmp.eq.s32.totalorder %s26, 1
      %p175 = por %p173, %p174
      %p177 = scmp.ne.s32.totalorder %s162, %s176
      %p178 = scmp.eq.s32.totalorder %s26, 0
      %p179 = por %p177, %p178
      %s181 = sadd.s32 %s180, 1
      %p184 = scmp.eq.s32.totalorder %s20, 1
      %p185 = scmp.ne.s32.totalorder %s180, %s182
      %p186 = scmp.eq.s32.totalorder %s20, 0
      %p187 = por %p185, %p186
      %p188 = scmp.ne.s32.totalorder %s180, %s182
      %p189 = scmp.eq.s32.totalorder %s25, 1
      %p190 = por %p188, %p189
      %p191 = scmp.ne.s32.totalorder %s182, %s183
      %p192 = scmp.eq.s32.totalorder %s25, 0
      %p193 = por %p191, %p192
      %p194 = scmp.ne.s32.totalorder %s182, %s183
      %p195 = scmp.eq.s32.totalorder %s26, 1
      %p196 = por %p194, %p195
      %p198 = scmp.ne.s32.totalorder %s183, %s197
      %p199 = scmp.eq.s32.totalorder %s26, 0
      %p200 = por %p198, %p199
      %s202 = sadd.s32 %s201, 1
      %p205 = scmp.eq.s32.totalorder %s20, 1
      %p206 = scmp.ne.s32.totalorder %s201, %s203
      %p207 = scmp.eq.s32.totalorder %s20, 0
      %p208 = por %p206, %p207
      %p209 = scmp.ne.s32.totalorder %s201, %s203
      %p210 = scmp.eq.s32.totalorder %s25, 1
      %p211 = por %p209, %p210
      %p212 = scmp.ne.s32.totalorder %s203, %s204
      %p213 = scmp.eq.s32.totalorder %s25, 0
      %p214 = por %p212, %p213
      %p215 = scmp.ne.s32.totalorder %s203, %s204
      %p216 = scmp.eq.s32.totalorder %s26, 1
      %p217 = por %p215, %p216
      %p219 = scmp.ne.s32.totalorder %s204, %s218
      %p220 = scmp.eq.s32.totalorder %s26, 0
      %p221 = por %p219, %p220
      %s222 = ssub.s32 %s20, %s27
      %p223 = scmp.eq.s32.totalorder %s222, 0
      %s225 = sadd.s32 %s224, 1
      %s226 = scalar_select %p223, %s224, %s225
      %p229 = pneg %p223
      %p230 = scmp.eq.s32.totalorder %s20, 1
      %p231 = por %p229, %p230
      %p232 = scmp.ne.s32.totalorder %s224, %s227
      %p233 = scmp.eq.s32.totalorder %s20, 0
      %p234 = por %p232, %p233
      %p235 = scmp.ne.s32.totalorder %s224, %s227
      %p236 = scmp.eq.s32.totalorder %s25, 1
      %p237 = por %p235, %p236
      %p238 = scmp.ne.s32.totalorder %s227, %s228
      %p239 = scmp.eq.s32.totalorder %s25, 0
      %p240 = por %p238, %p239
      %p241 = scmp.ne.s32.totalorder %s227, %s228
      %p242 = scmp.eq.s32.totalorder %s26, 1
      %p243 = por %p241, %p242
      %p245 = scmp.ne.s32.totalorder %s228, %s244
      %p246 = scmp.eq.s32.totalorder %s26, 0
      %p247 = por %p245, %p246
      %p248 = scmp.le.s32.totalorder 1, %s20
      %p249 = scmp.lt.s32.totalorder %s20, 3
      %p250 = pnand %p248, %p249
      %p251 = pneg %p250
      // Predicated region
      $region9: #{tpu_custom_call.1} parent=5 // pred_check
        _
      $region10: #{tpu_custom_call.1} parent=5 // pred_check_branch
        %253 = sbr.rel (%p250) target = $region12
      $region11: #{tpu_custom_call.1} parent=5 // pred_region
        %s254 = ssub.s32 %s20, 1
        // Predicated region
        $region13: #{tpu_custom_call.1} parent=11 // pred_check
          %p255 = pneg %p67
        $region14: #{tpu_custom_call.1} parent=11 // pred_check_branch
          %257 = sbr.rel (%p255) target = $region16
        $region15: #{tpu_custom_call.1} parent=11 // pred_region
          _
        $region16: #{tpu_custom_call.1} parent=11 // pred_fallthru
          _
        // Predicated region
        $region17: #{tpu_custom_call.1} parent=11 // pred_check
          %p258 = pneg %p88
        $region18: #{tpu_custom_call.1} parent=11 // pred_check_branch
          %260 = sbr.rel (%p258) target = $region20
        $region19: #{tpu_custom_call.1} parent=11 // pred_region
          _
        $region20: #{tpu_custom_call.1} parent=11 // pred_fallthru
          _
        // Predicated region
        $region21: #{tpu_custom_call.1} parent=11 // pred_check
          %p261 = pneg %p109
        $region22: #{tpu_custom_call.1} parent=11 // pred_check_branch
          %263 = sbr.rel (%p261) target = $region24
        $region23: #{tpu_custom_call.1} parent=11 // pred_region
          %265 = vsyncadd [#allocation3], 0
          %s266 = sshll.u32 %s3, 4
          %s267 = int_to_ptr.hbm [resolvable:$true] %s266
          %s268 = sshll.u32 [#allocation2], 4
          %s269 = int_to_ptr.vmem [resolvable:$true] %s268
          %274 = dma.hbm_to_vmem [thread:$0]  %s267, 32768, %s269, [#allocation3], 256, 256, 16
        $region24: #{tpu_custom_call.1} parent=11 // pred_fallthru
          _
        // Predicated region
        $region25: #{tpu_custom_call.1} parent=11 // pred_check
          %p275 = pneg %p130
        $region26: #{tpu_custom_call.1} parent=11 // pred_check_branch
          %277 = sbr.rel (%p275) target = $region28
        $region27: #{tpu_custom_call.1} parent=11 // pred_region
          _
        $region28: #{tpu_custom_call.1} parent=11 // pred_fallthru
          _
        // Predicated region
        $region29: #{tpu_custom_call.1} parent=11 // pred_check
          %p278 = pneg %p151
        $region30: #{tpu_custom_call.1} parent=11 // pred_check_branch
          %280 = sbr.rel (%p278) target = $region32
        $region31: #{tpu_custom_call.1} parent=11 // pred_region
          %282 = vsyncadd [#allocation6], 0
          %s283 = sshll.u32 %s5, 4
          %s284 = int_to_ptr.hbm [resolvable:$true] %s283
          %s285 = sshll.u32 [#allocation5], 4
          %s286 = int_to_ptr.vmem [resolvable:$true] %s285
          %291 = dma.hbm_to_vmem [thread:$0]  %s284, 8192, %s286, [#allocation6], 128, 128, 8
        $region32: #{tpu_custom_call.1} parent=11 // pred_fallthru
          _
        // Predicated region
        $region33: #{tpu_custom_call.1} parent=11 // pred_check
          %p292 = pneg %p172
        $region34: #{tpu_custom_call.1} parent=11 // pred_check_branch
          %294 = sbr.rel (%p292) target = $region36
        $region35: #{tpu_custom_call.1} parent=11 // pred_region
          _
        $region36: #{tpu_custom_call.1} parent=11 // pred_fallthru
          _
        // Predicated region
        $region37: #{tpu_custom_call.1} parent=11 // pred_check
          %p295 = pneg %p193
        $region38: #{tpu_custom_call.1} parent=11 // pred_check_branch
          %297 = sbr.rel (%p295) target = $region40
        $region39: #{tpu_custom_call.1} parent=11 // pred_region
          _
        $region40: #{tpu_custom_call.1} parent=11 // pred_fallthru
          _
        // Predicated region
        $region41: #{tpu_custom_call.1} parent=11 // pred_check
          %p298 = pneg %p214
        $region42: #{tpu_custom_call.1} parent=11 // pred_check_branch
          %300 = sbr.rel (%p298) target = $region44
        $region43: #{tpu_custom_call.1} parent=11 // pred_region
          _
        $region44: #{tpu_custom_call.1} parent=11 // pred_fallthru
          _
      $region12: #{tpu_custom_call.1} parent=5 // pred_fallthru
        _
      %p301 = scmp.lt.s32.totalorder %s20, 2
      // Predicated region
      $region45: #{tpu_custom_call.1} parent=5 // pred_check
        %p302 = pneg %p301
      $region46: #{tpu_custom_call.1} parent=5 // pred_check_branch
        %304 = sbr.rel (%p302) target = $region48
      $region47: #{tpu_custom_call.1} parent=5 // pred_region
        // Predicated region
        $region49: #{tpu_custom_call.1} parent=47 // pred_check
          %p305 = pneg %p40
        $region50: #{tpu_custom_call.1} parent=47 // pred_check_branch
          %307 = sbr.rel (%p305) target = $region52
        $region51: #{tpu_custom_call.1} parent=47 // pred_region
          %s308 = smul.u32 16, %s20
          %p309 = scmp.lt.s32.totalorder %s308, 31
          %s310 = scalar_select %p309, %s308, 31
          %s311 = smul.addr %s310, 7
          %s312 = smul.addr %s311, 8
          %s313 = scalar_lea.vmem %s0, %s312
          %s314 = smul.u32 16, %s20
        $region52: #{tpu_custom_call.1} parent=47 // pred_fallthru
          _
      $region48: #{tpu_custom_call.1} parent=5 // pred_fallthru
        _
      %p315 = scmp.le.s32.totalorder 1, %s20
      %p316 = scmp.lt.s32.totalorder %s20, 3
      %p317 = pnand %p315, %p316
      %p318 = pneg %p317
      // Predicated region
      $region53: #{tpu_custom_call.1} parent=5 // pred_check
        _
      $region54: #{tpu_custom_call.1} parent=5 // pred_check_branch
        %320 = sbr.rel (%p317) target = $region56
      $region55: #{tpu_custom_call.1} parent=5 // pred_region
        %s321 = ssub.s32 %s20, 1
        // Predicated region
        $region57: #{tpu_custom_call.1} parent=55 // pred_check
          %p322 = pneg %p109
        $region58: #{tpu_custom_call.1} parent=55 // pred_check_branch
          %324 = sbr.rel (%p322) target = $region60
        $region59: #{tpu_custom_call.1} parent=55 // pred_region
          %326 = dma.done [#allocation3], 32768
        $region60: #{tpu_custom_call.1} parent=55 // pred_fallthru
          _
        // Predicated region
        $region61: #{tpu_custom_call.1} parent=55 // pred_check
          %p327 = pneg %p151
        $region62: #{tpu_custom_call.1} parent=55 // pred_check_branch
          %329 = sbr.rel (%p327) target = $region64
        $region63: #{tpu_custom_call.1} parent=55 // pred_region
          %331 = dma.done [#allocation6], 8192
        $region64: #{tpu_custom_call.1} parent=55 // pred_fallthru
          _
        %s332 = smul.u32 16, %s25
        %p333 = scmp.lt.s32.totalorder %s332, 31
        %s334 = scalar_select %p333, %s332, 31
        %s335 = smul.addr %s334, 7
        %s336 = smul.addr %s335, 8
        %s337 = scalar_lea.vmem %s0, %s336
        %p338 = pneg %p46
        %p339 = pneg %p43
        %p340 = pneg %p67
        %p341 = pneg %p64
        %p342 = pneg %p88
        %p343 = pneg %p85
        %p344 = pneg %p109
        %p345 = pneg %p106
        %p346 = pneg %p130
        %p347 = pneg %p127
        %p348 = pneg %p151
        %p349 = pneg %p148
        %p350 = pneg %p172
        %p351 = pneg %p169
        %p352 = pneg %p193
        %p353 = pneg %p190
        %p354 = pneg %p214
        %p355 = pneg %p211
        %p356 = pneg %p240
        %p357 = pneg %p237
        %s358 = sand.u32 %s227, 1
        %s359 = scalar_lea.sflag [#allocation4], %s358
        %s360 = sand.u32 %s227, 1
        %s361 = smul.addr %s360, 64
        %s362 = scalar_lea.vmem [#allocation7], %s361
        %s363 = smul.u32 16, %s25
        %p364 = scmp.lt.s32.totalorder %s363, 31
        %s365 = scalar_select %p364, %s363, 31
        %s366 = smul.addr %s365, 7
        %s367 = smul.addr %s366, 8
        %s368 = scalar_lea.vmem %s0, %s367
        %s369 = smul.u32 16, %s25
        %s370 = smul.u32 16, %s25
        %v372 = vld [vmem:[%s368] sm:$0xff]
        %v373 = vld [vmem:[%s368 + $0x8] sm:$0xff]
        %v374 = vld [vmem:[%s368 + $0x10] sm:$0xff]
        %v375 = vld [vmem:[%s368 + $0x18] sm:$0xff]
        %v376 = vld [vmem:[%s368 + $0x20] sm:$0xff]
        %v377 = vld [vmem:[%s368 + $0x28] sm:$0xff]
        %v378 = vld [vmem:[%s368 + $0x30] sm:$0xff]
        %v379 = vld [vmem:[%s368 + $0x38] sm:$0xff]
        %v380 = vld [vmem:[%s368 + $0x40] sm:$0xff]
        %v381 = vld [vmem:[%s368 + $0x48] sm:$0xff]
        %v382 = vld [vmem:[%s368 + $0x50] sm:$0xff]
        %v383 = vld [vmem:[%s368 + $0x58] sm:$0xff]
        %v384 = vld [vmem:[%s368 + $0x60] sm:$0xff]
        %v385 = vld [vmem:[%s368 + $0x68] sm:$0xff]
        %v386 = vld [vmem:[%s368 + $0x70] sm:$0xff]
        %v387 = vld [vmem:[%s368 + $0x78] sm:$0xff]
        %v388 = vld [vmem:[%s368 + $0x80] sm:$0xff]
        %v389 = vld [vmem:[%s368 + $0x88] sm:$0xff]
        %v390 = vld [vmem:[%s368 + $0x90] sm:$0xff]
        %v391 = vld [vmem:[%s368 + $0x98] sm:$0xff]
        %v392 = vld [vmem:[%s368 + $0xa0] sm:$0xff]
        %v393 = vld [vmem:[%s368 + $0xa8] sm:$0xff]
        %v394 = vld [vmem:[%s368 + $0xb0] sm:$0xff]
        %v395 = vld [vmem:[%s368 + $0xb8] sm:$0xff]
        %v396 = vld [vmem:[%s368 + $0xc0] sm:$0xff]
        %v397 = vld [vmem:[%s368 + $0xc8] sm:$0xff]
        %v398 = vld [vmem:[%s368 + $0xd0] sm:$0xff]
        %v399 = vld [vmem:[%s368 + $0xd8] sm:$0xff]
        %v400 = vld [vmem:[%s368 + $0xe0] sm:$0xff]
        %v401 = vld [vmem:[%s368 + $0xe8] sm:$0xff]
        %v402 = vld [vmem:[%s368 + $0xf0] sm:$0xff]
        %v403 = vld [vmem:[%s368 + $0xf8] sm:$0xff]
        %v404 = vld [vmem:[%s368 + $0x100] sm:$0xff]
        %v405 = vld [vmem:[%s368 + $0x108] sm:$0xff]
        %v406 = vld [vmem:[%s368 + $0x110] sm:$0xff]
        %v407 = vld [vmem:[%s368 + $0x118] sm:$0xff]
        %v408 = vld [vmem:[%s368 + $0x120] sm:$0xff]
        %v409 = vld [vmem:[%s368 + $0x128] sm:$0xff]
        %v410 = vld [vmem:[%s368 + $0x130] sm:$0xff]
        %v411 = vld [vmem:[%s368 + $0x138] sm:$0xff]
        %v412 = vld [vmem:[%s368 + $0x140] sm:$0xff]
        %v413 = vld [vmem:[%s368 + $0x148] sm:$0xff]
        %v414 = vld [vmem:[%s368 + $0x150] sm:$0xff]
        %v415 = vld [vmem:[%s368 + $0x158] sm:$0xff]
        %v416 = vld [vmem:[%s368 + $0x160] sm:$0xff]
        %v417 = vld [vmem:[%s368 + $0x168] sm:$0xff]
        %v418 = vld [vmem:[%s368 + $0x170] sm:$0xff]
        %v419 = vld [vmem:[%s368 + $0x178] sm:$0xff]
        %v420 = vld [vmem:[%s368 + $0x180] sm:$0xff]
        %v421 = vld [vmem:[%s368 + $0x188] sm:$0xff]
        %v422 = vld [vmem:[%s368 + $0x190] sm:$0xff]
        %v423 = vld [vmem:[%s368 + $0x198] sm:$0xff]
        %v424 = vld [vmem:[%s368 + $0x1a0] sm:$0xff]
        %v425 = vld [vmem:[%s368 + $0x1a8] sm:$0xff]
        %v426 = vld [vmem:[%s368 + $0x1b0] sm:$0xff]
        %v427 = vld [vmem:[%s368 + $0x1b8] sm:$0xff]
        %v428 = vld [vmem:[%s368 + $0x1c0] sm:$0xff]
        %v429 = vld [vmem:[%s368 + $0x1c8] sm:$0xff]
        %v430 = vld [vmem:[%s368 + $0x1d0] sm:$0xff]
        %v431 = vld [vmem:[%s368 + $0x1d8] sm:$0xff]
        %v432 = vld [vmem:[%s368 + $0x1e0] sm:$0xff]
        %v433 = vld [vmem:[%s368 + $0x1e8] sm:$0xff]
        %v434 = vld [vmem:[%s368 + $0x1f0] sm:$0xff]
        %v435 = vld [vmem:[%s368 + $0x1f8] sm:$0xff]
        %v436 = vld [vmem:[%s368 + $0x200] sm:$0xff]
        %v437 = vld [vmem:[%s368 + $0x208] sm:$0xff]
        %v438 = vld [vmem:[%s368 + $0x210] sm:$0xff]
        %v439 = vld [vmem:[%s368 + $0x218] sm:$0xff]
        %v440 = vld [vmem:[%s368 + $0x220] sm:$0xff]
        %v441 = vld [vmem:[%s368 + $0x228] sm:$0xff]
        %v442 = vld [vmem:[%s368 + $0x230] sm:$0xff]
        %v443 = vld [vmem:[%s368 + $0x238] sm:$0xff]
        %v444 = vld [vmem:[%s368 + $0x240] sm:$0xff]
        %v445 = vld [vmem:[%s368 + $0x248] sm:$0xff]
        %v446 = vld [vmem:[%s368 + $0x250] sm:$0xff]
        %v447 = vld [vmem:[%s368 + $0x258] sm:$0xff]
        %v448 = vld [vmem:[%s368 + $0x260] sm:$0xff]
        %v449 = vld [vmem:[%s368 + $0x268] sm:$0xff]
        %v450 = vld [vmem:[%s368 + $0x270] sm:$0xff]
        %v451 = vld [vmem:[%s368 + $0x278] sm:$0xff]
        %v452 = vld [vmem:[%s368 + $0x280] sm:$0xff]
        %v453 = vld [vmem:[%s368 + $0x288] sm:$0xff]
        %v454 = vld [vmem:[%s368 + $0x290] sm:$0xff]
        %v455 = vld [vmem:[%s368 + $0x298] sm:$0xff]
        %v456 = vld [vmem:[%s368 + $0x2a0] sm:$0xff]
        %v457 = vld [vmem:[%s368 + $0x2a8] sm:$0xff]
        %v458 = vld [vmem:[%s368 + $0x2b0] sm:$0xff]
        %v459 = vld [vmem:[%s368 + $0x2b8] sm:$0xff]
        %v460 = vld [vmem:[%s368 + $0x2c0] sm:$0xff]
        %v461 = vld [vmem:[%s368 + $0x2c8] sm:$0xff]
        %v462 = vld [vmem:[%s368 + $0x2d0] sm:$0xff]
        %v463 = vld [vmem:[%s368 + $0x2d8] sm:$0xff]
        %v464 = vld [vmem:[%s368 + $0x2e0] sm:$0xff]
        %v465 = vld [vmem:[%s368 + $0x2e8] sm:$0xff]
        %v466 = vld [vmem:[%s368 + $0x2f0] sm:$0xff]
        %v467 = vld [vmem:[%s368 + $0x2f8] sm:$0xff]
        %v468 = vld [vmem:[%s368 + $0x300] sm:$0xff]
        %v469 = vld [vmem:[%s368 + $0x308] sm:$0xff]
        %v470 = vld [vmem:[%s368 + $0x310] sm:$0xff]
        %v471 = vld [vmem:[%s368 + $0x318] sm:$0xff]
        %v472 = vld [vmem:[%s368 + $0x320] sm:$0xff]
        %v473 = vld [vmem:[%s368 + $0x328] sm:$0xff]
        %v474 = vld [vmem:[%s368 + $0x330] sm:$0xff]
        %v475 = vld [vmem:[%s368 + $0x338] sm:$0xff]
        %v476 = vld [vmem:[%s368 + $0x340] sm:$0xff]
        %v477 = vld [vmem:[%s368 + $0x348] sm:$0xff]
        %v478 = vld [vmem:[%s368 + $0x350] sm:$0xff]
        %v479 = vld [vmem:[%s368 + $0x358] sm:$0xff]
        %v480 = vld [vmem:[%s368 + $0x360] sm:$0xff]
        %v481 = vld [vmem:[%s368 + $0x368] sm:$0xff]
        %v482 = vld [vmem:[%s368 + $0x370] sm:$0xff]
        %v483 = vld [vmem:[%s368 + $0x378] sm:$0xff]
        %v484 = vpack.c.bf16 %v379, %v372
        %v485 = vpack.c.bf16 %v380, %v373
        %v486 = vpack.c.bf16 %v381, %v374
        %v487 = vpack.c.bf16 %v382, %v375
        %v488 = vpack.c.bf16 %v383, %v376
        %v489 = vpack.c.bf16 %v384, %v377
        %v490 = vpack.c.bf16 %v385, %v378
        %v491 = vpack.c.bf16 %v393, %v386
        %v492 = vpack.c.bf16 %v394, %v387
        %v493 = vpack.c.bf16 %v395, %v388
        %v494 = vpack.c.bf16 %v396, %v389
        %v495 = vpack.c.bf16 %v397, %v390
        %v496 = vpack.c.bf16 %v398, %v391
        %v497 = vpack.c.bf16 %v399, %v392
        %v498 = vpack.c.bf16 %v407, %v400
        %v499 = vpack.c.bf16 %v408, %v401
        %v500 = vpack.c.bf16 %v409, %v402
        %v501 = vpack.c.bf16 %v410, %v403
        %v502 = vpack.c.bf16 %v411, %v404
        %v503 = vpack.c.bf16 %v412, %v405
        %v504 = vpack.c.bf16 %v413, %v406
        %v505 = vpack.c.bf16 %v421, %v414
        %v506 = vpack.c.bf16 %v422, %v415
        %v507 = vpack.c.bf16 %v423, %v416
        %v508 = vpack.c.bf16 %v424, %v417
        %v509 = vpack.c.bf16 %v425, %v418
        %v510 = vpack.c.bf16 %v426, %v419
        %v511 = vpack.c.bf16 %v427, %v420
        %v512 = vpack.c.bf16 %v435, %v428
        %v513 = vpack.c.bf16 %v436, %v429
        %v514 = vpack.c.bf16 %v437, %v430
        %v515 = vpack.c.bf16 %v438, %v431
        %v516 = vpack.c.bf16 %v439, %v432
        %v517 = vpack.c.bf16 %v440, %v433
        %v518 = vpack.c.bf16 %v441, %v434
        %v519 = vpack.c.bf16 %v449, %v442
        %v520 = vpack.c.bf16 %v450, %v443
        %v521 = vpack.c.bf16 %v451, %v444
        %v522 = vpack.c.bf16 %v452, %v445
        %v523 = vpack.c.bf16 %v453, %v446
        %v524 = vpack.c.bf16 %v454, %v447
        %v525 = vpack.c.bf16 %v455, %v448
        %v526 = vpack.c.bf16 %v463, %v456
        %v527 = vpack.c.bf16 %v464, %v457
        %v528 = vpack.c.bf16 %v465, %v458
        %v529 = vpack.c.bf16 %v466, %v459
        %v530 = vpack.c.bf16 %v467, %v460
        %v531 = vpack.c.bf16 %v468, %v461
        %v532 = vpack.c.bf16 %v469, %v462
        %v533 = vpack.c.bf16 %v477, %v470
        %v534 = vpack.c.bf16 %v478, %v471
        %v535 = vpack.c.bf16 %v479, %v472
        %v536 = vpack.c.bf16 %v480, %v473
        %v537 = vpack.c.bf16 %v481, %v474
        %v538 = vpack.c.bf16 %v482, %v475
        %v539 = vpack.c.bf16 %v483, %v476
        %v540 = vld [vmem:[%s1] sm:$0xff]
        %v541 = vld [vmem:[%s1 + $0x8] sm:$0xff]
        %v542 = vld [vmem:[%s1 + $0x10] sm:$0xff]
        %v543 = vld [vmem:[%s1 + $0x18] sm:$0xff]
        %v544 = vld [vmem:[%s1 + $0x20] sm:$0xff]
        %v545 = vld [vmem:[%s1 + $0x28] sm:$0xff]
        %v546 = vld [vmem:[%s1 + $0x30] sm:$0xff]
        %v547 = vld [vmem:[%s1 + $0x38] sm:$0xff]
        %v548 = vld [vmem:[%s1 + $0x40] sm:$0xff]
        %v549 = vld [vmem:[%s1 + $0x48] sm:$0xff]
        %v550 = vld [vmem:[%s1 + $0x50] sm:$0xff]
        %v551 = vld [vmem:[%s1 + $0x58] sm:$0xff]
        %v552 = vld [vmem:[%s1 + $0x60] sm:$0xff]
        %v553 = vld [vmem:[%s1 + $0x68] sm:$0xff]
        %v554 = vld [vmem:[%s1 + $0x70] sm:$0xff]
        %v555 = vld [vmem:[%s1 + $0x78] sm:$0xff]
        %v556 = vld [vmem:[%s1 + $0x80] sm:$0xff]
        %v557 = vld [vmem:[%s1 + $0x88] sm:$0xff]
        %v558 = vld [vmem:[%s1 + $0x90] sm:$0xff]
        %v559 = vld [vmem:[%s1 + $0x98] sm:$0xff]
        %v560 = vld [vmem:[%s1 + $0xa0] sm:$0xff]
        %v561 = vld [vmem:[%s1 + $0xa8] sm:$0xff]
        %v562 = vld [vmem:[%s1 + $0xb0] sm:$0xff]
        %v563 = vld [vmem:[%s1 + $0xb8] sm:$0xff]
        %v564 = vld [vmem:[%s1 + $0xc0] sm:$0xff]
        %v565 = vld [vmem:[%s1 + $0xc8] sm:$0xff]
        %v566 = vld [vmem:[%s1 + $0xd0] sm:$0xff]
        %v567 = vld [vmem:[%s1 + $0xd8] sm:$0xff]
        %v568 = vld [vmem:[%s1 + $0xe0] sm:$0xff]
        %v569 = vld [vmem:[%s1 + $0xe8] sm:$0xff]
        %v570 = vld [vmem:[%s1 + $0xf0] sm:$0xff]
        %v571 = vld [vmem:[%s1 + $0xf8] sm:$0xff]
        %v572 = vld [vmem:[%s1 + $0x100] sm:$0xff]
        %v573 = vld [vmem:[%s1 + $0x108] sm:$0xff]
        %v574 = vld [vmem:[%s1 + $0x110] sm:$0xff]
        %v575 = vld [vmem:[%s1 + $0x118] sm:$0xff]
        %v576 = vld [vmem:[%s1 + $0x120] sm:$0xff]
        %v577 = vld [vmem:[%s1 + $0x128] sm:$0xff]
        %v578 = vld [vmem:[%s1 + $0x130] sm:$0xff]
        %v579 = vld [vmem:[%s1 + $0x138] sm:$0xff]
        %v580 = vld [vmem:[%s1 + $0x140] sm:$0xff]
        %v581 = vld [vmem:[%s1 + $0x148] sm:$0xff]
        %v582 = vld [vmem:[%s1 + $0x150] sm:$0xff]
        %v583 = vld [vmem:[%s1 + $0x158] sm:$0xff]
        %v584 = vld [vmem:[%s1 + $0x160] sm:$0xff]
        %v585 = vld [vmem:[%s1 + $0x168] sm:$0xff]
        %v586 = vld [vmem:[%s1 + $0x170] sm:$0xff]
        %v587 = vld [vmem:[%s1 + $0x178] sm:$0xff]
        %v588 = vld [vmem:[%s1 + $0x180] sm:$0xff]
        %v589 = vld [vmem:[%s1 + $0x188] sm:$0xff]
        %v590 = vld [vmem:[%s1 + $0x190] sm:$0xff]
        %v591 = vld [vmem:[%s1 + $0x198] sm:$0xff]
        %v592 = vld [vmem:[%s1 + $0x1a0] sm:$0xff]
        %v593 = vld [vmem:[%s1 + $0x1a8] sm:$0xff]
        %v594 = vld [vmem:[%s1 + $0x1b0] sm:$0xff]
        %v595 = vld [vmem:[%s1 + $0x1b8] sm:$0xff]
        %v596 = vld [vmem:[%s1 + $0x1c0] sm:$0xff]
        %v597 = vld [vmem:[%s1 + $0x1c8] sm:$0xff]
        %v598 = vld [vmem:[%s1 + $0x1d0] sm:$0xff]
        %v599 = vld [vmem:[%s1 + $0x1d8] sm:$0xff]
        %v600 = vld [vmem:[%s1 + $0x1e0] sm:$0xff]
        %v601 = vld [vmem:[%s1 + $0x1e8] sm:$0xff]
        %v602 = vld [vmem:[%s1 + $0x1f0] sm:$0xff]
        %v603 = vld [vmem:[%s1 + $0x1f8] sm:$0xff]
        %v604 = vld [vmem:[%s1 + $0x200] sm:$0xff]
        %v605 = vld [vmem:[%s1 + $0x208] sm:$0xff]
        %v606 = vld [vmem:[%s1 + $0x210] sm:$0xff]
        %v607 = vld [vmem:[%s1 + $0x218] sm:$0xff]
        %v608 = vld [vmem:[%s1 + $0x220] sm:$0xff]
        %v609 = vld [vmem:[%s1 + $0x228] sm:$0xff]
        %v610 = vld [vmem:[%s1 + $0x230] sm:$0xff]
        %v611 = vld [vmem:[%s1 + $0x238] sm:$0xff]
        %v612 = vld [vmem:[%s1 + $0x240] sm:$0xff]
        %v613 = vld [vmem:[%s1 + $0x248] sm:$0xff]
        %v614 = vld [vmem:[%s1 + $0x250] sm:$0xff]
        %v615 = vld [vmem:[%s1 + $0x258] sm:$0xff]
        %v616 = vld [vmem:[%s1 + $0x260] sm:$0xff]
        %v617 = vld [vmem:[%s1 + $0x268] sm:$0xff]
        %v618 = vld [vmem:[%s1 + $0x270] sm:$0xff]
        %v619 = vld [vmem:[%s1 + $0x278] sm:$0xff]
        %v620 = vld [vmem:[%s1 + $0x280] sm:$0xff]
        %v621 = vld [vmem:[%s1 + $0x288] sm:$0xff]
        %v622 = vld [vmem:[%s1 + $0x290] sm:$0xff]
        %v623 = vld [vmem:[%s1 + $0x298] sm:$0xff]
        %v624 = vld [vmem:[%s1 + $0x2a0] sm:$0xff]
        %v625 = vld [vmem:[%s1 + $0x2a8] sm:$0xff]
        %v626 = vld [vmem:[%s1 + $0x2b0] sm:$0xff]
        %v627 = vld [vmem:[%s1 + $0x2b8] sm:$0xff]
        %v628 = vld [vmem:[%s1 + $0x2c0] sm:$0xff]
        %v629 = vld [vmem:[%s1 + $0x2c8] sm:$0xff]
        %v630 = vld [vmem:[%s1 + $0x2d0] sm:$0xff]
        %v631 = vld [vmem:[%s1 + $0x2d8] sm:$0xff]
        %v632 = vld [vmem:[%s1 + $0x2e0] sm:$0xff]
        %v633 = vld [vmem:[%s1 + $0x2e8] sm:$0xff]
        %v634 = vld [vmem:[%s1 + $0x2f0] sm:$0xff]
        %v635 = vld [vmem:[%s1 + $0x2f8] sm:$0xff]
        %v636 = vld [vmem:[%s1 + $0x300] sm:$0xff]
        %v637 = vld [vmem:[%s1 + $0x308] sm:$0xff]
        %v638 = vld [vmem:[%s1 + $0x310] sm:$0xff]
        %v639 = vld [vmem:[%s1 + $0x318] sm:$0xff]
        %v640 = vld [vmem:[%s1 + $0x320] sm:$0xff]
        %v641 = vld [vmem:[%s1 + $0x328] sm:$0xff]
        %v642 = vld [vmem:[%s1 + $0x330] sm:$0xff]
        %v643 = vld [vmem:[%s1 + $0x338] sm:$0xff]
        %v644 = vld [vmem:[%s1 + $0x340] sm:$0xff]
        %v645 = vld [vmem:[%s1 + $0x348] sm:$0xff]
        %v646 = vld [vmem:[%s1 + $0x350] sm:$0xff]
        %v647 = vld [vmem:[%s1 + $0x358] sm:$0xff]
        %v648 = vld [vmem:[%s1 + $0x360] sm:$0xff]
        %v649 = vld [vmem:[%s1 + $0x368] sm:$0xff]
        %v650 = vld [vmem:[%s1 + $0x370] sm:$0xff]
        %v651 = vld [vmem:[%s1 + $0x378] sm:$0xff]
        %v652 = vld [vmem:[%s1 + $0x380] sm:$0xff]
        %v653 = vld [vmem:[%s1 + $0x388] sm:$0xff]
        %v654 = vld [vmem:[%s1 + $0x390] sm:$0xff]
        %v655 = vld [vmem:[%s1 + $0x398] sm:$0xff]
        %v656 = vld [vmem:[%s1 + $0x3a0] sm:$0xff]
        %v657 = vld [vmem:[%s1 + $0x3a8] sm:$0xff]
        %v658 = vld [vmem:[%s1 + $0x3b0] sm:$0xff]
        %v659 = vld [vmem:[%s1 + $0x3b8] sm:$0xff]
        %v660 = vld [vmem:[%s1 + $0x3c0] sm:$0xff]
        %v661 = vld [vmem:[%s1 + $0x3c8] sm:$0xff]
        %v662 = vld [vmem:[%s1 + $0x3d0] sm:$0xff]
        %v663 = vld [vmem:[%s1 + $0x3d8] sm:$0xff]
        %v664 = vld [vmem:[%s1 + $0x3e0] sm:$0xff]
        %v665 = vld [vmem:[%s1 + $0x3e8] sm:$0xff]
        %v666 = vld [vmem:[%s1 + $0x3f0] sm:$0xff]
        %v667 = vld [vmem:[%s1 + $0x3f8] sm:$0xff]
        %v668 = vld [vmem:[%s1 + $0x400] sm:$0xff]
        %v669 = vld [vmem:[%s1 + $0x408] sm:$0xff]
        %v670 = vld [vmem:[%s1 + $0x410] sm:$0xff]
        %v671 = vld [vmem:[%s1 + $0x418] sm:$0xff]
        %v672 = vld [vmem:[%s1 + $0x420] sm:$0xff]
        %v673 = vld [vmem:[%s1 + $0x428] sm:$0xff]
        %v674 = vld [vmem:[%s1 + $0x430] sm:$0xff]
        %v675 = vld [vmem:[%s1 + $0x438] sm:$0xff]
        %v676 = vld [vmem:[%s1 + $0x440] sm:$0xff]
        %v677 = vld [vmem:[%s1 + $0x448] sm:$0xff]
        %v678 = vld [vmem:[%s1 + $0x450] sm:$0xff]
        %v679 = vld [vmem:[%s1 + $0x458] sm:$0xff]
        %v680 = vld [vmem:[%s1 + $0x460] sm:$0xff]
        %v681 = vld [vmem:[%s1 + $0x468] sm:$0xff]
        %v682 = vld [vmem:[%s1 + $0x470] sm:$0xff]
        %v683 = vld [vmem:[%s1 + $0x478] sm:$0xff]
        %v684 = vld [vmem:[%s1 + $0x480] sm:$0xff]
        %v685 = vld [vmem:[%s1 + $0x488] sm:$0xff]
        %v686 = vld [vmem:[%s1 + $0x490] sm:$0xff]
        %v687 = vld [vmem:[%s1 + $0x498] sm:$0xff]
        %v688 = vld [vmem:[%s1 + $0x4a0] sm:$0xff]
        %v689 = vld [vmem:[%s1 + $0x4a8] sm:$0xff]
        %v690 = vld [vmem:[%s1 + $0x4b0] sm:$0xff]
        %v691 = vld [vmem:[%s1 + $0x4b8] sm:$0xff]
        %v692 = vld [vmem:[%s1 + $0x4c0] sm:$0xff]
        %v693 = vld [vmem:[%s1 + $0x4c8] sm:$0xff]
        %v694 = vld [vmem:[%s1 + $0x4d0] sm:$0xff]
        %v695 = vld [vmem:[%s1 + $0x4d8] sm:$0xff]
        %v696 = vld [vmem:[%s1 + $0x4e0] sm:$0xff]
        %v697 = vld [vmem:[%s1 + $0x4e8] sm:$0xff]
        %v698 = vld [vmem:[%s1 + $0x4f0] sm:$0xff]
        %v699 = vld [vmem:[%s1 + $0x4f8] sm:$0xff]
        %v700 = vld [vmem:[%s1 + $0x500] sm:$0xff]
        %v701 = vld [vmem:[%s1 + $0x508] sm:$0xff]
        %v702 = vld [vmem:[%s1 + $0x510] sm:$0xff]
        %v703 = vld [vmem:[%s1 + $0x518] sm:$0xff]
        %v704 = vld [vmem:[%s1 + $0x520] sm:$0xff]
        %v705 = vld [vmem:[%s1 + $0x528] sm:$0xff]
        %v706 = vld [vmem:[%s1 + $0x530] sm:$0xff]
        %v707 = vld [vmem:[%s1 + $0x538] sm:$0xff]
        %v708 = vld [vmem:[%s1 + $0x540] sm:$0xff]
        %v709 = vld [vmem:[%s1 + $0x548] sm:$0xff]
        %v710 = vld [vmem:[%s1 + $0x550] sm:$0xff]
        %v711 = vld [vmem:[%s1 + $0x558] sm:$0xff]
        %v712 = vld [vmem:[%s1 + $0x560] sm:$0xff]
        %v713 = vld [vmem:[%s1 + $0x568] sm:$0xff]
        %v714 = vld [vmem:[%s1 + $0x570] sm:$0xff]
        %v715 = vld [vmem:[%s1 + $0x578] sm:$0xff]
        %v716 = vld [vmem:[%s1 + $0x580] sm:$0xff]
        %v717 = vld [vmem:[%s1 + $0x588] sm:$0xff]
        %v718 = vld [vmem:[%s1 + $0x590] sm:$0xff]
        %v719 = vld [vmem:[%s1 + $0x598] sm:$0xff]
        %v720 = vld [vmem:[%s1 + $0x5a0] sm:$0xff]
        %v721 = vld [vmem:[%s1 + $0x5a8] sm:$0xff]
        %v722 = vld [vmem:[%s1 + $0x5b0] sm:$0xff]
        %v723 = vld [vmem:[%s1 + $0x5b8] sm:$0xff]
        %v724 = vld [vmem:[%s1 + $0x5c0] sm:$0xff]
        %v725 = vld [vmem:[%s1 + $0x5c8] sm:$0xff]
        %v726 = vld [vmem:[%s1 + $0x5d0] sm:$0xff]
        %v727 = vld [vmem:[%s1 + $0x5d8] sm:$0xff]
        %v728 = vld [vmem:[%s1 + $0x5e0] sm:$0xff]
        %v729 = vld [vmem:[%s1 + $0x5e8] sm:$0xff]
        %v730 = vld [vmem:[%s1 + $0x5f0] sm:$0xff]
        %v731 = vld [vmem:[%s1 + $0x5f8] sm:$0xff]
        %v732 = vld [vmem:[%s1 + $0x600] sm:$0xff]
        %v733 = vld [vmem:[%s1 + $0x608] sm:$0xff]
        %v734 = vld [vmem:[%s1 + $0x610] sm:$0xff]
        %v735 = vld [vmem:[%s1 + $0x618] sm:$0xff]
        %v736 = vld [vmem:[%s1 + $0x620] sm:$0xff]
        %v737 = vld [vmem:[%s1 + $0x628] sm:$0xff]
        %v738 = vld [vmem:[%s1 + $0x630] sm:$0xff]
        %v739 = vld [vmem:[%s1 + $0x638] sm:$0xff]
        %v740 = vld [vmem:[%s1 + $0x640] sm:$0xff]
        %v741 = vld [vmem:[%s1 + $0x648] sm:$0xff]
        %v742 = vld [vmem:[%s1 + $0x650] sm:$0xff]
        %v743 = vld [vmem:[%s1 + $0x658] sm:$0xff]
        %v744 = vld [vmem:[%s1 + $0x660] sm:$0xff]
        %v745 = vld [vmem:[%s1 + $0x668] sm:$0xff]
        %v746 = vld [vmem:[%s1 + $0x670] sm:$0xff]
        %v747 = vld [vmem:[%s1 + $0x678] sm:$0xff]
        %v748 = vld [vmem:[%s1 + $0x680] sm:$0xff]
        %v749 = vld [vmem:[%s1 + $0x688] sm:$0xff]
        %v750 = vld [vmem:[%s1 + $0x690] sm:$0xff]
        %v751 = vld [vmem:[%s1 + $0x698] sm:$0xff]
        %v752 = vld [vmem:[%s1 + $0x6a0] sm:$0xff]
        %v753 = vld [vmem:[%s1 + $0x6a8] sm:$0xff]
        %v754 = vld [vmem:[%s1 + $0x6b0] sm:$0xff]
        %v755 = vld [vmem:[%s1 + $0x6b8] sm:$0xff]
        %v756 = vld [vmem:[%s1 + $0x6c0] sm:$0xff]
        %v757 = vld [vmem:[%s1 + $0x6c8] sm:$0xff]
        %v758 = vld [vmem:[%s1 + $0x6d0] sm:$0xff]
        %v759 = vld [vmem:[%s1 + $0x6d8] sm:$0xff]
        %v760 = vld [vmem:[%s1 + $0x6e0] sm:$0xff]
        %v761 = vld [vmem:[%s1 + $0x6e8] sm:$0xff]
        %v762 = vld [vmem:[%s1 + $0x6f0] sm:$0xff]
        %v763 = vld [vmem:[%s1 + $0x6f8] sm:$0xff]
        %v764 = vld [vmem:[%s1 + $0x700] sm:$0xff]
        %v765 = vld [vmem:[%s1 + $0x708] sm:$0xff]
        %v766 = vld [vmem:[%s1 + $0x710] sm:$0xff]
        %v767 = vld [vmem:[%s1 + $0x718] sm:$0xff]
        %v768 = vld [vmem:[%s1 + $0x720] sm:$0xff]
        %v769 = vld [vmem:[%s1 + $0x728] sm:$0xff]
        %v770 = vld [vmem:[%s1 + $0x730] sm:$0xff]
        %v771 = vld [vmem:[%s1 + $0x738] sm:$0xff]
        %v772 = vld [vmem:[%s1 + $0x740] sm:$0xff]
        %v773 = vld [vmem:[%s1 + $0x748] sm:$0xff]
        %v774 = vld [vmem:[%s1 + $0x750] sm:$0xff]
        %v775 = vld [vmem:[%s1 + $0x758] sm:$0xff]
        %v776 = vld [vmem:[%s1 + $0x760] sm:$0xff]
        %v777 = vld [vmem:[%s1 + $0x768] sm:$0xff]
        %v778 = vld [vmem:[%s1 + $0x770] sm:$0xff]
        %v779 = vld [vmem:[%s1 + $0x778] sm:$0xff]
        %v780 = vld [vmem:[%s1 + $0x780] sm:$0xff]
        %v781 = vld [vmem:[%s1 + $0x788] sm:$0xff]
        %v782 = vld [vmem:[%s1 + $0x790] sm:$0xff]
        %v783 = vld [vmem:[%s1 + $0x798] sm:$0xff]
        %v784 = vld [vmem:[%s1 + $0x7a0] sm:$0xff]
        %v785 = vld [vmem:[%s1 + $0x7a8] sm:$0xff]
        %v786 = vld [vmem:[%s1 + $0x7b0] sm:$0xff]
        %v787 = vld [vmem:[%s1 + $0x7b8] sm:$0xff]
        %v788 = vld [vmem:[%s1 + $0x7c0] sm:$0xff]
        %v789 = vld [vmem:[%s1 + $0x7c8] sm:$0xff]
        %v790 = vld [vmem:[%s1 + $0x7d0] sm:$0xff]
        %v791 = vld [vmem:[%s1 + $0x7d8] sm:$0xff]
        %v792 = vld [vmem:[%s1 + $0x7e0] sm:$0xff]
        %v793 = vld [vmem:[%s1 + $0x7e8] sm:$0xff]
        %v794 = vld [vmem:[%s1 + $0x7f0] sm:$0xff]
        %v795 = vld [vmem:[%s1 + $0x7f8] sm:$0xff]
        %v796 = vld [vmem:[%s1 + $0x800] sm:$0xff]
        %v797 = vld [vmem:[%s1 + $0x808] sm:$0xff]
        %v798 = vld [vmem:[%s1 + $0x810] sm:$0xff]
        %v799 = vld [vmem:[%s1 + $0x818] sm:$0xff]
        %v800 = vld [vmem:[%s1 + $0x820] sm:$0xff]
        %v801 = vld [vmem:[%s1 + $0x828] sm:$0xff]
        %v802 = vld [vmem:[%s1 + $0x830] sm:$0xff]
        %v803 = vld [vmem:[%s1 + $0x838] sm:$0xff]
        %v804 = vld [vmem:[%s1 + $0x840] sm:$0xff]
        %v805 = vld [vmem:[%s1 + $0x848] sm:$0xff]
        %v806 = vld [vmem:[%s1 + $0x850] sm:$0xff]
        %v807 = vld [vmem:[%s1 + $0x858] sm:$0xff]
        %v808 = vld [vmem:[%s1 + $0x860] sm:$0xff]
        %v809 = vld [vmem:[%s1 + $0x868] sm:$0xff]
        %v810 = vld [vmem:[%s1 + $0x870] sm:$0xff]
        %v811 = vld [vmem:[%s1 + $0x878] sm:$0xff]
        %v812 = vld [vmem:[%s1 + $0x880] sm:$0xff]
        %v813 = vld [vmem:[%s1 + $0x888] sm:$0xff]
        %v814 = vld [vmem:[%s1 + $0x890] sm:$0xff]
        %v815 = vld [vmem:[%s1 + $0x898] sm:$0xff]
        %v816 = vld [vmem:[%s1 + $0x8a0] sm:$0xff]
        %v817 = vld [vmem:[%s1 + $0x8a8] sm:$0xff]
        %v818 = vld [vmem:[%s1 + $0x8b0] sm:$0xff]
        %v819 = vld [vmem:[%s1 + $0x8b8] sm:$0xff]
        %v820 = vld [vmem:[%s1 + $0x8c0] sm:$0xff]
        %v821 = vld [vmem:[%s1 + $0x8c8] sm:$0xff]
        %v822 = vld [vmem:[%s1 + $0x8d0] sm:$0xff]
        %v823 = vld [vmem:[%s1 + $0x8d8] sm:$0xff]
        %v824 = vld [vmem:[%s1 + $0x8e0] sm:$0xff]
        %v825 = vld [vmem:[%s1 + $0x8e8] sm:$0xff]
        %v826 = vld [vmem:[%s1 + $0x8f0] sm:$0xff]
        %v827 = vld [vmem:[%s1 + $0x8f8] sm:$0xff]
        %v828 = vld [vmem:[%s1 + $0x900] sm:$0xff]
        %v829 = vld [vmem:[%s1 + $0x908] sm:$0xff]
        %v830 = vld [vmem:[%s1 + $0x910] sm:$0xff]
        %v831 = vld [vmem:[%s1 + $0x918] sm:$0xff]
        %v832 = vld [vmem:[%s1 + $0x920] sm:$0xff]
        %v833 = vld [vmem:[%s1 + $0x928] sm:$0xff]
        %v834 = vld [vmem:[%s1 + $0x930] sm:$0xff]
        %v835 = vld [vmem:[%s1 + $0x938] sm:$0xff]
        %v836 = vld [vmem:[%s1 + $0x940] sm:$0xff]
        %v837 = vld [vmem:[%s1 + $0x948] sm:$0xff]
        %v838 = vld [vmem:[%s1 + $0x950] sm:$0xff]
        %v839 = vld [vmem:[%s1 + $0x958] sm:$0xff]
        %v840 = vld [vmem:[%s1 + $0x960] sm:$0xff]
        %v841 = vld [vmem:[%s1 + $0x968] sm:$0xff]
        %v842 = vld [vmem:[%s1 + $0x970] sm:$0xff]
        %v843 = vld [vmem:[%s1 + $0x978] sm:$0xff]
        %v844 = vld [vmem:[%s1 + $0x980] sm:$0xff]
        %v845 = vld [vmem:[%s1 + $0x988] sm:$0xff]
        %v846 = vld [vmem:[%s1 + $0x990] sm:$0xff]
        %v847 = vld [vmem:[%s1 + $0x998] sm:$0xff]
        %v848 = vld [vmem:[%s1 + $0x9a0] sm:$0xff]
        %v849 = vld [vmem:[%s1 + $0x9a8] sm:$0xff]
        %v850 = vld [vmem:[%s1 + $0x9b0] sm:$0xff]
        %v851 = vld [vmem:[%s1 + $0x9b8] sm:$0xff]
        %v852 = vld [vmem:[%s1 + $0x9c0] sm:$0xff]
        %v853 = vld [vmem:[%s1 + $0x9c8] sm:$0xff]
        %v854 = vld [vmem:[%s1 + $0x9d0] sm:$0xff]
        %v855 = vld [vmem:[%s1 + $0x9d8] sm:$0xff]
        %v856 = vld [vmem:[%s1 + $0x9e0] sm:$0xff]
        %v857 = vld [vmem:[%s1 + $0x9e8] sm:$0xff]
        %v858 = vld [vmem:[%s1 + $0x9f0] sm:$0xff]
        %v859 = vld [vmem:[%s1 + $0x9f8] sm:$0xff]
        %v860 = vld [vmem:[%s1 + $0xa00] sm:$0xff]
        %v861 = vld [vmem:[%s1 + $0xa08] sm:$0xff]
        %v862 = vld [vmem:[%s1 + $0xa10] sm:$0xff]
        %v863 = vld [vmem:[%s1 + $0xa18] sm:$0xff]
        %v864 = vld [vmem:[%s1 + $0xa20] sm:$0xff]
        %v865 = vld [vmem:[%s1 + $0xa28] sm:$0xff]
        %v866 = vld [vmem:[%s1 + $0xa30] sm:$0xff]
        %v867 = vld [vmem:[%s1 + $0xa38] sm:$0xff]
        %v868 = vld [vmem:[%s1 + $0xa40] sm:$0xff]
        %v869 = vld [vmem:[%s1 + $0xa48] sm:$0xff]
        %v870 = vld [vmem:[%s1 + $0xa50] sm:$0xff]
        %v871 = vld [vmem:[%s1 + $0xa58] sm:$0xff]
        %v872 = vld [vmem:[%s1 + $0xa60] sm:$0xff]
        %v873 = vld [vmem:[%s1 + $0xa68] sm:$0xff]
        %v874 = vld [vmem:[%s1 + $0xa70] sm:$0xff]
        %v875 = vld [vmem:[%s1 + $0xa78] sm:$0xff]
        %v876 = vld [vmem:[%s1 + $0xa80] sm:$0xff]
        %v877 = vld [vmem:[%s1 + $0xa88] sm:$0xff]
        %v878 = vld [vmem:[%s1 + $0xa90] sm:$0xff]
        %v879 = vld [vmem:[%s1 + $0xa98] sm:$0xff]
        %v880 = vld [vmem:[%s1 + $0xaa0] sm:$0xff]
        %v881 = vld [vmem:[%s1 + $0xaa8] sm:$0xff]
        %v882 = vld [vmem:[%s1 + $0xab0] sm:$0xff]
        %v883 = vld [vmem:[%s1 + $0xab8] sm:$0xff]
        %v884 = vld [vmem:[%s1 + $0xac0] sm:$0xff]
        %v885 = vld [vmem:[%s1 + $0xac8] sm:$0xff]
        %v886 = vld [vmem:[%s1 + $0xad0] sm:$0xff]
        %v887 = vld [vmem:[%s1 + $0xad8] sm:$0xff]
        %v888 = vld [vmem:[%s1 + $0xae0] sm:$0xff]
        %v889 = vld [vmem:[%s1 + $0xae8] sm:$0xff]
        %v890 = vld [vmem:[%s1 + $0xaf0] sm:$0xff]
        %v891 = vld [vmem:[%s1 + $0xaf8] sm:$0xff]
        %v892 = vld [vmem:[%s1 + $0xb00] sm:$0xff]
        %v893 = vld [vmem:[%s1 + $0xb08] sm:$0xff]
        %v894 = vld [vmem:[%s1 + $0xb10] sm:$0xff]
        %v895 = vld [vmem:[%s1 + $0xb18] sm:$0xff]
        %v896 = vld [vmem:[%s1 + $0xb20] sm:$0xff]
        %v897 = vld [vmem:[%s1 + $0xb28] sm:$0xff]
        %v898 = vld [vmem:[%s1 + $0xb30] sm:$0xff]
        %v899 = vld [vmem:[%s1 + $0xb38] sm:$0xff]
        %v900 = vld [vmem:[%s1 + $0xb40] sm:$0xff]
        %v901 = vld [vmem:[%s1 + $0xb48] sm:$0xff]
        %v902 = vld [vmem:[%s1 + $0xb50] sm:$0xff]
        %v903 = vld [vmem:[%s1 + $0xb58] sm:$0xff]
        %v904 = vld [vmem:[%s1 + $0xb60] sm:$0xff]
        %v905 = vld [vmem:[%s1 + $0xb68] sm:$0xff]
        %v906 = vld [vmem:[%s1 + $0xb70] sm:$0xff]
        %v907 = vld [vmem:[%s1 + $0xb78] sm:$0xff]
        %v908 = vld [vmem:[%s1 + $0xb80] sm:$0xff]
        %v909 = vld [vmem:[%s1 + $0xb88] sm:$0xff]
        %v910 = vld [vmem:[%s1 + $0xb90] sm:$0xff]
        %v911 = vld [vmem:[%s1 + $0xb98] sm:$0xff]
        %v912 = vld [vmem:[%s1 + $0xba0] sm:$0xff]
        %v913 = vld [vmem:[%s1 + $0xba8] sm:$0xff]
        %v914 = vld [vmem:[%s1 + $0xbb0] sm:$0xff]
        %v915 = vld [vmem:[%s1 + $0xbb8] sm:$0xff]
        %v916 = vld [vmem:[%s1 + $0xbc0] sm:$0xff]
        %v917 = vld [vmem:[%s1 + $0xbc8] sm:$0xff]
        %v918 = vld [vmem:[%s1 + $0xbd0] sm:$0xff]
        %v919 = vld [vmem:[%s1 + $0xbd8] sm:$0xff]
        %v920 = vld [vmem:[%s1 + $0xbe0] sm:$0xff]
        %v921 = vld [vmem:[%s1 + $0xbe8] sm:$0xff]
        %v922 = vld [vmem:[%s1 + $0xbf0] sm:$0xff]
        %v923 = vld [vmem:[%s1 + $0xbf8] sm:$0xff]
        %v924 = vld [vmem:[%s1 + $0xc00] sm:$0xff]
        %v925 = vld [vmem:[%s1 + $0xc08] sm:$0xff]
        %v926 = vld [vmem:[%s1 + $0xc10] sm:$0xff]
        %v927 = vld [vmem:[%s1 + $0xc18] sm:$0xff]
        %v928 = vld [vmem:[%s1 + $0xc20] sm:$0xff]
        %v929 = vld [vmem:[%s1 + $0xc28] sm:$0xff]
        %v930 = vld [vmem:[%s1 + $0xc30] sm:$0xff]
        %v931 = vld [vmem:[%s1 + $0xc38] sm:$0xff]
        %v932 = vld [vmem:[%s2] sm:$0xff]
        %v934 = vperm.slane %v932, 0
        %v935 = vperm.slane %v932, 1
        %v936 = vperm.slane %v932, 2
        %v937 = vperm.slane %v932, 3
        %v938 = vperm.slane %v932, 4
        %v939 = vperm.slane %v932, 5
        %v940 = vperm.slane %v932, 6
        %v941 = vperm.slane %v932, 7
        %v1342 = vunpack.c.l.b16 %v540
        %v1343 = vunpack.c.h.b16 %v540
        %v1344 = vunpack.c.l.b16 %v541
        %v1345 = vunpack.c.h.b16 %v541
        %v1346 = vunpack.c.l.b16 %v542
        %v1347 = vunpack.c.h.b16 %v542
        %v1348 = vunpack.c.l.b16 %v543
        %v1349 = vunpack.c.h.b16 %v543
        %v1350 = vunpack.c.l.b16 %v544
        %v1351 = vunpack.c.h.b16 %v544
        %v1352 = vunpack.c.l.b16 %v545
        %v1353 = vunpack.c.h.b16 %v545
        %v1354 = vunpack.c.l.b16 %v546
        %v1355 = vunpack.c.h.b16 %v546
        %v1356 = vunpack.c.l.b16 %v547
        %v1357 = vunpack.c.h.b16 %v547
        %v1358 = vunpack.c.l.b16 %v548
        %v1359 = vunpack.c.h.b16 %v548
        %v1360 = vunpack.c.l.b16 %v549
        %v1361 = vunpack.c.h.b16 %v549
        %v1362 = vunpack.c.l.b16 %v550
        %v1363 = vunpack.c.h.b16 %v550
        %v1364 = vunpack.c.l.b16 %v551
        %v1365 = vunpack.c.h.b16 %v551
        %v1366 = vunpack.c.l.b16 %v552
        %v1367 = vunpack.c.h.b16 %v552
        %v1368 = vunpack.c.l.b16 %v553
        %v1369 = vunpack.c.h.b16 %v553
        %v1370 = vunpack.c.l.b16 %v554
        %v1371 = vunpack.c.h.b16 %v554
        %v1372 = vunpack.c.l.b16 %v555
        %v1373 = vunpack.c.h.b16 %v555
        %v1374 = vunpack.c.l.b16 %v556
        %v1375 = vunpack.c.h.b16 %v556
        %v1376 = vunpack.c.l.b16 %v557
        %v1377 = vunpack.c.h.b16 %v557
        %v1378 = vunpack.c.l.b16 %v558
        %v1379 = vunpack.c.h.b16 %v558
        %v1380 = vunpack.c.l.b16 %v559
        %v1381 = vunpack.c.h.b16 %v559
        %v1382 = vunpack.c.l.b16 %v560
        %v1383 = vunpack.c.h.b16 %v560
        %v1384 = vunpack.c.l.b16 %v561
        %v1385 = vunpack.c.h.b16 %v561
        %v1386 = vunpack.c.l.b16 %v562
        %v1387 = vunpack.c.h.b16 %v562
        %v1388 = vunpack.c.l.b16 %v563
        %v1389 = vunpack.c.h.b16 %v563
        %v1390 = vunpack.c.l.b16 %v564
        %v1391 = vunpack.c.h.b16 %v564
        %v1392 = vunpack.c.l.b16 %v565
        %v1393 = vunpack.c.h.b16 %v565
        %v1394 = vunpack.c.l.b16 %v566
        %v1395 = vunpack.c.h.b16 %v566
        %v1396 = vunpack.c.l.b16 %v567
        %v1397 = vunpack.c.h.b16 %v567
        %v1398 = vunpack.c.l.b16 %v568
        %v1399 = vunpack.c.h.b16 %v568
        %v1400 = vunpack.c.l.b16 %v569
        %v1401 = vunpack.c.h.b16 %v569
        %v1402 = vunpack.c.l.b16 %v570
        %v1403 = vunpack.c.h.b16 %v570
        %v1404 = vunpack.c.l.b16 %v571
        %v1405 = vunpack.c.h.b16 %v571
        %v1406 = vunpack.c.l.b16 %v572
        %v1407 = vunpack.c.h.b16 %v572
        %v1408 = vunpack.c.l.b16 %v573
        %v1409 = vunpack.c.h.b16 %v573
        %v1410 = vunpack.c.l.b16 %v574
        %v1411 = vunpack.c.h.b16 %v574
        %v1412 = vunpack.c.l.b16 %v575
        %v1413 = vunpack.c.h.b16 %v575
        %v1414 = vunpack.c.l.b16 %v576
        %v1415 = vunpack.c.h.b16 %v576
        %v1416 = vunpack.c.l.b16 %v577
        %v1417 = vunpack.c.h.b16 %v577
        %v1418 = vunpack.c.l.b16 %v578
        %v1419 = vunpack.c.h.b16 %v578
        %v1420 = vunpack.c.l.b16 %v579
        %v1421 = vunpack.c.h.b16 %v579
        %v1422 = vunpack.c.l.b16 %v580
        %v1423 = vunpack.c.h.b16 %v580
        %v1424 = vunpack.c.l.b16 %v581
        %v1425 = vunpack.c.h.b16 %v581
        %v1426 = vunpack.c.l.b16 %v582
        %v1427 = vunpack.c.h.b16 %v582
        %v1428 = vunpack.c.l.b16 %v583
        %v1429 = vunpack.c.h.b16 %v583
        %v1430 = vunpack.c.l.b16 %v584
        %v1431 = vunpack.c.h.b16 %v584
        %v1432 = vunpack.c.l.b16 %v585
        %v1433 = vunpack.c.h.b16 %v585
        %v1434 = vunpack.c.l.b16 %v586
        %v1435 = vunpack.c.h.b16 %v586
        %v1436 = vunpack.c.l.b16 %v587
        %v1437 = vunpack.c.h.b16 %v587
        %v1438 = vunpack.c.l.b16 %v588
        %v1439 = vunpack.c.h.b16 %v588
        %v1440 = vunpack.c.l.b16 %v589
        %v1441 = vunpack.c.h.b16 %v589
        %v1442 = vunpack.c.l.b16 %v590
        %v1443 = vunpack.c.h.b16 %v590
        %v1444 = vunpack.c.l.b16 %v591
        %v1445 = vunpack.c.h.b16 %v591
        %v1446 = vunpack.c.l.b16 %v592
        %v1447 = vunpack.c.h.b16 %v592
        %v1448 = vunpack.c.l.b16 %v593
        %v1449 = vunpack.c.h.b16 %v593
        %v1450 = vunpack.c.l.b16 %v594
        %v1451 = vunpack.c.h.b16 %v594
        %v1452 = vunpack.c.l.b16 %v595
        %v1453 = vunpack.c.h.b16 %v595
        %v1454 = vunpack.c.l.b16 %v596
        %v1455 = vunpack.c.h.b16 %v596
        %v1456 = vunpack.c.l.b16 %v597
        %v1457 = vunpack.c.h.b16 %v597
        %v1458 = vunpack.c.l.b16 %v598
        %v1459 = vunpack.c.h.b16 %v598
        %v1460 = vunpack.c.l.b16 %v599
        %v1461 = vunpack.c.h.b16 %v599
        %v1462 = vunpack.c.l.b16 %v600
        %v1463 = vunpack.c.h.b16 %v600
        %v1464 = vunpack.c.l.b16 %v601
        %v1465 = vunpack.c.h.b16 %v601
        %v1466 = vunpack.c.l.b16 %v602
        %v1467 = vunpack.c.h.b16 %v602
        %v1468 = vunpack.c.l.b16 %v603
        %v1469 = vunpack.c.h.b16 %v603
        %v1470 = vunpack.c.l.b16 %v604
        %v1471 = vunpack.c.h.b16 %v604
        %v1472 = vunpack.c.l.b16 %v605
        %v1473 = vunpack.c.h.b16 %v605
        %v1474 = vunpack.c.l.b16 %v606
        %v1475 = vunpack.c.h.b16 %v606
        %v1476 = vunpack.c.l.b16 %v607
        %v1477 = vunpack.c.h.b16 %v607
        %v1478 = vunpack.c.l.b16 %v608
        %v1479 = vunpack.c.h.b16 %v608
        %v1480 = vunpack.c.l.b16 %v609
        %v1481 = vunpack.c.h.b16 %v609
        %v1482 = vunpack.c.l.b16 %v610
        %v1483 = vunpack.c.h.b16 %v610
        %v1484 = vunpack.c.l.b16 %v611
        %v1485 = vunpack.c.h.b16 %v611
        %v1486 = vunpack.c.l.b16 %v612
        %v1487 = vunpack.c.h.b16 %v612
        %v1488 = vunpack.c.l.b16 %v613
        %v1489 = vunpack.c.h.b16 %v613
        %v1490 = vunpack.c.l.b16 %v614
        %v1491 = vunpack.c.h.b16 %v614
        %v1492 = vunpack.c.l.b16 %v615
        %v1493 = vunpack.c.h.b16 %v615
        %v1494 = vunpack.c.l.b16 %v616
        %v1495 = vunpack.c.h.b16 %v616
        %v1496 = vunpack.c.l.b16 %v617
        %v1497 = vunpack.c.h.b16 %v617
        %v1498 = vunpack.c.l.b16 %v618
        %v1499 = vunpack.c.h.b16 %v618
        %v1500 = vunpack.c.l.b16 %v619
        %v1501 = vunpack.c.h.b16 %v619
        %v1502 = vunpack.c.l.b16 %v620
        %v1503 = vunpack.c.h.b16 %v620
        %v1504 = vunpack.c.l.b16 %v621
        %v1505 = vunpack.c.h.b16 %v621
        %v1506 = vunpack.c.l.b16 %v622
        %v1507 = vunpack.c.h.b16 %v622
        %v1508 = vunpack.c.l.b16 %v623
        %v1509 = vunpack.c.h.b16 %v623
        %v1510 = vunpack.c.l.b16 %v624
        %v1511 = vunpack.c.h.b16 %v624
        %v1512 = vunpack.c.l.b16 %v625
        %v1513 = vunpack.c.h.b16 %v625
        %v1514 = vunpack.c.l.b16 %v626
        %v1515 = vunpack.c.h.b16 %v626
        %v1516 = vunpack.c.l.b16 %v627
        %v1517 = vunpack.c.h.b16 %v627
        %v1518 = vunpack.c.l.b16 %v628
        %v1519 = vunpack.c.h.b16 %v628
        %v1520 = vunpack.c.l.b16 %v629
        %v1521 = vunpack.c.h.b16 %v629
        %v1522 = vunpack.c.l.b16 %v630
        %v1523 = vunpack.c.h.b16 %v630
        %v1524 = vunpack.c.l.b16 %v631
        %v1525 = vunpack.c.h.b16 %v631
        %v1526 = vunpack.c.l.b16 %v632
        %v1527 = vunpack.c.h.b16 %v632
        %v1528 = vunpack.c.l.b16 %v633
        %v1529 = vunpack.c.h.b16 %v633
        %v1530 = vunpack.c.l.b16 %v634
        %v1531 = vunpack.c.h.b16 %v634
        %v1532 = vunpack.c.l.b16 %v635
        %v1533 = vunpack.c.h.b16 %v635
        %v1534 = vunpack.c.l.b16 %v636
        %v1535 = vunpack.c.h.b16 %v636
        %v1536 = vunpack.c.l.b16 %v637
        %v1537 = vunpack.c.h.b16 %v637
        %v1538 = vunpack.c.l.b16 %v638
        %v1539 = vunpack.c.h.b16 %v638
        %v1540 = vunpack.c.l.b16 %v639
        %v1541 = vunpack.c.h.b16 %v639
        %v1542 = vunpack.c.l.b16 %v640
        %v1543 = vunpack.c.h.b16 %v640
        %v1544 = vunpack.c.l.b16 %v641
        %v1545 = vunpack.c.h.b16 %v641
        %v1546 = vunpack.c.l.b16 %v642
        %v1547 = vunpack.c.h.b16 %v642
        %v1548 = vunpack.c.l.b16 %v643
        %v1549 = vunpack.c.h.b16 %v643
        %v1550 = vunpack.c.l.b16 %v644
        %v1551 = vunpack.c.h.b16 %v644
        %v1552 = vunpack.c.l.b16 %v645
        %v1553 = vunpack.c.h.b16 %v645
        %v1554 = vunpack.c.l.b16 %v646
        %v1555 = vunpack.c.h.b16 %v646
        %v1556 = vunpack.c.l.b16 %v647
        %v1557 = vunpack.c.h.b16 %v647
        %v1558 = vunpack.c.l.b16 %v648
        %v1559 = vunpack.c.h.b16 %v648
        %v1560 = vunpack.c.l.b16 %v649
        %v1561 = vunpack.c.h.b16 %v649
        %v1562 = vunpack.c.l.b16 %v650
        %v1563 = vunpack.c.h.b16 %v650
        %v1564 = vunpack.c.l.b16 %v651
        %v1565 = vunpack.c.h.b16 %v651
        %v1566 = vunpack.c.l.b16 %v652
        %v1567 = vunpack.c.h.b16 %v652
        %v1568 = vunpack.c.l.b16 %v653
        %v1569 = vunpack.c.h.b16 %v653
        %v1570 = vunpack.c.l.b16 %v654
        %v1571 = vunpack.c.h.b16 %v654
        %v1572 = vunpack.c.l.b16 %v655
        %v1573 = vunpack.c.h.b16 %v655
        %v1574 = vunpack.c.l.b16 %v656
        %v1575 = vunpack.c.h.b16 %v656
        %v1576 = vunpack.c.l.b16 %v657
        %v1577 = vunpack.c.h.b16 %v657
        %v1578 = vunpack.c.l.b16 %v658
        %v1579 = vunpack.c.h.b16 %v658
        %v1580 = vunpack.c.l.b16 %v659
        %v1581 = vunpack.c.h.b16 %v659
        %v1582 = vunpack.c.l.b16 %v660
        %v1583 = vunpack.c.h.b16 %v660
        %v1584 = vunpack.c.l.b16 %v661
        %v1585 = vunpack.c.h.b16 %v661
        %v1586 = vunpack.c.l.b16 %v662
        %v1587 = vunpack.c.h.b16 %v662
        %v1588 = vunpack.c.l.b16 %v663
        %v1589 = vunpack.c.h.b16 %v663
        %v1590 = vunpack.c.l.b16 %v664
        %v1591 = vunpack.c.h.b16 %v664
        %v1592 = vunpack.c.l.b16 %v665
        %v1593 = vunpack.c.h.b16 %v665
        %v1594 = vunpack.c.l.b16 %v666
        %v1595 = vunpack.c.h.b16 %v666
        %v1596 = vunpack.c.l.b16 %v667
        %v1597 = vunpack.c.h.b16 %v667
        %v1598 = vunpack.c.l.b16 %v668
        %v1599 = vunpack.c.h.b16 %v668
        %v1600 = vunpack.c.l.b16 %v669
        %v1601 = vunpack.c.h.b16 %v669
        %v1602 = vunpack.c.l.b16 %v670
        %v1603 = vunpack.c.h.b16 %v670
        %v1604 = vunpack.c.l.b16 %v671
        %v1605 = vunpack.c.h.b16 %v671
        %v1606 = vunpack.c.l.b16 %v672
        %v1607 = vunpack.c.h.b16 %v672
        %v1608 = vunpack.c.l.b16 %v673
        %v1609 = vunpack.c.h.b16 %v673
        %v1610 = vunpack.c.l.b16 %v674
        %v1611 = vunpack.c.h.b16 %v674
        %v1612 = vunpack.c.l.b16 %v675
        %v1613 = vunpack.c.h.b16 %v675
        %v1614 = vunpack.c.l.b16 %v676
        %v1615 = vunpack.c.h.b16 %v676
        %v1616 = vunpack.c.l.b16 %v677
        %v1617 = vunpack.c.h.b16 %v677
        %v1618 = vunpack.c.l.b16 %v678
        %v1619 = vunpack.c.h.b16 %v678
        %v1620 = vunpack.c.l.b16 %v679
        %v1621 = vunpack.c.h.b16 %v679
        %v1622 = vunpack.c.l.b16 %v680
        %v1623 = vunpack.c.h.b16 %v680
        %v1624 = vunpack.c.l.b16 %v681
        %v1625 = vunpack.c.h.b16 %v681
        %v1626 = vunpack.c.l.b16 %v682
        %v1627 = vunpack.c.h.b16 %v682
        %v1628 = vunpack.c.l.b16 %v683
        %v1629 = vunpack.c.h.b16 %v683
        %v1630 = vunpack.c.l.b16 %v684
        %v1631 = vunpack.c.h.b16 %v684
        %v1632 = vunpack.c.l.b16 %v685
        %v1633 = vunpack.c.h.b16 %v685
        %v1634 = vunpack.c.l.b16 %v686
        %v1635 = vunpack.c.h.b16 %v686
        %v1636 = vunpack.c.l.b16 %v687
        %v1637 = vunpack.c.h.b16 %v687
        %v1638 = vunpack.c.l.b16 %v688
        %v1639 = vunpack.c.h.b16 %v688
        %v1640 = vunpack.c.l.b16 %v689
        %v1641 = vunpack.c.h.b16 %v689
        %v1642 = vunpack.c.l.b16 %v690
        %v1643 = vunpack.c.h.b16 %v690
        %v1644 = vunpack.c.l.b16 %v691
        %v1645 = vunpack.c.h.b16 %v691
        %v1646 = vunpack.c.l.b16 %v692
        %v1647 = vunpack.c.h.b16 %v692
        %v1648 = vunpack.c.l.b16 %v693
        %v1649 = vunpack.c.h.b16 %v693
        %v1650 = vunpack.c.l.b16 %v694
        %v1651 = vunpack.c.h.b16 %v694
        %v1652 = vunpack.c.l.b16 %v695
        %v1653 = vunpack.c.h.b16 %v695
        %v1654 = vunpack.c.l.b16 %v696
        %v1655 = vunpack.c.h.b16 %v696
        %v1656 = vunpack.c.l.b16 %v697
        %v1657 = vunpack.c.h.b16 %v697
        %v1658 = vunpack.c.l.b16 %v698
        %v1659 = vunpack.c.h.b16 %v698
        %v1660 = vunpack.c.l.b16 %v699
        %v1661 = vunpack.c.h.b16 %v699
        %v1662 = vunpack.c.l.b16 %v700
        %v1663 = vunpack.c.h.b16 %v700
        %v1664 = vunpack.c.l.b16 %v701
        %v1665 = vunpack.c.h.b16 %v701
        %v1666 = vunpack.c.l.b16 %v702
        %v1667 = vunpack.c.h.b16 %v702
        %v1668 = vunpack.c.l.b16 %v703
        %v1669 = vunpack.c.h.b16 %v703
        %v1670 = vunpack.c.l.b16 %v704
        %v1671 = vunpack.c.h.b16 %v704
        %v1672 = vunpack.c.l.b16 %v705
        %v1673 = vunpack.c.h.b16 %v705
        %v1674 = vunpack.c.l.b16 %v706
        %v1675 = vunpack.c.h.b16 %v706
        %v1676 = vunpack.c.l.b16 %v707
        %v1677 = vunpack.c.h.b16 %v707
        %v1678 = vunpack.c.l.b16 %v708
        %v1679 = vunpack.c.h.b16 %v708
        %v1680 = vunpack.c.l.b16 %v709
        %v1681 = vunpack.c.h.b16 %v709
        %v1682 = vunpack.c.l.b16 %v710
        %v1683 = vunpack.c.h.b16 %v710
        %v1684 = vunpack.c.l.b16 %v711
        %v1685 = vunpack.c.h.b16 %v711
        %v1686 = vunpack.c.l.b16 %v712
        %v1687 = vunpack.c.h.b16 %v712
        %v1688 = vunpack.c.l.b16 %v713
        %v1689 = vunpack.c.h.b16 %v713
        %v1690 = vunpack.c.l.b16 %v714
        %v1691 = vunpack.c.h.b16 %v714
        %v1692 = vunpack.c.l.b16 %v715
        %v1693 = vunpack.c.h.b16 %v715
        %v1694 = vunpack.c.l.b16 %v716
        %v1695 = vunpack.c.h.b16 %v716
        %v1696 = vunpack.c.l.b16 %v717
        %v1697 = vunpack.c.h.b16 %v717
        %v1698 = vunpack.c.l.b16 %v718
        %v1699 = vunpack.c.h.b16 %v718
        %v1700 = vunpack.c.l.b16 %v719
        %v1701 = vunpack.c.h.b16 %v719
        %v1702 = vunpack.c.l.b16 %v720
        %v1703 = vunpack.c.h.b16 %v720
        %v1704 = vunpack.c.l.b16 %v721
        %v1705 = vunpack.c.h.b16 %v721
        %v1706 = vunpack.c.l.b16 %v722
        %v1707 = vunpack.c.h.b16 %v722
        %v1708 = vunpack.c.l.b16 %v723
        %v1709 = vunpack.c.h.b16 %v723
        %v1710 = vunpack.c.l.b16 %v724
        %v1711 = vunpack.c.h.b16 %v724
        %v1712 = vunpack.c.l.b16 %v725
        %v1713 = vunpack.c.h.b16 %v725
        %v1714 = vunpack.c.l.b16 %v726
        %v1715 = vunpack.c.h.b16 %v726
        %v1716 = vunpack.c.l.b16 %v727
        %v1717 = vunpack.c.h.b16 %v727
        %v1718 = vunpack.c.l.b16 %v728
        %v1719 = vunpack.c.h.b16 %v728
        %v1720 = vunpack.c.l.b16 %v729
        %v1721 = vunpack.c.h.b16 %v729
        %v1722 = vunpack.c.l.b16 %v730
        %v1723 = vunpack.c.h.b16 %v730
        %v1724 = vunpack.c.l.b16 %v731
        %v1725 = vunpack.c.h.b16 %v731
        %v1726 = vunpack.c.l.b16 %v732
        %v1727 = vunpack.c.h.b16 %v732
        %v1728 = vunpack.c.l.b16 %v733
        %v1729 = vunpack.c.h.b16 %v733
        %v1730 = vunpack.c.l.b16 %v734
        %v1731 = vunpack.c.h.b16 %v734
        %v1732 = vunpack.c.l.b16 %v735
        %v1733 = vunpack.c.h.b16 %v735
        %v1734 = vunpack.c.l.b16 %v736
        %v1735 = vunpack.c.h.b16 %v736
        %v1736 = vunpack.c.l.b16 %v737
        %v1737 = vunpack.c.h.b16 %v737
        %v1738 = vunpack.c.l.b16 %v738
        %v1739 = vunpack.c.h.b16 %v738
        %v1740 = vunpack.c.l.b16 %v739
        %v1741 = vunpack.c.h.b16 %v739
        %v1742 = vunpack.c.l.b16 %v740
        %v1743 = vunpack.c.h.b16 %v740
        %v1744 = vunpack.c.l.b16 %v741
        %v1745 = vunpack.c.h.b16 %v741
        %v1746 = vunpack.c.l.b16 %v742
        %v1747 = vunpack.c.h.b16 %v742
        %v1748 = vunpack.c.l.b16 %v743
        %v1749 = vunpack.c.h.b16 %v743
        %v1750 = vunpack.c.l.b16 %v744
        %v1751 = vunpack.c.h.b16 %v744
        %v1752 = vunpack.c.l.b16 %v745
        %v1753 = vunpack.c.h.b16 %v745
        %v1754 = vunpack.c.l.b16 %v746
        %v1755 = vunpack.c.h.b16 %v746
        %v1756 = vunpack.c.l.b16 %v747
        %v1757 = vunpack.c.h.b16 %v747
        %v1758 = vunpack.c.l.b16 %v748
        %v1759 = vunpack.c.h.b16 %v748
        %v1760 = vunpack.c.l.b16 %v749
        %v1761 = vunpack.c.h.b16 %v749
        %v1762 = vunpack.c.l.b16 %v750
        %v1763 = vunpack.c.h.b16 %v750
        %v1764 = vunpack.c.l.b16 %v751
        %v1765 = vunpack.c.h.b16 %v751
        %v1766 = vunpack.c.l.b16 %v752
        %v1767 = vunpack.c.h.b16 %v752
        %v1768 = vunpack.c.l.b16 %v753
        %v1769 = vunpack.c.h.b16 %v753
        %v1770 = vunpack.c.l.b16 %v754
        %v1771 = vunpack.c.h.b16 %v754
        %v1772 = vunpack.c.l.b16 %v755
        %v1773 = vunpack.c.h.b16 %v755
        %v1774 = vunpack.c.l.b16 %v756
        %v1775 = vunpack.c.h.b16 %v756
        %v1776 = vunpack.c.l.b16 %v757
        %v1777 = vunpack.c.h.b16 %v757
        %v1778 = vunpack.c.l.b16 %v758
        %v1779 = vunpack.c.h.b16 %v758
        %v1780 = vunpack.c.l.b16 %v759
        %v1781 = vunpack.c.h.b16 %v759
        %v1782 = vunpack.c.l.b16 %v760
        %v1783 = vunpack.c.h.b16 %v760
        %v1784 = vunpack.c.l.b16 %v761
        %v1785 = vunpack.c.h.b16 %v761
        %v1786 = vunpack.c.l.b16 %v762
        %v1787 = vunpack.c.h.b16 %v762
        %v1788 = vunpack.c.l.b16 %v763
        %v1789 = vunpack.c.h.b16 %v763
        %v1790 = vunpack.c.l.b16 %v764
        %v1791 = vunpack.c.h.b16 %v764
        %v1792 = vunpack.c.l.b16 %v765
        %v1793 = vunpack.c.h.b16 %v765
        %v1794 = vunpack.c.l.b16 %v766
        %v1795 = vunpack.c.h.b16 %v766
        %v1796 = vunpack.c.l.b16 %v767
        %v1797 = vunpack.c.h.b16 %v767
        %v1798 = vunpack.c.l.b16 %v768
        %v1799 = vunpack.c.h.b16 %v768
        %v1800 = vunpack.c.l.b16 %v769
        %v1801 = vunpack.c.h.b16 %v769
        %v1802 = vunpack.c.l.b16 %v770
        %v1803 = vunpack.c.h.b16 %v770
        %v1804 = vunpack.c.l.b16 %v771
        %v1805 = vunpack.c.h.b16 %v771
        %v1806 = vunpack.c.l.b16 %v772
        %v1807 = vunpack.c.h.b16 %v772
        %v1808 = vunpack.c.l.b16 %v773
        %v1809 = vunpack.c.h.b16 %v773
        %v1810 = vunpack.c.l.b16 %v774
        %v1811 = vunpack.c.h.b16 %v774
        %v1812 = vunpack.c.l.b16 %v775
        %v1813 = vunpack.c.h.b16 %v775
        %v1814 = vunpack.c.l.b16 %v776
        %v1815 = vunpack.c.h.b16 %v776
        %v1816 = vunpack.c.l.b16 %v777
        %v1817 = vunpack.c.h.b16 %v777
        %v1818 = vunpack.c.l.b16 %v778
        %v1819 = vunpack.c.h.b16 %v778
        %v1820 = vunpack.c.l.b16 %v779
        %v1821 = vunpack.c.h.b16 %v779
        %v1822 = vunpack.c.l.b16 %v780
        %v1823 = vunpack.c.h.b16 %v780
        %v1824 = vunpack.c.l.b16 %v781
        %v1825 = vunpack.c.h.b16 %v781
        %v1826 = vunpack.c.l.b16 %v782
        %v1827 = vunpack.c.h.b16 %v782
        %v1828 = vunpack.c.l.b16 %v783
        %v1829 = vunpack.c.h.b16 %v783
        %v1830 = vunpack.c.l.b16 %v784
        %v1831 = vunpack.c.h.b16 %v784
        %v1832 = vunpack.c.l.b16 %v785
        %v1833 = vunpack.c.h.b16 %v785
        %v1834 = vunpack.c.l.b16 %v786
        %v1835 = vunpack.c.h.b16 %v786
        %v1836 = vunpack.c.l.b16 %v787
        %v1837 = vunpack.c.h.b16 %v787
        %v1838 = vunpack.c.l.b16 %v788
        %v1839 = vunpack.c.h.b16 %v788
        %v1840 = vunpack.c.l.b16 %v789
        %v1841 = vunpack.c.h.b16 %v789
        %v1842 = vunpack.c.l.b16 %v790
        %v1843 = vunpack.c.h.b16 %v790
        %v1844 = vunpack.c.l.b16 %v791
        %v1845 = vunpack.c.h.b16 %v791
        %v1846 = vunpack.c.l.b16 %v792
        %v1847 = vunpack.c.h.b16 %v792
        %v1848 = vunpack.c.l.b16 %v793
        %v1849 = vunpack.c.h.b16 %v793
        %v1850 = vunpack.c.l.b16 %v794
        %v1851 = vunpack.c.h.b16 %v794
        %v1852 = vunpack.c.l.b16 %v795
        %v1853 = vunpack.c.h.b16 %v795
        %v1854 = vunpack.c.l.b16 %v796
        %v1855 = vunpack.c.h.b16 %v796
        %v1856 = vunpack.c.l.b16 %v797
        %v1857 = vunpack.c.h.b16 %v797
        %v1858 = vunpack.c.l.b16 %v798
        %v1859 = vunpack.c.h.b16 %v798
        %v1860 = vunpack.c.l.b16 %v799
        %v1861 = vunpack.c.h.b16 %v799
        %v1862 = vunpack.c.l.b16 %v800
        %v1863 = vunpack.c.h.b16 %v800
        %v1864 = vunpack.c.l.b16 %v801
        %v1865 = vunpack.c.h.b16 %v801
        %v1866 = vunpack.c.l.b16 %v802
        %v1867 = vunpack.c.h.b16 %v802
        %v1868 = vunpack.c.l.b16 %v803
        %v1869 = vunpack.c.h.b16 %v803
        %v1870 = vunpack.c.l.b16 %v804
        %v1871 = vunpack.c.h.b16 %v804
        %v1872 = vunpack.c.l.b16 %v805
        %v1873 = vunpack.c.h.b16 %v805
        %v1874 = vunpack.c.l.b16 %v806
        %v1875 = vunpack.c.h.b16 %v806
        %v1876 = vunpack.c.l.b16 %v807
        %v1877 = vunpack.c.h.b16 %v807
        %v1878 = vunpack.c.l.b16 %v808
        %v1879 = vunpack.c.h.b16 %v808
        %v1880 = vunpack.c.l.b16 %v809
        %v1881 = vunpack.c.h.b16 %v809
        %v1882 = vunpack.c.l.b16 %v810
        %v1883 = vunpack.c.h.b16 %v810
        %v1884 = vunpack.c.l.b16 %v811
        %v1885 = vunpack.c.h.b16 %v811
        %v1886 = vunpack.c.l.b16 %v812
        %v1887 = vunpack.c.h.b16 %v812
        %v1888 = vunpack.c.l.b16 %v813
        %v1889 = vunpack.c.h.b16 %v813
        %v1890 = vunpack.c.l.b16 %v814
        %v1891 = vunpack.c.h.b16 %v814
        %v1892 = vunpack.c.l.b16 %v815
        %v1893 = vunpack.c.h.b16 %v815
        %v1894 = vunpack.c.l.b16 %v816
        %v1895 = vunpack.c.h.b16 %v816
        %v1896 = vunpack.c.l.b16 %v817
        %v1897 = vunpack.c.h.b16 %v817
        %v1898 = vunpack.c.l.b16 %v818
        %v1899 = vunpack.c.h.b16 %v818
        %v1900 = vunpack.c.l.b16 %v819
        %v1901 = vunpack.c.h.b16 %v819
        %v1902 = vunpack.c.l.b16 %v820
        %v1903 = vunpack.c.h.b16 %v820
        %v1904 = vunpack.c.l.b16 %v821
        %v1905 = vunpack.c.h.b16 %v821
        %v1906 = vunpack.c.l.b16 %v822
        %v1907 = vunpack.c.h.b16 %v822
        %v1908 = vunpack.c.l.b16 %v823
        %v1909 = vunpack.c.h.b16 %v823
        %v1910 = vunpack.c.l.b16 %v824
        %v1911 = vunpack.c.h.b16 %v824
        %v1912 = vunpack.c.l.b16 %v825
        %v1913 = vunpack.c.h.b16 %v825
        %v1914 = vunpack.c.l.b16 %v826
        %v1915 = vunpack.c.h.b16 %v826
        %v1916 = vunpack.c.l.b16 %v827
        %v1917 = vunpack.c.h.b16 %v827
        %v1918 = vunpack.c.l.b16 %v828
        %v1919 = vunpack.c.h.b16 %v828
        %v1920 = vunpack.c.l.b16 %v829
        %v1921 = vunpack.c.h.b16 %v829
        %v1922 = vunpack.c.l.b16 %v830
        %v1923 = vunpack.c.h.b16 %v830
        %v1924 = vunpack.c.l.b16 %v831
        %v1925 = vunpack.c.h.b16 %v831
        %v1926 = vunpack.c.l.b16 %v832
        %v1927 = vunpack.c.h.b16 %v832
        %v1928 = vunpack.c.l.b16 %v833
        %v1929 = vunpack.c.h.b16 %v833
        %v1930 = vunpack.c.l.b16 %v834
        %v1931 = vunpack.c.h.b16 %v834
        %v1932 = vunpack.c.l.b16 %v835
        %v1933 = vunpack.c.h.b16 %v835
        %v1934 = vunpack.c.l.b16 %v836
        %v1935 = vunpack.c.h.b16 %v836
        %v1936 = vunpack.c.l.b16 %v837
        %v1937 = vunpack.c.h.b16 %v837
        %v1938 = vunpack.c.l.b16 %v838
        %v1939 = vunpack.c.h.b16 %v838
        %v1940 = vunpack.c.l.b16 %v839
        %v1941 = vunpack.c.h.b16 %v839
        %v1942 = vunpack.c.l.b16 %v840
        %v1943 = vunpack.c.h.b16 %v840
        %v1944 = vunpack.c.l.b16 %v841
        %v1945 = vunpack.c.h.b16 %v841
        %v1946 = vunpack.c.l.b16 %v842
        %v1947 = vunpack.c.h.b16 %v842
        %v1948 = vunpack.c.l.b16 %v843
        %v1949 = vunpack.c.h.b16 %v843
        %v1950 = vunpack.c.l.b16 %v844
        %v1951 = vunpack.c.h.b16 %v844
        %v1952 = vunpack.c.l.b16 %v845
        %v1953 = vunpack.c.h.b16 %v845
        %v1954 = vunpack.c.l.b16 %v846
        %v1955 = vunpack.c.h.b16 %v846
        %v1956 = vunpack.c.l.b16 %v847
        %v1957 = vunpack.c.h.b16 %v847
        %v1958 = vunpack.c.l.b16 %v848
        %v1959 = vunpack.c.h.b16 %v848
        %v1960 = vunpack.c.l.b16 %v849
        %v1961 = vunpack.c.h.b16 %v849
        %v1962 = vunpack.c.l.b16 %v850
        %v1963 = vunpack.c.h.b16 %v850
        %v1964 = vunpack.c.l.b16 %v851
        %v1965 = vunpack.c.h.b16 %v851
        %v1966 = vunpack.c.l.b16 %v852
        %v1967 = vunpack.c.h.b16 %v852
        %v1968 = vunpack.c.l.b16 %v853
        %v1969 = vunpack.c.h.b16 %v853
        %v1970 = vunpack.c.l.b16 %v854
        %v1971 = vunpack.c.h.b16 %v854
        %v1972 = vunpack.c.l.b16 %v855
        %v1973 = vunpack.c.h.b16 %v855
        %v1974 = vunpack.c.l.b16 %v856
        %v1975 = vunpack.c.h.b16 %v856
        %v1976 = vunpack.c.l.b16 %v857
        %v1977 = vunpack.c.h.b16 %v857
        %v1978 = vunpack.c.l.b16 %v858
        %v1979 = vunpack.c.h.b16 %v858
        %v1980 = vunpack.c.l.b16 %v859
        %v1981 = vunpack.c.h.b16 %v859
        %v1982 = vunpack.c.l.b16 %v860
        %v1983 = vunpack.c.h.b16 %v860
        %v1984 = vunpack.c.l.b16 %v861
        %v1985 = vunpack.c.h.b16 %v861
        %v1986 = vunpack.c.l.b16 %v862
        %v1987 = vunpack.c.h.b16 %v862
        %v1988 = vunpack.c.l.b16 %v863
        %v1989 = vunpack.c.h.b16 %v863
        %v1990 = vunpack.c.l.b16 %v864
        %v1991 = vunpack.c.h.b16 %v864
        %v1992 = vunpack.c.l.b16 %v865
        %v1993 = vunpack.c.h.b16 %v865
        %v1994 = vunpack.c.l.b16 %v866
        %v1995 = vunpack.c.h.b16 %v866
        %v1996 = vunpack.c.l.b16 %v867
        %v1997 = vunpack.c.h.b16 %v867
        %v1998 = vunpack.c.l.b16 %v868
        %v1999 = vunpack.c.h.b16 %v868
        %v2000 = vunpack.c.l.b16 %v869
        %v2001 = vunpack.c.h.b16 %v869
        %v2002 = vunpack.c.l.b16 %v870
        %v2003 = vunpack.c.h.b16 %v870
        %v2004 = vunpack.c.l.b16 %v871
        %v2005 = vunpack.c.h.b16 %v871
        %v2006 = vunpack.c.l.b16 %v872
        %v2007 = vunpack.c.h.b16 %v872
        %v2008 = vunpack.c.l.b16 %v873
        %v2009 = vunpack.c.h.b16 %v873
        %v2010 = vunpack.c.l.b16 %v874
        %v2011 = vunpack.c.h.b16 %v874
        %v2012 = vunpack.c.l.b16 %v875
        %v2013 = vunpack.c.h.b16 %v875
        %v2014 = vunpack.c.l.b16 %v876
        %v2015 = vunpack.c.h.b16 %v876
        %v2016 = vunpack.c.l.b16 %v877
        %v2017 = vunpack.c.h.b16 %v877
        %v2018 = vunpack.c.l.b16 %v878
        %v2019 = vunpack.c.h.b16 %v878
        %v2020 = vunpack.c.l.b16 %v879
        %v2021 = vunpack.c.h.b16 %v879
        %v2022 = vunpack.c.l.b16 %v880
        %v2023 = vunpack.c.h.b16 %v880
        %v2024 = vunpack.c.l.b16 %v881
        %v2025 = vunpack.c.h.b16 %v881
        %v2026 = vunpack.c.l.b16 %v882
        %v2027 = vunpack.c.h.b16 %v882
        %v2028 = vunpack.c.l.b16 %v883
        %v2029 = vunpack.c.h.b16 %v883
        %v2030 = vunpack.c.l.b16 %v884
        %v2031 = vunpack.c.h.b16 %v884
        %v2032 = vunpack.c.l.b16 %v885
        %v2033 = vunpack.c.h.b16 %v885
        %v2034 = vunpack.c.l.b16 %v886
        %v2035 = vunpack.c.h.b16 %v886
        %v2036 = vunpack.c.l.b16 %v887
        %v2037 = vunpack.c.h.b16 %v887
        %v2038 = vunpack.c.l.b16 %v888
        %v2039 = vunpack.c.h.b16 %v888
        %v2040 = vunpack.c.l.b16 %v889
        %v2041 = vunpack.c.h.b16 %v889
        %v2042 = vunpack.c.l.b16 %v890
        %v2043 = vunpack.c.h.b16 %v890
        %v2044 = vunpack.c.l.b16 %v891
        %v2045 = vunpack.c.h.b16 %v891
        %v2046 = vunpack.c.l.b16 %v892
        %v2047 = vunpack.c.h.b16 %v892
        %v2048 = vunpack.c.l.b16 %v893
        %v2049 = vunpack.c.h.b16 %v893
        %v2050 = vunpack.c.l.b16 %v894
        %v2051 = vunpack.c.h.b16 %v894
        %v2052 = vunpack.c.l.b16 %v895
        %v2053 = vunpack.c.h.b16 %v895
        %v2054 = vunpack.c.l.b16 %v896
        %v2055 = vunpack.c.h.b16 %v896
        %v2056 = vunpack.c.l.b16 %v897
        %v2057 = vunpack.c.h.b16 %v897
        %v2058 = vunpack.c.l.b16 %v898
        %v2059 = vunpack.c.h.b16 %v898
        %v2060 = vunpack.c.l.b16 %v899
        %v2061 = vunpack.c.h.b16 %v899
        %v2062 = vunpack.c.l.b16 %v900
        %v2063 = vunpack.c.h.b16 %v900
        %v2064 = vunpack.c.l.b16 %v901
        %v2065 = vunpack.c.h.b16 %v901
        %v2066 = vunpack.c.l.b16 %v902
        %v2067 = vunpack.c.h.b16 %v902
        %v2068 = vunpack.c.l.b16 %v903
        %v2069 = vunpack.c.h.b16 %v903
        %v2070 = vunpack.c.l.b16 %v904
        %v2071 = vunpack.c.h.b16 %v904
        %v2072 = vunpack.c.l.b16 %v905
        %v2073 = vunpack.c.h.b16 %v905
        %v2074 = vunpack.c.l.b16 %v906
        %v2075 = vunpack.c.h.b16 %v906
        %v2076 = vunpack.c.l.b16 %v907
        %v2077 = vunpack.c.h.b16 %v907
        %v2078 = vunpack.c.l.b16 %v908
        %v2079 = vunpack.c.h.b16 %v908
        %v2080 = vunpack.c.l.b16 %v909
        %v2081 = vunpack.c.h.b16 %v909
        %v2082 = vunpack.c.l.b16 %v910
        %v2083 = vunpack.c.h.b16 %v910
        %v2084 = vunpack.c.l.b16 %v911
        %v2085 = vunpack.c.h.b16 %v911
        %v2086 = vunpack.c.l.b16 %v912
        %v2087 = vunpack.c.h.b16 %v912
        %v2088 = vunpack.c.l.b16 %v913
        %v2089 = vunpack.c.h.b16 %v913
        %v2090 = vunpack.c.l.b16 %v914
        %v2091 = vunpack.c.h.b16 %v914
        %v2092 = vunpack.c.l.b16 %v915
        %v2093 = vunpack.c.h.b16 %v915
        %v2094 = vunpack.c.l.b16 %v916
        %v2095 = vunpack.c.h.b16 %v916
        %v2096 = vunpack.c.l.b16 %v917
        %v2097 = vunpack.c.h.b16 %v917
        %v2098 = vunpack.c.l.b16 %v918
        %v2099 = vunpack.c.h.b16 %v918
        %v2100 = vunpack.c.l.b16 %v919
        %v2101 = vunpack.c.h.b16 %v919
        %v2102 = vunpack.c.l.b16 %v920
        %v2103 = vunpack.c.h.b16 %v920
        %v2104 = vunpack.c.l.b16 %v921
        %v2105 = vunpack.c.h.b16 %v921
        %v2106 = vunpack.c.l.b16 %v922
        %v2107 = vunpack.c.h.b16 %v922
        %v2108 = vunpack.c.l.b16 %v923
        %v2109 = vunpack.c.h.b16 %v923
        %v2110 = vunpack.c.l.b16 %v924
        %v2111 = vunpack.c.h.b16 %v924
        %v2112 = vunpack.c.l.b16 %v925
        %v2113 = vunpack.c.h.b16 %v925
        %v2114 = vunpack.c.l.b16 %v926
        %v2115 = vunpack.c.h.b16 %v926
        %v2116 = vunpack.c.l.b16 %v927
        %v2117 = vunpack.c.h.b16 %v927
        %v2118 = vunpack.c.l.b16 %v928
        %v2119 = vunpack.c.h.b16 %v928
        %v2120 = vunpack.c.l.b16 %v929
        %v2121 = vunpack.c.h.b16 %v929
        %v2122 = vunpack.c.l.b16 %v930
        %v2123 = vunpack.c.h.b16 %v930
        %v2124 = vunpack.c.l.b16 %v931
        %v2125 = vunpack.c.h.b16 %v931
        %v2126 = vpack.c.b16 %v1350, %v1342
        %v2127 = vpack.c.b16 %v1351, %v1343
        %v2128 = vpack.c.b16 %v1352, %v1344
        %v2129 = vpack.c.b16 %v1353, %v1345
        %v2130 = vpack.c.b16 %v1354, %v1346
        %v2131 = vpack.c.b16 %v1355, %v1347
        %v2132 = vpack.c.b16 %v1356, %v1348
        %v2133 = vpack.c.b16 %v1357, %v1349
        %v2134 = vpack.c.b16 %v1366, %v1358
        %v2135 = vpack.c.b16 %v1367, %v1359
        %v2136 = vpack.c.b16 %v1368, %v1360
        %v2137 = vpack.c.b16 %v1369, %v1361
        %v2138 = vpack.c.b16 %v1370, %v1362
        %v2139 = vpack.c.b16 %v1371, %v1363
        %v2140 = vpack.c.b16 %v1372, %v1364
        %v2141 = vpack.c.b16 %v1373, %v1365
        %v2142 = vpack.c.b16 %v1382, %v1374
        %v2143 = vpack.c.b16 %v1383, %v1375
        %v2144 = vpack.c.b16 %v1384, %v1376
        %v2145 = vpack.c.b16 %v1385, %v1377
        %v2146 = vpack.c.b16 %v1386, %v1378
        %v2147 = vpack.c.b16 %v1387, %v1379
        %v2148 = vpack.c.b16 %v1388, %v1380
        %v2149 = vpack.c.b16 %v1389, %v1381
        %v2150 = vpack.c.b16 %v1398, %v1390
        %v2151 = vpack.c.b16 %v1399, %v1391
        %v2152 = vpack.c.b16 %v1400, %v1392
        %v2153 = vpack.c.b16 %v1401, %v1393
        %v2154 = vpack.c.b16 %v1402, %v1394
        %v2155 = vpack.c.b16 %v1403, %v1395
        %v2156 = vpack.c.b16 %v1404, %v1396
        %v2157 = vpack.c.b16 %v1405, %v1397
        %v2158 = vpack.c.b16 %v1414, %v1406
        %v2159 = vpack.c.b16 %v1415, %v1407
        %v2160 = vpack.c.b16 %v1416, %v1408
        %v2161 = vpack.c.b16 %v1417, %v1409
        %v2162 = vpack.c.b16 %v1418, %v1410
        %v2163 = vpack.c.b16 %v1419, %v1411
        %v2164 = vpack.c.b16 %v1420, %v1412
        %v2165 = vpack.c.b16 %v1421, %v1413
        %v2166 = vpack.c.b16 %v1430, %v1422
        %v2167 = vpack.c.b16 %v1431, %v1423
        %v2168 = vpack.c.b16 %v1432, %v1424
        %v2169 = vpack.c.b16 %v1433, %v1425
        %v2170 = vpack.c.b16 %v1434, %v1426
        %v2171 = vpack.c.b16 %v1435, %v1427
        %v2172 = vpack.c.b16 %v1436, %v1428
        %v2173 = vpack.c.b16 %v1437, %v1429
        %v2174 = vpack.c.b16 %v1446, %v1438
        %v2175 = vpack.c.b16 %v1447, %v1439
        %v2176 = vpack.c.b16 %v1448, %v1440
        %v2177 = vpack.c.b16 %v1449, %v1441
        %v2178 = vpack.c.b16 %v1450, %v1442
        %v2179 = vpack.c.b16 %v1451, %v1443
        %v2180 = vpack.c.b16 %v1452, %v1444
        %v2181 = vpack.c.b16 %v1453, %v1445
        %v2182 = vpack.c.b16 %v1462, %v1454
        %v2183 = vpack.c.b16 %v1463, %v1455
        %v2184 = vpack.c.b16 %v1464, %v1456
        %v2185 = vpack.c.b16 %v1465, %v1457
        %v2186 = vpack.c.b16 %v1466, %v1458
        %v2187 = vpack.c.b16 %v1467, %v1459
        %v2188 = vpack.c.b16 %v1468, %v1460
        %v2189 = vpack.c.b16 %v1469, %v1461
        %v2190 = vpack.c.b16 %v1478, %v1470
        %v2191 = vpack.c.b16 %v1479, %v1471
        %v2192 = vpack.c.b16 %v1480, %v1472
        %v2193 = vpack.c.b16 %v1481, %v1473
        %v2194 = vpack.c.b16 %v1482, %v1474
        %v2195 = vpack.c.b16 %v1483, %v1475
        %v2196 = vpack.c.b16 %v1484, %v1476
        %v2197 = vpack.c.b16 %v1485, %v1477
        %v2198 = vpack.c.b16 %v1494, %v1486
        %v2199 = vpack.c.b16 %v1495, %v1487
        %v2200 = vpack.c.b16 %v1496, %v1488
        %v2201 = vpack.c.b16 %v1497, %v1489
        %v2202 = vpack.c.b16 %v1498, %v1490
        %v2203 = vpack.c.b16 %v1499, %v1491
        %v2204 = vpack.c.b16 %v1500, %v1492
        %v2205 = vpack.c.b16 %v1501, %v1493
        %v2206 = vpack.c.b16 %v1510, %v1502
        %v2207 = vpack.c.b16 %v1511, %v1503
        %v2208 = vpack.c.b16 %v1512, %v1504
        %v2209 = vpack.c.b16 %v1513, %v1505
        %v2210 = vpack.c.b16 %v1514, %v1506
        %v2211 = vpack.c.b16 %v1515, %v1507
        %v2212 = vpack.c.b16 %v1516, %v1508
        %v2213 = vpack.c.b16 %v1517, %v1509
        %v2214 = vpack.c.b16 %v1526, %v1518
        %v2215 = vpack.c.b16 %v1527, %v1519
        %v2216 = vpack.c.b16 %v1528, %v1520
        %v2217 = vpack.c.b16 %v1529, %v1521
        %v2218 = vpack.c.b16 %v1530, %v1522
        %v2219 = vpack.c.b16 %v1531, %v1523
        %v2220 = vpack.c.b16 %v1532, %v1524
        %v2221 = vpack.c.b16 %v1533, %v1525
        %v2222 = vpack.c.b16 %v1542, %v1534
        %v2223 = vpack.c.b16 %v1543, %v1535
        %v2224 = vpack.c.b16 %v1544, %v1536
        %v2225 = vpack.c.b16 %v1545, %v1537
        %v2226 = vpack.c.b16 %v1546, %v1538
        %v2227 = vpack.c.b16 %v1547, %v1539
        %v2228 = vpack.c.b16 %v1548, %v1540
        %v2229 = vpack.c.b16 %v1549, %v1541
        %v2230 = vpack.c.b16 %v1558, %v1550
        %v2231 = vpack.c.b16 %v1559, %v1551
        %v2232 = vpack.c.b16 %v1560, %v1552
        %v2233 = vpack.c.b16 %v1561, %v1553
        %v2234 = vpack.c.b16 %v1562, %v1554
        %v2235 = vpack.c.b16 %v1563, %v1555
        %v2236 = vpack.c.b16 %v1564, %v1556
        %v2237 = vpack.c.b16 %v1565, %v1557
        %v2238 = vpack.c.b16 %v1574, %v1566
        %v2239 = vpack.c.b16 %v1575, %v1567
        %v2240 = vpack.c.b16 %v1576, %v1568
        %v2241 = vpack.c.b16 %v1577, %v1569
        %v2242 = vpack.c.b16 %v1578, %v1570
        %v2243 = vpack.c.b16 %v1579, %v1571
        %v2244 = vpack.c.b16 %v1580, %v1572
        %v2245 = vpack.c.b16 %v1581, %v1573
        %v2246 = vpack.c.b16 %v1590, %v1582
        %v2247 = vpack.c.b16 %v1591, %v1583
        %v2248 = vpack.c.b16 %v1592, %v1584
        %v2249 = vpack.c.b16 %v1593, %v1585
        %v2250 = vpack.c.b16 %v1594, %v1586
        %v2251 = vpack.c.b16 %v1595, %v1587
        %v2252 = vpack.c.b16 %v1596, %v1588
        %v2253 = vpack.c.b16 %v1597, %v1589
        %v2254 = vpack.c.b16 %v1606, %v1598
        %v2255 = vpack.c.b16 %v1607, %v1599
        %v2256 = vpack.c.b16 %v1608, %v1600
        %v2257 = vpack.c.b16 %v1609, %v1601
        %v2258 = vpack.c.b16 %v1610, %v1602
        %v2259 = vpack.c.b16 %v1611, %v1603
        %v2260 = vpack.c.b16 %v1612, %v1604
        %v2261 = vpack.c.b16 %v1613, %v1605
        %v2262 = vpack.c.b16 %v1622, %v1614
        %v2263 = vpack.c.b16 %v1623, %v1615
        %v2264 = vpack.c.b16 %v1624, %v1616
        %v2265 = vpack.c.b16 %v1625, %v1617
        %v2266 = vpack.c.b16 %v1626, %v1618
        %v2267 = vpack.c.b16 %v1627, %v1619
        %v2268 = vpack.c.b16 %v1628, %v1620
        %v2269 = vpack.c.b16 %v1629, %v1621
        %v2270 = vpack.c.b16 %v1638, %v1630
        %v2271 = vpack.c.b16 %v1639, %v1631
        %v2272 = vpack.c.b16 %v1640, %v1632
        %v2273 = vpack.c.b16 %v1641, %v1633
        %v2274 = vpack.c.b16 %v1642, %v1634
        %v2275 = vpack.c.b16 %v1643, %v1635
        %v2276 = vpack.c.b16 %v1644, %v1636
        %v2277 = vpack.c.b16 %v1645, %v1637
        %v2278 = vpack.c.b16 %v1654, %v1646
        %v2279 = vpack.c.b16 %v1655, %v1647
        %v2280 = vpack.c.b16 %v1656, %v1648
        %v2281 = vpack.c.b16 %v1657, %v1649
        %v2282 = vpack.c.b16 %v1658, %v1650
        %v2283 = vpack.c.b16 %v1659, %v1651
        %v2284 = vpack.c.b16 %v1660, %v1652
        %v2285 = vpack.c.b16 %v1661, %v1653
        %v2286 = vpack.c.b16 %v1670, %v1662
        %v2287 = vpack.c.b16 %v1671, %v1663
        %v2288 = vpack.c.b16 %v1672, %v1664
        %v2289 = vpack.c.b16 %v1673, %v1665
        %v2290 = vpack.c.b16 %v1674, %v1666
        %v2291 = vpack.c.b16 %v1675, %v1667
        %v2292 = vpack.c.b16 %v1676, %v1668
        %v2293 = vpack.c.b16 %v1677, %v1669
        %v2294 = vpack.c.b16 %v1686, %v1678
        %v2295 = vpack.c.b16 %v1687, %v1679
        %v2296 = vpack.c.b16 %v1688, %v1680
        %v2297 = vpack.c.b16 %v1689, %v1681
        %v2298 = vpack.c.b16 %v1690, %v1682
        %v2299 = vpack.c.b16 %v1691, %v1683
        %v2300 = vpack.c.b16 %v1692, %v1684
        %v2301 = vpack.c.b16 %v1693, %v1685
        %v2302 = vpack.c.b16 %v1702, %v1694
        %v2303 = vpack.c.b16 %v1703, %v1695
        %v2304 = vpack.c.b16 %v1704, %v1696
        %v2305 = vpack.c.b16 %v1705, %v1697
        %v2306 = vpack.c.b16 %v1706, %v1698
        %v2307 = vpack.c.b16 %v1707, %v1699
        %v2308 = vpack.c.b16 %v1708, %v1700
        %v2309 = vpack.c.b16 %v1709, %v1701
        %v2310 = vpack.c.b16 %v1718, %v1710
        %v2311 = vpack.c.b16 %v1719, %v1711
        %v2312 = vpack.c.b16 %v1720, %v1712
        %v2313 = vpack.c.b16 %v1721, %v1713
        %v2314 = vpack.c.b16 %v1722, %v1714
        %v2315 = vpack.c.b16 %v1723, %v1715
        %v2316 = vpack.c.b16 %v1724, %v1716
        %v2317 = vpack.c.b16 %v1725, %v1717
        %v2318 = vpack.c.b16 %v1734, %v1726
        %v2319 = vpack.c.b16 %v1735, %v1727
        %v2320 = vpack.c.b16 %v1736, %v1728
        %v2321 = vpack.c.b16 %v1737, %v1729
        %v2322 = vpack.c.b16 %v1738, %v1730
        %v2323 = vpack.c.b16 %v1739, %v1731
        %v2324 = vpack.c.b16 %v1740, %v1732
        %v2325 = vpack.c.b16 %v1741, %v1733
        %v2326 = vpack.c.b16 %v1750, %v1742
        %v2327 = vpack.c.b16 %v1751, %v1743
        %v2328 = vpack.c.b16 %v1752, %v1744
        %v2329 = vpack.c.b16 %v1753, %v1745
        %v2330 = vpack.c.b16 %v1754, %v1746
        %v2331 = vpack.c.b16 %v1755, %v1747
        %v2332 = vpack.c.b16 %v1756, %v1748
        %v2333 = vpack.c.b16 %v1757, %v1749
        %v2334 = vpack.c.b16 %v1766, %v1758
        %v2335 = vpack.c.b16 %v1767, %v1759
        %v2336 = vpack.c.b16 %v1768, %v1760
        %v2337 = vpack.c.b16 %v1769, %v1761
        %v2338 = vpack.c.b16 %v1770, %v1762
        %v2339 = vpack.c.b16 %v1771, %v1763
        %v2340 = vpack.c.b16 %v1772, %v1764
        %v2341 = vpack.c.b16 %v1773, %v1765
        %v2342 = vpack.c.b16 %v1782, %v1774
        %v2343 = vpack.c.b16 %v1783, %v1775
        %v2344 = vpack.c.b16 %v1784, %v1776
        %v2345 = vpack.c.b16 %v1785, %v1777
        %v2346 = vpack.c.b16 %v1786, %v1778
        %v2347 = vpack.c.b16 %v1787, %v1779
        %v2348 = vpack.c.b16 %v1788, %v1780
        %v2349 = vpack.c.b16 %v1789, %v1781
        %v2350 = vpack.c.b16 %v1798, %v1790
        %v2351 = vpack.c.b16 %v1799, %v1791
        %v2352 = vpack.c.b16 %v1800, %v1792
        %v2353 = vpack.c.b16 %v1801, %v1793
        %v2354 = vpack.c.b16 %v1802, %v1794
        %v2355 = vpack.c.b16 %v1803, %v1795
        %v2356 = vpack.c.b16 %v1804, %v1796
        %v2357 = vpack.c.b16 %v1805, %v1797
        %v2358 = vpack.c.b16 %v1814, %v1806
        %v2359 = vpack.c.b16 %v1815, %v1807
        %v2360 = vpack.c.b16 %v1816, %v1808
        %v2361 = vpack.c.b16 %v1817, %v1809
        %v2362 = vpack.c.b16 %v1818, %v1810
        %v2363 = vpack.c.b16 %v1819, %v1811
        %v2364 = vpack.c.b16 %v1820, %v1812
        %v2365 = vpack.c.b16 %v1821, %v1813
        %v2366 = vpack.c.b16 %v1830, %v1822
        %v2367 = vpack.c.b16 %v1831, %v1823
        %v2368 = vpack.c.b16 %v1832, %v1824
        %v2369 = vpack.c.b16 %v1833, %v1825
        %v2370 = vpack.c.b16 %v1834, %v1826
        %v2371 = vpack.c.b16 %v1835, %v1827
        %v2372 = vpack.c.b16 %v1836, %v1828
        %v2373 = vpack.c.b16 %v1837, %v1829
        %v2374 = vpack.c.b16 %v1846, %v1838
        %v2375 = vpack.c.b16 %v1847, %v1839
        %v2376 = vpack.c.b16 %v1848, %v1840
        %v2377 = vpack.c.b16 %v1849, %v1841
        %v2378 = vpack.c.b16 %v1850, %v1842
        %v2379 = vpack.c.b16 %v1851, %v1843
        %v2380 = vpack.c.b16 %v1852, %v1844
        %v2381 = vpack.c.b16 %v1853, %v1845
        %v2382 = vpack.c.b16 %v1862, %v1854
        %v2383 = vpack.c.b16 %v1863, %v1855
        %v2384 = vpack.c.b16 %v1864, %v1856
        %v2385 = vpack.c.b16 %v1865, %v1857
        %v2386 = vpack.c.b16 %v1866, %v1858
        %v2387 = vpack.c.b16 %v1867, %v1859
        %v2388 = vpack.c.b16 %v1868, %v1860
        %v2389 = vpack.c.b16 %v1869, %v1861
        %v2390 = vpack.c.b16 %v1878, %v1870
        %v2391 = vpack.c.b16 %v1879, %v1871
        %v2392 = vpack.c.b16 %v1880, %v1872
        %v2393 = vpack.c.b16 %v1881, %v1873
        %v2394 = vpack.c.b16 %v1882, %v1874
        %v2395 = vpack.c.b16 %v1883, %v1875
        %v2396 = vpack.c.b16 %v1884, %v1876
        %v2397 = vpack.c.b16 %v1885, %v1877
        %v2398 = vpack.c.b16 %v1894, %v1886
        %v2399 = vpack.c.b16 %v1895, %v1887
        %v2400 = vpack.c.b16 %v1896, %v1888
        %v2401 = vpack.c.b16 %v1897, %v1889
        %v2402 = vpack.c.b16 %v1898, %v1890
        %v2403 = vpack.c.b16 %v1899, %v1891
        %v2404 = vpack.c.b16 %v1900, %v1892
        %v2405 = vpack.c.b16 %v1901, %v1893
        %v2406 = vpack.c.b16 %v1910, %v1902
        %v2407 = vpack.c.b16 %v1911, %v1903
        %v2408 = vpack.c.b16 %v1912, %v1904
        %v2409 = vpack.c.b16 %v1913, %v1905
        %v2410 = vpack.c.b16 %v1914, %v1906
        %v2411 = vpack.c.b16 %v1915, %v1907
        %v2412 = vpack.c.b16 %v1916, %v1908
        %v2413 = vpack.c.b16 %v1917, %v1909
        %v2414 = vpack.c.b16 %v1926, %v1918
        %v2415 = vpack.c.b16 %v1927, %v1919
        %v2416 = vpack.c.b16 %v1928, %v1920
        %v2417 = vpack.c.b16 %v1929, %v1921
        %v2418 = vpack.c.b16 %v1930, %v1922
        %v2419 = vpack.c.b16 %v1931, %v1923
        %v2420 = vpack.c.b16 %v1932, %v1924
        %v2421 = vpack.c.b16 %v1933, %v1925
        %v2422 = vpack.c.b16 %v1942, %v1934
        %v2423 = vpack.c.b16 %v1943, %v1935
        %v2424 = vpack.c.b16 %v1944, %v1936
        %v2425 = vpack.c.b16 %v1945, %v1937
        %v2426 = vpack.c.b16 %v1946, %v1938
        %v2427 = vpack.c.b16 %v1947, %v1939
        %v2428 = vpack.c.b16 %v1948, %v1940
        %v2429 = vpack.c.b16 %v1949, %v1941
        %v2430 = vpack.c.b16 %v1958, %v1950
        %v2431 = vpack.c.b16 %v1959, %v1951
        %v2432 = vpack.c.b16 %v1960, %v1952
        %v2433 = vpack.c.b16 %v1961, %v1953
        %v2434 = vpack.c.b16 %v1962, %v1954
        %v2435 = vpack.c.b16 %v1963, %v1955
        %v2436 = vpack.c.b16 %v1964, %v1956
        %v2437 = vpack.c.b16 %v1965, %v1957
        %v2438 = vpack.c.b16 %v1974, %v1966
        %v2439 = vpack.c.b16 %v1975, %v1967
        %v2440 = vpack.c.b16 %v1976, %v1968
        %v2441 = vpack.c.b16 %v1977, %v1969
        %v2442 = vpack.c.b16 %v1978, %v1970
        %v2443 = vpack.c.b16 %v1979, %v1971
        %v2444 = vpack.c.b16 %v1980, %v1972
        %v2445 = vpack.c.b16 %v1981, %v1973
        %v2446 = vpack.c.b16 %v1990, %v1982
        %v2447 = vpack.c.b16 %v1991, %v1983
        %v2448 = vpack.c.b16 %v1992, %v1984
        %v2449 = vpack.c.b16 %v1993, %v1985
        %v2450 = vpack.c.b16 %v1994, %v1986
        %v2451 = vpack.c.b16 %v1995, %v1987
        %v2452 = vpack.c.b16 %v1996, %v1988
        %v2453 = vpack.c.b16 %v1997, %v1989
        %v2454 = vpack.c.b16 %v2006, %v1998
        %v2455 = vpack.c.b16 %v2007, %v1999
        %v2456 = vpack.c.b16 %v2008, %v2000
        %v2457 = vpack.c.b16 %v2009, %v2001
        %v2458 = vpack.c.b16 %v2010, %v2002
        %v2459 = vpack.c.b16 %v2011, %v2003
        %v2460 = vpack.c.b16 %v2012, %v2004
        %v2461 = vpack.c.b16 %v2013, %v2005
        %v2462 = vpack.c.b16 %v2022, %v2014
        %v2463 = vpack.c.b16 %v2023, %v2015
        %v2464 = vpack.c.b16 %v2024, %v2016
        %v2465 = vpack.c.b16 %v2025, %v2017
        %v2466 = vpack.c.b16 %v2026, %v2018
        %v2467 = vpack.c.b16 %v2027, %v2019
        %v2468 = vpack.c.b16 %v2028, %v2020
        %v2469 = vpack.c.b16 %v2029, %v2021
        %v2470 = vpack.c.b16 %v2038, %v2030
        %v2471 = vpack.c.b16 %v2039, %v2031
        %v2472 = vpack.c.b16 %v2040, %v2032
        %v2473 = vpack.c.b16 %v2041, %v2033
        %v2474 = vpack.c.b16 %v2042, %v2034
        %v2475 = vpack.c.b16 %v2043, %v2035
        %v2476 = vpack.c.b16 %v2044, %v2036
        %v2477 = vpack.c.b16 %v2045, %v2037
        %v2478 = vpack.c.b16 %v2054, %v2046
        %v2479 = vpack.c.b16 %v2055, %v2047
        %v2480 = vpack.c.b16 %v2056, %v2048
        %v2481 = vpack.c.b16 %v2057, %v2049
        %v2482 = vpack.c.b16 %v2058, %v2050
        %v2483 = vpack.c.b16 %v2059, %v2051
        %v2484 = vpack.c.b16 %v2060, %v2052
        %v2485 = vpack.c.b16 %v2061, %v2053
        %v2486 = vpack.c.b16 %v2070, %v2062
        %v2487 = vpack.c.b16 %v2071, %v2063
        %v2488 = vpack.c.b16 %v2072, %v2064
        %v2489 = vpack.c.b16 %v2073, %v2065
        %v2490 = vpack.c.b16 %v2074, %v2066
        %v2491 = vpack.c.b16 %v2075, %v2067
        %v2492 = vpack.c.b16 %v2076, %v2068
        %v2493 = vpack.c.b16 %v2077, %v2069
        %v2494 = vpack.c.b16 %v2086, %v2078
        %v2495 = vpack.c.b16 %v2087, %v2079
        %v2496 = vpack.c.b16 %v2088, %v2080
        %v2497 = vpack.c.b16 %v2089, %v2081
        %v2498 = vpack.c.b16 %v2090, %v2082
        %v2499 = vpack.c.b16 %v2091, %v2083
        %v2500 = vpack.c.b16 %v2092, %v2084
        %v2501 = vpack.c.b16 %v2093, %v2085
        %v2502 = vpack.c.b16 %v2102, %v2094
        %v2503 = vpack.c.b16 %v2103, %v2095
        %v2504 = vpack.c.b16 %v2104, %v2096
        %v2505 = vpack.c.b16 %v2105, %v2097
        %v2506 = vpack.c.b16 %v2106, %v2098
        %v2507 = vpack.c.b16 %v2107, %v2099
        %v2508 = vpack.c.b16 %v2108, %v2100
        %v2509 = vpack.c.b16 %v2109, %v2101
        %v2510 = vpack.c.b16 %v2118, %v2110
        %v2511 = vpack.c.b16 %v2119, %v2111
        %v2512 = vpack.c.b16 %v2120, %v2112
        %v2513 = vpack.c.b16 %v2121, %v2113
        %v2514 = vpack.c.b16 %v2122, %v2114
        %v2515 = vpack.c.b16 %v2123, %v2115
        %v2516 = vpack.c.b16 %v2124, %v2116
        %v2517 = vpack.c.b16 %v2125, %v2117
        %vm2910 = vcmask 130048
        %v2912 = vsel %vm2910, %v490, 0
        %v2915 = vsel %vm2910, %v497, 0
        %v2918 = vsel %vm2910, %v504, 0
        %v2921 = vsel %vm2910, %v511, 0
        %v2924 = vsel %vm2910, %v518, 0
        %v2927 = vsel %vm2910, %v525, 0
        %v2930 = vsel %vm2910, %v532, 0
        %v2933 = vsel %vm2910, %v539, 0
        %2935 = vmatpush.bf16.msra.mxu0 %v2182
        %2936 = vmatpush.bf16.msra.mxu0 %v2174
        %2937 = vmatpush.bf16.msra.mxu0 %v2166
        %2938 = vmatpush.bf16.msra.mxu0 %v2158
        %2939 = vmatpush.bf16.msra.mxu0 %v2150
        %2940 = vmatpush.bf16.msra.mxu0 %v2142
        %2941 = vmatpush.bf16.msra.mxu0 %v2134
        %2942 = vmatpush.bf16.msra.mxu0 %v2126
        %2943 = vmatmul.bf16.gmra.mxu0 %v484
        %v2944 = vpop.f32.mrf.mxu0
        %v2945 = vadd.f32 %v934, %v2944
        %v2946 = vpop.f32.mrf.mxu0
        %v2947 = vadd.f32 %v934, %v2946
        %2948 = vmatmul.bf16.gmra.mxu0 %v491
        %v2949 = vpop.f32.mrf.mxu0
        %v2950 = vadd.f32 %v934, %v2949
        %v2951 = vpop.f32.mrf.mxu0
        %v2952 = vadd.f32 %v934, %v2951
        %2953 = vmatmul.bf16.gmra.mxu0 %v498
        %v2954 = vpop.f32.mrf.mxu0
        %v2955 = vadd.f32 %v934, %v2954
        %v2956 = vpop.f32.mrf.mxu0
        %v2957 = vadd.f32 %v934, %v2956
        %2958 = vmatmul.bf16.gmra.mxu0 %v505
        %v2959 = vpop.f32.mrf.mxu0
        %v2960 = vadd.f32 %v934, %v2959
        %v2961 = vpop.f32.mrf.mxu0
        %v2962 = vadd.f32 %v934, %v2961
        %2963 = vmatmul.bf16.gmra.mxu0 %v512
        %v2964 = vpop.f32.mrf.mxu0
        %v2965 = vadd.f32 %v934, %v2964
        %v2966 = vpop.f32.mrf.mxu0
        %v2967 = vadd.f32 %v934, %v2966
        %2968 = vmatmul.bf16.gmra.mxu0 %v519
        %v2969 = vpop.f32.mrf.mxu0
        %v2970 = vadd.f32 %v934, %v2969
        %v2971 = vpop.f32.mrf.mxu0
        %v2972 = vadd.f32 %v934, %v2971
        %2973 = vmatmul.bf16.gmra.mxu0 %v526
        %v2974 = vpop.f32.mrf.mxu0
        %v2975 = vadd.f32 %v934, %v2974
        %v2976 = vpop.f32.mrf.mxu0
        %v2977 = vadd.f32 %v934, %v2976
        %2978 = vmatmul.bf16.gmra.mxu0 %v533
        %v2979 = vpop.f32.mrf.mxu0
        %v2980 = vadd.f32 %v934, %v2979
        %v2981 = vpop.f32.mrf.mxu0
        %v2982 = vadd.f32 %v934, %v2981
        %2983 = vdwg.mxu0
        %2984 = vmatpush.bf16.msra.mxu0 %v2246
        %2985 = vmatpush.bf16.msra.mxu0 %v2238
        %2986 = vmatpush.bf16.msra.mxu0 %v2230
        %2987 = vmatpush.bf16.msra.mxu0 %v2222
        %2988 = vmatpush.bf16.msra.mxu0 %v2214
        %2989 = vmatpush.bf16.msra.mxu0 %v2206
        %2990 = vmatpush.bf16.msra.mxu0 %v2198
        %2991 = vmatpush.bf16.msra.mxu0 %v2190
        %2992 = vmatmul.bf16.gmra.mxu0 %v485
        %v2993 = vpop.f32.mrf.mxu0
        %v2994 = vadd.f32 %v2945, %v2993
        %v2995 = vpop.f32.mrf.mxu0
        %v2996 = vadd.f32 %v2947, %v2995
        %2997 = vmatmul.bf16.gmra.mxu0 %v492
        %v2998 = vpop.f32.mrf.mxu0
        %v2999 = vadd.f32 %v2950, %v2998
        %v3000 = vpop.f32.mrf.mxu0
        %v3001 = vadd.f32 %v2952, %v3000
        %3002 = vmatmul.bf16.gmra.mxu0 %v499
        %v3003 = vpop.f32.mrf.mxu0
        %v3004 = vadd.f32 %v2955, %v3003
        %v3005 = vpop.f32.mrf.mxu0
        %v3006 = vadd.f32 %v2957, %v3005
        %3007 = vmatmul.bf16.gmra.mxu0 %v506
        %v3008 = vpop.f32.mrf.mxu0
        %v3009 = vadd.f32 %v2960, %v3008
        %v3010 = vpop.f32.mrf.mxu0
        %v3011 = vadd.f32 %v2962, %v3010
        %3012 = vmatmul.bf16.gmra.mxu0 %v513
        %v3013 = vpop.f32.mrf.mxu0
        %v3014 = vadd.f32 %v2965, %v3013
        %v3015 = vpop.f32.mrf.mxu0
        %v3016 = vadd.f32 %v2967, %v3015
        %3017 = vmatmul.bf16.gmra.mxu0 %v520
        %v3018 = vpop.f32.mrf.mxu0
        %v3019 = vadd.f32 %v2970, %v3018
        %v3020 = vpop.f32.mrf.mxu0
        %v3021 = vadd.f32 %v2972, %v3020
        %3022 = vmatmul.bf16.gmra.mxu0 %v527
        %v3023 = vpop.f32.mrf.mxu0
        %v3024 = vadd.f32 %v2975, %v3023
        %v3025 = vpop.f32.mrf.mxu0
        %v3026 = vadd.f32 %v2977, %v3025
        %3027 = vmatmul.bf16.gmra.mxu0 %v534
        %v3028 = vpop.f32.mrf.mxu0
        %v3029 = vadd.f32 %v2980, %v3028
        %v3030 = vpop.f32.mrf.mxu0
        %v3031 = vadd.f32 %v2982, %v3030
        %3032 = vdwg.mxu0
        %3033 = vmatpush.bf16.msra.mxu0 %v2310
        %3034 = vmatpush.bf16.msra.mxu0 %v2302
        %3035 = vmatpush.bf16.msra.mxu0 %v2294
        %3036 = vmatpush.bf16.msra.mxu0 %v2286
        %3037 = vmatpush.bf16.msra.mxu0 %v2278
        %3038 = vmatpush.bf16.msra.mxu0 %v2270
        %3039 = vmatpush.bf16.msra.mxu0 %v2262
        %3040 = vmatpush.bf16.msra.mxu0 %v2254
        %3041 = vmatmul.bf16.gmra.mxu0 %v486
        %v3042 = vpop.f32.mrf.mxu0
        %v3043 = vadd.f32 %v2994, %v3042
        %v3044 = vpop.f32.mrf.mxu0
        %v3045 = vadd.f32 %v2996, %v3044
        %3046 = vmatmul.bf16.gmra.mxu0 %v493
        %v3047 = vpop.f32.mrf.mxu0
        %v3048 = vadd.f32 %v2999, %v3047
        %v3049 = vpop.f32.mrf.mxu0
        %v3050 = vadd.f32 %v3001, %v3049
        %3051 = vmatmul.bf16.gmra.mxu0 %v500
        %v3052 = vpop.f32.mrf.mxu0
        %v3053 = vadd.f32 %v3004, %v3052
        %v3054 = vpop.f32.mrf.mxu0
        %v3055 = vadd.f32 %v3006, %v3054
        %3056 = vmatmul.bf16.gmra.mxu0 %v507
        %v3057 = vpop.f32.mrf.mxu0
        %v3058 = vadd.f32 %v3009, %v3057
        %v3059 = vpop.f32.mrf.mxu0
        %v3060 = vadd.f32 %v3011, %v3059
        %3061 = vmatmul.bf16.gmra.mxu0 %v514
        %v3062 = vpop.f32.mrf.mxu0
        %v3063 = vadd.f32 %v3014, %v3062
        %v3064 = vpop.f32.mrf.mxu0
        %v3065 = vadd.f32 %v3016, %v3064
        %3066 = vmatmul.bf16.gmra.mxu0 %v521
        %v3067 = vpop.f32.mrf.mxu0
        %v3068 = vadd.f32 %v3019, %v3067
        %v3069 = vpop.f32.mrf.mxu0
        %v3070 = vadd.f32 %v3021, %v3069
        %3071 = vmatmul.bf16.gmra.mxu0 %v528
        %v3072 = vpop.f32.mrf.mxu0
        %v3073 = vadd.f32 %v3024, %v3072
        %v3074 = vpop.f32.mrf.mxu0
        %v3075 = vadd.f32 %v3026, %v3074
        %3076 = vmatmul.bf16.gmra.mxu0 %v535
        %v3077 = vpop.f32.mrf.mxu0
        %v3078 = vadd.f32 %v3029, %v3077
        %v3079 = vpop.f32.mrf.mxu0
        %v3080 = vadd.f32 %v3031, %v3079
        %3081 = vdwg.mxu0
        %3082 = vmatpush.bf16.msra.mxu0 %v2374
        %3083 = vmatpush.bf16.msra.mxu0 %v2366
        %3084 = vmatpush.bf16.msra.mxu0 %v2358
        %3085 = vmatpush.bf16.msra.mxu0 %v2350
        %3086 = vmatpush.bf16.msra.mxu0 %v2342
        %3087 = vmatpush.bf16.msra.mxu0 %v2334
        %3088 = vmatpush.bf16.msra.mxu0 %v2326
        %3089 = vmatpush.bf16.msra.mxu0 %v2318
        %3090 = vmatmul.bf16.gmra.mxu0 %v487
        %v3091 = vpop.f32.mrf.mxu0
        %v3092 = vadd.f32 %v3043, %v3091
        %v3093 = vpop.f32.mrf.mxu0
        %v3094 = vadd.f32 %v3045, %v3093
        %3095 = vmatmul.bf16.gmra.mxu0 %v494
        %v3096 = vpop.f32.mrf.mxu0
        %v3097 = vadd.f32 %v3048, %v3096
        %v3098 = vpop.f32.mrf.mxu0
        %v3099 = vadd.f32 %v3050, %v3098
        %3100 = vmatmul.bf16.gmra.mxu0 %v501
        %v3101 = vpop.f32.mrf.mxu0
        %v3102 = vadd.f32 %v3053, %v3101
        %v3103 = vpop.f32.mrf.mxu0
        %v3104 = vadd.f32 %v3055, %v3103
        %3105 = vmatmul.bf16.gmra.mxu0 %v508
        %v3106 = vpop.f32.mrf.mxu0
        %v3107 = vadd.f32 %v3058, %v3106
        %v3108 = vpop.f32.mrf.mxu0
        %v3109 = vadd.f32 %v3060, %v3108
        %3110 = vmatmul.bf16.gmra.mxu0 %v515
        %v3111 = vpop.f32.mrf.mxu0
        %v3112 = vadd.f32 %v3063, %v3111
        %v3113 = vpop.f32.mrf.mxu0
        %v3114 = vadd.f32 %v3065, %v3113
        %3115 = vmatmul.bf16.gmra.mxu0 %v522
        %v3116 = vpop.f32.mrf.mxu0
        %v3117 = vadd.f32 %v3068, %v3116
        %v3118 = vpop.f32.mrf.mxu0
        %v3119 = vadd.f32 %v3070, %v3118
        %3120 = vmatmul.bf16.gmra.mxu0 %v529
        %v3121 = vpop.f32.mrf.mxu0
        %v3122 = vadd.f32 %v3073, %v3121
        %v3123 = vpop.f32.mrf.mxu0
        %v3124 = vadd.f32 %v3075, %v3123
        %3125 = vmatmul.bf16.gmra.mxu0 %v536
        %v3126 = vpop.f32.mrf.mxu0
        %v3127 = vadd.f32 %v3078, %v3126
        %v3128 = vpop.f32.mrf.mxu0
        %v3129 = vadd.f32 %v3080, %v3128
        %3130 = vdwg.mxu0
        %3131 = vmatpush.bf16.msra.mxu0 %v2438
        %3132 = vmatpush.bf16.msra.mxu0 %v2430
        %3133 = vmatpush.bf16.msra.mxu0 %v2422
        %3134 = vmatpush.bf16.msra.mxu0 %v2414
        %3135 = vmatpush.bf16.msra.mxu0 %v2406
        %3136 = vmatpush.bf16.msra.mxu0 %v2398
        %3137 = vmatpush.bf16.msra.mxu0 %v2390
        %3138 = vmatpush.bf16.msra.mxu0 %v2382
        %3139 = vmatmul.bf16.gmra.mxu0 %v488
        %v3140 = vpop.f32.mrf.mxu0
        %v3141 = vadd.f32 %v3092, %v3140
        %v3142 = vpop.f32.mrf.mxu0
        %v3143 = vadd.f32 %v3094, %v3142
        %3144 = vmatmul.bf16.gmra.mxu0 %v495
        %v3145 = vpop.f32.mrf.mxu0
        %v3146 = vadd.f32 %v3097, %v3145
        %v3147 = vpop.f32.mrf.mxu0
        %v3148 = vadd.f32 %v3099, %v3147
        %3149 = vmatmul.bf16.gmra.mxu0 %v502
        %v3150 = vpop.f32.mrf.mxu0
        %v3151 = vadd.f32 %v3102, %v3150
        %v3152 = vpop.f32.mrf.mxu0
        %v3153 = vadd.f32 %v3104, %v3152
        %3154 = vmatmul.bf16.gmra.mxu0 %v509
        %v3155 = vpop.f32.mrf.mxu0
        %v3156 = vadd.f32 %v3107, %v3155
        %v3157 = vpop.f32.mrf.mxu0
        %v3158 = vadd.f32 %v3109, %v3157
        %3159 = vmatmul.bf16.gmra.mxu0 %v516
        %v3160 = vpop.f32.mrf.mxu0
        %v3161 = vadd.f32 %v3112, %v3160
        %v3162 = vpop.f32.mrf.mxu0
        %v3163 = vadd.f32 %v3114, %v3162
        %3164 = vmatmul.bf16.gmra.mxu0 %v523
        %v3165 = vpop.f32.mrf.mxu0
        %v3166 = vadd.f32 %v3117, %v3165
        %v3167 = vpop.f32.mrf.mxu0
        %v3168 = vadd.f32 %v3119, %v3167
        %3169 = vmatmul.bf16.gmra.mxu0 %v530
        %v3170 = vpop.f32.mrf.mxu0
        %v3171 = vadd.f32 %v3122, %v3170
        %v3172 = vpop.f32.mrf.mxu0
        %v3173 = vadd.f32 %v3124, %v3172
        %3174 = vmatmul.bf16.gmra.mxu0 %v537
        %v3175 = vpop.f32.mrf.mxu0
        %v3176 = vadd.f32 %v3127, %v3175
        %v3177 = vpop.f32.mrf.mxu0
        %v3178 = vadd.f32 %v3129, %v3177
        %3179 = vdwg.mxu0
        %3180 = vmatpush.bf16.msra.mxu0 %v2502
        %3181 = vmatpush.bf16.msra.mxu0 %v2494
        %3182 = vmatpush.bf16.msra.mxu0 %v2486
        %3183 = vmatpush.bf16.msra.mxu0 %v2478
        %3184 = vmatpush.bf16.msra.mxu0 %v2470
        %3185 = vmatpush.bf16.msra.mxu0 %v2462
        %3186 = vmatpush.bf16.msra.mxu0 %v2454
        %3187 = vmatpush.bf16.msra.mxu0 %v2446
        %3188 = vmatmul.bf16.gmra.mxu0 %v489
        %v3189 = vpop.f32.mrf.mxu0
        %v3190 = vadd.f32 %v3141, %v3189
        %v3191 = vpop.f32.mrf.mxu0
        %v3192 = vadd.f32 %v3143, %v3191
        %3193 = vmatmul.bf16.gmra.mxu0 %v496
        %v3194 = vpop.f32.mrf.mxu0
        %v3195 = vadd.f32 %v3146, %v3194
        %v3196 = vpop.f32.mrf.mxu0
        %v3197 = vadd.f32 %v3148, %v3196
        %3198 = vmatmul.bf16.gmra.mxu0 %v503
        %v3199 = vpop.f32.mrf.mxu0
        %v3200 = vadd.f32 %v3151, %v3199
        %v3201 = vpop.f32.mrf.mxu0
        %v3202 = vadd.f32 %v3153, %v3201
        %3203 = vmatmul.bf16.gmra.mxu0 %v510
        %v3204 = vpop.f32.mrf.mxu0
        %v3205 = vadd.f32 %v3156, %v3204
        %v3206 = vpop.f32.mrf.mxu0
        %v3207 = vadd.f32 %v3158, %v3206
        %3208 = vmatmul.bf16.gmra.mxu0 %v517
        %v3209 = vpop.f32.mrf.mxu0
        %v3210 = vadd.f32 %v3161, %v3209
        %v3211 = vpop.f32.mrf.mxu0
        %v3212 = vadd.f32 %v3163, %v3211
        %3213 = vmatmul.bf16.gmra.mxu0 %v524
        %v3214 = vpop.f32.mrf.mxu0
        %v3215 = vadd.f32 %v3166, %v3214
        %v3216 = vpop.f32.mrf.mxu0
        %v3217 = vadd.f32 %v3168, %v3216
        %3218 = vmatmul.bf16.gmra.mxu0 %v531
        %v3219 = vpop.f32.mrf.mxu0
        %v3220 = vadd.f32 %v3171, %v3219
        %v3221 = vpop.f32.mrf.mxu0
        %v3222 = vadd.f32 %v3173, %v3221
        %3223 = vmatmul.bf16.gmra.mxu0 %v538
        %v3224 = vpop.f32.mrf.mxu0
        %v3225 = vadd.f32 %v3176, %v3224
        %v3226 = vpop.f32.mrf.mxu0
        %v3227 = vadd.f32 %v3178, %v3226
        %3228 = vdwg.mxu0
        %3229 = vmatpush.bf16.msra.mxu0 0
        %3230 = vmatpush.bf16.msra.mxu0 0
        %3231 = vmatpush.bf16.msra.mxu0 0
        %3232 = vmatpush.bf16.msra.mxu0 0
        %3233 = vmatpush.bf16.msra.mxu0 0
        %3234 = vmatpush.bf16.msra.mxu0 0
        %3235 = vmatpush.bf16.msra.mxu0 0
        %3236 = vmatpush.bf16.msra.mxu0 %v2510
        %3237 = vmatmul.bf16.gmra.mxu0 %v2912
        %v3238 = vpop.f32.mrf.mxu0
        %v3239 = vadd.f32 %v3190, %v3238
        %v3240 = vpop.f32.mrf.mxu0
        %v3241 = vadd.f32 %v3192, %v3240
        %3242 = vmatmul.bf16.gmra.mxu0 %v2915
        %v3243 = vpop.f32.mrf.mxu0
        %v3244 = vadd.f32 %v3195, %v3243
        %v3245 = vpop.f32.mrf.mxu0
        %v3246 = vadd.f32 %v3197, %v3245
        %3247 = vmatmul.bf16.gmra.mxu0 %v2918
        %v3248 = vpop.f32.mrf.mxu0
        %v3249 = vadd.f32 %v3200, %v3248
        %v3250 = vpop.f32.mrf.mxu0
        %v3251 = vadd.f32 %v3202, %v3250
        %3252 = vmatmul.bf16.gmra.mxu0 %v2921
        %v3253 = vpop.f32.mrf.mxu0
        %v3254 = vadd.f32 %v3205, %v3253
        %v3255 = vpop.f32.mrf.mxu0
        %v3256 = vadd.f32 %v3207, %v3255
        %3257 = vmatmul.bf16.gmra.mxu0 %v2924
        %v3258 = vpop.f32.mrf.mxu0
        %v3259 = vadd.f32 %v3210, %v3258
        %v3260 = vpop.f32.mrf.mxu0
        %v3261 = vadd.f32 %v3212, %v3260
        %3262 = vmatmul.bf16.gmra.mxu0 %v2927
        %v3263 = vpop.f32.mrf.mxu0
        %v3264 = vadd.f32 %v3215, %v3263
        %v3265 = vpop.f32.mrf.mxu0
        %v3266 = vadd.f32 %v3217, %v3265
        %3267 = vmatmul.bf16.gmra.mxu0 %v2930
        %v3268 = vpop.f32.mrf.mxu0
        %v3269 = vadd.f32 %v3220, %v3268
        %v3270 = vpop.f32.mrf.mxu0
        %v3271 = vadd.f32 %v3222, %v3270
        %3272 = vmatmul.bf16.gmra.mxu0 %v2933
        %v3273 = vpop.f32.mrf.mxu0
        %v3274 = vadd.f32 %v3225, %v3273
        %v3275 = vpop.f32.mrf.mxu0
        %v3276 = vadd.f32 %v3227, %v3275
        %3277 = vdwg.mxu0
        %3278 = vmatpush.bf16.msra.mxu0 %v2183
        %3279 = vmatpush.bf16.msra.mxu0 %v2175
        %3280 = vmatpush.bf16.msra.mxu0 %v2167
        %3281 = vmatpush.bf16.msra.mxu0 %v2159
        %3282 = vmatpush.bf16.msra.mxu0 %v2151
        %3283 = vmatpush.bf16.msra.mxu0 %v2143
        %3284 = vmatpush.bf16.msra.mxu0 %v2135
        %3285 = vmatpush.bf16.msra.mxu0 %v2127
        %3286 = vmatmul.bf16.gmra.mxu0 %v484
        %v3287 = vpop.f32.mrf.mxu0
        %v3288 = vadd.f32 %v935, %v3287
        %v3289 = vpop.f32.mrf.mxu0
        %v3290 = vadd.f32 %v935, %v3289
        %3291 = vmatmul.bf16.gmra.mxu0 %v491
        %v3292 = vpop.f32.mrf.mxu0
        %v3293 = vadd.f32 %v935, %v3292
        %v3294 = vpop.f32.mrf.mxu0
        %v3295 = vadd.f32 %v935, %v3294
        %3296 = vmatmul.bf16.gmra.mxu0 %v498
        %v3297 = vpop.f32.mrf.mxu0
        %v3298 = vadd.f32 %v935, %v3297
        %v3299 = vpop.f32.mrf.mxu0
        %v3300 = vadd.f32 %v935, %v3299
        %3301 = vmatmul.bf16.gmra.mxu0 %v505
        %v3302 = vpop.f32.mrf.mxu0
        %v3303 = vadd.f32 %v935, %v3302
        %v3304 = vpop.f32.mrf.mxu0
        %v3305 = vadd.f32 %v935, %v3304
        %3306 = vmatmul.bf16.gmra.mxu0 %v512
        %v3307 = vpop.f32.mrf.mxu0
        %v3308 = vadd.f32 %v935, %v3307
        %v3309 = vpop.f32.mrf.mxu0
        %v3310 = vadd.f32 %v935, %v3309
        %3311 = vmatmul.bf16.gmra.mxu0 %v519
        %v3312 = vpop.f32.mrf.mxu0
        %v3313 = vadd.f32 %v935, %v3312
        %v3314 = vpop.f32.mrf.mxu0
        %v3315 = vadd.f32 %v935, %v3314
        %3316 = vmatmul.bf16.gmra.mxu0 %v526
        %v3317 = vpop.f32.mrf.mxu0
        %v3318 = vadd.f32 %v935, %v3317
        %v3319 = vpop.f32.mrf.mxu0
        %v3320 = vadd.f32 %v935, %v3319
        %3321 = vmatmul.bf16.gmra.mxu0 %v533
        %v3322 = vpop.f32.mrf.mxu0
        %v3323 = vadd.f32 %v935, %v3322
        %v3324 = vpop.f32.mrf.mxu0
        %v3325 = vadd.f32 %v935, %v3324
        %3326 = vdwg.mxu0
        %3327 = vmatpush.bf16.msra.mxu0 %v2247
        %3328 = vmatpush.bf16.msra.mxu0 %v2239
        %3329 = vmatpush.bf16.msra.mxu0 %v2231
        %3330 = vmatpush.bf16.msra.mxu0 %v2223
        %3331 = vmatpush.bf16.msra.mxu0 %v2215
        %3332 = vmatpush.bf16.msra.mxu0 %v2207
        %3333 = vmatpush.bf16.msra.mxu0 %v2199
        %3334 = vmatpush.bf16.msra.mxu0 %v2191
        %3335 = vmatmul.bf16.gmra.mxu0 %v485
        %v3336 = vpop.f32.mrf.mxu0
        %v3337 = vadd.f32 %v3288, %v3336
        %v3338 = vpop.f32.mrf.mxu0
        %v3339 = vadd.f32 %v3290, %v3338
        %3340 = vmatmul.bf16.gmra.mxu0 %v492
        %v3341 = vpop.f32.mrf.mxu0
        %v3342 = vadd.f32 %v3293, %v3341
        %v3343 = vpop.f32.mrf.mxu0
        %v3344 = vadd.f32 %v3295, %v3343
        %3345 = vmatmul.bf16.gmra.mxu0 %v499
        %v3346 = vpop.f32.mrf.mxu0
        %v3347 = vadd.f32 %v3298, %v3346
        %v3348 = vpop.f32.mrf.mxu0
        %v3349 = vadd.f32 %v3300, %v3348
        %3350 = vmatmul.bf16.gmra.mxu0 %v506
        %v3351 = vpop.f32.mrf.mxu0
        %v3352 = vadd.f32 %v3303, %v3351
        %v3353 = vpop.f32.mrf.mxu0
        %v3354 = vadd.f32 %v3305, %v3353
        %3355 = vmatmul.bf16.gmra.mxu0 %v513
        %v3356 = vpop.f32.mrf.mxu0
        %v3357 = vadd.f32 %v3308, %v3356
        %v3358 = vpop.f32.mrf.mxu0
        %v3359 = vadd.f32 %v3310, %v3358
        %3360 = vmatmul.bf16.gmra.mxu0 %v520
        %v3361 = vpop.f32.mrf.mxu0
        %v3362 = vadd.f32 %v3313, %v3361
        %v3363 = vpop.f32.mrf.mxu0
        %v3364 = vadd.f32 %v3315, %v3363
        %3365 = vmatmul.bf16.gmra.mxu0 %v527
        %v3366 = vpop.f32.mrf.mxu0
        %v3367 = vadd.f32 %v3318, %v3366
        %v3368 = vpop.f32.mrf.mxu0
        %v3369 = vadd.f32 %v3320, %v3368
        %3370 = vmatmul.bf16.gmra.mxu0 %v534
        %v3371 = vpop.f32.mrf.mxu0
        %v3372 = vadd.f32 %v3323, %v3371
        %v3373 = vpop.f32.mrf.mxu0
        %v3374 = vadd.f32 %v3325, %v3373
        %3375 = vdwg.mxu0
        %3376 = vmatpush.bf16.msra.mxu0 %v2311
        %3377 = vmatpush.bf16.msra.mxu0 %v2303
        %3378 = vmatpush.bf16.msra.mxu0 %v2295
        %3379 = vmatpush.bf16.msra.mxu0 %v2287
        %3380 = vmatpush.bf16.msra.mxu0 %v2279
        %3381 = vmatpush.bf16.msra.mxu0 %v2271
        %3382 = vmatpush.bf16.msra.mxu0 %v2263
        %3383 = vmatpush.bf16.msra.mxu0 %v2255
        %3384 = vmatmul.bf16.gmra.mxu0 %v486
        %v3385 = vpop.f32.mrf.mxu0
        %v3386 = vadd.f32 %v3337, %v3385
        %v3387 = vpop.f32.mrf.mxu0
        %v3388 = vadd.f32 %v3339, %v3387
        %3389 = vmatmul.bf16.gmra.mxu0 %v493
        %v3390 = vpop.f32.mrf.mxu0
        %v3391 = vadd.f32 %v3342, %v3390
        %v3392 = vpop.f32.mrf.mxu0
        %v3393 = vadd.f32 %v3344, %v3392
        %3394 = vmatmul.bf16.gmra.mxu0 %v500
        %v3395 = vpop.f32.mrf.mxu0
        %v3396 = vadd.f32 %v3347, %v3395
        %v3397 = vpop.f32.mrf.mxu0
        %v3398 = vadd.f32 %v3349, %v3397
        %3399 = vmatmul.bf16.gmra.mxu0 %v507
        %v3400 = vpop.f32.mrf.mxu0
        %v3401 = vadd.f32 %v3352, %v3400
        %v3402 = vpop.f32.mrf.mxu0
        %v3403 = vadd.f32 %v3354, %v3402
        %3404 = vmatmul.bf16.gmra.mxu0 %v514
        %v3405 = vpop.f32.mrf.mxu0
        %v3406 = vadd.f32 %v3357, %v3405
        %v3407 = vpop.f32.mrf.mxu0
        %v3408 = vadd.f32 %v3359, %v3407
        %3409 = vmatmul.bf16.gmra.mxu0 %v521
        %v3410 = vpop.f32.mrf.mxu0
        %v3411 = vadd.f32 %v3362, %v3410
        %v3412 = vpop.f32.mrf.mxu0
        %v3413 = vadd.f32 %v3364, %v3412
        %3414 = vmatmul.bf16.gmra.mxu0 %v528
        %v3415 = vpop.f32.mrf.mxu0
        %v3416 = vadd.f32 %v3367, %v3415
        %v3417 = vpop.f32.mrf.mxu0
        %v3418 = vadd.f32 %v3369, %v3417
        %3419 = vmatmul.bf16.gmra.mxu0 %v535
        %v3420 = vpop.f32.mrf.mxu0
        %v3421 = vadd.f32 %v3372, %v3420
        %v3422 = vpop.f32.mrf.mxu0
        %v3423 = vadd.f32 %v3374, %v3422
        %3424 = vdwg.mxu0
        %3425 = vmatpush.bf16.msra.mxu0 %v2375
        %3426 = vmatpush.bf16.msra.mxu0 %v2367
        %3427 = vmatpush.bf16.msra.mxu0 %v2359
        %3428 = vmatpush.bf16.msra.mxu0 %v2351
        %3429 = vmatpush.bf16.msra.mxu0 %v2343
        %3430 = vmatpush.bf16.msra.mxu0 %v2335
        %3431 = vmatpush.bf16.msra.mxu0 %v2327
        %3432 = vmatpush.bf16.msra.mxu0 %v2319
        %3433 = vmatmul.bf16.gmra.mxu0 %v487
        %v3434 = vpop.f32.mrf.mxu0
        %v3435 = vadd.f32 %v3386, %v3434
        %v3436 = vpop.f32.mrf.mxu0
        %v3437 = vadd.f32 %v3388, %v3436
        %3438 = vmatmul.bf16.gmra.mxu0 %v494
        %v3439 = vpop.f32.mrf.mxu0
        %v3440 = vadd.f32 %v3391, %v3439
        %v3441 = vpop.f32.mrf.mxu0
        %v3442 = vadd.f32 %v3393, %v3441
        %3443 = vmatmul.bf16.gmra.mxu0 %v501
        %v3444 = vpop.f32.mrf.mxu0
        %v3445 = vadd.f32 %v3396, %v3444
        %v3446 = vpop.f32.mrf.mxu0
        %v3447 = vadd.f32 %v3398, %v3446
        %3448 = vmatmul.bf16.gmra.mxu0 %v508
        %v3449 = vpop.f32.mrf.mxu0
        %v3450 = vadd.f32 %v3401, %v3449
        %v3451 = vpop.f32.mrf.mxu0
        %v3452 = vadd.f32 %v3403, %v3451
        %3453 = vmatmul.bf16.gmra.mxu0 %v515
        %v3454 = vpop.f32.mrf.mxu0
        %v3455 = vadd.f32 %v3406, %v3454
        %v3456 = vpop.f32.mrf.mxu0
        %v3457 = vadd.f32 %v3408, %v3456
        %3458 = vmatmul.bf16.gmra.mxu0 %v522
        %v3459 = vpop.f32.mrf.mxu0
        %v3460 = vadd.f32 %v3411, %v3459
        %v3461 = vpop.f32.mrf.mxu0
        %v3462 = vadd.f32 %v3413, %v3461
        %3463 = vmatmul.bf16.gmra.mxu0 %v529
        %v3464 = vpop.f32.mrf.mxu0
        %v3465 = vadd.f32 %v3416, %v3464
        %v3466 = vpop.f32.mrf.mxu0
        %v3467 = vadd.f32 %v3418, %v3466
        %3468 = vmatmul.bf16.gmra.mxu0 %v536
        %v3469 = vpop.f32.mrf.mxu0
        %v3470 = vadd.f32 %v3421, %v3469
        %v3471 = vpop.f32.mrf.mxu0
        %v3472 = vadd.f32 %v3423, %v3471
        %3473 = vdwg.mxu0
        %3474 = vmatpush.bf16.msra.mxu0 %v2439
        %3475 = vmatpush.bf16.msra.mxu0 %v2431
        %3476 = vmatpush.bf16.msra.mxu0 %v2423
        %3477 = vmatpush.bf16.msra.mxu0 %v2415
        %3478 = vmatpush.bf16.msra.mxu0 %v2407
        %3479 = vmatpush.bf16.msra.mxu0 %v2399
        %3480 = vmatpush.bf16.msra.mxu0 %v2391
        %3481 = vmatpush.bf16.msra.mxu0 %v2383
        %3482 = vmatmul.bf16.gmra.mxu0 %v488
        %v3483 = vpop.f32.mrf.mxu0
        %v3484 = vadd.f32 %v3435, %v3483
        %v3485 = vpop.f32.mrf.mxu0
        %v3486 = vadd.f32 %v3437, %v3485
        %3487 = vmatmul.bf16.gmra.mxu0 %v495
        %v3488 = vpop.f32.mrf.mxu0
        %v3489 = vadd.f32 %v3440, %v3488
        %v3490 = vpop.f32.mrf.mxu0
        %v3491 = vadd.f32 %v3442, %v3490
        %3492 = vmatmul.bf16.gmra.mxu0 %v502
        %v3493 = vpop.f32.mrf.mxu0
        %v3494 = vadd.f32 %v3445, %v3493
        %v3495 = vpop.f32.mrf.mxu0
        %v3496 = vadd.f32 %v3447, %v3495
        %3497 = vmatmul.bf16.gmra.mxu0 %v509
        %v3498 = vpop.f32.mrf.mxu0
        %v3499 = vadd.f32 %v3450, %v3498
        %v3500 = vpop.f32.mrf.mxu0
        %v3501 = vadd.f32 %v3452, %v3500
        %3502 = vmatmul.bf16.gmra.mxu0 %v516
        %v3503 = vpop.f32.mrf.mxu0
        %v3504 = vadd.f32 %v3455, %v3503
        %v3505 = vpop.f32.mrf.mxu0
        %v3506 = vadd.f32 %v3457, %v3505
        %3507 = vmatmul.bf16.gmra.mxu0 %v523
        %v3508 = vpop.f32.mrf.mxu0
        %v3509 = vadd.f32 %v3460, %v3508
        %v3510 = vpop.f32.mrf.mxu0
        %v3511 = vadd.f32 %v3462, %v3510
        %3512 = vmatmul.bf16.gmra.mxu0 %v530
        %v3513 = vpop.f32.mrf.mxu0
        %v3514 = vadd.f32 %v3465, %v3513
        %v3515 = vpop.f32.mrf.mxu0
        %v3516 = vadd.f32 %v3467, %v3515
        %3517 = vmatmul.bf16.gmra.mxu0 %v537
        %v3518 = vpop.f32.mrf.mxu0
        %v3519 = vadd.f32 %v3470, %v3518
        %v3520 = vpop.f32.mrf.mxu0
        %v3521 = vadd.f32 %v3472, %v3520
        %3522 = vdwg.mxu0
        %3523 = vmatpush.bf16.msra.mxu0 %v2503
        %3524 = vmatpush.bf16.msra.mxu0 %v2495
        %3525 = vmatpush.bf16.msra.mxu0 %v2487
        %3526 = vmatpush.bf16.msra.mxu0 %v2479
        %3527 = vmatpush.bf16.msra.mxu0 %v2471
        %3528 = vmatpush.bf16.msra.mxu0 %v2463
        %3529 = vmatpush.bf16.msra.mxu0 %v2455
        %3530 = vmatpush.bf16.msra.mxu0 %v2447
        %3531 = vmatmul.bf16.gmra.mxu0 %v489
        %v3532 = vpop.f32.mrf.mxu0
        %v3533 = vadd.f32 %v3484, %v3532
        %v3534 = vpop.f32.mrf.mxu0
        %v3535 = vadd.f32 %v3486, %v3534
        %3536 = vmatmul.bf16.gmra.mxu0 %v496
        %v3537 = vpop.f32.mrf.mxu0
        %v3538 = vadd.f32 %v3489, %v3537
        %v3539 = vpop.f32.mrf.mxu0
        %v3540 = vadd.f32 %v3491, %v3539
        %3541 = vmatmul.bf16.gmra.mxu0 %v503
        %v3542 = vpop.f32.mrf.mxu0
        %v3543 = vadd.f32 %v3494, %v3542
        %v3544 = vpop.f32.mrf.mxu0
        %v3545 = vadd.f32 %v3496, %v3544
        %3546 = vmatmul.bf16.gmra.mxu0 %v510
        %v3547 = vpop.f32.mrf.mxu0
        %v3548 = vadd.f32 %v3499, %v3547
        %v3549 = vpop.f32.mrf.mxu0
        %v3550 = vadd.f32 %v3501, %v3549
        %3551 = vmatmul.bf16.gmra.mxu0 %v517
        %v3552 = vpop.f32.mrf.mxu0
        %v3553 = vadd.f32 %v3504, %v3552
        %v3554 = vpop.f32.mrf.mxu0
        %v3555 = vadd.f32 %v3506, %v3554
        %3556 = vmatmul.bf16.gmra.mxu0 %v524
        %v3557 = vpop.f32.mrf.mxu0
        %v3558 = vadd.f32 %v3509, %v3557
        %v3559 = vpop.f32.mrf.mxu0
        %v3560 = vadd.f32 %v3511, %v3559
        %3561 = vmatmul.bf16.gmra.mxu0 %v531
        %v3562 = vpop.f32.mrf.mxu0
        %v3563 = vadd.f32 %v3514, %v3562
        %v3564 = vpop.f32.mrf.mxu0
        %v3565 = vadd.f32 %v3516, %v3564
        %3566 = vmatmul.bf16.gmra.mxu0 %v538
        %v3567 = vpop.f32.mrf.mxu0
        %v3568 = vadd.f32 %v3519, %v3567
        %v3569 = vpop.f32.mrf.mxu0
        %v3570 = vadd.f32 %v3521, %v3569
        %3571 = vdwg.mxu0
        %3572 = vmatpush.bf16.msra.mxu0 0
        %3573 = vmatpush.bf16.msra.mxu0 0
        %3574 = vmatpush.bf16.msra.mxu0 0
        %3575 = vmatpush.bf16.msra.mxu0 0
        %3576 = vmatpush.bf16.msra.mxu0 0
        %3577 = vmatpush.bf16.msra.mxu0 0
        %3578 = vmatpush.bf16.msra.mxu0 0
        %3579 = vmatpush.bf16.msra.mxu0 %v2511
        %3580 = vmatmul.bf16.gmra.mxu0 %v2912
        %v3581 = vpop.f32.mrf.mxu0
        %v3582 = vadd.f32 %v3533, %v3581
        %v3583 = vpop.f32.mrf.mxu0
        %v3584 = vadd.f32 %v3535, %v3583
        %3585 = vmatmul.bf16.gmra.mxu0 %v2915
        %v3586 = vpop.f32.mrf.mxu0
        %v3587 = vadd.f32 %v3538, %v3586
        %v3588 = vpop.f32.mrf.mxu0
        %v3589 = vadd.f32 %v3540, %v3588
        %3590 = vmatmul.bf16.gmra.mxu0 %v2918
        %v3591 = vpop.f32.mrf.mxu0
        %v3592 = vadd.f32 %v3543, %v3591
        %v3593 = vpop.f32.mrf.mxu0
        %v3594 = vadd.f32 %v3545, %v3593
        %3595 = vmatmul.bf16.gmra.mxu0 %v2921
        %v3596 = vpop.f32.mrf.mxu0
        %v3597 = vadd.f32 %v3548, %v3596
        %v3598 = vpop.f32.mrf.mxu0
        %v3599 = vadd.f32 %v3550, %v3598
        %3600 = vmatmul.bf16.gmra.mxu0 %v2924
        %v3601 = vpop.f32.mrf.mxu0
        %v3602 = vadd.f32 %v3553, %v3601
        %v3603 = vpop.f32.mrf.mxu0
        %v3604 = vadd.f32 %v3555, %v3603
        %3605 = vmatmul.bf16.gmra.mxu0 %v2927
        %v3606 = vpop.f32.mrf.mxu0
        %v3607 = vadd.f32 %v3558, %v3606
        %v3608 = vpop.f32.mrf.mxu0
        %v3609 = vadd.f32 %v3560, %v3608
        %3610 = vmatmul.bf16.gmra.mxu0 %v2930
        %v3611 = vpop.f32.mrf.mxu0
        %v3612 = vadd.f32 %v3563, %v3611
        %v3613 = vpop.f32.mrf.mxu0
        %v3614 = vadd.f32 %v3565, %v3613
        %3615 = vmatmul.bf16.gmra.mxu0 %v2933
        %v3616 = vpop.f32.mrf.mxu0
        %v3617 = vadd.f32 %v3568, %v3616
        %v3618 = vpop.f32.mrf.mxu0
        %v3619 = vadd.f32 %v3570, %v3618
        %3620 = vdwg.mxu0
        %3621 = vmatpush.bf16.msra.mxu0 %v2184
        %3622 = vmatpush.bf16.msra.mxu0 %v2176
        %3623 = vmatpush.bf16.msra.mxu0 %v2168
        %3624 = vmatpush.bf16.msra.mxu0 %v2160
        %3625 = vmatpush.bf16.msra.mxu0 %v2152
        %3626 = vmatpush.bf16.msra.mxu0 %v2144
        %3627 = vmatpush.bf16.msra.mxu0 %v2136
        %3628 = vmatpush.bf16.msra.mxu0 %v2128
        %3629 = vmatmul.bf16.gmra.mxu0 %v484
        %v3630 = vpop.f32.mrf.mxu0
        %v3631 = vadd.f32 %v936, %v3630
        %v3632 = vpop.f32.mrf.mxu0
        %v3633 = vadd.f32 %v936, %v3632
        %3634 = vmatmul.bf16.gmra.mxu0 %v491
        %v3635 = vpop.f32.mrf.mxu0
        %v3636 = vadd.f32 %v936, %v3635
        %v3637 = vpop.f32.mrf.mxu0
        %v3638 = vadd.f32 %v936, %v3637
        %3639 = vmatmul.bf16.gmra.mxu0 %v498
        %v3640 = vpop.f32.mrf.mxu0
        %v3641 = vadd.f32 %v936, %v3640
        %v3642 = vpop.f32.mrf.mxu0
        %v3643 = vadd.f32 %v936, %v3642
        %3644 = vmatmul.bf16.gmra.mxu0 %v505
        %v3645 = vpop.f32.mrf.mxu0
        %v3646 = vadd.f32 %v936, %v3645
        %v3647 = vpop.f32.mrf.mxu0
        %v3648 = vadd.f32 %v936, %v3647
        %3649 = vmatmul.bf16.gmra.mxu0 %v512
        %v3650 = vpop.f32.mrf.mxu0
        %v3651 = vadd.f32 %v936, %v3650
        %v3652 = vpop.f32.mrf.mxu0
        %v3653 = vadd.f32 %v936, %v3652
        %3654 = vmatmul.bf16.gmra.mxu0 %v519
        %v3655 = vpop.f32.mrf.mxu0
        %v3656 = vadd.f32 %v936, %v3655
        %v3657 = vpop.f32.mrf.mxu0
        %v3658 = vadd.f32 %v936, %v3657
        %3659 = vmatmul.bf16.gmra.mxu0 %v526
        %v3660 = vpop.f32.mrf.mxu0
        %v3661 = vadd.f32 %v936, %v3660
        %v3662 = vpop.f32.mrf.mxu0
        %v3663 = vadd.f32 %v936, %v3662
        %3664 = vmatmul.bf16.gmra.mxu0 %v533
        %v3665 = vpop.f32.mrf.mxu0
        %v3666 = vadd.f32 %v936, %v3665
        %v3667 = vpop.f32.mrf.mxu0
        %v3668 = vadd.f32 %v936, %v3667
        %3669 = vdwg.mxu0
        %3670 = vmatpush.bf16.msra.mxu0 %v2248
        %3671 = vmatpush.bf16.msra.mxu0 %v2240
        %3672 = vmatpush.bf16.msra.mxu0 %v2232
        %3673 = vmatpush.bf16.msra.mxu0 %v2224
        %3674 = vmatpush.bf16.msra.mxu0 %v2216
        %3675 = vmatpush.bf16.msra.mxu0 %v2208
        %3676 = vmatpush.bf16.msra.mxu0 %v2200
        %3677 = vmatpush.bf16.msra.mxu0 %v2192
        %3678 = vmatmul.bf16.gmra.mxu0 %v485
        %v3679 = vpop.f32.mrf.mxu0
        %v3680 = vadd.f32 %v3631, %v3679
        %v3681 = vpop.f32.mrf.mxu0
        %v3682 = vadd.f32 %v3633, %v3681
        %3683 = vmatmul.bf16.gmra.mxu0 %v492
        %v3684 = vpop.f32.mrf.mxu0
        %v3685 = vadd.f32 %v3636, %v3684
        %v3686 = vpop.f32.mrf.mxu0
        %v3687 = vadd.f32 %v3638, %v3686
        %3688 = vmatmul.bf16.gmra.mxu0 %v499
        %v3689 = vpop.f32.mrf.mxu0
        %v3690 = vadd.f32 %v3641, %v3689
        %v3691 = vpop.f32.mrf.mxu0
        %v3692 = vadd.f32 %v3643, %v3691
        %3693 = vmatmul.bf16.gmra.mxu0 %v506
        %v3694 = vpop.f32.mrf.mxu0
        %v3695 = vadd.f32 %v3646, %v3694
        %v3696 = vpop.f32.mrf.mxu0
        %v3697 = vadd.f32 %v3648, %v3696
        %3698 = vmatmul.bf16.gmra.mxu0 %v513
        %v3699 = vpop.f32.mrf.mxu0
        %v3700 = vadd.f32 %v3651, %v3699
        %v3701 = vpop.f32.mrf.mxu0
        %v3702 = vadd.f32 %v3653, %v3701
        %3703 = vmatmul.bf16.gmra.mxu0 %v520
        %v3704 = vpop.f32.mrf.mxu0
        %v3705 = vadd.f32 %v3656, %v3704
        %v3706 = vpop.f32.mrf.mxu0
        %v3707 = vadd.f32 %v3658, %v3706
        %3708 = vmatmul.bf16.gmra.mxu0 %v527
        %v3709 = vpop.f32.mrf.mxu0
        %v3710 = vadd.f32 %v3661, %v3709
        %v3711 = vpop.f32.mrf.mxu0
        %v3712 = vadd.f32 %v3663, %v3711
        %3713 = vmatmul.bf16.gmra.mxu0 %v534
        %v3714 = vpop.f32.mrf.mxu0
        %v3715 = vadd.f32 %v3666, %v3714
        %v3716 = vpop.f32.mrf.mxu0
        %v3717 = vadd.f32 %v3668, %v3716
        %3718 = vdwg.mxu0
        %3719 = vmatpush.bf16.msra.mxu0 %v2312
        %3720 = vmatpush.bf16.msra.mxu0 %v2304
        %3721 = vmatpush.bf16.msra.mxu0 %v2296
        %3722 = vmatpush.bf16.msra.mxu0 %v2288
        %3723 = vmatpush.bf16.msra.mxu0 %v2280
        %3724 = vmatpush.bf16.msra.mxu0 %v2272
        %3725 = vmatpush.bf16.msra.mxu0 %v2264
        %3726 = vmatpush.bf16.msra.mxu0 %v2256
        %3727 = vmatmul.bf16.gmra.mxu0 %v486
        %v3728 = vpop.f32.mrf.mxu0
        %v3729 = vadd.f32 %v3680, %v3728
        %v3730 = vpop.f32.mrf.mxu0
        %v3731 = vadd.f32 %v3682, %v3730
        %3732 = vmatmul.bf16.gmra.mxu0 %v493
        %v3733 = vpop.f32.mrf.mxu0
        %v3734 = vadd.f32 %v3685, %v3733
        %v3735 = vpop.f32.mrf.mxu0
        %v3736 = vadd.f32 %v3687, %v3735
        %3737 = vmatmul.bf16.gmra.mxu0 %v500
        %v3738 = vpop.f32.mrf.mxu0
        %v3739 = vadd.f32 %v3690, %v3738
        %v3740 = vpop.f32.mrf.mxu0
        %v3741 = vadd.f32 %v3692, %v3740
        %3742 = vmatmul.bf16.gmra.mxu0 %v507
        %v3743 = vpop.f32.mrf.mxu0
        %v3744 = vadd.f32 %v3695, %v3743
        %v3745 = vpop.f32.mrf.mxu0
        %v3746 = vadd.f32 %v3697, %v3745
        %3747 = vmatmul.bf16.gmra.mxu0 %v514
        %v3748 = vpop.f32.mrf.mxu0
        %v3749 = vadd.f32 %v3700, %v3748
        %v3750 = vpop.f32.mrf.mxu0
        %v3751 = vadd.f32 %v3702, %v3750
        %3752 = vmatmul.bf16.gmra.mxu0 %v521
        %v3753 = vpop.f32.mrf.mxu0
        %v3754 = vadd.f32 %v3705, %v3753
        %v3755 = vpop.f32.mrf.mxu0
        %v3756 = vadd.f32 %v3707, %v3755
        %3757 = vmatmul.bf16.gmra.mxu0 %v528
        %v3758 = vpop.f32.mrf.mxu0
        %v3759 = vadd.f32 %v3710, %v3758
        %v3760 = vpop.f32.mrf.mxu0
        %v3761 = vadd.f32 %v3712, %v3760
        %3762 = vmatmul.bf16.gmra.mxu0 %v535
        %v3763 = vpop.f32.mrf.mxu0
        %v3764 = vadd.f32 %v3715, %v3763
        %v3765 = vpop.f32.mrf.mxu0
        %v3766 = vadd.f32 %v3717, %v3765
        %3767 = vdwg.mxu0
        %3768 = vmatpush.bf16.msra.mxu0 %v2376
        %3769 = vmatpush.bf16.msra.mxu0 %v2368
        %3770 = vmatpush.bf16.msra.mxu0 %v2360
        %3771 = vmatpush.bf16.msra.mxu0 %v2352
        %3772 = vmatpush.bf16.msra.mxu0 %v2344
        %3773 = vmatpush.bf16.msra.mxu0 %v2336
        %3774 = vmatpush.bf16.msra.mxu0 %v2328
        %3775 = vmatpush.bf16.msra.mxu0 %v2320
        %3776 = vmatmul.bf16.gmra.mxu0 %v487
        %v3777 = vpop.f32.mrf.mxu0
        %v3778 = vadd.f32 %v3729, %v3777
        %v3779 = vpop.f32.mrf.mxu0
        %v3780 = vadd.f32 %v3731, %v3779
        %3781 = vmatmul.bf16.gmra.mxu0 %v494
        %v3782 = vpop.f32.mrf.mxu0
        %v3783 = vadd.f32 %v3734, %v3782
        %v3784 = vpop.f32.mrf.mxu0
        %v3785 = vadd.f32 %v3736, %v3784
        %3786 = vmatmul.bf16.gmra.mxu0 %v501
        %v3787 = vpop.f32.mrf.mxu0
        %v3788 = vadd.f32 %v3739, %v3787
        %v3789 = vpop.f32.mrf.mxu0
        %v3790 = vadd.f32 %v3741, %v3789
        %3791 = vmatmul.bf16.gmra.mxu0 %v508
        %v3792 = vpop.f32.mrf.mxu0
        %v3793 = vadd.f32 %v3744, %v3792
        %v3794 = vpop.f32.mrf.mxu0
        %v3795 = vadd.f32 %v3746, %v3794
        %3796 = vmatmul.bf16.gmra.mxu0 %v515
        %v3797 = vpop.f32.mrf.mxu0
        %v3798 = vadd.f32 %v3749, %v3797
        %v3799 = vpop.f32.mrf.mxu0
        %v3800 = vadd.f32 %v3751, %v3799
        %3801 = vmatmul.bf16.gmra.mxu0 %v522
        %v3802 = vpop.f32.mrf.mxu0
        %v3803 = vadd.f32 %v3754, %v3802
        %v3804 = vpop.f32.mrf.mxu0
        %v3805 = vadd.f32 %v3756, %v3804
        %3806 = vmatmul.bf16.gmra.mxu0 %v529
        %v3807 = vpop.f32.mrf.mxu0
        %v3808 = vadd.f32 %v3759, %v3807
        %v3809 = vpop.f32.mrf.mxu0
        %v3810 = vadd.f32 %v3761, %v3809
        %3811 = vmatmul.bf16.gmra.mxu0 %v536
        %v3812 = vpop.f32.mrf.mxu0
        %v3813 = vadd.f32 %v3764, %v3812
        %v3814 = vpop.f32.mrf.mxu0
        %v3815 = vadd.f32 %v3766, %v3814
        %3816 = vdwg.mxu0
        %3817 = vmatpush.bf16.msra.mxu0 %v2440
        %3818 = vmatpush.bf16.msra.mxu0 %v2432
        %3819 = vmatpush.bf16.msra.mxu0 %v2424
        %3820 = vmatpush.bf16.msra.mxu0 %v2416
        %3821 = vmatpush.bf16.msra.mxu0 %v2408
        %3822 = vmatpush.bf16.msra.mxu0 %v2400
        %3823 = vmatpush.bf16.msra.mxu0 %v2392
        %3824 = vmatpush.bf16.msra.mxu0 %v2384
        %3825 = vmatmul.bf16.gmra.mxu0 %v488
        %v3826 = vpop.f32.mrf.mxu0
        %v3827 = vadd.f32 %v3778, %v3826
        %v3828 = vpop.f32.mrf.mxu0
        %v3829 = vadd.f32 %v3780, %v3828
        %3830 = vmatmul.bf16.gmra.mxu0 %v495
        %v3831 = vpop.f32.mrf.mxu0
        %v3832 = vadd.f32 %v3783, %v3831
        %v3833 = vpop.f32.mrf.mxu0
        %v3834 = vadd.f32 %v3785, %v3833
        %3835 = vmatmul.bf16.gmra.mxu0 %v502
        %v3836 = vpop.f32.mrf.mxu0
        %v3837 = vadd.f32 %v3788, %v3836
        %v3838 = vpop.f32.mrf.mxu0
        %v3839 = vadd.f32 %v3790, %v3838
        %3840 = vmatmul.bf16.gmra.mxu0 %v509
        %v3841 = vpop.f32.mrf.mxu0
        %v3842 = vadd.f32 %v3793, %v3841
        %v3843 = vpop.f32.mrf.mxu0
        %v3844 = vadd.f32 %v3795, %v3843
        %3845 = vmatmul.bf16.gmra.mxu0 %v516
        %v3846 = vpop.f32.mrf.mxu0
        %v3847 = vadd.f32 %v3798, %v3846
        %v3848 = vpop.f32.mrf.mxu0
        %v3849 = vadd.f32 %v3800, %v3848
        %3850 = vmatmul.bf16.gmra.mxu0 %v523
        %v3851 = vpop.f32.mrf.mxu0
        %v3852 = vadd.f32 %v3803, %v3851
        %v3853 = vpop.f32.mrf.mxu0
        %v3854 = vadd.f32 %v3805, %v3853
        %3855 = vmatmul.bf16.gmra.mxu0 %v530
        %v3856 = vpop.f32.mrf.mxu0
        %v3857 = vadd.f32 %v3808, %v3856
        %v3858 = vpop.f32.mrf.mxu0
        %v3859 = vadd.f32 %v3810, %v3858
        %3860 = vmatmul.bf16.gmra.mxu0 %v537
        %v3861 = vpop.f32.mrf.mxu0
        %v3862 = vadd.f32 %v3813, %v3861
        %v3863 = vpop.f32.mrf.mxu0
        %v3864 = vadd.f32 %v3815, %v3863
        %3865 = vdwg.mxu0
        %3866 = vmatpush.bf16.msra.mxu0 %v2504
        %3867 = vmatpush.bf16.msra.mxu0 %v2496
        %3868 = vmatpush.bf16.msra.mxu0 %v2488
        %3869 = vmatpush.bf16.msra.mxu0 %v2480
        %3870 = vmatpush.bf16.msra.mxu0 %v2472
        %3871 = vmatpush.bf16.msra.mxu0 %v2464
        %3872 = vmatpush.bf16.msra.mxu0 %v2456
        %3873 = vmatpush.bf16.msra.mxu0 %v2448
        %3874 = vmatmul.bf16.gmra.mxu0 %v489
        %v3875 = vpop.f32.mrf.mxu0
        %v3876 = vadd.f32 %v3827, %v3875
        %v3877 = vpop.f32.mrf.mxu0
        %v3878 = vadd.f32 %v3829, %v3877
        %3879 = vmatmul.bf16.gmra.mxu0 %v496
        %v3880 = vpop.f32.mrf.mxu0
        %v3881 = vadd.f32 %v3832, %v3880
        %v3882 = vpop.f32.mrf.mxu0
        %v3883 = vadd.f32 %v3834, %v3882
        %3884 = vmatmul.bf16.gmra.mxu0 %v503
        %v3885 = vpop.f32.mrf.mxu0
        %v3886 = vadd.f32 %v3837, %v3885
        %v3887 = vpop.f32.mrf.mxu0
        %v3888 = vadd.f32 %v3839, %v3887
        %3889 = vmatmul.bf16.gmra.mxu0 %v510
        %v3890 = vpop.f32.mrf.mxu0
        %v3891 = vadd.f32 %v3842, %v3890
        %v3892 = vpop.f32.mrf.mxu0
        %v3893 = vadd.f32 %v3844, %v3892
        %3894 = vmatmul.bf16.gmra.mxu0 %v517
        %v3895 = vpop.f32.mrf.mxu0
        %v3896 = vadd.f32 %v3847, %v3895
        %v3897 = vpop.f32.mrf.mxu0
        %v3898 = vadd.f32 %v3849, %v3897
        %3899 = vmatmul.bf16.gmra.mxu0 %v524
        %v3900 = vpop.f32.mrf.mxu0
        %v3901 = vadd.f32 %v3852, %v3900
        %v3902 = vpop.f32.mrf.mxu0
        %v3903 = vadd.f32 %v3854, %v3902
        %3904 = vmatmul.bf16.gmra.mxu0 %v531
        %v3905 = vpop.f32.mrf.mxu0
        %v3906 = vadd.f32 %v3857, %v3905
        %v3907 = vpop.f32.mrf.mxu0
        %v3908 = vadd.f32 %v3859, %v3907
        %3909 = vmatmul.bf16.gmra.mxu0 %v538
        %v3910 = vpop.f32.mrf.mxu0
        %v3911 = vadd.f32 %v3862, %v3910
        %v3912 = vpop.f32.mrf.mxu0
        %v3913 = vadd.f32 %v3864, %v3912
        %3914 = vdwg.mxu0
        %3915 = vmatpush.bf16.msra.mxu0 0
        %3916 = vmatpush.bf16.msra.mxu0 0
        %3917 = vmatpush.bf16.msra.mxu0 0
        %3918 = vmatpush.bf16.msra.mxu0 0
        %3919 = vmatpush.bf16.msra.mxu0 0
        %3920 = vmatpush.bf16.msra.mxu0 0
        %3921 = vmatpush.bf16.msra.mxu0 0
        %3922 = vmatpush.bf16.msra.mxu0 %v2512
        %3923 = vmatmul.bf16.gmra.mxu0 %v2912
        %v3924 = vpop.f32.mrf.mxu0
        %v3925 = vadd.f32 %v3876, %v3924
        %v3926 = vpop.f32.mrf.mxu0
        %v3927 = vadd.f32 %v3878, %v3926
        %3928 = vmatmul.bf16.gmra.mxu0 %v2915
        %v3929 = vpop.f32.mrf.mxu0
        %v3930 = vadd.f32 %v3881, %v3929
        %v3931 = vpop.f32.mrf.mxu0
        %v3932 = vadd.f32 %v3883, %v3931
        %3933 = vmatmul.bf16.gmra.mxu0 %v2918
        %v3934 = vpop.f32.mrf.mxu0
        %v3935 = vadd.f32 %v3886, %v3934
        %v3936 = vpop.f32.mrf.mxu0
        %v3937 = vadd.f32 %v3888, %v3936
        %3938 = vmatmul.bf16.gmra.mxu0 %v2921
        %v3939 = vpop.f32.mrf.mxu0
        %v3940 = vadd.f32 %v3891, %v3939
        %v3941 = vpop.f32.mrf.mxu0
        %v3942 = vadd.f32 %v3893, %v3941
        %3943 = vmatmul.bf16.gmra.mxu0 %v2924
        %v3944 = vpop.f32.mrf.mxu0
        %v3945 = vadd.f32 %v3896, %v3944
        %v3946 = vpop.f32.mrf.mxu0
        %v3947 = vadd.f32 %v3898, %v3946
        %3948 = vmatmul.bf16.gmra.mxu0 %v2927
        %v3949 = vpop.f32.mrf.mxu0
        %v3950 = vadd.f32 %v3901, %v3949
        %v3951 = vpop.f32.mrf.mxu0
        %v3952 = vadd.f32 %v3903, %v3951
        %3953 = vmatmul.bf16.gmra.mxu0 %v2930
        %v3954 = vpop.f32.mrf.mxu0
        %v3955 = vadd.f32 %v3906, %v3954
        %v3956 = vpop.f32.mrf.mxu0
        %v3957 = vadd.f32 %v3908, %v3956
        %3958 = vmatmul.bf16.gmra.mxu0 %v2933
        %v3959 = vpop.f32.mrf.mxu0
        %v3960 = vadd.f32 %v3911, %v3959
        %v3961 = vpop.f32.mrf.mxu0
        %v3962 = vadd.f32 %v3913, %v3961
        %3963 = vdwg.mxu0
        %3964 = vmatpush.bf16.msra.mxu0 %v2185
        %3965 = vmatpush.bf16.msra.mxu0 %v2177
        %3966 = vmatpush.bf16.msra.mxu0 %v2169
        %3967 = vmatpush.bf16.msra.mxu0 %v2161
        %3968 = vmatpush.bf16.msra.mxu0 %v2153
        %3969 = vmatpush.bf16.msra.mxu0 %v2145
        %3970 = vmatpush.bf16.msra.mxu0 %v2137
        %3971 = vmatpush.bf16.msra.mxu0 %v2129
        %3972 = vmatmul.bf16.gmra.mxu0 %v484
        %v3973 = vpop.f32.mrf.mxu0
        %v3974 = vadd.f32 %v937, %v3973
        %v3975 = vpop.f32.mrf.mxu0
        %v3976 = vadd.f32 %v937, %v3975
        %3977 = vmatmul.bf16.gmra.mxu0 %v491
        %v3978 = vpop.f32.mrf.mxu0
        %v3979 = vadd.f32 %v937, %v3978
        %v3980 = vpop.f32.mrf.mxu0
        %v3981 = vadd.f32 %v937, %v3980
        %3982 = vmatmul.bf16.gmra.mxu0 %v498
        %v3983 = vpop.f32.mrf.mxu0
        %v3984 = vadd.f32 %v937, %v3983
        %v3985 = vpop.f32.mrf.mxu0
        %v3986 = vadd.f32 %v937, %v3985
        %3987 = vmatmul.bf16.gmra.mxu0 %v505
        %v3988 = vpop.f32.mrf.mxu0
        %v3989 = vadd.f32 %v937, %v3988
        %v3990 = vpop.f32.mrf.mxu0
        %v3991 = vadd.f32 %v937, %v3990
        %3992 = vmatmul.bf16.gmra.mxu0 %v512
        %v3993 = vpop.f32.mrf.mxu0
        %v3994 = vadd.f32 %v937, %v3993
        %v3995 = vpop.f32.mrf.mxu0
        %v3996 = vadd.f32 %v937, %v3995
        %3997 = vmatmul.bf16.gmra.mxu0 %v519
        %v3998 = vpop.f32.mrf.mxu0
        %v3999 = vadd.f32 %v937, %v3998
        %v4000 = vpop.f32.mrf.mxu0
        %v4001 = vadd.f32 %v937, %v4000
        %4002 = vmatmul.bf16.gmra.mxu0 %v526
        %v4003 = vpop.f32.mrf.mxu0
        %v4004 = vadd.f32 %v937, %v4003
        %v4005 = vpop.f32.mrf.mxu0
        %v4006 = vadd.f32 %v937, %v4005
        %4007 = vmatmul.bf16.gmra.mxu0 %v533
        %v4008 = vpop.f32.mrf.mxu0
        %v4009 = vadd.f32 %v937, %v4008
        %v4010 = vpop.f32.mrf.mxu0
        %v4011 = vadd.f32 %v937, %v4010
        %4012 = vdwg.mxu0
        %4013 = vmatpush.bf16.msra.mxu0 %v2249
        %4014 = vmatpush.bf16.msra.mxu0 %v2241
        %4015 = vmatpush.bf16.msra.mxu0 %v2233
        %4016 = vmatpush.bf16.msra.mxu0 %v2225
        %4017 = vmatpush.bf16.msra.mxu0 %v2217
        %4018 = vmatpush.bf16.msra.mxu0 %v2209
        %4019 = vmatpush.bf16.msra.mxu0 %v2201
        %4020 = vmatpush.bf16.msra.mxu0 %v2193
        %4021 = vmatmul.bf16.gmra.mxu0 %v485
        %v4022 = vpop.f32.mrf.mxu0
        %v4023 = vadd.f32 %v3974, %v4022
        %v4024 = vpop.f32.mrf.mxu0
        %v4025 = vadd.f32 %v3976, %v4024
        %4026 = vmatmul.bf16.gmra.mxu0 %v492
        %v4027 = vpop.f32.mrf.mxu0
        %v4028 = vadd.f32 %v3979, %v4027
        %v4029 = vpop.f32.mrf.mxu0
        %v4030 = vadd.f32 %v3981, %v4029
        %4031 = vmatmul.bf16.gmra.mxu0 %v499
        %v4032 = vpop.f32.mrf.mxu0
        %v4033 = vadd.f32 %v3984, %v4032
        %v4034 = vpop.f32.mrf.mxu0
        %v4035 = vadd.f32 %v3986, %v4034
        %4036 = vmatmul.bf16.gmra.mxu0 %v506
        %v4037 = vpop.f32.mrf.mxu0
        %v4038 = vadd.f32 %v3989, %v4037
        %v4039 = vpop.f32.mrf.mxu0
        %v4040 = vadd.f32 %v3991, %v4039
        %4041 = vmatmul.bf16.gmra.mxu0 %v513
        %v4042 = vpop.f32.mrf.mxu0
        %v4043 = vadd.f32 %v3994, %v4042
        %v4044 = vpop.f32.mrf.mxu0
        %v4045 = vadd.f32 %v3996, %v4044
        %4046 = vmatmul.bf16.gmra.mxu0 %v520
        %v4047 = vpop.f32.mrf.mxu0
        %v4048 = vadd.f32 %v3999, %v4047
        %v4049 = vpop.f32.mrf.mxu0
        %v4050 = vadd.f32 %v4001, %v4049
        %4051 = vmatmul.bf16.gmra.mxu0 %v527
        %v4052 = vpop.f32.mrf.mxu0
        %v4053 = vadd.f32 %v4004, %v4052
        %v4054 = vpop.f32.mrf.mxu0
        %v4055 = vadd.f32 %v4006, %v4054
        %4056 = vmatmul.bf16.gmra.mxu0 %v534
        %v4057 = vpop.f32.mrf.mxu0
        %v4058 = vadd.f32 %v4009, %v4057
        %v4059 = vpop.f32.mrf.mxu0
        %v4060 = vadd.f32 %v4011, %v4059
        %4061 = vdwg.mxu0
        %4062 = vmatpush.bf16.msra.mxu0 %v2313
        %4063 = vmatpush.bf16.msra.mxu0 %v2305
        %4064 = vmatpush.bf16.msra.mxu0 %v2297
        %4065 = vmatpush.bf16.msra.mxu0 %v2289
        %4066 = vmatpush.bf16.msra.mxu0 %v2281
        %4067 = vmatpush.bf16.msra.mxu0 %v2273
        %4068 = vmatpush.bf16.msra.mxu0 %v2265
        %4069 = vmatpush.bf16.msra.mxu0 %v2257
        %4070 = vmatmul.bf16.gmra.mxu0 %v486
        %v4071 = vpop.f32.mrf.mxu0
        %v4072 = vadd.f32 %v4023, %v4071
        %v4073 = vpop.f32.mrf.mxu0
        %v4074 = vadd.f32 %v4025, %v4073
        %4075 = vmatmul.bf16.gmra.mxu0 %v493
        %v4076 = vpop.f32.mrf.mxu0
        %v4077 = vadd.f32 %v4028, %v4076
        %v4078 = vpop.f32.mrf.mxu0
        %v4079 = vadd.f32 %v4030, %v4078
        %4080 = vmatmul.bf16.gmra.mxu0 %v500
        %v4081 = vpop.f32.mrf.mxu0
        %v4082 = vadd.f32 %v4033, %v4081
        %v4083 = vpop.f32.mrf.mxu0
        %v4084 = vadd.f32 %v4035, %v4083
        %4085 = vmatmul.bf16.gmra.mxu0 %v507
        %v4086 = vpop.f32.mrf.mxu0
        %v4087 = vadd.f32 %v4038, %v4086
        %v4088 = vpop.f32.mrf.mxu0
        %v4089 = vadd.f32 %v4040, %v4088
        %4090 = vmatmul.bf16.gmra.mxu0 %v514
        %v4091 = vpop.f32.mrf.mxu0
        %v4092 = vadd.f32 %v4043, %v4091
        %v4093 = vpop.f32.mrf.mxu0
        %v4094 = vadd.f32 %v4045, %v4093
        %4095 = vmatmul.bf16.gmra.mxu0 %v521
        %v4096 = vpop.f32.mrf.mxu0
        %v4097 = vadd.f32 %v4048, %v4096
        %v4098 = vpop.f32.mrf.mxu0
        %v4099 = vadd.f32 %v4050, %v4098
        %4100 = vmatmul.bf16.gmra.mxu0 %v528
        %v4101 = vpop.f32.mrf.mxu0
        %v4102 = vadd.f32 %v4053, %v4101
        %v4103 = vpop.f32.mrf.mxu0
        %v4104 = vadd.f32 %v4055, %v4103
        %4105 = vmatmul.bf16.gmra.mxu0 %v535
        %v4106 = vpop.f32.mrf.mxu0
        %v4107 = vadd.f32 %v4058, %v4106
        %v4108 = vpop.f32.mrf.mxu0
        %v4109 = vadd.f32 %v4060, %v4108
        %4110 = vdwg.mxu0
        %4111 = vmatpush.bf16.msra.mxu0 %v2377
        %4112 = vmatpush.bf16.msra.mxu0 %v2369
        %4113 = vmatpush.bf16.msra.mxu0 %v2361
        %4114 = vmatpush.bf16.msra.mxu0 %v2353
        %4115 = vmatpush.bf16.msra.mxu0 %v2345
        %4116 = vmatpush.bf16.msra.mxu0 %v2337
        %4117 = vmatpush.bf16.msra.mxu0 %v2329
        %4118 = vmatpush.bf16.msra.mxu0 %v2321
        %4119 = vmatmul.bf16.gmra.mxu0 %v487
        %v4120 = vpop.f32.mrf.mxu0
        %v4121 = vadd.f32 %v4072, %v4120
        %v4122 = vpop.f32.mrf.mxu0
        %v4123 = vadd.f32 %v4074, %v4122
        %4124 = vmatmul.bf16.gmra.mxu0 %v494
        %v4125 = vpop.f32.mrf.mxu0
        %v4126 = vadd.f32 %v4077, %v4125
        %v4127 = vpop.f32.mrf.mxu0
        %v4128 = vadd.f32 %v4079, %v4127
        %4129 = vmatmul.bf16.gmra.mxu0 %v501
        %v4130 = vpop.f32.mrf.mxu0
        %v4131 = vadd.f32 %v4082, %v4130
        %v4132 = vpop.f32.mrf.mxu0
        %v4133 = vadd.f32 %v4084, %v4132
        %4134 = vmatmul.bf16.gmra.mxu0 %v508
        %v4135 = vpop.f32.mrf.mxu0
        %v4136 = vadd.f32 %v4087, %v4135
        %v4137 = vpop.f32.mrf.mxu0
        %v4138 = vadd.f32 %v4089, %v4137
        %4139 = vmatmul.bf16.gmra.mxu0 %v515
        %v4140 = vpop.f32.mrf.mxu0
        %v4141 = vadd.f32 %v4092, %v4140
        %v4142 = vpop.f32.mrf.mxu0
        %v4143 = vadd.f32 %v4094, %v4142
        %4144 = vmatmul.bf16.gmra.mxu0 %v522
        %v4145 = vpop.f32.mrf.mxu0
        %v4146 = vadd.f32 %v4097, %v4145
        %v4147 = vpop.f32.mrf.mxu0
        %v4148 = vadd.f32 %v4099, %v4147
        %4149 = vmatmul.bf16.gmra.mxu0 %v529
        %v4150 = vpop.f32.mrf.mxu0
        %v4151 = vadd.f32 %v4102, %v4150
        %v4152 = vpop.f32.mrf.mxu0
        %v4153 = vadd.f32 %v4104, %v4152
        %4154 = vmatmul.bf16.gmra.mxu0 %v536
        %v4155 = vpop.f32.mrf.mxu0
        %v4156 = vadd.f32 %v4107, %v4155
        %v4157 = vpop.f32.mrf.mxu0
        %v4158 = vadd.f32 %v4109, %v4157
        %4159 = vdwg.mxu0
        %4160 = vmatpush.bf16.msra.mxu0 %v2441
        %4161 = vmatpush.bf16.msra.mxu0 %v2433
        %4162 = vmatpush.bf16.msra.mxu0 %v2425
        %4163 = vmatpush.bf16.msra.mxu0 %v2417
        %4164 = vmatpush.bf16.msra.mxu0 %v2409
        %4165 = vmatpush.bf16.msra.mxu0 %v2401
        %4166 = vmatpush.bf16.msra.mxu0 %v2393
        %4167 = vmatpush.bf16.msra.mxu0 %v2385
        %4168 = vmatmul.bf16.gmra.mxu0 %v488
        %v4169 = vpop.f32.mrf.mxu0
        %v4170 = vadd.f32 %v4121, %v4169
        %v4171 = vpop.f32.mrf.mxu0
        %v4172 = vadd.f32 %v4123, %v4171
        %4173 = vmatmul.bf16.gmra.mxu0 %v495
        %v4174 = vpop.f32.mrf.mxu0
        %v4175 = vadd.f32 %v4126, %v4174
        %v4176 = vpop.f32.mrf.mxu0
        %v4177 = vadd.f32 %v4128, %v4176
        %4178 = vmatmul.bf16.gmra.mxu0 %v502
        %v4179 = vpop.f32.mrf.mxu0
        %v4180 = vadd.f32 %v4131, %v4179
        %v4181 = vpop.f32.mrf.mxu0
        %v4182 = vadd.f32 %v4133, %v4181
        %4183 = vmatmul.bf16.gmra.mxu0 %v509
        %v4184 = vpop.f32.mrf.mxu0
        %v4185 = vadd.f32 %v4136, %v4184
        %v4186 = vpop.f32.mrf.mxu0
        %v4187 = vadd.f32 %v4138, %v4186
        %4188 = vmatmul.bf16.gmra.mxu0 %v516
        %v4189 = vpop.f32.mrf.mxu0
        %v4190 = vadd.f32 %v4141, %v4189
        %v4191 = vpop.f32.mrf.mxu0
        %v4192 = vadd.f32 %v4143, %v4191
        %4193 = vmatmul.bf16.gmra.mxu0 %v523
        %v4194 = vpop.f32.mrf.mxu0
        %v4195 = vadd.f32 %v4146, %v4194
        %v4196 = vpop.f32.mrf.mxu0
        %v4197 = vadd.f32 %v4148, %v4196
        %4198 = vmatmul.bf16.gmra.mxu0 %v530
        %v4199 = vpop.f32.mrf.mxu0
        %v4200 = vadd.f32 %v4151, %v4199
        %v4201 = vpop.f32.mrf.mxu0
        %v4202 = vadd.f32 %v4153, %v4201
        %4203 = vmatmul.bf16.gmra.mxu0 %v537
        %v4204 = vpop.f32.mrf.mxu0
        %v4205 = vadd.f32 %v4156, %v4204
        %v4206 = vpop.f32.mrf.mxu0
        %v4207 = vadd.f32 %v4158, %v4206
        %4208 = vdwg.mxu0
        %4209 = vmatpush.bf16.msra.mxu0 %v2505
        %4210 = vmatpush.bf16.msra.mxu0 %v2497
        %4211 = vmatpush.bf16.msra.mxu0 %v2489
        %4212 = vmatpush.bf16.msra.mxu0 %v2481
        %4213 = vmatpush.bf16.msra.mxu0 %v2473
        %4214 = vmatpush.bf16.msra.mxu0 %v2465
        %4215 = vmatpush.bf16.msra.mxu0 %v2457
        %4216 = vmatpush.bf16.msra.mxu0 %v2449
        %4217 = vmatmul.bf16.gmra.mxu0 %v489
        %v4218 = vpop.f32.mrf.mxu0
        %v4219 = vadd.f32 %v4170, %v4218
        %v4220 = vpop.f32.mrf.mxu0
        %v4221 = vadd.f32 %v4172, %v4220
        %4222 = vmatmul.bf16.gmra.mxu0 %v496
        %v4223 = vpop.f32.mrf.mxu0
        %v4224 = vadd.f32 %v4175, %v4223
        %v4225 = vpop.f32.mrf.mxu0
        %v4226 = vadd.f32 %v4177, %v4225
        %4227 = vmatmul.bf16.gmra.mxu0 %v503
        %v4228 = vpop.f32.mrf.mxu0
        %v4229 = vadd.f32 %v4180, %v4228
        %v4230 = vpop.f32.mrf.mxu0
        %v4231 = vadd.f32 %v4182, %v4230
        %4232 = vmatmul.bf16.gmra.mxu0 %v510
        %v4233 = vpop.f32.mrf.mxu0
        %v4234 = vadd.f32 %v4185, %v4233
        %v4235 = vpop.f32.mrf.mxu0
        %v4236 = vadd.f32 %v4187, %v4235
        %4237 = vmatmul.bf16.gmra.mxu0 %v517
        %v4238 = vpop.f32.mrf.mxu0
        %v4239 = vadd.f32 %v4190, %v4238
        %v4240 = vpop.f32.mrf.mxu0
        %v4241 = vadd.f32 %v4192, %v4240
        %4242 = vmatmul.bf16.gmra.mxu0 %v524
        %v4243 = vpop.f32.mrf.mxu0
        %v4244 = vadd.f32 %v4195, %v4243
        %v4245 = vpop.f32.mrf.mxu0
        %v4246 = vadd.f32 %v4197, %v4245
        %4247 = vmatmul.bf16.gmra.mxu0 %v531
        %v4248 = vpop.f32.mrf.mxu0
        %v4249 = vadd.f32 %v4200, %v4248
        %v4250 = vpop.f32.mrf.mxu0
        %v4251 = vadd.f32 %v4202, %v4250
        %4252 = vmatmul.bf16.gmra.mxu0 %v538
        %v4253 = vpop.f32.mrf.mxu0
        %v4254 = vadd.f32 %v4205, %v4253
        %v4255 = vpop.f32.mrf.mxu0
        %v4256 = vadd.f32 %v4207, %v4255
        %4257 = vdwg.mxu0
        %4258 = vmatpush.bf16.msra.mxu0 0
        %4259 = vmatpush.bf16.msra.mxu0 0
        %4260 = vmatpush.bf16.msra.mxu0 0
        %4261 = vmatpush.bf16.msra.mxu0 0
        %4262 = vmatpush.bf16.msra.mxu0 0
        %4263 = vmatpush.bf16.msra.mxu0 0
        %4264 = vmatpush.bf16.msra.mxu0 0
        %4265 = vmatpush.bf16.msra.mxu0 %v2513
        %4266 = vmatmul.bf16.gmra.mxu0 %v2912
        %v4267 = vpop.f32.mrf.mxu0
        %v4268 = vadd.f32 %v4219, %v4267
        %v4269 = vpop.f32.mrf.mxu0
        %v4270 = vadd.f32 %v4221, %v4269
        %4271 = vmatmul.bf16.gmra.mxu0 %v2915
        %v4272 = vpop.f32.mrf.mxu0
        %v4273 = vadd.f32 %v4224, %v4272
        %v4274 = vpop.f32.mrf.mxu0
        %v4275 = vadd.f32 %v4226, %v4274
        %4276 = vmatmul.bf16.gmra.mxu0 %v2918
        %v4277 = vpop.f32.mrf.mxu0
        %v4278 = vadd.f32 %v4229, %v4277
        %v4279 = vpop.f32.mrf.mxu0
        %v4280 = vadd.f32 %v4231, %v4279
        %4281 = vmatmul.bf16.gmra.mxu0 %v2921
        %v4282 = vpop.f32.mrf.mxu0
        %v4283 = vadd.f32 %v4234, %v4282
        %v4284 = vpop.f32.mrf.mxu0
        %v4285 = vadd.f32 %v4236, %v4284
        %4286 = vmatmul.bf16.gmra.mxu0 %v2924
        %v4287 = vpop.f32.mrf.mxu0
        %v4288 = vadd.f32 %v4239, %v4287
        %v4289 = vpop.f32.mrf.mxu0
        %v4290 = vadd.f32 %v4241, %v4289
        %4291 = vmatmul.bf16.gmra.mxu0 %v2927
        %v4292 = vpop.f32.mrf.mxu0
        %v4293 = vadd.f32 %v4244, %v4292
        %v4294 = vpop.f32.mrf.mxu0
        %v4295 = vadd.f32 %v4246, %v4294
        %4296 = vmatmul.bf16.gmra.mxu0 %v2930
        %v4297 = vpop.f32.mrf.mxu0
        %v4298 = vadd.f32 %v4249, %v4297
        %v4299 = vpop.f32.mrf.mxu0
        %v4300 = vadd.f32 %v4251, %v4299
        %4301 = vmatmul.bf16.gmra.mxu0 %v2933
        %v4302 = vpop.f32.mrf.mxu0
        %v4303 = vadd.f32 %v4254, %v4302
        %v4304 = vpop.f32.mrf.mxu0
        %v4305 = vadd.f32 %v4256, %v4304
        %4306 = vdwg.mxu0
        %4307 = vmatpush.bf16.msra.mxu0 %v2186
        %4308 = vmatpush.bf16.msra.mxu0 %v2178
        %4309 = vmatpush.bf16.msra.mxu0 %v2170
        %4310 = vmatpush.bf16.msra.mxu0 %v2162
        %4311 = vmatpush.bf16.msra.mxu0 %v2154
        %4312 = vmatpush.bf16.msra.mxu0 %v2146
        %4313 = vmatpush.bf16.msra.mxu0 %v2138
        %4314 = vmatpush.bf16.msra.mxu0 %v2130
        %4315 = vmatmul.bf16.gmra.mxu0 %v484
        %v4316 = vpop.f32.mrf.mxu0
        %v4317 = vadd.f32 %v938, %v4316
        %v4318 = vpop.f32.mrf.mxu0
        %v4319 = vadd.f32 %v938, %v4318
        %4320 = vmatmul.bf16.gmra.mxu0 %v491
        %v4321 = vpop.f32.mrf.mxu0
        %v4322 = vadd.f32 %v938, %v4321
        %v4323 = vpop.f32.mrf.mxu0
        %v4324 = vadd.f32 %v938, %v4323
        %4325 = vmatmul.bf16.gmra.mxu0 %v498
        %v4326 = vpop.f32.mrf.mxu0
        %v4327 = vadd.f32 %v938, %v4326
        %v4328 = vpop.f32.mrf.mxu0
        %v4329 = vadd.f32 %v938, %v4328
        %4330 = vmatmul.bf16.gmra.mxu0 %v505
        %v4331 = vpop.f32.mrf.mxu0
        %v4332 = vadd.f32 %v938, %v4331
        %v4333 = vpop.f32.mrf.mxu0
        %v4334 = vadd.f32 %v938, %v4333
        %4335 = vmatmul.bf16.gmra.mxu0 %v512
        %v4336 = vpop.f32.mrf.mxu0
        %v4337 = vadd.f32 %v938, %v4336
        %v4338 = vpop.f32.mrf.mxu0
        %v4339 = vadd.f32 %v938, %v4338
        %4340 = vmatmul.bf16.gmra.mxu0 %v519
        %v4341 = vpop.f32.mrf.mxu0
        %v4342 = vadd.f32 %v938, %v4341
        %v4343 = vpop.f32.mrf.mxu0
        %v4344 = vadd.f32 %v938, %v4343
        %4345 = vmatmul.bf16.gmra.mxu0 %v526
        %v4346 = vpop.f32.mrf.mxu0
        %v4347 = vadd.f32 %v938, %v4346
        %v4348 = vpop.f32.mrf.mxu0
        %v4349 = vadd.f32 %v938, %v4348
        %4350 = vmatmul.bf16.gmra.mxu0 %v533
        %v4351 = vpop.f32.mrf.mxu0
        %v4352 = vadd.f32 %v938, %v4351
        %v4353 = vpop.f32.mrf.mxu0
        %v4354 = vadd.f32 %v938, %v4353
        %4355 = vdwg.mxu0
        %4356 = vmatpush.bf16.msra.mxu0 %v2250
        %4357 = vmatpush.bf16.msra.mxu0 %v2242
        %4358 = vmatpush.bf16.msra.mxu0 %v2234
        %4359 = vmatpush.bf16.msra.mxu0 %v2226
        %4360 = vmatpush.bf16.msra.mxu0 %v2218
        %4361 = vmatpush.bf16.msra.mxu0 %v2210
        %4362 = vmatpush.bf16.msra.mxu0 %v2202
        %4363 = vmatpush.bf16.msra.mxu0 %v2194
        %4364 = vmatmul.bf16.gmra.mxu0 %v485
        %v4365 = vpop.f32.mrf.mxu0
        %v4366 = vadd.f32 %v4317, %v4365
        %v4367 = vpop.f32.mrf.mxu0
        %v4368 = vadd.f32 %v4319, %v4367
        %4369 = vmatmul.bf16.gmra.mxu0 %v492
        %v4370 = vpop.f32.mrf.mxu0
        %v4371 = vadd.f32 %v4322, %v4370
        %v4372 = vpop.f32.mrf.mxu0
        %v4373 = vadd.f32 %v4324, %v4372
        %4374 = vmatmul.bf16.gmra.mxu0 %v499
        %v4375 = vpop.f32.mrf.mxu0
        %v4376 = vadd.f32 %v4327, %v4375
        %v4377 = vpop.f32.mrf.mxu0
        %v4378 = vadd.f32 %v4329, %v4377
        %4379 = vmatmul.bf16.gmra.mxu0 %v506
        %v4380 = vpop.f32.mrf.mxu0
        %v4381 = vadd.f32 %v4332, %v4380
        %v4382 = vpop.f32.mrf.mxu0
        %v4383 = vadd.f32 %v4334, %v4382
        %4384 = vmatmul.bf16.gmra.mxu0 %v513
        %v4385 = vpop.f32.mrf.mxu0
        %v4386 = vadd.f32 %v4337, %v4385
        %v4387 = vpop.f32.mrf.mxu0
        %v4388 = vadd.f32 %v4339, %v4387
        %4389 = vmatmul.bf16.gmra.mxu0 %v520
        %v4390 = vpop.f32.mrf.mxu0
        %v4391 = vadd.f32 %v4342, %v4390
        %v4392 = vpop.f32.mrf.mxu0
        %v4393 = vadd.f32 %v4344, %v4392
        %4394 = vmatmul.bf16.gmra.mxu0 %v527
        %v4395 = vpop.f32.mrf.mxu0
        %v4396 = vadd.f32 %v4347, %v4395
        %v4397 = vpop.f32.mrf.mxu0
        %v4398 = vadd.f32 %v4349, %v4397
        %4399 = vmatmul.bf16.gmra.mxu0 %v534
        %v4400 = vpop.f32.mrf.mxu0
        %v4401 = vadd.f32 %v4352, %v4400
        %v4402 = vpop.f32.mrf.mxu0
        %v4403 = vadd.f32 %v4354, %v4402
        %4404 = vdwg.mxu0
        %4405 = vmatpush.bf16.msra.mxu0 %v2314
        %4406 = vmatpush.bf16.msra.mxu0 %v2306
        %4407 = vmatpush.bf16.msra.mxu0 %v2298
        %4408 = vmatpush.bf16.msra.mxu0 %v2290
        %4409 = vmatpush.bf16.msra.mxu0 %v2282
        %4410 = vmatpush.bf16.msra.mxu0 %v2274
        %4411 = vmatpush.bf16.msra.mxu0 %v2266
        %4412 = vmatpush.bf16.msra.mxu0 %v2258
        %4413 = vmatmul.bf16.gmra.mxu0 %v486
        %v4414 = vpop.f32.mrf.mxu0
        %v4415 = vadd.f32 %v4366, %v4414
        %v4416 = vpop.f32.mrf.mxu0
        %v4417 = vadd.f32 %v4368, %v4416
        %4418 = vmatmul.bf16.gmra.mxu0 %v493
        %v4419 = vpop.f32.mrf.mxu0
        %v4420 = vadd.f32 %v4371, %v4419
        %v4421 = vpop.f32.mrf.mxu0
        %v4422 = vadd.f32 %v4373, %v4421
        %4423 = vmatmul.bf16.gmra.mxu0 %v500
        %v4424 = vpop.f32.mrf.mxu0
        %v4425 = vadd.f32 %v4376, %v4424
        %v4426 = vpop.f32.mrf.mxu0
        %v4427 = vadd.f32 %v4378, %v4426
        %4428 = vmatmul.bf16.gmra.mxu0 %v507
        %v4429 = vpop.f32.mrf.mxu0
        %v4430 = vadd.f32 %v4381, %v4429
        %v4431 = vpop.f32.mrf.mxu0
        %v4432 = vadd.f32 %v4383, %v4431
        %4433 = vmatmul.bf16.gmra.mxu0 %v514
        %v4434 = vpop.f32.mrf.mxu0
        %v4435 = vadd.f32 %v4386, %v4434
        %v4436 = vpop.f32.mrf.mxu0
        %v4437 = vadd.f32 %v4388, %v4436
        %4438 = vmatmul.bf16.gmra.mxu0 %v521
        %v4439 = vpop.f32.mrf.mxu0
        %v4440 = vadd.f32 %v4391, %v4439
        %v4441 = vpop.f32.mrf.mxu0
        %v4442 = vadd.f32 %v4393, %v4441
        %4443 = vmatmul.bf16.gmra.mxu0 %v528
        %v4444 = vpop.f32.mrf.mxu0
        %v4445 = vadd.f32 %v4396, %v4444
        %v4446 = vpop.f32.mrf.mxu0
        %v4447 = vadd.f32 %v4398, %v4446
        %4448 = vmatmul.bf16.gmra.mxu0 %v535
        %v4449 = vpop.f32.mrf.mxu0
        %v4450 = vadd.f32 %v4401, %v4449
        %v4451 = vpop.f32.mrf.mxu0
        %v4452 = vadd.f32 %v4403, %v4451
        %4453 = vdwg.mxu0
        %4454 = vmatpush.bf16.msra.mxu0 %v2378
        %4455 = vmatpush.bf16.msra.mxu0 %v2370
        %4456 = vmatpush.bf16.msra.mxu0 %v2362
        %4457 = vmatpush.bf16.msra.mxu0 %v2354
        %4458 = vmatpush.bf16.msra.mxu0 %v2346
        %4459 = vmatpush.bf16.msra.mxu0 %v2338
        %4460 = vmatpush.bf16.msra.mxu0 %v2330
        %4461 = vmatpush.bf16.msra.mxu0 %v2322
        %4462 = vmatmul.bf16.gmra.mxu0 %v487
        %v4463 = vpop.f32.mrf.mxu0
        %v4464 = vadd.f32 %v4415, %v4463
        %v4465 = vpop.f32.mrf.mxu0
        %v4466 = vadd.f32 %v4417, %v4465
        %4467 = vmatmul.bf16.gmra.mxu0 %v494
        %v4468 = vpop.f32.mrf.mxu0
        %v4469 = vadd.f32 %v4420, %v4468
        %v4470 = vpop.f32.mrf.mxu0
        %v4471 = vadd.f32 %v4422, %v4470
        %4472 = vmatmul.bf16.gmra.mxu0 %v501
        %v4473 = vpop.f32.mrf.mxu0
        %v4474 = vadd.f32 %v4425, %v4473
        %v4475 = vpop.f32.mrf.mxu0
        %v4476 = vadd.f32 %v4427, %v4475
        %4477 = vmatmul.bf16.gmra.mxu0 %v508
        %v4478 = vpop.f32.mrf.mxu0
        %v4479 = vadd.f32 %v4430, %v4478
        %v4480 = vpop.f32.mrf.mxu0
        %v4481 = vadd.f32 %v4432, %v4480
        %4482 = vmatmul.bf16.gmra.mxu0 %v515
        %v4483 = vpop.f32.mrf.mxu0
        %v4484 = vadd.f32 %v4435, %v4483
        %v4485 = vpop.f32.mrf.mxu0
        %v4486 = vadd.f32 %v4437, %v4485
        %4487 = vmatmul.bf16.gmra.mxu0 %v522
        %v4488 = vpop.f32.mrf.mxu0
        %v4489 = vadd.f32 %v4440, %v4488
        %v4490 = vpop.f32.mrf.mxu0
        %v4491 = vadd.f32 %v4442, %v4490
        %4492 = vmatmul.bf16.gmra.mxu0 %v529
        %v4493 = vpop.f32.mrf.mxu0
        %v4494 = vadd.f32 %v4445, %v4493
        %v4495 = vpop.f32.mrf.mxu0
        %v4496 = vadd.f32 %v4447, %v4495
        %4497 = vmatmul.bf16.gmra.mxu0 %v536
        %v4498 = vpop.f32.mrf.mxu0
        %v4499 = vadd.f32 %v4450, %v4498
        %v4500 = vpop.f32.mrf.mxu0
        %v4501 = vadd.f32 %v4452, %v4500
        %4502 = vdwg.mxu0
        %4503 = vmatpush.bf16.msra.mxu0 %v2442
        %4504 = vmatpush.bf16.msra.mxu0 %v2434
        %4505 = vmatpush.bf16.msra.mxu0 %v2426
        %4506 = vmatpush.bf16.msra.mxu0 %v2418
        %4507 = vmatpush.bf16.msra.mxu0 %v2410
        %4508 = vmatpush.bf16.msra.mxu0 %v2402
        %4509 = vmatpush.bf16.msra.mxu0 %v2394
        %4510 = vmatpush.bf16.msra.mxu0 %v2386
        %4511 = vmatmul.bf16.gmra.mxu0 %v488
        %v4512 = vpop.f32.mrf.mxu0
        %v4513 = vadd.f32 %v4464, %v4512
        %v4514 = vpop.f32.mrf.mxu0
        %v4515 = vadd.f32 %v4466, %v4514
        %4516 = vmatmul.bf16.gmra.mxu0 %v495
        %v4517 = vpop.f32.mrf.mxu0
        %v4518 = vadd.f32 %v4469, %v4517
        %v4519 = vpop.f32.mrf.mxu0
        %v4520 = vadd.f32 %v4471, %v4519
        %4521 = vmatmul.bf16.gmra.mxu0 %v502
        %v4522 = vpop.f32.mrf.mxu0
        %v4523 = vadd.f32 %v4474, %v4522
        %v4524 = vpop.f32.mrf.mxu0
        %v4525 = vadd.f32 %v4476, %v4524
        %4526 = vmatmul.bf16.gmra.mxu0 %v509
        %v4527 = vpop.f32.mrf.mxu0
        %v4528 = vadd.f32 %v4479, %v4527
        %v4529 = vpop.f32.mrf.mxu0
        %v4530 = vadd.f32 %v4481, %v4529
        %4531 = vmatmul.bf16.gmra.mxu0 %v516
        %v4532 = vpop.f32.mrf.mxu0
        %v4533 = vadd.f32 %v4484, %v4532
        %v4534 = vpop.f32.mrf.mxu0
        %v4535 = vadd.f32 %v4486, %v4534
        %4536 = vmatmul.bf16.gmra.mxu0 %v523
        %v4537 = vpop.f32.mrf.mxu0
        %v4538 = vadd.f32 %v4489, %v4537
        %v4539 = vpop.f32.mrf.mxu0
        %v4540 = vadd.f32 %v4491, %v4539
        %4541 = vmatmul.bf16.gmra.mxu0 %v530
        %v4542 = vpop.f32.mrf.mxu0
        %v4543 = vadd.f32 %v4494, %v4542
        %v4544 = vpop.f32.mrf.mxu0
        %v4545 = vadd.f32 %v4496, %v4544
        %4546 = vmatmul.bf16.gmra.mxu0 %v537
        %v4547 = vpop.f32.mrf.mxu0
        %v4548 = vadd.f32 %v4499, %v4547
        %v4549 = vpop.f32.mrf.mxu0
        %v4550 = vadd.f32 %v4501, %v4549
        %4551 = vdwg.mxu0
        %4552 = vmatpush.bf16.msra.mxu0 %v2506
        %4553 = vmatpush.bf16.msra.mxu0 %v2498
        %4554 = vmatpush.bf16.msra.mxu0 %v2490
        %4555 = vmatpush.bf16.msra.mxu0 %v2482
        %4556 = vmatpush.bf16.msra.mxu0 %v2474
        %4557 = vmatpush.bf16.msra.mxu0 %v2466
        %4558 = vmatpush.bf16.msra.mxu0 %v2458
        %4559 = vmatpush.bf16.msra.mxu0 %v2450
        %4560 = vmatmul.bf16.gmra.mxu0 %v489
        %v4561 = vpop.f32.mrf.mxu0
        %v4562 = vadd.f32 %v4513, %v4561
        %v4563 = vpop.f32.mrf.mxu0
        %v4564 = vadd.f32 %v4515, %v4563
        %4565 = vmatmul.bf16.gmra.mxu0 %v496
        %v4566 = vpop.f32.mrf.mxu0
        %v4567 = vadd.f32 %v4518, %v4566
        %v4568 = vpop.f32.mrf.mxu0
        %v4569 = vadd.f32 %v4520, %v4568
        %4570 = vmatmul.bf16.gmra.mxu0 %v503
        %v4571 = vpop.f32.mrf.mxu0
        %v4572 = vadd.f32 %v4523, %v4571
        %v4573 = vpop.f32.mrf.mxu0
        %v4574 = vadd.f32 %v4525, %v4573
        %4575 = vmatmul.bf16.gmra.mxu0 %v510
        %v4576 = vpop.f32.mrf.mxu0
        %v4577 = vadd.f32 %v4528, %v4576
        %v4578 = vpop.f32.mrf.mxu0
        %v4579 = vadd.f32 %v4530, %v4578
        %4580 = vmatmul.bf16.gmra.mxu0 %v517
        %v4581 = vpop.f32.mrf.mxu0
        %v4582 = vadd.f32 %v4533, %v4581
        %v4583 = vpop.f32.mrf.mxu0
        %v4584 = vadd.f32 %v4535, %v4583
        %4585 = vmatmul.bf16.gmra.mxu0 %v524
        %v4586 = vpop.f32.mrf.mxu0
        %v4587 = vadd.f32 %v4538, %v4586
        %v4588 = vpop.f32.mrf.mxu0
        %v4589 = vadd.f32 %v4540, %v4588
        %4590 = vmatmul.bf16.gmra.mxu0 %v531
        %v4591 = vpop.f32.mrf.mxu0
        %v4592 = vadd.f32 %v4543, %v4591
        %v4593 = vpop.f32.mrf.mxu0
        %v4594 = vadd.f32 %v4545, %v4593
        %4595 = vmatmul.bf16.gmra.mxu0 %v538
        %v4596 = vpop.f32.mrf.mxu0
        %v4597 = vadd.f32 %v4548, %v4596
        %v4598 = vpop.f32.mrf.mxu0
        %v4599 = vadd.f32 %v4550, %v4598
        %4600 = vdwg.mxu0
        %4601 = vmatpush.bf16.msra.mxu0 0
        %4602 = vmatpush.bf16.msra.mxu0 0
        %4603 = vmatpush.bf16.msra.mxu0 0
        %4604 = vmatpush.bf16.msra.mxu0 0
        %4605 = vmatpush.bf16.msra.mxu0 0
        %4606 = vmatpush.bf16.msra.mxu0 0
        %4607 = vmatpush.bf16.msra.mxu0 0
        %4608 = vmatpush.bf16.msra.mxu0 %v2514
        %4609 = vmatmul.bf16.gmra.mxu0 %v2912
        %v4610 = vpop.f32.mrf.mxu0
        %v4611 = vadd.f32 %v4562, %v4610
        %v4612 = vpop.f32.mrf.mxu0
        %v4613 = vadd.f32 %v4564, %v4612
        %4614 = vmatmul.bf16.gmra.mxu0 %v2915
        %v4615 = vpop.f32.mrf.mxu0
        %v4616 = vadd.f32 %v4567, %v4615
        %v4617 = vpop.f32.mrf.mxu0
        %v4618 = vadd.f32 %v4569, %v4617
        %4619 = vmatmul.bf16.gmra.mxu0 %v2918
        %v4620 = vpop.f32.mrf.mxu0
        %v4621 = vadd.f32 %v4572, %v4620
        %v4622 = vpop.f32.mrf.mxu0
        %v4623 = vadd.f32 %v4574, %v4622
        %4624 = vmatmul.bf16.gmra.mxu0 %v2921
        %v4625 = vpop.f32.mrf.mxu0
        %v4626 = vadd.f32 %v4577, %v4625
        %v4627 = vpop.f32.mrf.mxu0
        %v4628 = vadd.f32 %v4579, %v4627
        %4629 = vmatmul.bf16.gmra.mxu0 %v2924
        %v4630 = vpop.f32.mrf.mxu0
        %v4631 = vadd.f32 %v4582, %v4630
        %v4632 = vpop.f32.mrf.mxu0
        %v4633 = vadd.f32 %v4584, %v4632
        %4634 = vmatmul.bf16.gmra.mxu0 %v2927
        %v4635 = vpop.f32.mrf.mxu0
        %v4636 = vadd.f32 %v4587, %v4635
        %v4637 = vpop.f32.mrf.mxu0
        %v4638 = vadd.f32 %v4589, %v4637
        %4639 = vmatmul.bf16.gmra.mxu0 %v2930
        %v4640 = vpop.f32.mrf.mxu0
        %v4641 = vadd.f32 %v4592, %v4640
        %v4642 = vpop.f32.mrf.mxu0
        %v4643 = vadd.f32 %v4594, %v4642
        %4644 = vmatmul.bf16.gmra.mxu0 %v2933
        %v4645 = vpop.f32.mrf.mxu0
        %v4646 = vadd.f32 %v4597, %v4645
        %v4647 = vpop.f32.mrf.mxu0
        %v4648 = vadd.f32 %v4599, %v4647
        %4649 = vdwg.mxu0
        %4650 = vmatpush.bf16.msra.mxu0 %v2187
        %4651 = vmatpush.bf16.msra.mxu0 %v2179
        %4652 = vmatpush.bf16.msra.mxu0 %v2171
        %4653 = vmatpush.bf16.msra.mxu0 %v2163
        %4654 = vmatpush.bf16.msra.mxu0 %v2155
        %4655 = vmatpush.bf16.msra.mxu0 %v2147
        %4656 = vmatpush.bf16.msra.mxu0 %v2139
        %4657 = vmatpush.bf16.msra.mxu0 %v2131
        %4658 = vmatmul.bf16.gmra.mxu0 %v484
        %v4659 = vpop.f32.mrf.mxu0
        %v4660 = vadd.f32 %v939, %v4659
        %v4661 = vpop.f32.mrf.mxu0
        %v4662 = vadd.f32 %v939, %v4661
        %4663 = vmatmul.bf16.gmra.mxu0 %v491
        %v4664 = vpop.f32.mrf.mxu0
        %v4665 = vadd.f32 %v939, %v4664
        %v4666 = vpop.f32.mrf.mxu0
        %v4667 = vadd.f32 %v939, %v4666
        %4668 = vmatmul.bf16.gmra.mxu0 %v498
        %v4669 = vpop.f32.mrf.mxu0
        %v4670 = vadd.f32 %v939, %v4669
        %v4671 = vpop.f32.mrf.mxu0
        %v4672 = vadd.f32 %v939, %v4671
        %4673 = vmatmul.bf16.gmra.mxu0 %v505
        %v4674 = vpop.f32.mrf.mxu0
        %v4675 = vadd.f32 %v939, %v4674
        %v4676 = vpop.f32.mrf.mxu0
        %v4677 = vadd.f32 %v939, %v4676
        %4678 = vmatmul.bf16.gmra.mxu0 %v512
        %v4679 = vpop.f32.mrf.mxu0
        %v4680 = vadd.f32 %v939, %v4679
        %v4681 = vpop.f32.mrf.mxu0
        %v4682 = vadd.f32 %v939, %v4681
        %4683 = vmatmul.bf16.gmra.mxu0 %v519
        %v4684 = vpop.f32.mrf.mxu0
        %v4685 = vadd.f32 %v939, %v4684
        %v4686 = vpop.f32.mrf.mxu0
        %v4687 = vadd.f32 %v939, %v4686
        %4688 = vmatmul.bf16.gmra.mxu0 %v526
        %v4689 = vpop.f32.mrf.mxu0
        %v4690 = vadd.f32 %v939, %v4689
        %v4691 = vpop.f32.mrf.mxu0
        %v4692 = vadd.f32 %v939, %v4691
        %4693 = vmatmul.bf16.gmra.mxu0 %v533
        %v4694 = vpop.f32.mrf.mxu0
        %v4695 = vadd.f32 %v939, %v4694
        %v4696 = vpop.f32.mrf.mxu0
        %v4697 = vadd.f32 %v939, %v4696
        %4698 = vdwg.mxu0
        %4699 = vmatpush.bf16.msra.mxu0 %v2251
        %4700 = vmatpush.bf16.msra.mxu0 %v2243
        %4701 = vmatpush.bf16.msra.mxu0 %v2235
        %4702 = vmatpush.bf16.msra.mxu0 %v2227
        %4703 = vmatpush.bf16.msra.mxu0 %v2219
        %4704 = vmatpush.bf16.msra.mxu0 %v2211
        %4705 = vmatpush.bf16.msra.mxu0 %v2203
        %4706 = vmatpush.bf16.msra.mxu0 %v2195
        %4707 = vmatmul.bf16.gmra.mxu0 %v485
        %v4708 = vpop.f32.mrf.mxu0
        %v4709 = vadd.f32 %v4660, %v4708
        %v4710 = vpop.f32.mrf.mxu0
        %v4711 = vadd.f32 %v4662, %v4710
        %4712 = vmatmul.bf16.gmra.mxu0 %v492
        %v4713 = vpop.f32.mrf.mxu0
        %v4714 = vadd.f32 %v4665, %v4713
        %v4715 = vpop.f32.mrf.mxu0
        %v4716 = vadd.f32 %v4667, %v4715
        %4717 = vmatmul.bf16.gmra.mxu0 %v499
        %v4718 = vpop.f32.mrf.mxu0
        %v4719 = vadd.f32 %v4670, %v4718
        %v4720 = vpop.f32.mrf.mxu0
        %v4721 = vadd.f32 %v4672, %v4720
        %4722 = vmatmul.bf16.gmra.mxu0 %v506
        %v4723 = vpop.f32.mrf.mxu0
        %v4724 = vadd.f32 %v4675, %v4723
        %v4725 = vpop.f32.mrf.mxu0
        %v4726 = vadd.f32 %v4677, %v4725
        %4727 = vmatmul.bf16.gmra.mxu0 %v513
        %v4728 = vpop.f32.mrf.mxu0
        %v4729 = vadd.f32 %v4680, %v4728
        %v4730 = vpop.f32.mrf.mxu0
        %v4731 = vadd.f32 %v4682, %v4730
        %4732 = vmatmul.bf16.gmra.mxu0 %v520
        %v4733 = vpop.f32.mrf.mxu0
        %v4734 = vadd.f32 %v4685, %v4733
        %v4735 = vpop.f32.mrf.mxu0
        %v4736 = vadd.f32 %v4687, %v4735
        %4737 = vmatmul.bf16.gmra.mxu0 %v527
        %v4738 = vpop.f32.mrf.mxu0
        %v4739 = vadd.f32 %v4690, %v4738
        %v4740 = vpop.f32.mrf.mxu0
        %v4741 = vadd.f32 %v4692, %v4740
        %4742 = vmatmul.bf16.gmra.mxu0 %v534
        %v4743 = vpop.f32.mrf.mxu0
        %v4744 = vadd.f32 %v4695, %v4743
        %v4745 = vpop.f32.mrf.mxu0
        %v4746 = vadd.f32 %v4697, %v4745
        %4747 = vdwg.mxu0
        %4748 = vmatpush.bf16.msra.mxu0 %v2315
        %4749 = vmatpush.bf16.msra.mxu0 %v2307
        %4750 = vmatpush.bf16.msra.mxu0 %v2299
        %4751 = vmatpush.bf16.msra.mxu0 %v2291
        %4752 = vmatpush.bf16.msra.mxu0 %v2283
        %4753 = vmatpush.bf16.msra.mxu0 %v2275
        %4754 = vmatpush.bf16.msra.mxu0 %v2267
        %4755 = vmatpush.bf16.msra.mxu0 %v2259
        %4756 = vmatmul.bf16.gmra.mxu0 %v486
        %v4757 = vpop.f32.mrf.mxu0
        %v4758 = vadd.f32 %v4709, %v4757
        %v4759 = vpop.f32.mrf.mxu0
        %v4760 = vadd.f32 %v4711, %v4759
        %4761 = vmatmul.bf16.gmra.mxu0 %v493
        %v4762 = vpop.f32.mrf.mxu0
        %v4763 = vadd.f32 %v4714, %v4762
        %v4764 = vpop.f32.mrf.mxu0
        %v4765 = vadd.f32 %v4716, %v4764
        %4766 = vmatmul.bf16.gmra.mxu0 %v500
        %v4767 = vpop.f32.mrf.mxu0
        %v4768 = vadd.f32 %v4719, %v4767
        %v4769 = vpop.f32.mrf.mxu0
        %v4770 = vadd.f32 %v4721, %v4769
        %4771 = vmatmul.bf16.gmra.mxu0 %v507
        %v4772 = vpop.f32.mrf.mxu0
        %v4773 = vadd.f32 %v4724, %v4772
        %v4774 = vpop.f32.mrf.mxu0
        %v4775 = vadd.f32 %v4726, %v4774
        %4776 = vmatmul.bf16.gmra.mxu0 %v514
        %v4777 = vpop.f32.mrf.mxu0
        %v4778 = vadd.f32 %v4729, %v4777
        %v4779 = vpop.f32.mrf.mxu0
        %v4780 = vadd.f32 %v4731, %v4779
        %4781 = vmatmul.bf16.gmra.mxu0 %v521
        %v4782 = vpop.f32.mrf.mxu0
        %v4783 = vadd.f32 %v4734, %v4782
        %v4784 = vpop.f32.mrf.mxu0
        %v4785 = vadd.f32 %v4736, %v4784
        %4786 = vmatmul.bf16.gmra.mxu0 %v528
        %v4787 = vpop.f32.mrf.mxu0
        %v4788 = vadd.f32 %v4739, %v4787
        %v4789 = vpop.f32.mrf.mxu0
        %v4790 = vadd.f32 %v4741, %v4789
        %4791 = vmatmul.bf16.gmra.mxu0 %v535
        %v4792 = vpop.f32.mrf.mxu0
        %v4793 = vadd.f32 %v4744, %v4792
        %v4794 = vpop.f32.mrf.mxu0
        %v4795 = vadd.f32 %v4746, %v4794
        %4796 = vdwg.mxu0
        %4797 = vmatpush.bf16.msra.mxu0 %v2379
        %4798 = vmatpush.bf16.msra.mxu0 %v2371
        %4799 = vmatpush.bf16.msra.mxu0 %v2363
        %4800 = vmatpush.bf16.msra.mxu0 %v2355
        %4801 = vmatpush.bf16.msra.mxu0 %v2347
        %4802 = vmatpush.bf16.msra.mxu0 %v2339
        %4803 = vmatpush.bf16.msra.mxu0 %v2331
        %4804 = vmatpush.bf16.msra.mxu0 %v2323
        %4805 = vmatmul.bf16.gmra.mxu0 %v487
        %v4806 = vpop.f32.mrf.mxu0
        %v4807 = vadd.f32 %v4758, %v4806
        %v4808 = vpop.f32.mrf.mxu0
        %v4809 = vadd.f32 %v4760, %v4808
        %4810 = vmatmul.bf16.gmra.mxu0 %v494
        %v4811 = vpop.f32.mrf.mxu0
        %v4812 = vadd.f32 %v4763, %v4811
        %v4813 = vpop.f32.mrf.mxu0
        %v4814 = vadd.f32 %v4765, %v4813
        %4815 = vmatmul.bf16.gmra.mxu0 %v501
        %v4816 = vpop.f32.mrf.mxu0
        %v4817 = vadd.f32 %v4768, %v4816
        %v4818 = vpop.f32.mrf.mxu0
        %v4819 = vadd.f32 %v4770, %v4818
        %4820 = vmatmul.bf16.gmra.mxu0 %v508
        %v4821 = vpop.f32.mrf.mxu0
        %v4822 = vadd.f32 %v4773, %v4821
        %v4823 = vpop.f32.mrf.mxu0
        %v4824 = vadd.f32 %v4775, %v4823
        %4825 = vmatmul.bf16.gmra.mxu0 %v515
        %v4826 = vpop.f32.mrf.mxu0
        %v4827 = vadd.f32 %v4778, %v4826
        %v4828 = vpop.f32.mrf.mxu0
        %v4829 = vadd.f32 %v4780, %v4828
        %4830 = vmatmul.bf16.gmra.mxu0 %v522
        %v4831 = vpop.f32.mrf.mxu0
        %v4832 = vadd.f32 %v4783, %v4831
        %v4833 = vpop.f32.mrf.mxu0
        %v4834 = vadd.f32 %v4785, %v4833
        %4835 = vmatmul.bf16.gmra.mxu0 %v529
        %v4836 = vpop.f32.mrf.mxu0
        %v4837 = vadd.f32 %v4788, %v4836
        %v4838 = vpop.f32.mrf.mxu0
        %v4839 = vadd.f32 %v4790, %v4838
        %4840 = vmatmul.bf16.gmra.mxu0 %v536
        %v4841 = vpop.f32.mrf.mxu0
        %v4842 = vadd.f32 %v4793, %v4841
        %v4843 = vpop.f32.mrf.mxu0
        %v4844 = vadd.f32 %v4795, %v4843
        %4845 = vdwg.mxu0
        %4846 = vmatpush.bf16.msra.mxu0 %v2443
        %4847 = vmatpush.bf16.msra.mxu0 %v2435
        %4848 = vmatpush.bf16.msra.mxu0 %v2427
        %4849 = vmatpush.bf16.msra.mxu0 %v2419
        %4850 = vmatpush.bf16.msra.mxu0 %v2411
        %4851 = vmatpush.bf16.msra.mxu0 %v2403
        %4852 = vmatpush.bf16.msra.mxu0 %v2395
        %4853 = vmatpush.bf16.msra.mxu0 %v2387
        %4854 = vmatmul.bf16.gmra.mxu0 %v488
        %v4855 = vpop.f32.mrf.mxu0
        %v4856 = vadd.f32 %v4807, %v4855
        %v4857 = vpop.f32.mrf.mxu0
        %v4858 = vadd.f32 %v4809, %v4857
        %4859 = vmatmul.bf16.gmra.mxu0 %v495
        %v4860 = vpop.f32.mrf.mxu0
        %v4861 = vadd.f32 %v4812, %v4860
        %v4862 = vpop.f32.mrf.mxu0
        %v4863 = vadd.f32 %v4814, %v4862
        %4864 = vmatmul.bf16.gmra.mxu0 %v502
        %v4865 = vpop.f32.mrf.mxu0
        %v4866 = vadd.f32 %v4817, %v4865
        %v4867 = vpop.f32.mrf.mxu0
        %v4868 = vadd.f32 %v4819, %v4867
        %4869 = vmatmul.bf16.gmra.mxu0 %v509
        %v4870 = vpop.f32.mrf.mxu0
        %v4871 = vadd.f32 %v4822, %v4870
        %v4872 = vpop.f32.mrf.mxu0
        %v4873 = vadd.f32 %v4824, %v4872
        %4874 = vmatmul.bf16.gmra.mxu0 %v516
        %v4875 = vpop.f32.mrf.mxu0
        %v4876 = vadd.f32 %v4827, %v4875
        %v4877 = vpop.f32.mrf.mxu0
        %v4878 = vadd.f32 %v4829, %v4877
        %4879 = vmatmul.bf16.gmra.mxu0 %v523
        %v4880 = vpop.f32.mrf.mxu0
        %v4881 = vadd.f32 %v4832, %v4880
        %v4882 = vpop.f32.mrf.mxu0
        %v4883 = vadd.f32 %v4834, %v4882
        %4884 = vmatmul.bf16.gmra.mxu0 %v530
        %v4885 = vpop.f32.mrf.mxu0
        %v4886 = vadd.f32 %v4837, %v4885
        %v4887 = vpop.f32.mrf.mxu0
        %v4888 = vadd.f32 %v4839, %v4887
        %4889 = vmatmul.bf16.gmra.mxu0 %v537
        %v4890 = vpop.f32.mrf.mxu0
        %v4891 = vadd.f32 %v4842, %v4890
        %v4892 = vpop.f32.mrf.mxu0
        %v4893 = vadd.f32 %v4844, %v4892
        %4894 = vdwg.mxu0
        %4895 = vmatpush.bf16.msra.mxu0 %v2507
        %4896 = vmatpush.bf16.msra.mxu0 %v2499
        %4897 = vmatpush.bf16.msra.mxu0 %v2491
        %4898 = vmatpush.bf16.msra.mxu0 %v2483
        %4899 = vmatpush.bf16.msra.mxu0 %v2475
        %4900 = vmatpush.bf16.msra.mxu0 %v2467
        %4901 = vmatpush.bf16.msra.mxu0 %v2459
        %4902 = vmatpush.bf16.msra.mxu0 %v2451
        %4903 = vmatmul.bf16.gmra.mxu0 %v489
        %v4904 = vpop.f32.mrf.mxu0
        %v4905 = vadd.f32 %v4856, %v4904
        %v4906 = vpop.f32.mrf.mxu0
        %v4907 = vadd.f32 %v4858, %v4906
        %4908 = vmatmul.bf16.gmra.mxu0 %v496
        %v4909 = vpop.f32.mrf.mxu0
        %v4910 = vadd.f32 %v4861, %v4909
        %v4911 = vpop.f32.mrf.mxu0
        %v4912 = vadd.f32 %v4863, %v4911
        %4913 = vmatmul.bf16.gmra.mxu0 %v503
        %v4914 = vpop.f32.mrf.mxu0
        %v4915 = vadd.f32 %v4866, %v4914
        %v4916 = vpop.f32.mrf.mxu0
        %v4917 = vadd.f32 %v4868, %v4916
        %4918 = vmatmul.bf16.gmra.mxu0 %v510
        %v4919 = vpop.f32.mrf.mxu0
        %v4920 = vadd.f32 %v4871, %v4919
        %v4921 = vpop.f32.mrf.mxu0
        %v4922 = vadd.f32 %v4873, %v4921
        %4923 = vmatmul.bf16.gmra.mxu0 %v517
        %v4924 = vpop.f32.mrf.mxu0
        %v4925 = vadd.f32 %v4876, %v4924
        %v4926 = vpop.f32.mrf.mxu0
        %v4927 = vadd.f32 %v4878, %v4926
        %4928 = vmatmul.bf16.gmra.mxu0 %v524
        %v4929 = vpop.f32.mrf.mxu0
        %v4930 = vadd.f32 %v4881, %v4929
        %v4931 = vpop.f32.mrf.mxu0
        %v4932 = vadd.f32 %v4883, %v4931
        %4933 = vmatmul.bf16.gmra.mxu0 %v531
        %v4934 = vpop.f32.mrf.mxu0
        %v4935 = vadd.f32 %v4886, %v4934
        %v4936 = vpop.f32.mrf.mxu0
        %v4937 = vadd.f32 %v4888, %v4936
        %4938 = vmatmul.bf16.gmra.mxu0 %v538
        %v4939 = vpop.f32.mrf.mxu0
        %v4940 = vadd.f32 %v4891, %v4939
        %v4941 = vpop.f32.mrf.mxu0
        %v4942 = vadd.f32 %v4893, %v4941
        %4943 = vdwg.mxu0
        %4944 = vmatpush.bf16.msra.mxu0 0
        %4945 = vmatpush.bf16.msra.mxu0 0
        %4946 = vmatpush.bf16.msra.mxu0 0
        %4947 = vmatpush.bf16.msra.mxu0 0
        %4948 = vmatpush.bf16.msra.mxu0 0
        %4949 = vmatpush.bf16.msra.mxu0 0
        %4950 = vmatpush.bf16.msra.mxu0 0
        %4951 = vmatpush.bf16.msra.mxu0 %v2515
        %4952 = vmatmul.bf16.gmra.mxu0 %v2912
        %v4953 = vpop.f32.mrf.mxu0
        %v4954 = vadd.f32 %v4905, %v4953
        %v4955 = vpop.f32.mrf.mxu0
        %v4956 = vadd.f32 %v4907, %v4955
        %4957 = vmatmul.bf16.gmra.mxu0 %v2915
        %v4958 = vpop.f32.mrf.mxu0
        %v4959 = vadd.f32 %v4910, %v4958
        %v4960 = vpop.f32.mrf.mxu0
        %v4961 = vadd.f32 %v4912, %v4960
        %4962 = vmatmul.bf16.gmra.mxu0 %v2918
        %v4963 = vpop.f32.mrf.mxu0
        %v4964 = vadd.f32 %v4915, %v4963
        %v4965 = vpop.f32.mrf.mxu0
        %v4966 = vadd.f32 %v4917, %v4965
        %4967 = vmatmul.bf16.gmra.mxu0 %v2921
        %v4968 = vpop.f32.mrf.mxu0
        %v4969 = vadd.f32 %v4920, %v4968
        %v4970 = vpop.f32.mrf.mxu0
        %v4971 = vadd.f32 %v4922, %v4970
        %4972 = vmatmul.bf16.gmra.mxu0 %v2924
        %v4973 = vpop.f32.mrf.mxu0
        %v4974 = vadd.f32 %v4925, %v4973
        %v4975 = vpop.f32.mrf.mxu0
        %v4976 = vadd.f32 %v4927, %v4975
        %4977 = vmatmul.bf16.gmra.mxu0 %v2927
        %v4978 = vpop.f32.mrf.mxu0
        %v4979 = vadd.f32 %v4930, %v4978
        %v4980 = vpop.f32.mrf.mxu0
        %v4981 = vadd.f32 %v4932, %v4980
        %4982 = vmatmul.bf16.gmra.mxu0 %v2930
        %v4983 = vpop.f32.mrf.mxu0
        %v4984 = vadd.f32 %v4935, %v4983
        %v4985 = vpop.f32.mrf.mxu0
        %v4986 = vadd.f32 %v4937, %v4985
        %4987 = vmatmul.bf16.gmra.mxu0 %v2933
        %v4988 = vpop.f32.mrf.mxu0
        %v4989 = vadd.f32 %v4940, %v4988
        %v4990 = vpop.f32.mrf.mxu0
        %v4991 = vadd.f32 %v4942, %v4990
        %4992 = vdwg.mxu0
        %4993 = vmatpush.bf16.msra.mxu0 %v2188
        %4994 = vmatpush.bf16.msra.mxu0 %v2180
        %4995 = vmatpush.bf16.msra.mxu0 %v2172
        %4996 = vmatpush.bf16.msra.mxu0 %v2164
        %4997 = vmatpush.bf16.msra.mxu0 %v2156
        %4998 = vmatpush.bf16.msra.mxu0 %v2148
        %4999 = vmatpush.bf16.msra.mxu0 %v2140
        %5000 = vmatpush.bf16.msra.mxu0 %v2132
        %5001 = vmatmul.bf16.gmra.mxu0 %v484
        %v5002 = vpop.f32.mrf.mxu0
        %v5003 = vadd.f32 %v940, %v5002
        %v5004 = vpop.f32.mrf.mxu0
        %v5005 = vadd.f32 %v940, %v5004
        %5006 = vmatmul.bf16.gmra.mxu0 %v491
        %v5007 = vpop.f32.mrf.mxu0
        %v5008 = vadd.f32 %v940, %v5007
        %v5009 = vpop.f32.mrf.mxu0
        %v5010 = vadd.f32 %v940, %v5009
        %5011 = vmatmul.bf16.gmra.mxu0 %v498
        %v5012 = vpop.f32.mrf.mxu0
        %v5013 = vadd.f32 %v940, %v5012
        %v5014 = vpop.f32.mrf.mxu0
        %v5015 = vadd.f32 %v940, %v5014
        %5016 = vmatmul.bf16.gmra.mxu0 %v505
        %v5017 = vpop.f32.mrf.mxu0
        %v5018 = vadd.f32 %v940, %v5017
        %v5019 = vpop.f32.mrf.mxu0
        %v5020 = vadd.f32 %v940, %v5019
        %5021 = vmatmul.bf16.gmra.mxu0 %v512
        %v5022 = vpop.f32.mrf.mxu0
        %v5023 = vadd.f32 %v940, %v5022
        %v5024 = vpop.f32.mrf.mxu0
        %v5025 = vadd.f32 %v940, %v5024
        %5026 = vmatmul.bf16.gmra.mxu0 %v519
        %v5027 = vpop.f32.mrf.mxu0
        %v5028 = vadd.f32 %v940, %v5027
        %v5029 = vpop.f32.mrf.mxu0
        %v5030 = vadd.f32 %v940, %v5029
        %5031 = vmatmul.bf16.gmra.mxu0 %v526
        %v5032 = vpop.f32.mrf.mxu0
        %v5033 = vadd.f32 %v940, %v5032
        %v5034 = vpop.f32.mrf.mxu0
        %v5035 = vadd.f32 %v940, %v5034
        %5036 = vmatmul.bf16.gmra.mxu0 %v533
        %v5037 = vpop.f32.mrf.mxu0
        %v5038 = vadd.f32 %v940, %v5037
        %v5039 = vpop.f32.mrf.mxu0
        %v5040 = vadd.f32 %v940, %v5039
        %5041 = vdwg.mxu0
        %5042 = vmatpush.bf16.msra.mxu0 %v2252
        %5043 = vmatpush.bf16.msra.mxu0 %v2244
        %5044 = vmatpush.bf16.msra.mxu0 %v2236
        %5045 = vmatpush.bf16.msra.mxu0 %v2228
        %5046 = vmatpush.bf16.msra.mxu0 %v2220
        %5047 = vmatpush.bf16.msra.mxu0 %v2212
        %5048 = vmatpush.bf16.msra.mxu0 %v2204
        %5049 = vmatpush.bf16.msra.mxu0 %v2196
        %5050 = vmatmul.bf16.gmra.mxu0 %v485
        %v5051 = vpop.f32.mrf.mxu0
        %v5052 = vadd.f32 %v5003, %v5051
        %v5053 = vpop.f32.mrf.mxu0
        %v5054 = vadd.f32 %v5005, %v5053
        %5055 = vmatmul.bf16.gmra.mxu0 %v492
        %v5056 = vpop.f32.mrf.mxu0
        %v5057 = vadd.f32 %v5008, %v5056
        %v5058 = vpop.f32.mrf.mxu0
        %v5059 = vadd.f32 %v5010, %v5058
        %5060 = vmatmul.bf16.gmra.mxu0 %v499
        %v5061 = vpop.f32.mrf.mxu0
        %v5062 = vadd.f32 %v5013, %v5061
        %v5063 = vpop.f32.mrf.mxu0
        %v5064 = vadd.f32 %v5015, %v5063
        %5065 = vmatmul.bf16.gmra.mxu0 %v506
        %v5066 = vpop.f32.mrf.mxu0
        %v5067 = vadd.f32 %v5018, %v5066
        %v5068 = vpop.f32.mrf.mxu0
        %v5069 = vadd.f32 %v5020, %v5068
        %5070 = vmatmul.bf16.gmra.mxu0 %v513
        %v5071 = vpop.f32.mrf.mxu0
        %v5072 = vadd.f32 %v5023, %v5071
        %v5073 = vpop.f32.mrf.mxu0
        %v5074 = vadd.f32 %v5025, %v5073
        %5075 = vmatmul.bf16.gmra.mxu0 %v520
        %v5076 = vpop.f32.mrf.mxu0
        %v5077 = vadd.f32 %v5028, %v5076
        %v5078 = vpop.f32.mrf.mxu0
        %v5079 = vadd.f32 %v5030, %v5078
        %5080 = vmatmul.bf16.gmra.mxu0 %v527
        %v5081 = vpop.f32.mrf.mxu0
        %v5082 = vadd.f32 %v5033, %v5081
        %v5083 = vpop.f32.mrf.mxu0
        %v5084 = vadd.f32 %v5035, %v5083
        %5085 = vmatmul.bf16.gmra.mxu0 %v534
        %v5086 = vpop.f32.mrf.mxu0
        %v5087 = vadd.f32 %v5038, %v5086
        %v5088 = vpop.f32.mrf.mxu0
        %v5089 = vadd.f32 %v5040, %v5088
        %5090 = vdwg.mxu0
        %5091 = vmatpush.bf16.msra.mxu0 %v2316
        %5092 = vmatpush.bf16.msra.mxu0 %v2308
        %5093 = vmatpush.bf16.msra.mxu0 %v2300
        %5094 = vmatpush.bf16.msra.mxu0 %v2292
        %5095 = vmatpush.bf16.msra.mxu0 %v2284
        %5096 = vmatpush.bf16.msra.mxu0 %v2276
        %5097 = vmatpush.bf16.msra.mxu0 %v2268
        %5098 = vmatpush.bf16.msra.mxu0 %v2260
        %5099 = vmatmul.bf16.gmra.mxu0 %v486
        %v5100 = vpop.f32.mrf.mxu0
        %v5101 = vadd.f32 %v5052, %v5100
        %v5102 = vpop.f32.mrf.mxu0
        %v5103 = vadd.f32 %v5054, %v5102
        %5104 = vmatmul.bf16.gmra.mxu0 %v493
        %v5105 = vpop.f32.mrf.mxu0
        %v5106 = vadd.f32 %v5057, %v5105
        %v5107 = vpop.f32.mrf.mxu0
        %v5108 = vadd.f32 %v5059, %v5107
        %5109 = vmatmul.bf16.gmra.mxu0 %v500
        %v5110 = vpop.f32.mrf.mxu0
        %v5111 = vadd.f32 %v5062, %v5110
        %v5112 = vpop.f32.mrf.mxu0
        %v5113 = vadd.f32 %v5064, %v5112
        %5114 = vmatmul.bf16.gmra.mxu0 %v507
        %v5115 = vpop.f32.mrf.mxu0
        %v5116 = vadd.f32 %v5067, %v5115
        %v5117 = vpop.f32.mrf.mxu0
        %v5118 = vadd.f32 %v5069, %v5117
        %5119 = vmatmul.bf16.gmra.mxu0 %v514
        %v5120 = vpop.f32.mrf.mxu0
        %v5121 = vadd.f32 %v5072, %v5120
        %v5122 = vpop.f32.mrf.mxu0
        %v5123 = vadd.f32 %v5074, %v5122
        %5124 = vmatmul.bf16.gmra.mxu0 %v521
        %v5125 = vpop.f32.mrf.mxu0
        %v5126 = vadd.f32 %v5077, %v5125
        %v5127 = vpop.f32.mrf.mxu0
        %v5128 = vadd.f32 %v5079, %v5127
        %5129 = vmatmul.bf16.gmra.mxu0 %v528
        %v5130 = vpop.f32.mrf.mxu0
        %v5131 = vadd.f32 %v5082, %v5130
        %v5132 = vpop.f32.mrf.mxu0
        %v5133 = vadd.f32 %v5084, %v5132
        %5134 = vmatmul.bf16.gmra.mxu0 %v535
        %v5135 = vpop.f32.mrf.mxu0
        %v5136 = vadd.f32 %v5087, %v5135
        %v5137 = vpop.f32.mrf.mxu0
        %v5138 = vadd.f32 %v5089, %v5137
        %5139 = vdwg.mxu0
        %5140 = vmatpush.bf16.msra.mxu0 %v2380
        %5141 = vmatpush.bf16.msra.mxu0 %v2372
        %5142 = vmatpush.bf16.msra.mxu0 %v2364
        %5143 = vmatpush.bf16.msra.mxu0 %v2356
        %5144 = vmatpush.bf16.msra.mxu0 %v2348
        %5145 = vmatpush.bf16.msra.mxu0 %v2340
        %5146 = vmatpush.bf16.msra.mxu0 %v2332
        %5147 = vmatpush.bf16.msra.mxu0 %v2324
        %5148 = vmatmul.bf16.gmra.mxu0 %v487
        %v5149 = vpop.f32.mrf.mxu0
        %v5150 = vadd.f32 %v5101, %v5149
        %v5151 = vpop.f32.mrf.mxu0
        %v5152 = vadd.f32 %v5103, %v5151
        %5153 = vmatmul.bf16.gmra.mxu0 %v494
        %v5154 = vpop.f32.mrf.mxu0
        %v5155 = vadd.f32 %v5106, %v5154
        %v5156 = vpop.f32.mrf.mxu0
        %v5157 = vadd.f32 %v5108, %v5156
        %5158 = vmatmul.bf16.gmra.mxu0 %v501
        %v5159 = vpop.f32.mrf.mxu0
        %v5160 = vadd.f32 %v5111, %v5159
        %v5161 = vpop.f32.mrf.mxu0
        %v5162 = vadd.f32 %v5113, %v5161
        %5163 = vmatmul.bf16.gmra.mxu0 %v508
        %v5164 = vpop.f32.mrf.mxu0
        %v5165 = vadd.f32 %v5116, %v5164
        %v5166 = vpop.f32.mrf.mxu0
        %v5167 = vadd.f32 %v5118, %v5166
        %5168 = vmatmul.bf16.gmra.mxu0 %v515
        %v5169 = vpop.f32.mrf.mxu0
        %v5170 = vadd.f32 %v5121, %v5169
        %v5171 = vpop.f32.mrf.mxu0
        %v5172 = vadd.f32 %v5123, %v5171
        %5173 = vmatmul.bf16.gmra.mxu0 %v522
        %v5174 = vpop.f32.mrf.mxu0
        %v5175 = vadd.f32 %v5126, %v5174
        %v5176 = vpop.f32.mrf.mxu0
        %v5177 = vadd.f32 %v5128, %v5176
        %5178 = vmatmul.bf16.gmra.mxu0 %v529
        %v5179 = vpop.f32.mrf.mxu0
        %v5180 = vadd.f32 %v5131, %v5179
        %v5181 = vpop.f32.mrf.mxu0
        %v5182 = vadd.f32 %v5133, %v5181
        %5183 = vmatmul.bf16.gmra.mxu0 %v536
        %v5184 = vpop.f32.mrf.mxu0
        %v5185 = vadd.f32 %v5136, %v5184
        %v5186 = vpop.f32.mrf.mxu0
        %v5187 = vadd.f32 %v5138, %v5186
        %5188 = vdwg.mxu0
        %5189 = vmatpush.bf16.msra.mxu0 %v2444
        %5190 = vmatpush.bf16.msra.mxu0 %v2436
        %5191 = vmatpush.bf16.msra.mxu0 %v2428
        %5192 = vmatpush.bf16.msra.mxu0 %v2420
        %5193 = vmatpush.bf16.msra.mxu0 %v2412
        %5194 = vmatpush.bf16.msra.mxu0 %v2404
        %5195 = vmatpush.bf16.msra.mxu0 %v2396
        %5196 = vmatpush.bf16.msra.mxu0 %v2388
        %5197 = vmatmul.bf16.gmra.mxu0 %v488
        %v5198 = vpop.f32.mrf.mxu0
        %v5199 = vadd.f32 %v5150, %v5198
        %v5200 = vpop.f32.mrf.mxu0
        %v5201 = vadd.f32 %v5152, %v5200
        %5202 = vmatmul.bf16.gmra.mxu0 %v495
        %v5203 = vpop.f32.mrf.mxu0
        %v5204 = vadd.f32 %v5155, %v5203
        %v5205 = vpop.f32.mrf.mxu0
        %v5206 = vadd.f32 %v5157, %v5205
        %5207 = vmatmul.bf16.gmra.mxu0 %v502
        %v5208 = vpop.f32.mrf.mxu0
        %v5209 = vadd.f32 %v5160, %v5208
        %v5210 = vpop.f32.mrf.mxu0
        %v5211 = vadd.f32 %v5162, %v5210
        %5212 = vmatmul.bf16.gmra.mxu0 %v509
        %v5213 = vpop.f32.mrf.mxu0
        %v5214 = vadd.f32 %v5165, %v5213
        %v5215 = vpop.f32.mrf.mxu0
        %v5216 = vadd.f32 %v5167, %v5215
        %5217 = vmatmul.bf16.gmra.mxu0 %v516
        %v5218 = vpop.f32.mrf.mxu0
        %v5219 = vadd.f32 %v5170, %v5218
        %v5220 = vpop.f32.mrf.mxu0
        %v5221 = vadd.f32 %v5172, %v5220
        %5222 = vmatmul.bf16.gmra.mxu0 %v523
        %v5223 = vpop.f32.mrf.mxu0
        %v5224 = vadd.f32 %v5175, %v5223
        %v5225 = vpop.f32.mrf.mxu0
        %v5226 = vadd.f32 %v5177, %v5225
        %5227 = vmatmul.bf16.gmra.mxu0 %v530
        %v5228 = vpop.f32.mrf.mxu0
        %v5229 = vadd.f32 %v5180, %v5228
        %v5230 = vpop.f32.mrf.mxu0
        %v5231 = vadd.f32 %v5182, %v5230
        %5232 = vmatmul.bf16.gmra.mxu0 %v537
        %v5233 = vpop.f32.mrf.mxu0
        %v5234 = vadd.f32 %v5185, %v5233
        %v5235 = vpop.f32.mrf.mxu0
        %v5236 = vadd.f32 %v5187, %v5235
        %5237 = vdwg.mxu0
        %5238 = vmatpush.bf16.msra.mxu0 %v2508
        %5239 = vmatpush.bf16.msra.mxu0 %v2500
        %5240 = vmatpush.bf16.msra.mxu0 %v2492
        %5241 = vmatpush.bf16.msra.mxu0 %v2484
        %5242 = vmatpush.bf16.msra.mxu0 %v2476
        %5243 = vmatpush.bf16.msra.mxu0 %v2468
        %5244 = vmatpush.bf16.msra.mxu0 %v2460
        %5245 = vmatpush.bf16.msra.mxu0 %v2452
        %5246 = vmatmul.bf16.gmra.mxu0 %v489
        %v5247 = vpop.f32.mrf.mxu0
        %v5248 = vadd.f32 %v5199, %v5247
        %v5249 = vpop.f32.mrf.mxu0
        %v5250 = vadd.f32 %v5201, %v5249
        %5251 = vmatmul.bf16.gmra.mxu0 %v496
        %v5252 = vpop.f32.mrf.mxu0
        %v5253 = vadd.f32 %v5204, %v5252
        %v5254 = vpop.f32.mrf.mxu0
        %v5255 = vadd.f32 %v5206, %v5254
        %5256 = vmatmul.bf16.gmra.mxu0 %v503
        %v5257 = vpop.f32.mrf.mxu0
        %v5258 = vadd.f32 %v5209, %v5257
        %v5259 = vpop.f32.mrf.mxu0
        %v5260 = vadd.f32 %v5211, %v5259
        %5261 = vmatmul.bf16.gmra.mxu0 %v510
        %v5262 = vpop.f32.mrf.mxu0
        %v5263 = vadd.f32 %v5214, %v5262
        %v5264 = vpop.f32.mrf.mxu0
        %v5265 = vadd.f32 %v5216, %v5264
        %5266 = vmatmul.bf16.gmra.mxu0 %v517
        %v5267 = vpop.f32.mrf.mxu0
        %v5268 = vadd.f32 %v5219, %v5267
        %v5269 = vpop.f32.mrf.mxu0
        %v5270 = vadd.f32 %v5221, %v5269
        %5271 = vmatmul.bf16.gmra.mxu0 %v524
        %v5272 = vpop.f32.mrf.mxu0
        %v5273 = vadd.f32 %v5224, %v5272
        %v5274 = vpop.f32.mrf.mxu0
        %v5275 = vadd.f32 %v5226, %v5274
        %5276 = vmatmul.bf16.gmra.mxu0 %v531
        %v5277 = vpop.f32.mrf.mxu0
        %v5278 = vadd.f32 %v5229, %v5277
        %v5279 = vpop.f32.mrf.mxu0
        %v5280 = vadd.f32 %v5231, %v5279
        %5281 = vmatmul.bf16.gmra.mxu0 %v538
        %v5282 = vpop.f32.mrf.mxu0
        %v5283 = vadd.f32 %v5234, %v5282
        %v5284 = vpop.f32.mrf.mxu0
        %v5285 = vadd.f32 %v5236, %v5284
        %5286 = vdwg.mxu0
        %5287 = vmatpush.bf16.msra.mxu0 0
        %5288 = vmatpush.bf16.msra.mxu0 0
        %5289 = vmatpush.bf16.msra.mxu0 0
        %5290 = vmatpush.bf16.msra.mxu0 0
        %5291 = vmatpush.bf16.msra.mxu0 0
        %5292 = vmatpush.bf16.msra.mxu0 0
        %5293 = vmatpush.bf16.msra.mxu0 0
        %5294 = vmatpush.bf16.msra.mxu0 %v2516
        %5295 = vmatmul.bf16.gmra.mxu0 %v2912
        %v5296 = vpop.f32.mrf.mxu0
        %v5297 = vadd.f32 %v5248, %v5296
        %v5298 = vpop.f32.mrf.mxu0
        %v5299 = vadd.f32 %v5250, %v5298
        %5300 = vmatmul.bf16.gmra.mxu0 %v2915
        %v5301 = vpop.f32.mrf.mxu0
        %v5302 = vadd.f32 %v5253, %v5301
        %v5303 = vpop.f32.mrf.mxu0
        %v5304 = vadd.f32 %v5255, %v5303
        %5305 = vmatmul.bf16.gmra.mxu0 %v2918
        %v5306 = vpop.f32.mrf.mxu0
        %v5307 = vadd.f32 %v5258, %v5306
        %v5308 = vpop.f32.mrf.mxu0
        %v5309 = vadd.f32 %v5260, %v5308
        %5310 = vmatmul.bf16.gmra.mxu0 %v2921
        %v5311 = vpop.f32.mrf.mxu0
        %v5312 = vadd.f32 %v5263, %v5311
        %v5313 = vpop.f32.mrf.mxu0
        %v5314 = vadd.f32 %v5265, %v5313
        %5315 = vmatmul.bf16.gmra.mxu0 %v2924
        %v5316 = vpop.f32.mrf.mxu0
        %v5317 = vadd.f32 %v5268, %v5316
        %v5318 = vpop.f32.mrf.mxu0
        %v5319 = vadd.f32 %v5270, %v5318
        %5320 = vmatmul.bf16.gmra.mxu0 %v2927
        %v5321 = vpop.f32.mrf.mxu0
        %v5322 = vadd.f32 %v5273, %v5321
        %v5323 = vpop.f32.mrf.mxu0
        %v5324 = vadd.f32 %v5275, %v5323
        %5325 = vmatmul.bf16.gmra.mxu0 %v2930
        %v5326 = vpop.f32.mrf.mxu0
        %v5327 = vadd.f32 %v5278, %v5326
        %v5328 = vpop.f32.mrf.mxu0
        %v5329 = vadd.f32 %v5280, %v5328
        %5330 = vmatmul.bf16.gmra.mxu0 %v2933
        %v5331 = vpop.f32.mrf.mxu0
        %v5332 = vadd.f32 %v5283, %v5331
        %v5333 = vpop.f32.mrf.mxu0
        %v5334 = vadd.f32 %v5285, %v5333
        %5335 = vdwg.mxu0
        %5336 = vmatpush.bf16.msra.mxu0 %v2189
        %5337 = vmatpush.bf16.msra.mxu0 %v2181
        %5338 = vmatpush.bf16.msra.mxu0 %v2173
        %5339 = vmatpush.bf16.msra.mxu0 %v2165
        %5340 = vmatpush.bf16.msra.mxu0 %v2157
        %5341 = vmatpush.bf16.msra.mxu0 %v2149
        %5342 = vmatpush.bf16.msra.mxu0 %v2141
        %5343 = vmatpush.bf16.msra.mxu0 %v2133
        %5344 = vmatmul.bf16.gmra.mxu0 %v484
        %v5345 = vpop.f32.mrf.mxu0
        %v5346 = vadd.f32 %v941, %v5345
        %v5347 = vpop.f32.mrf.mxu0
        %v5348 = vadd.f32 %v941, %v5347
        %5349 = vmatmul.bf16.gmra.mxu0 %v491
        %v5350 = vpop.f32.mrf.mxu0
        %v5351 = vadd.f32 %v941, %v5350
        %v5352 = vpop.f32.mrf.mxu0
        %v5353 = vadd.f32 %v941, %v5352
        %5354 = vmatmul.bf16.gmra.mxu0 %v498
        %v5355 = vpop.f32.mrf.mxu0
        %v5356 = vadd.f32 %v941, %v5355
        %v5357 = vpop.f32.mrf.mxu0
        %v5358 = vadd.f32 %v941, %v5357
        %5359 = vmatmul.bf16.gmra.mxu0 %v505
        %v5360 = vpop.f32.mrf.mxu0
        %v5361 = vadd.f32 %v941, %v5360
        %v5362 = vpop.f32.mrf.mxu0
        %v5363 = vadd.f32 %v941, %v5362
        %5364 = vmatmul.bf16.gmra.mxu0 %v512
        %v5365 = vpop.f32.mrf.mxu0
        %v5366 = vadd.f32 %v941, %v5365
        %v5367 = vpop.f32.mrf.mxu0
        %v5368 = vadd.f32 %v941, %v5367
        %5369 = vmatmul.bf16.gmra.mxu0 %v519
        %v5370 = vpop.f32.mrf.mxu0
        %v5371 = vadd.f32 %v941, %v5370
        %v5372 = vpop.f32.mrf.mxu0
        %v5373 = vadd.f32 %v941, %v5372
        %5374 = vmatmul.bf16.gmra.mxu0 %v526
        %v5375 = vpop.f32.mrf.mxu0
        %v5376 = vadd.f32 %v941, %v5375
        %v5377 = vpop.f32.mrf.mxu0
        %v5378 = vadd.f32 %v941, %v5377
        %5379 = vmatmul.bf16.gmra.mxu0 %v533
        %v5380 = vpop.f32.mrf.mxu0
        %v5381 = vadd.f32 %v941, %v5380
        %v5382 = vpop.f32.mrf.mxu0
        %v5383 = vadd.f32 %v941, %v5382
        %5384 = vdwg.mxu0
        %5385 = vmatpush.bf16.msra.mxu0 %v2253
        %5386 = vmatpush.bf16.msra.mxu0 %v2245
        %5387 = vmatpush.bf16.msra.mxu0 %v2237
        %5388 = vmatpush.bf16.msra.mxu0 %v2229
        %5389 = vmatpush.bf16.msra.mxu0 %v2221
        %5390 = vmatpush.bf16.msra.mxu0 %v2213
        %5391 = vmatpush.bf16.msra.mxu0 %v2205
        %5392 = vmatpush.bf16.msra.mxu0 %v2197
        %5393 = vmatmul.bf16.gmra.mxu0 %v485
        %v5394 = vpop.f32.mrf.mxu0
        %v5395 = vadd.f32 %v5346, %v5394
        %v5396 = vpop.f32.mrf.mxu0
        %v5397 = vadd.f32 %v5348, %v5396
        %5398 = vmatmul.bf16.gmra.mxu0 %v492
        %v5399 = vpop.f32.mrf.mxu0
        %v5400 = vadd.f32 %v5351, %v5399
        %v5401 = vpop.f32.mrf.mxu0
        %v5402 = vadd.f32 %v5353, %v5401
        %5403 = vmatmul.bf16.gmra.mxu0 %v499
        %v5404 = vpop.f32.mrf.mxu0
        %v5405 = vadd.f32 %v5356, %v5404
        %v5406 = vpop.f32.mrf.mxu0
        %v5407 = vadd.f32 %v5358, %v5406
        %5408 = vmatmul.bf16.gmra.mxu0 %v506
        %v5409 = vpop.f32.mrf.mxu0
        %v5410 = vadd.f32 %v5361, %v5409
        %v5411 = vpop.f32.mrf.mxu0
        %v5412 = vadd.f32 %v5363, %v5411
        %5413 = vmatmul.bf16.gmra.mxu0 %v513
        %v5414 = vpop.f32.mrf.mxu0
        %v5415 = vadd.f32 %v5366, %v5414
        %v5416 = vpop.f32.mrf.mxu0
        %v5417 = vadd.f32 %v5368, %v5416
        %5418 = vmatmul.bf16.gmra.mxu0 %v520
        %v5419 = vpop.f32.mrf.mxu0
        %v5420 = vadd.f32 %v5371, %v5419
        %v5421 = vpop.f32.mrf.mxu0
        %v5422 = vadd.f32 %v5373, %v5421
        %5423 = vmatmul.bf16.gmra.mxu0 %v527
        %v5424 = vpop.f32.mrf.mxu0
        %v5425 = vadd.f32 %v5376, %v5424
        %v5426 = vpop.f32.mrf.mxu0
        %v5427 = vadd.f32 %v5378, %v5426
        %5428 = vmatmul.bf16.gmra.mxu0 %v534
        %v5429 = vpop.f32.mrf.mxu0
        %v5430 = vadd.f32 %v5381, %v5429
        %v5431 = vpop.f32.mrf.mxu0
        %v5432 = vadd.f32 %v5383, %v5431
        %5433 = vdwg.mxu0
        %5434 = vmatpush.bf16.msra.mxu0 %v2317
        %5435 = vmatpush.bf16.msra.mxu0 %v2309
        %5436 = vmatpush.bf16.msra.mxu0 %v2301
        %5437 = vmatpush.bf16.msra.mxu0 %v2293
        %5438 = vmatpush.bf16.msra.mxu0 %v2285
        %5439 = vmatpush.bf16.msra.mxu0 %v2277
        %5440 = vmatpush.bf16.msra.mxu0 %v2269
        %5441 = vmatpush.bf16.msra.mxu0 %v2261
        %5442 = vmatmul.bf16.gmra.mxu0 %v486
        %v5443 = vpop.f32.mrf.mxu0
        %v5444 = vadd.f32 %v5395, %v5443
        %v5445 = vpop.f32.mrf.mxu0
        %v5446 = vadd.f32 %v5397, %v5445
        %5447 = vmatmul.bf16.gmra.mxu0 %v493
        %v5448 = vpop.f32.mrf.mxu0
        %v5449 = vadd.f32 %v5400, %v5448
        %v5450 = vpop.f32.mrf.mxu0
        %v5451 = vadd.f32 %v5402, %v5450
        %5452 = vmatmul.bf16.gmra.mxu0 %v500
        %v5453 = vpop.f32.mrf.mxu0
        %v5454 = vadd.f32 %v5405, %v5453
        %v5455 = vpop.f32.mrf.mxu0
        %v5456 = vadd.f32 %v5407, %v5455
        %5457 = vmatmul.bf16.gmra.mxu0 %v507
        %v5458 = vpop.f32.mrf.mxu0
        %v5459 = vadd.f32 %v5410, %v5458
        %v5460 = vpop.f32.mrf.mxu0
        %v5461 = vadd.f32 %v5412, %v5460
        %5462 = vmatmul.bf16.gmra.mxu0 %v514
        %v5463 = vpop.f32.mrf.mxu0
        %v5464 = vadd.f32 %v5415, %v5463
        %v5465 = vpop.f32.mrf.mxu0
        %v5466 = vadd.f32 %v5417, %v5465
        %5467 = vmatmul.bf16.gmra.mxu0 %v521
        %v5468 = vpop.f32.mrf.mxu0
        %v5469 = vadd.f32 %v5420, %v5468
        %v5470 = vpop.f32.mrf.mxu0
        %v5471 = vadd.f32 %v5422, %v5470
        %5472 = vmatmul.bf16.gmra.mxu0 %v528
        %v5473 = vpop.f32.mrf.mxu0
        %v5474 = vadd.f32 %v5425, %v5473
        %v5475 = vpop.f32.mrf.mxu0
        %v5476 = vadd.f32 %v5427, %v5475
        %5477 = vmatmul.bf16.gmra.mxu0 %v535
        %v5478 = vpop.f32.mrf.mxu0
        %v5479 = vadd.f32 %v5430, %v5478
        %v5480 = vpop.f32.mrf.mxu0
        %v5481 = vadd.f32 %v5432, %v5480
        %5482 = vdwg.mxu0
        %5483 = vmatpush.bf16.msra.mxu0 %v2381
        %5484 = vmatpush.bf16.msra.mxu0 %v2373
        %5485 = vmatpush.bf16.msra.mxu0 %v2365
        %5486 = vmatpush.bf16.msra.mxu0 %v2357
        %5487 = vmatpush.bf16.msra.mxu0 %v2349
        %5488 = vmatpush.bf16.msra.mxu0 %v2341
        %5489 = vmatpush.bf16.msra.mxu0 %v2333
        %5490 = vmatpush.bf16.msra.mxu0 %v2325
        %5491 = vmatmul.bf16.gmra.mxu0 %v487
        %v5492 = vpop.f32.mrf.mxu0
        %v5493 = vadd.f32 %v5444, %v5492
        %v5494 = vpop.f32.mrf.mxu0
        %v5495 = vadd.f32 %v5446, %v5494
        %5496 = vmatmul.bf16.gmra.mxu0 %v494
        %v5497 = vpop.f32.mrf.mxu0
        %v5498 = vadd.f32 %v5449, %v5497
        %v5499 = vpop.f32.mrf.mxu0
        %v5500 = vadd.f32 %v5451, %v5499
        %5501 = vmatmul.bf16.gmra.mxu0 %v501
        %v5502 = vpop.f32.mrf.mxu0
        %v5503 = vadd.f32 %v5454, %v5502
        %v5504 = vpop.f32.mrf.mxu0
        %v5505 = vadd.f32 %v5456, %v5504
        %5506 = vmatmul.bf16.gmra.mxu0 %v508
        %v5507 = vpop.f32.mrf.mxu0
        %v5508 = vadd.f32 %v5459, %v5507
        %v5509 = vpop.f32.mrf.mxu0
        %v5510 = vadd.f32 %v5461, %v5509
        %5511 = vmatmul.bf16.gmra.mxu0 %v515
        %v5512 = vpop.f32.mrf.mxu0
        %v5513 = vadd.f32 %v5464, %v5512
        %v5514 = vpop.f32.mrf.mxu0
        %v5515 = vadd.f32 %v5466, %v5514
        %5516 = vmatmul.bf16.gmra.mxu0 %v522
        %v5517 = vpop.f32.mrf.mxu0
        %v5518 = vadd.f32 %v5469, %v5517
        %v5519 = vpop.f32.mrf.mxu0
        %v5520 = vadd.f32 %v5471, %v5519
        %5521 = vmatmul.bf16.gmra.mxu0 %v529
        %v5522 = vpop.f32.mrf.mxu0
        %v5523 = vadd.f32 %v5474, %v5522
        %v5524 = vpop.f32.mrf.mxu0
        %v5525 = vadd.f32 %v5476, %v5524
        %5526 = vmatmul.bf16.gmra.mxu0 %v536
        %v5527 = vpop.f32.mrf.mxu0
        %v5528 = vadd.f32 %v5479, %v5527
        %v5529 = vpop.f32.mrf.mxu0
        %v5530 = vadd.f32 %v5481, %v5529
        %5531 = vdwg.mxu0
        %5532 = vmatpush.bf16.msra.mxu0 %v2445
        %5533 = vmatpush.bf16.msra.mxu0 %v2437
        %5534 = vmatpush.bf16.msra.mxu0 %v2429
        %5535 = vmatpush.bf16.msra.mxu0 %v2421
        %5536 = vmatpush.bf16.msra.mxu0 %v2413
        %5537 = vmatpush.bf16.msra.mxu0 %v2405
        %5538 = vmatpush.bf16.msra.mxu0 %v2397
        %5539 = vmatpush.bf16.msra.mxu0 %v2389
        %5540 = vmatmul.bf16.gmra.mxu0 %v488
        %v5541 = vpop.f32.mrf.mxu0
        %v5542 = vadd.f32 %v5493, %v5541
        %v5543 = vpop.f32.mrf.mxu0
        %v5544 = vadd.f32 %v5495, %v5543
        %5545 = vmatmul.bf16.gmra.mxu0 %v495
        %v5546 = vpop.f32.mrf.mxu0
        %v5547 = vadd.f32 %v5498, %v5546
        %v5548 = vpop.f32.mrf.mxu0
        %v5549 = vadd.f32 %v5500, %v5548
        %5550 = vmatmul.bf16.gmra.mxu0 %v502
        %v5551 = vpop.f32.mrf.mxu0
        %v5552 = vadd.f32 %v5503, %v5551
        %v5553 = vpop.f32.mrf.mxu0
        %v5554 = vadd.f32 %v5505, %v5553
        %5555 = vmatmul.bf16.gmra.mxu0 %v509
        %v5556 = vpop.f32.mrf.mxu0
        %v5557 = vadd.f32 %v5508, %v5556
        %v5558 = vpop.f32.mrf.mxu0
        %v5559 = vadd.f32 %v5510, %v5558
        %5560 = vmatmul.bf16.gmra.mxu0 %v516
        %v5561 = vpop.f32.mrf.mxu0
        %v5562 = vadd.f32 %v5513, %v5561
        %v5563 = vpop.f32.mrf.mxu0
        %v5564 = vadd.f32 %v5515, %v5563
        %5565 = vmatmul.bf16.gmra.mxu0 %v523
        %v5566 = vpop.f32.mrf.mxu0
        %v5567 = vadd.f32 %v5518, %v5566
        %v5568 = vpop.f32.mrf.mxu0
        %v5569 = vadd.f32 %v5520, %v5568
        %5570 = vmatmul.bf16.gmra.mxu0 %v530
        %v5571 = vpop.f32.mrf.mxu0
        %v5572 = vadd.f32 %v5523, %v5571
        %v5573 = vpop.f32.mrf.mxu0
        %v5574 = vadd.f32 %v5525, %v5573
        %5575 = vmatmul.bf16.gmra.mxu0 %v537
        %v5576 = vpop.f32.mrf.mxu0
        %v5577 = vadd.f32 %v5528, %v5576
        %v5578 = vpop.f32.mrf.mxu0
        %v5579 = vadd.f32 %v5530, %v5578
        %5580 = vdwg.mxu0
        %5581 = vmatpush.bf16.msra.mxu0 %v2509
        %5582 = vmatpush.bf16.msra.mxu0 %v2501
        %5583 = vmatpush.bf16.msra.mxu0 %v2493
        %5584 = vmatpush.bf16.msra.mxu0 %v2485
        %5585 = vmatpush.bf16.msra.mxu0 %v2477
        %5586 = vmatpush.bf16.msra.mxu0 %v2469
        %5587 = vmatpush.bf16.msra.mxu0 %v2461
        %5588 = vmatpush.bf16.msra.mxu0 %v2453
        %5589 = vmatmul.bf16.gmra.mxu0 %v489
        %v5590 = vpop.f32.mrf.mxu0
        %v5591 = vadd.f32 %v5542, %v5590
        %v5592 = vpop.f32.mrf.mxu0
        %v5593 = vadd.f32 %v5544, %v5592
        %5594 = vmatmul.bf16.gmra.mxu0 %v496
        %v5595 = vpop.f32.mrf.mxu0
        %v5596 = vadd.f32 %v5547, %v5595
        %v5597 = vpop.f32.mrf.mxu0
        %v5598 = vadd.f32 %v5549, %v5597
        %5599 = vmatmul.bf16.gmra.mxu0 %v503
        %v5600 = vpop.f32.mrf.mxu0
        %v5601 = vadd.f32 %v5552, %v5600
        %v5602 = vpop.f32.mrf.mxu0
        %v5603 = vadd.f32 %v5554, %v5602
        %5604 = vmatmul.bf16.gmra.mxu0 %v510
        %v5605 = vpop.f32.mrf.mxu0
        %v5606 = vadd.f32 %v5557, %v5605
        %v5607 = vpop.f32.mrf.mxu0
        %v5608 = vadd.f32 %v5559, %v5607
        %5609 = vmatmul.bf16.gmra.mxu0 %v517
        %v5610 = vpop.f32.mrf.mxu0
        %v5611 = vadd.f32 %v5562, %v5610
        %v5612 = vpop.f32.mrf.mxu0
        %v5613 = vadd.f32 %v5564, %v5612
        %5614 = vmatmul.bf16.gmra.mxu0 %v524
        %v5615 = vpop.f32.mrf.mxu0
        %v5616 = vadd.f32 %v5567, %v5615
        %v5617 = vpop.f32.mrf.mxu0
        %v5618 = vadd.f32 %v5569, %v5617
        %5619 = vmatmul.bf16.gmra.mxu0 %v531
        %v5620 = vpop.f32.mrf.mxu0
        %v5621 = vadd.f32 %v5572, %v5620
        %v5622 = vpop.f32.mrf.mxu0
        %v5623 = vadd.f32 %v5574, %v5622
        %5624 = vmatmul.bf16.gmra.mxu0 %v538
        %v5625 = vpop.f32.mrf.mxu0
        %v5626 = vadd.f32 %v5577, %v5625
        %v5627 = vpop.f32.mrf.mxu0
        %v5628 = vadd.f32 %v5579, %v5627
        %5629 = vdwg.mxu0
        %5630 = vmatpush.bf16.msra.mxu0 0
        %5631 = vmatpush.bf16.msra.mxu0 0
        %5632 = vmatpush.bf16.msra.mxu0 0
        %5633 = vmatpush.bf16.msra.mxu0 0
        %5634 = vmatpush.bf16.msra.mxu0 0
        %5635 = vmatpush.bf16.msra.mxu0 0
        %5636 = vmatpush.bf16.msra.mxu0 0
        %5637 = vmatpush.bf16.msra.mxu0 %v2517
        %5638 = vmatmul.bf16.gmra.mxu0 %v2912
        %v5639 = vpop.f32.mrf.mxu0
        %v5640 = vadd.f32 %v5591, %v5639
        %v5641 = vpop.f32.mrf.mxu0
        %v5642 = vadd.f32 %v5593, %v5641
        %5643 = vmatmul.bf16.gmra.mxu0 %v2915
        %v5644 = vpop.f32.mrf.mxu0
        %v5645 = vadd.f32 %v5596, %v5644
        %v5646 = vpop.f32.mrf.mxu0
        %v5647 = vadd.f32 %v5598, %v5646
        %5648 = vmatmul.bf16.gmra.mxu0 %v2918
        %v5649 = vpop.f32.mrf.mxu0
        %v5650 = vadd.f32 %v5601, %v5649
        %v5651 = vpop.f32.mrf.mxu0
        %v5652 = vadd.f32 %v5603, %v5651
        %5653 = vmatmul.bf16.gmra.mxu0 %v2921
        %v5654 = vpop.f32.mrf.mxu0
        %v5655 = vadd.f32 %v5606, %v5654
        %v5656 = vpop.f32.mrf.mxu0
        %v5657 = vadd.f32 %v5608, %v5656
        %5658 = vmatmul.bf16.gmra.mxu0 %v2924
        %v5659 = vpop.f32.mrf.mxu0
        %v5660 = vadd.f32 %v5611, %v5659
        %v5661 = vpop.f32.mrf.mxu0
        %v5662 = vadd.f32 %v5613, %v5661
        %5663 = vmatmul.bf16.gmra.mxu0 %v2927
        %v5664 = vpop.f32.mrf.mxu0
        %v5665 = vadd.f32 %v5616, %v5664
        %v5666 = vpop.f32.mrf.mxu0
        %v5667 = vadd.f32 %v5618, %v5666
        %5668 = vmatmul.bf16.gmra.mxu0 %v2930
        %v5669 = vpop.f32.mrf.mxu0
        %v5670 = vadd.f32 %v5621, %v5669
        %v5671 = vpop.f32.mrf.mxu0
        %v5672 = vadd.f32 %v5623, %v5671
        %5673 = vmatmul.bf16.gmra.mxu0 %v2933
        %v5674 = vpop.f32.mrf.mxu0
        %v5675 = vadd.f32 %v5626, %v5674
        %v5676 = vpop.f32.mrf.mxu0
        %v5677 = vadd.f32 %v5628, %v5676
        %5678 = vdwg.mxu0
        %vm5679 = vcmp.gt.f32.partialorder %v3239, 0.0
        %vm5680 = vcmp.gt.f32.partialorder %v3582, 0.0
        %vm5681 = vcmp.gt.f32.partialorder %v3925, 0.0
        %vm5682 = vcmp.gt.f32.partialorder %v4268, 0.0
        %vm5683 = vcmp.gt.f32.partialorder %v4611, 0.0
        %vm5684 = vcmp.gt.f32.partialorder %v4954, 0.0
        %vm5685 = vcmp.gt.f32.partialorder %v5297, 0.0
        %vm5686 = vcmp.gt.f32.partialorder %v5640, 0.0
        %vm5687 = vcmp.gt.f32.partialorder %v3241, 0.0
        %vm5688 = vcmp.gt.f32.partialorder %v3584, 0.0
        %vm5689 = vcmp.gt.f32.partialorder %v3927, 0.0
        %vm5690 = vcmp.gt.f32.partialorder %v4270, 0.0
        %vm5691 = vcmp.gt.f32.partialorder %v4613, 0.0
        %vm5692 = vcmp.gt.f32.partialorder %v4956, 0.0
        %vm5693 = vcmp.gt.f32.partialorder %v5299, 0.0
        %vm5694 = vcmp.gt.f32.partialorder %v5642, 0.0
        %vm5695 = vcmp.gt.f32.partialorder %v3244, 0.0
        %vm5696 = vcmp.gt.f32.partialorder %v3587, 0.0
        %vm5697 = vcmp.gt.f32.partialorder %v3930, 0.0
        %vm5698 = vcmp.gt.f32.partialorder %v4273, 0.0
        %vm5699 = vcmp.gt.f32.partialorder %v4616, 0.0
        %vm5700 = vcmp.gt.f32.partialorder %v4959, 0.0
        %vm5701 = vcmp.gt.f32.partialorder %v5302, 0.0
        %vm5702 = vcmp.gt.f32.partialorder %v5645, 0.0
        %vm5703 = vcmp.gt.f32.partialorder %v3246, 0.0
        %vm5704 = vcmp.gt.f32.partialorder %v3589, 0.0
        %vm5705 = vcmp.gt.f32.partialorder %v3932, 0.0
        %vm5706 = vcmp.gt.f32.partialorder %v4275, 0.0
        %vm5707 = vcmp.gt.f32.partialorder %v4618, 0.0
        %vm5708 = vcmp.gt.f32.partialorder %v4961, 0.0
        %vm5709 = vcmp.gt.f32.partialorder %v5304, 0.0
        %vm5710 = vcmp.gt.f32.partialorder %v5647, 0.0
        %vm5711 = vcmp.gt.f32.partialorder %v3249, 0.0
        %vm5712 = vcmp.gt.f32.partialorder %v3592, 0.0
        %vm5713 = vcmp.gt.f32.partialorder %v3935, 0.0
        %vm5714 = vcmp.gt.f32.partialorder %v4278, 0.0
        %vm5715 = vcmp.gt.f32.partialorder %v4621, 0.0
        %vm5716 = vcmp.gt.f32.partialorder %v4964, 0.0
        %vm5717 = vcmp.gt.f32.partialorder %v5307, 0.0
        %vm5718 = vcmp.gt.f32.partialorder %v5650, 0.0
        %vm5719 = vcmp.gt.f32.partialorder %v3251, 0.0
        %vm5720 = vcmp.gt.f32.partialorder %v3594, 0.0
        %vm5721 = vcmp.gt.f32.partialorder %v3937, 0.0
        %vm5722 = vcmp.gt.f32.partialorder %v4280, 0.0
        %vm5723 = vcmp.gt.f32.partialorder %v4623, 0.0
        %vm5724 = vcmp.gt.f32.partialorder %v4966, 0.0
        %vm5725 = vcmp.gt.f32.partialorder %v5309, 0.0
        %vm5726 = vcmp.gt.f32.partialorder %v5652, 0.0
        %vm5727 = vcmp.gt.f32.partialorder %v3254, 0.0
        %vm5728 = vcmp.gt.f32.partialorder %v3597, 0.0
        %vm5729 = vcmp.gt.f32.partialorder %v3940, 0.0
        %vm5730 = vcmp.gt.f32.partialorder %v4283, 0.0
        %vm5731 = vcmp.gt.f32.partialorder %v4626, 0.0
        %vm5732 = vcmp.gt.f32.partialorder %v4969, 0.0
        %vm5733 = vcmp.gt.f32.partialorder %v5312, 0.0
        %vm5734 = vcmp.gt.f32.partialorder %v5655, 0.0
        %vm5735 = vcmp.gt.f32.partialorder %v3256, 0.0
        %vm5736 = vcmp.gt.f32.partialorder %v3599, 0.0
        %vm5737 = vcmp.gt.f32.partialorder %v3942, 0.0
        %vm5738 = vcmp.gt.f32.partialorder %v4285, 0.0
        %vm5739 = vcmp.gt.f32.partialorder %v4628, 0.0
        %vm5740 = vcmp.gt.f32.partialorder %v4971, 0.0
        %vm5741 = vcmp.gt.f32.partialorder %v5314, 0.0
        %vm5742 = vcmp.gt.f32.partialorder %v5657, 0.0
        %vm5743 = vcmp.gt.f32.partialorder %v3259, 0.0
        %vm5744 = vcmp.gt.f32.partialorder %v3602, 0.0
        %vm5745 = vcmp.gt.f32.partialorder %v3945, 0.0
        %vm5746 = vcmp.gt.f32.partialorder %v4288, 0.0
        %vm5747 = vcmp.gt.f32.partialorder %v4631, 0.0
        %vm5748 = vcmp.gt.f32.partialorder %v4974, 0.0
        %vm5749 = vcmp.gt.f32.partialorder %v5317, 0.0
        %vm5750 = vcmp.gt.f32.partialorder %v5660, 0.0
        %vm5751 = vcmp.gt.f32.partialorder %v3261, 0.0
        %vm5752 = vcmp.gt.f32.partialorder %v3604, 0.0
        %vm5753 = vcmp.gt.f32.partialorder %v3947, 0.0
        %vm5754 = vcmp.gt.f32.partialorder %v4290, 0.0
        %vm5755 = vcmp.gt.f32.partialorder %v4633, 0.0
        %vm5756 = vcmp.gt.f32.partialorder %v4976, 0.0
        %vm5757 = vcmp.gt.f32.partialorder %v5319, 0.0
        %vm5758 = vcmp.gt.f32.partialorder %v5662, 0.0
        %vm5759 = vcmp.gt.f32.partialorder %v3264, 0.0
        %vm5760 = vcmp.gt.f32.partialorder %v3607, 0.0
        %vm5761 = vcmp.gt.f32.partialorder %v3950, 0.0
        %vm5762 = vcmp.gt.f32.partialorder %v4293, 0.0
        %vm5763 = vcmp.gt.f32.partialorder %v4636, 0.0
        %vm5764 = vcmp.gt.f32.partialorder %v4979, 0.0
        %vm5765 = vcmp.gt.f32.partialorder %v5322, 0.0
        %vm5766 = vcmp.gt.f32.partialorder %v5665, 0.0
        %vm5767 = vcmp.gt.f32.partialorder %v3266, 0.0
        %vm5768 = vcmp.gt.f32.partialorder %v3609, 0.0
        %vm5769 = vcmp.gt.f32.partialorder %v3952, 0.0
        %vm5770 = vcmp.gt.f32.partialorder %v4295, 0.0
        %vm5771 = vcmp.gt.f32.partialorder %v4638, 0.0
        %vm5772 = vcmp.gt.f32.partialorder %v4981, 0.0
        %vm5773 = vcmp.gt.f32.partialorder %v5324, 0.0
        %vm5774 = vcmp.gt.f32.partialorder %v5667, 0.0
        %vm5775 = vcmp.gt.f32.partialorder %v3269, 0.0
        %vm5776 = vcmp.gt.f32.partialorder %v3612, 0.0
        %vm5777 = vcmp.gt.f32.partialorder %v3955, 0.0
        %vm5778 = vcmp.gt.f32.partialorder %v4298, 0.0
        %vm5779 = vcmp.gt.f32.partialorder %v4641, 0.0
        %vm5780 = vcmp.gt.f32.partialorder %v4984, 0.0
        %vm5781 = vcmp.gt.f32.partialorder %v5327, 0.0
        %vm5782 = vcmp.gt.f32.partialorder %v5670, 0.0
        %vm5783 = vcmp.gt.f32.partialorder %v3271, 0.0
        %vm5784 = vcmp.gt.f32.partialorder %v3614, 0.0
        %vm5785 = vcmp.gt.f32.partialorder %v3957, 0.0
        %vm5786 = vcmp.gt.f32.partialorder %v4300, 0.0
        %vm5787 = vcmp.gt.f32.partialorder %v4643, 0.0
        %vm5788 = vcmp.gt.f32.partialorder %v4986, 0.0
        %vm5789 = vcmp.gt.f32.partialorder %v5329, 0.0
        %vm5790 = vcmp.gt.f32.partialorder %v5672, 0.0
        %vm5791 = vcmp.gt.f32.partialorder %v3274, 0.0
        %vm5792 = vcmp.gt.f32.partialorder %v3617, 0.0
        %vm5793 = vcmp.gt.f32.partialorder %v3960, 0.0
        %vm5794 = vcmp.gt.f32.partialorder %v4303, 0.0
        %vm5795 = vcmp.gt.f32.partialorder %v4646, 0.0
        %vm5796 = vcmp.gt.f32.partialorder %v4989, 0.0
        %vm5797 = vcmp.gt.f32.partialorder %v5332, 0.0
        %vm5798 = vcmp.gt.f32.partialorder %v5675, 0.0
        %vm5799 = vcmp.gt.f32.partialorder %v3276, 0.0
        %vm5800 = vcmp.gt.f32.partialorder %v3619, 0.0
        %vm5801 = vcmp.gt.f32.partialorder %v3962, 0.0
        %vm5802 = vcmp.gt.f32.partialorder %v4305, 0.0
        %vm5803 = vcmp.gt.f32.partialorder %v4648, 0.0
        %vm5804 = vcmp.gt.f32.partialorder %v4991, 0.0
        %vm5805 = vcmp.gt.f32.partialorder %v5334, 0.0
        %vm5806 = vcmp.gt.f32.partialorder %v5677, 0.0
        %v5807 = vmul.f32 %v3239, 0.2
        %v5808 = vmul.f32 %v3582, 0.2
        %v5809 = vmul.f32 %v3925, 0.2
        %v5810 = vmul.f32 %v4268, 0.2
        %v5811 = vmul.f32 %v4611, 0.2
        %v5812 = vmul.f32 %v4954, 0.2
        %v5813 = vmul.f32 %v5297, 0.2
        %v5814 = vmul.f32 %v5640, 0.2
        %v5815 = vmul.f32 %v3241, 0.2
        %v5816 = vmul.f32 %v3584, 0.2
        %v5817 = vmul.f32 %v3927, 0.2
        %v5818 = vmul.f32 %v4270, 0.2
        %v5819 = vmul.f32 %v4613, 0.2
        %v5820 = vmul.f32 %v4956, 0.2
        %v5821 = vmul.f32 %v5299, 0.2
        %v5822 = vmul.f32 %v5642, 0.2
        %v5823 = vmul.f32 %v3244, 0.2
        %v5824 = vmul.f32 %v3587, 0.2
        %v5825 = vmul.f32 %v3930, 0.2
        %v5826 = vmul.f32 %v4273, 0.2
        %v5827 = vmul.f32 %v4616, 0.2
        %v5828 = vmul.f32 %v4959, 0.2
        %v5829 = vmul.f32 %v5302, 0.2
        %v5830 = vmul.f32 %v5645, 0.2
        %v5831 = vmul.f32 %v3246, 0.2
        %v5832 = vmul.f32 %v3589, 0.2
        %v5833 = vmul.f32 %v3932, 0.2
        %v5834 = vmul.f32 %v4275, 0.2
        %v5835 = vmul.f32 %v4618, 0.2
        %v5836 = vmul.f32 %v4961, 0.2
        %v5837 = vmul.f32 %v5304, 0.2
        %v5838 = vmul.f32 %v5647, 0.2
        %v5839 = vmul.f32 %v3249, 0.2
        %v5840 = vmul.f32 %v3592, 0.2
        %v5841 = vmul.f32 %v3935, 0.2
        %v5842 = vmul.f32 %v4278, 0.2
        %v5843 = vmul.f32 %v4621, 0.2
        %v5844 = vmul.f32 %v4964, 0.2
        %v5845 = vmul.f32 %v5307, 0.2
        %v5846 = vmul.f32 %v5650, 0.2
        %v5847 = vmul.f32 %v3251, 0.2
        %v5848 = vmul.f32 %v3594, 0.2
        %v5849 = vmul.f32 %v3937, 0.2
        %v5850 = vmul.f32 %v4280, 0.2
        %v5851 = vmul.f32 %v4623, 0.2
        %v5852 = vmul.f32 %v4966, 0.2
        %v5853 = vmul.f32 %v5309, 0.2
        %v5854 = vmul.f32 %v5652, 0.2
        %v5855 = vmul.f32 %v3254, 0.2
        %v5856 = vmul.f32 %v3597, 0.2
        %v5857 = vmul.f32 %v3940, 0.2
        %v5858 = vmul.f32 %v4283, 0.2
        %v5859 = vmul.f32 %v4626, 0.2
        %v5860 = vmul.f32 %v4969, 0.2
        %v5861 = vmul.f32 %v5312, 0.2
        %v5862 = vmul.f32 %v5655, 0.2
        %v5863 = vmul.f32 %v3256, 0.2
        %v5864 = vmul.f32 %v3599, 0.2
        %v5865 = vmul.f32 %v3942, 0.2
        %v5866 = vmul.f32 %v4285, 0.2
        %v5867 = vmul.f32 %v4628, 0.2
        %v5868 = vmul.f32 %v4971, 0.2
        %v5869 = vmul.f32 %v5314, 0.2
        %v5870 = vmul.f32 %v5657, 0.2
        %v5871 = vmul.f32 %v3259, 0.2
        %v5872 = vmul.f32 %v3602, 0.2
        %v5873 = vmul.f32 %v3945, 0.2
        %v5874 = vmul.f32 %v4288, 0.2
        %v5875 = vmul.f32 %v4631, 0.2
        %v5876 = vmul.f32 %v4974, 0.2
        %v5877 = vmul.f32 %v5317, 0.2
        %v5878 = vmul.f32 %v5660, 0.2
        %v5879 = vmul.f32 %v3261, 0.2
        %v5880 = vmul.f32 %v3604, 0.2
        %v5881 = vmul.f32 %v3947, 0.2
        %v5882 = vmul.f32 %v4290, 0.2
        %v5883 = vmul.f32 %v4633, 0.2
        %v5884 = vmul.f32 %v4976, 0.2
        %v5885 = vmul.f32 %v5319, 0.2
        %v5886 = vmul.f32 %v5662, 0.2
        %v5887 = vmul.f32 %v3264, 0.2
        %v5888 = vmul.f32 %v3607, 0.2
        %v5889 = vmul.f32 %v3950, 0.2
        %v5890 = vmul.f32 %v4293, 0.2
        %v5891 = vmul.f32 %v4636, 0.2
        %v5892 = vmul.f32 %v4979, 0.2
        %v5893 = vmul.f32 %v5322, 0.2
        %v5894 = vmul.f32 %v5665, 0.2
        %v5895 = vmul.f32 %v3266, 0.2
        %v5896 = vmul.f32 %v3609, 0.2
        %v5897 = vmul.f32 %v3952, 0.2
        %v5898 = vmul.f32 %v4295, 0.2
        %v5899 = vmul.f32 %v4638, 0.2
        %v5900 = vmul.f32 %v4981, 0.2
        %v5901 = vmul.f32 %v5324, 0.2
        %v5902 = vmul.f32 %v5667, 0.2
        %v5903 = vmul.f32 %v3269, 0.2
        %v5904 = vmul.f32 %v3612, 0.2
        %v5905 = vmul.f32 %v3955, 0.2
        %v5906 = vmul.f32 %v4298, 0.2
        %v5907 = vmul.f32 %v4641, 0.2
        %v5908 = vmul.f32 %v4984, 0.2
        %v5909 = vmul.f32 %v5327, 0.2
        %v5910 = vmul.f32 %v5670, 0.2
        %v5911 = vmul.f32 %v3271, 0.2
        %v5912 = vmul.f32 %v3614, 0.2
        %v5913 = vmul.f32 %v3957, 0.2
        %v5914 = vmul.f32 %v4300, 0.2
        %v5915 = vmul.f32 %v4643, 0.2
        %v5916 = vmul.f32 %v4986, 0.2
        %v5917 = vmul.f32 %v5329, 0.2
        %v5918 = vmul.f32 %v5672, 0.2
        %v5919 = vmul.f32 %v3274, 0.2
        %v5920 = vmul.f32 %v3617, 0.2
        %v5921 = vmul.f32 %v3960, 0.2
        %v5922 = vmul.f32 %v4303, 0.2
        %v5923 = vmul.f32 %v4646, 0.2
        %v5924 = vmul.f32 %v4989, 0.2
        %v5925 = vmul.f32 %v5332, 0.2
        %v5926 = vmul.f32 %v5675, 0.2
        %v5927 = vmul.f32 %v3276, 0.2
        %v5928 = vmul.f32 %v3619, 0.2
        %v5929 = vmul.f32 %v3962, 0.2
        %v5930 = vmul.f32 %v4305, 0.2
        %v5931 = vmul.f32 %v4648, 0.2
        %v5932 = vmul.f32 %v4991, 0.2
        %v5933 = vmul.f32 %v5334, 0.2
        %v5934 = vmul.f32 %v5677, 0.2
        %v5935 = vsel %vm5679, %v3239, %v5807
        %v5936 = vsel %vm5680, %v3582, %v5808
        %v5937 = vsel %vm5681, %v3925, %v5809
        %v5938 = vsel %vm5682, %v4268, %v5810
        %v5939 = vsel %vm5683, %v4611, %v5811
        %v5940 = vsel %vm5684, %v4954, %v5812
        %v5941 = vsel %vm5685, %v5297, %v5813
        %v5942 = vsel %vm5686, %v5640, %v5814
        %v5943 = vsel %vm5687, %v3241, %v5815
        %v5944 = vsel %vm5688, %v3584, %v5816
        %v5945 = vsel %vm5689, %v3927, %v5817
        %v5946 = vsel %vm5690, %v4270, %v5818
        %v5947 = vsel %vm5691, %v4613, %v5819
        %v5948 = vsel %vm5692, %v4956, %v5820
        %v5949 = vsel %vm5693, %v5299, %v5821
        %v5950 = vsel %vm5694, %v5642, %v5822
        %v5951 = vsel %vm5695, %v3244, %v5823
        %v5952 = vsel %vm5696, %v3587, %v5824
        %v5953 = vsel %vm5697, %v3930, %v5825
        %v5954 = vsel %vm5698, %v4273, %v5826
        %v5955 = vsel %vm5699, %v4616, %v5827
        %v5956 = vsel %vm5700, %v4959, %v5828
        %v5957 = vsel %vm5701, %v5302, %v5829
        %v5958 = vsel %vm5702, %v5645, %v5830
        %v5959 = vsel %vm5703, %v3246, %v5831
        %v5960 = vsel %vm5704, %v3589, %v5832
        %v5961 = vsel %vm5705, %v3932, %v5833
        %v5962 = vsel %vm5706, %v4275, %v5834
        %v5963 = vsel %vm5707, %v4618, %v5835
        %v5964 = vsel %vm5708, %v4961, %v5836
        %v5965 = vsel %vm5709, %v5304, %v5837
        %v5966 = vsel %vm5710, %v5647, %v5838
        %v5967 = vsel %vm5711, %v3249, %v5839
        %v5968 = vsel %vm5712, %v3592, %v5840
        %v5969 = vsel %vm5713, %v3935, %v5841
        %v5970 = vsel %vm5714, %v4278, %v5842
        %v5971 = vsel %vm5715, %v4621, %v5843
        %v5972 = vsel %vm5716, %v4964, %v5844
        %v5973 = vsel %vm5717, %v5307, %v5845
        %v5974 = vsel %vm5718, %v5650, %v5846
        %v5975 = vsel %vm5719, %v3251, %v5847
        %v5976 = vsel %vm5720, %v3594, %v5848
        %v5977 = vsel %vm5721, %v3937, %v5849
        %v5978 = vsel %vm5722, %v4280, %v5850
        %v5979 = vsel %vm5723, %v4623, %v5851
        %v5980 = vsel %vm5724, %v4966, %v5852
        %v5981 = vsel %vm5725, %v5309, %v5853
        %v5982 = vsel %vm5726, %v5652, %v5854
        %v5983 = vsel %vm5727, %v3254, %v5855
        %v5984 = vsel %vm5728, %v3597, %v5856
        %v5985 = vsel %vm5729, %v3940, %v5857
        %v5986 = vsel %vm5730, %v4283, %v5858
        %v5987 = vsel %vm5731, %v4626, %v5859
        %v5988 = vsel %vm5732, %v4969, %v5860
        %v5989 = vsel %vm5733, %v5312, %v5861
        %v5990 = vsel %vm5734, %v5655, %v5862
        %v5991 = vsel %vm5735, %v3256, %v5863
        %v5992 = vsel %vm5736, %v3599, %v5864
        %v5993 = vsel %vm5737, %v3942, %v5865
        %v5994 = vsel %vm5738, %v4285, %v5866
        %v5995 = vsel %vm5739, %v4628, %v5867
        %v5996 = vsel %vm5740, %v4971, %v5868
        %v5997 = vsel %vm5741, %v5314, %v5869
        %v5998 = vsel %vm5742, %v5657, %v5870
        %v5999 = vsel %vm5743, %v3259, %v5871
        %v6000 = vsel %vm5744, %v3602, %v5872
        %v6001 = vsel %vm5745, %v3945, %v5873
        %v6002 = vsel %vm5746, %v4288, %v5874
        %v6003 = vsel %vm5747, %v4631, %v5875
        %v6004 = vsel %vm5748, %v4974, %v5876
        %v6005 = vsel %vm5749, %v5317, %v5877
        %v6006 = vsel %vm5750, %v5660, %v5878
        %v6007 = vsel %vm5751, %v3261, %v5879
        %v6008 = vsel %vm5752, %v3604, %v5880
        %v6009 = vsel %vm5753, %v3947, %v5881
        %v6010 = vsel %vm5754, %v4290, %v5882
        %v6011 = vsel %vm5755, %v4633, %v5883
        %v6012 = vsel %vm5756, %v4976, %v5884
        %v6013 = vsel %vm5757, %v5319, %v5885
        %v6014 = vsel %vm5758, %v5662, %v5886
        %v6015 = vsel %vm5759, %v3264, %v5887
        %v6016 = vsel %vm5760, %v3607, %v5888
        %v6017 = vsel %vm5761, %v3950, %v5889
        %v6018 = vsel %vm5762, %v4293, %v5890
        %v6019 = vsel %vm5763, %v4636, %v5891
        %v6020 = vsel %vm5764, %v4979, %v5892
        %v6021 = vsel %vm5765, %v5322, %v5893
        %v6022 = vsel %vm5766, %v5665, %v5894
        %v6023 = vsel %vm5767, %v3266, %v5895
        %v6024 = vsel %vm5768, %v3609, %v5896
        %v6025 = vsel %vm5769, %v3952, %v5897
        %v6026 = vsel %vm5770, %v4295, %v5898
        %v6027 = vsel %vm5771, %v4638, %v5899
        %v6028 = vsel %vm5772, %v4981, %v5900
        %v6029 = vsel %vm5773, %v5324, %v5901
        %v6030 = vsel %vm5774, %v5667, %v5902
        %v6031 = vsel %vm5775, %v3269, %v5903
        %v6032 = vsel %vm5776, %v3612, %v5904
        %v6033 = vsel %vm5777, %v3955, %v5905
        %v6034 = vsel %vm5778, %v4298, %v5906
        %v6035 = vsel %vm5779, %v4641, %v5907
        %v6036 = vsel %vm5780, %v4984, %v5908
        %v6037 = vsel %vm5781, %v5327, %v5909
        %v6038 = vsel %vm5782, %v5670, %v5910
        %v6039 = vsel %vm5783, %v3271, %v5911
        %v6040 = vsel %vm5784, %v3614, %v5912
        %v6041 = vsel %vm5785, %v3957, %v5913
        %v6042 = vsel %vm5786, %v4300, %v5914
        %v6043 = vsel %vm5787, %v4643, %v5915
        %v6044 = vsel %vm5788, %v4986, %v5916
        %v6045 = vsel %vm5789, %v5329, %v5917
        %v6046 = vsel %vm5790, %v5672, %v5918
        %v6047 = vsel %vm5791, %v3274, %v5919
        %v6048 = vsel %vm5792, %v3617, %v5920
        %v6049 = vsel %vm5793, %v3960, %v5921
        %v6050 = vsel %vm5794, %v4303, %v5922
        %v6051 = vsel %vm5795, %v4646, %v5923
        %v6052 = vsel %vm5796, %v4989, %v5924
        %v6053 = vsel %vm5797, %v5332, %v5925
        %v6054 = vsel %vm5798, %v5675, %v5926
        %v6055 = vsel %vm5799, %v3276, %v5927
        %v6056 = vsel %vm5800, %v3619, %v5928
        %v6057 = vsel %vm5801, %v3962, %v5929
        %v6058 = vsel %vm5802, %v4305, %v5930
        %v6059 = vsel %vm5803, %v4648, %v5931
        %v6060 = vsel %vm5804, %v4991, %v5932
        %v6061 = vsel %vm5805, %v5334, %v5933
        %v6062 = vsel %vm5806, %v5677, %v5934
        %v6063 = vpack.c.bf16 %v5943, %v5935
        %v6064 = vpack.c.bf16 %v5944, %v5936
        %v6065 = vpack.c.bf16 %v5945, %v5937
        %v6066 = vpack.c.bf16 %v5946, %v5938
        %v6067 = vpack.c.bf16 %v5947, %v5939
        %v6068 = vpack.c.bf16 %v5948, %v5940
        %v6069 = vpack.c.bf16 %v5949, %v5941
        %v6070 = vpack.c.bf16 %v5950, %v5942
        %v6071 = vpack.c.bf16 %v5959, %v5951
        %v6072 = vpack.c.bf16 %v5960, %v5952
        %v6073 = vpack.c.bf16 %v5961, %v5953
        %v6074 = vpack.c.bf16 %v5962, %v5954
        %v6075 = vpack.c.bf16 %v5963, %v5955
        %v6076 = vpack.c.bf16 %v5964, %v5956
        %v6077 = vpack.c.bf16 %v5965, %v5957
        %v6078 = vpack.c.bf16 %v5966, %v5958
        %v6079 = vpack.c.bf16 %v5975, %v5967
        %v6080 = vpack.c.bf16 %v5976, %v5968
        %v6081 = vpack.c.bf16 %v5977, %v5969
        %v6082 = vpack.c.bf16 %v5978, %v5970
        %v6083 = vpack.c.bf16 %v5979, %v5971
        %v6084 = vpack.c.bf16 %v5980, %v5972
        %v6085 = vpack.c.bf16 %v5981, %v5973
        %v6086 = vpack.c.bf16 %v5982, %v5974
        %v6087 = vpack.c.bf16 %v5991, %v5983
        %v6088 = vpack.c.bf16 %v5992, %v5984
        %v6089 = vpack.c.bf16 %v5993, %v5985
        %v6090 = vpack.c.bf16 %v5994, %v5986
        %v6091 = vpack.c.bf16 %v5995, %v5987
        %v6092 = vpack.c.bf16 %v5996, %v5988
        %v6093 = vpack.c.bf16 %v5997, %v5989
        %v6094 = vpack.c.bf16 %v5998, %v5990
        %v6095 = vpack.c.bf16 %v6007, %v5999
        %v6096 = vpack.c.bf16 %v6008, %v6000
        %v6097 = vpack.c.bf16 %v6009, %v6001
        %v6098 = vpack.c.bf16 %v6010, %v6002
        %v6099 = vpack.c.bf16 %v6011, %v6003
        %v6100 = vpack.c.bf16 %v6012, %v6004
        %v6101 = vpack.c.bf16 %v6013, %v6005
        %v6102 = vpack.c.bf16 %v6014, %v6006
        %v6103 = vpack.c.bf16 %v6023, %v6015
        %v6104 = vpack.c.bf16 %v6024, %v6016
        %v6105 = vpack.c.bf16 %v6025, %v6017
        %v6106 = vpack.c.bf16 %v6026, %v6018
        %v6107 = vpack.c.bf16 %v6027, %v6019
        %v6108 = vpack.c.bf16 %v6028, %v6020
        %v6109 = vpack.c.bf16 %v6029, %v6021
        %v6110 = vpack.c.bf16 %v6030, %v6022
        %v6111 = vpack.c.bf16 %v6039, %v6031
        %v6112 = vpack.c.bf16 %v6040, %v6032
        %v6113 = vpack.c.bf16 %v6041, %v6033
        %v6114 = vpack.c.bf16 %v6042, %v6034
        %v6115 = vpack.c.bf16 %v6043, %v6035
        %v6116 = vpack.c.bf16 %v6044, %v6036
        %v6117 = vpack.c.bf16 %v6045, %v6037
        %v6118 = vpack.c.bf16 %v6046, %v6038
        %v6119 = vpack.c.bf16 %v6055, %v6047
        %v6120 = vpack.c.bf16 %v6056, %v6048
        %v6121 = vpack.c.bf16 %v6057, %v6049
        %v6122 = vpack.c.bf16 %v6058, %v6050
        %v6123 = vpack.c.bf16 %v6059, %v6051
        %v6124 = vpack.c.bf16 %v6060, %v6052
        %v6125 = vpack.c.bf16 %v6061, %v6053
        %v6126 = vpack.c.bf16 %v6062, %v6054
        %v6127 = vld [vmem:[#allocation2] sm:$0xff]
        %v6128 = vld [vmem:[#allocation2 + $0x8] sm:$0xff]
        %v6129 = vld [vmem:[#allocation2 + $0x10] sm:$0xff]
        %v6130 = vld [vmem:[#allocation2 + $0x18] sm:$0xff]
        %v6131 = vld [vmem:[#allocation2 + $0x20] sm:$0xff]
        %v6132 = vld [vmem:[#allocation2 + $0x28] sm:$0xff]
        %v6133 = vld [vmem:[#allocation2 + $0x30] sm:$0xff]
        %v6134 = vld [vmem:[#allocation2 + $0x38] sm:$0xff]
        %v6135 = vld [vmem:[#allocation2 + $0x40] sm:$0xff]
        %v6136 = vld [vmem:[#allocation2 + $0x48] sm:$0xff]
        %v6137 = vld [vmem:[#allocation2 + $0x50] sm:$0xff]
        %v6138 = vld [vmem:[#allocation2 + $0x58] sm:$0xff]
        %v6139 = vld [vmem:[#allocation2 + $0x60] sm:$0xff]
        %v6140 = vld [vmem:[#allocation2 + $0x68] sm:$0xff]
        %v6141 = vld [vmem:[#allocation2 + $0x70] sm:$0xff]
        %v6142 = vld [vmem:[#allocation2 + $0x78] sm:$0xff]
        %v6143 = vld [vmem:[#allocation2 + $0x80] sm:$0xff]
        %v6144 = vld [vmem:[#allocation2 + $0x88] sm:$0xff]
        %v6145 = vld [vmem:[#allocation2 + $0x90] sm:$0xff]
        %v6146 = vld [vmem:[#allocation2 + $0x98] sm:$0xff]
        %v6147 = vld [vmem:[#allocation2 + $0xa0] sm:$0xff]
        %v6148 = vld [vmem:[#allocation2 + $0xa8] sm:$0xff]
        %v6149 = vld [vmem:[#allocation2 + $0xb0] sm:$0xff]
        %v6150 = vld [vmem:[#allocation2 + $0xb8] sm:$0xff]
        %v6151 = vld [vmem:[#allocation2 + $0xc0] sm:$0xff]
        %v6152 = vld [vmem:[#allocation2 + $0xc8] sm:$0xff]
        %v6153 = vld [vmem:[#allocation2 + $0xd0] sm:$0xff]
        %v6154 = vld [vmem:[#allocation2 + $0xd8] sm:$0xff]
        %v6155 = vld [vmem:[#allocation2 + $0xe0] sm:$0xff]
        %v6156 = vld [vmem:[#allocation2 + $0xe8] sm:$0xff]
        %v6157 = vld [vmem:[#allocation2 + $0xf0] sm:$0xff]
        %v6158 = vld [vmem:[#allocation2 + $0xf8] sm:$0xff]
        %v6159 = vld [vmem:[#allocation2 + $0x100] sm:$0xff]
        %v6160 = vld [vmem:[#allocation2 + $0x108] sm:$0xff]
        %v6161 = vld [vmem:[#allocation2 + $0x110] sm:$0xff]
        %v6162 = vld [vmem:[#allocation2 + $0x118] sm:$0xff]
        %v6163 = vld [vmem:[#allocation2 + $0x120] sm:$0xff]
        %v6164 = vld [vmem:[#allocation2 + $0x128] sm:$0xff]
        %v6165 = vld [vmem:[#allocation2 + $0x130] sm:$0xff]
        %v6166 = vld [vmem:[#allocation2 + $0x138] sm:$0xff]
        %v6167 = vld [vmem:[#allocation2 + $0x140] sm:$0xff]
        %v6168 = vld [vmem:[#allocation2 + $0x148] sm:$0xff]
        %v6169 = vld [vmem:[#allocation2 + $0x150] sm:$0xff]
        %v6170 = vld [vmem:[#allocation2 + $0x158] sm:$0xff]
        %v6171 = vld [vmem:[#allocation2 + $0x160] sm:$0xff]
        %v6172 = vld [vmem:[#allocation2 + $0x168] sm:$0xff]
        %v6173 = vld [vmem:[#allocation2 + $0x170] sm:$0xff]
        %v6174 = vld [vmem:[#allocation2 + $0x178] sm:$0xff]
        %v6175 = vld [vmem:[#allocation2 + $0x180] sm:$0xff]
        %v6176 = vld [vmem:[#allocation2 + $0x188] sm:$0xff]
        %v6177 = vld [vmem:[#allocation2 + $0x190] sm:$0xff]
        %v6178 = vld [vmem:[#allocation2 + $0x198] sm:$0xff]
        %v6179 = vld [vmem:[#allocation2 + $0x1a0] sm:$0xff]
        %v6180 = vld [vmem:[#allocation2 + $0x1a8] sm:$0xff]
        %v6181 = vld [vmem:[#allocation2 + $0x1b0] sm:$0xff]
        %v6182 = vld [vmem:[#allocation2 + $0x1b8] sm:$0xff]
        %v6183 = vld [vmem:[#allocation2 + $0x1c0] sm:$0xff]
        %v6184 = vld [vmem:[#allocation2 + $0x1c8] sm:$0xff]
        %v6185 = vld [vmem:[#allocation2 + $0x1d0] sm:$0xff]
        %v6186 = vld [vmem:[#allocation2 + $0x1d8] sm:$0xff]
        %v6187 = vld [vmem:[#allocation2 + $0x1e0] sm:$0xff]
        %v6188 = vld [vmem:[#allocation2 + $0x1e8] sm:$0xff]
        %v6189 = vld [vmem:[#allocation2 + $0x1f0] sm:$0xff]
        %v6190 = vld [vmem:[#allocation2 + $0x1f8] sm:$0xff]
        %v6191 = vld [vmem:[#allocation2 + $0x200] sm:$0xff]
        %v6192 = vld [vmem:[#allocation2 + $0x208] sm:$0xff]
        %v6193 = vld [vmem:[#allocation2 + $0x210] sm:$0xff]
        %v6194 = vld [vmem:[#allocation2 + $0x218] sm:$0xff]
        %v6195 = vld [vmem:[#allocation2 + $0x220] sm:$0xff]
        %v6196 = vld [vmem:[#allocation2 + $0x228] sm:$0xff]
        %v6197 = vld [vmem:[#allocation2 + $0x230] sm:$0xff]
        %v6198 = vld [vmem:[#allocation2 + $0x238] sm:$0xff]
        %v6199 = vld [vmem:[#allocation2 + $0x240] sm:$0xff]
        %v6200 = vld [vmem:[#allocation2 + $0x248] sm:$0xff]
        %v6201 = vld [vmem:[#allocation2 + $0x250] sm:$0xff]
        %v6202 = vld [vmem:[#allocation2 + $0x258] sm:$0xff]
        %v6203 = vld [vmem:[#allocation2 + $0x260] sm:$0xff]
        %v6204 = vld [vmem:[#allocation2 + $0x268] sm:$0xff]
        %v6205 = vld [vmem:[#allocation2 + $0x270] sm:$0xff]
        %v6206 = vld [vmem:[#allocation2 + $0x278] sm:$0xff]
        %v6207 = vld [vmem:[#allocation2 + $0x280] sm:$0xff]
        %v6208 = vld [vmem:[#allocation2 + $0x288] sm:$0xff]
        %v6209 = vld [vmem:[#allocation2 + $0x290] sm:$0xff]
        %v6210 = vld [vmem:[#allocation2 + $0x298] sm:$0xff]
        %v6211 = vld [vmem:[#allocation2 + $0x2a0] sm:$0xff]
        %v6212 = vld [vmem:[#allocation2 + $0x2a8] sm:$0xff]
        %v6213 = vld [vmem:[#allocation2 + $0x2b0] sm:$0xff]
        %v6214 = vld [vmem:[#allocation2 + $0x2b8] sm:$0xff]
        %v6215 = vld [vmem:[#allocation2 + $0x2c0] sm:$0xff]
        %v6216 = vld [vmem:[#allocation2 + $0x2c8] sm:$0xff]
        %v6217 = vld [vmem:[#allocation2 + $0x2d0] sm:$0xff]
        %v6218 = vld [vmem:[#allocation2 + $0x2d8] sm:$0xff]
        %v6219 = vld [vmem:[#allocation2 + $0x2e0] sm:$0xff]
        %v6220 = vld [vmem:[#allocation2 + $0x2e8] sm:$0xff]
        %v6221 = vld [vmem:[#allocation2 + $0x2f0] sm:$0xff]
        %v6222 = vld [vmem:[#allocation2 + $0x2f8] sm:$0xff]
        %v6223 = vld [vmem:[#allocation2 + $0x300] sm:$0xff]
        %v6224 = vld [vmem:[#allocation2 + $0x308] sm:$0xff]
        %v6225 = vld [vmem:[#allocation2 + $0x310] sm:$0xff]
        %v6226 = vld [vmem:[#allocation2 + $0x318] sm:$0xff]
        %v6227 = vld [vmem:[#allocation2 + $0x320] sm:$0xff]
        %v6228 = vld [vmem:[#allocation2 + $0x328] sm:$0xff]
        %v6229 = vld [vmem:[#allocation2 + $0x330] sm:$0xff]
        %v6230 = vld [vmem:[#allocation2 + $0x338] sm:$0xff]
        %v6231 = vld [vmem:[#allocation2 + $0x340] sm:$0xff]
        %v6232 = vld [vmem:[#allocation2 + $0x348] sm:$0xff]
        %v6233 = vld [vmem:[#allocation2 + $0x350] sm:$0xff]
        %v6234 = vld [vmem:[#allocation2 + $0x358] sm:$0xff]
        %v6235 = vld [vmem:[#allocation2 + $0x360] sm:$0xff]
        %v6236 = vld [vmem:[#allocation2 + $0x368] sm:$0xff]
        %v6237 = vld [vmem:[#allocation2 + $0x370] sm:$0xff]
        %v6238 = vld [vmem:[#allocation2 + $0x378] sm:$0xff]
        %v6239 = vld [vmem:[#allocation2 + $0x380] sm:$0xff]
        %v6240 = vld [vmem:[#allocation2 + $0x388] sm:$0xff]
        %v6241 = vld [vmem:[#allocation2 + $0x390] sm:$0xff]
        %v6242 = vld [vmem:[#allocation2 + $0x398] sm:$0xff]
        %v6243 = vld [vmem:[#allocation2 + $0x3a0] sm:$0xff]
        %v6244 = vld [vmem:[#allocation2 + $0x3a8] sm:$0xff]
        %v6245 = vld [vmem:[#allocation2 + $0x3b0] sm:$0xff]
        %v6246 = vld [vmem:[#allocation2 + $0x3b8] sm:$0xff]
        %v6247 = vld [vmem:[#allocation2 + $0x3c0] sm:$0xff]
        %v6248 = vld [vmem:[#allocation2 + $0x3c8] sm:$0xff]
        %v6249 = vld [vmem:[#allocation2 + $0x3d0] sm:$0xff]
        %v6250 = vld [vmem:[#allocation2 + $0x3d8] sm:$0xff]
        %v6251 = vld [vmem:[#allocation2 + $0x3e0] sm:$0xff]
        %v6252 = vld [vmem:[#allocation2 + $0x3e8] sm:$0xff]
        %v6253 = vld [vmem:[#allocation2 + $0x3f0] sm:$0xff]
        %v6254 = vld [vmem:[#allocation2 + $0x3f8] sm:$0xff]
        %v6255 = vld [vmem:[#allocation2 + $0x400] sm:$0xff]
        %v6256 = vld [vmem:[#allocation2 + $0x408] sm:$0xff]
        %v6257 = vld [vmem:[#allocation2 + $0x410] sm:$0xff]
        %v6258 = vld [vmem:[#allocation2 + $0x418] sm:$0xff]
        %v6259 = vld [vmem:[#allocation2 + $0x420] sm:$0xff]
        %v6260 = vld [vmem:[#allocation2 + $0x428] sm:$0xff]
        %v6261 = vld [vmem:[#allocation2 + $0x430] sm:$0xff]
        %v6262 = vld [vmem:[#allocation2 + $0x438] sm:$0xff]
        %v6263 = vld [vmem:[#allocation2 + $0x440] sm:$0xff]
        %v6264 = vld [vmem:[#allocation2 + $0x448] sm:$0xff]
        %v6265 = vld [vmem:[#allocation2 + $0x450] sm:$0xff]
        %v6266 = vld [vmem:[#allocation2 + $0x458] sm:$0xff]
        %v6267 = vld [vmem:[#allocation2 + $0x460] sm:$0xff]
        %v6268 = vld [vmem:[#allocation2 + $0x468] sm:$0xff]
        %v6269 = vld [vmem:[#allocation2 + $0x470] sm:$0xff]
        %v6270 = vld [vmem:[#allocation2 + $0x478] sm:$0xff]
        %v6271 = vld [vmem:[#allocation2 + $0x480] sm:$0xff]
        %v6272 = vld [vmem:[#allocation2 + $0x488] sm:$0xff]
        %v6273 = vld [vmem:[#allocation2 + $0x490] sm:$0xff]
        %v6274 = vld [vmem:[#allocation2 + $0x498] sm:$0xff]
        %v6275 = vld [vmem:[#allocation2 + $0x4a0] sm:$0xff]
        %v6276 = vld [vmem:[#allocation2 + $0x4a8] sm:$0xff]
        %v6277 = vld [vmem:[#allocation2 + $0x4b0] sm:$0xff]
        %v6278 = vld [vmem:[#allocation2 + $0x4b8] sm:$0xff]
        %v6279 = vld [vmem:[#allocation2 + $0x4c0] sm:$0xff]
        %v6280 = vld [vmem:[#allocation2 + $0x4c8] sm:$0xff]
        %v6281 = vld [vmem:[#allocation2 + $0x4d0] sm:$0xff]
        %v6282 = vld [vmem:[#allocation2 + $0x4d8] sm:$0xff]
        %v6283 = vld [vmem:[#allocation2 + $0x4e0] sm:$0xff]
        %v6284 = vld [vmem:[#allocation2 + $0x4e8] sm:$0xff]
        %v6285 = vld [vmem:[#allocation2 + $0x4f0] sm:$0xff]
        %v6286 = vld [vmem:[#allocation2 + $0x4f8] sm:$0xff]
        %v6287 = vld [vmem:[#allocation2 + $0x500] sm:$0xff]
        %v6288 = vld [vmem:[#allocation2 + $0x508] sm:$0xff]
        %v6289 = vld [vmem:[#allocation2 + $0x510] sm:$0xff]
        %v6290 = vld [vmem:[#allocation2 + $0x518] sm:$0xff]
        %v6291 = vld [vmem:[#allocation2 + $0x520] sm:$0xff]
        %v6292 = vld [vmem:[#allocation2 + $0x528] sm:$0xff]
        %v6293 = vld [vmem:[#allocation2 + $0x530] sm:$0xff]
        %v6294 = vld [vmem:[#allocation2 + $0x538] sm:$0xff]
        %v6295 = vld [vmem:[#allocation2 + $0x540] sm:$0xff]
        %v6296 = vld [vmem:[#allocation2 + $0x548] sm:$0xff]
        %v6297 = vld [vmem:[#allocation2 + $0x550] sm:$0xff]
        %v6298 = vld [vmem:[#allocation2 + $0x558] sm:$0xff]
        %v6299 = vld [vmem:[#allocation2 + $0x560] sm:$0xff]
        %v6300 = vld [vmem:[#allocation2 + $0x568] sm:$0xff]
        %v6301 = vld [vmem:[#allocation2 + $0x570] sm:$0xff]
        %v6302 = vld [vmem:[#allocation2 + $0x578] sm:$0xff]
        %v6303 = vld [vmem:[#allocation2 + $0x580] sm:$0xff]
        %v6304 = vld [vmem:[#allocation2 + $0x588] sm:$0xff]
        %v6305 = vld [vmem:[#allocation2 + $0x590] sm:$0xff]
        %v6306 = vld [vmem:[#allocation2 + $0x598] sm:$0xff]
        %v6307 = vld [vmem:[#allocation2 + $0x5a0] sm:$0xff]
        %v6308 = vld [vmem:[#allocation2 + $0x5a8] sm:$0xff]
        %v6309 = vld [vmem:[#allocation2 + $0x5b0] sm:$0xff]
        %v6310 = vld [vmem:[#allocation2 + $0x5b8] sm:$0xff]
        %v6311 = vld [vmem:[#allocation2 + $0x5c0] sm:$0xff]
        %v6312 = vld [vmem:[#allocation2 + $0x5c8] sm:$0xff]
        %v6313 = vld [vmem:[#allocation2 + $0x5d0] sm:$0xff]
        %v6314 = vld [vmem:[#allocation2 + $0x5d8] sm:$0xff]
        %v6315 = vld [vmem:[#allocation2 + $0x5e0] sm:$0xff]
        %v6316 = vld [vmem:[#allocation2 + $0x5e8] sm:$0xff]
        %v6317 = vld [vmem:[#allocation2 + $0x5f0] sm:$0xff]
        %v6318 = vld [vmem:[#allocation2 + $0x5f8] sm:$0xff]
        %v6319 = vld [vmem:[#allocation2 + $0x600] sm:$0xff]
        %v6320 = vld [vmem:[#allocation2 + $0x608] sm:$0xff]
        %v6321 = vld [vmem:[#allocation2 + $0x610] sm:$0xff]
        %v6322 = vld [vmem:[#allocation2 + $0x618] sm:$0xff]
        %v6323 = vld [vmem:[#allocation2 + $0x620] sm:$0xff]
        %v6324 = vld [vmem:[#allocation2 + $0x628] sm:$0xff]
        %v6325 = vld [vmem:[#allocation2 + $0x630] sm:$0xff]
        %v6326 = vld [vmem:[#allocation2 + $0x638] sm:$0xff]
        %v6327 = vld [vmem:[#allocation2 + $0x640] sm:$0xff]
        %v6328 = vld [vmem:[#allocation2 + $0x648] sm:$0xff]
        %v6329 = vld [vmem:[#allocation2 + $0x650] sm:$0xff]
        %v6330 = vld [vmem:[#allocation2 + $0x658] sm:$0xff]
        %v6331 = vld [vmem:[#allocation2 + $0x660] sm:$0xff]
        %v6332 = vld [vmem:[#allocation2 + $0x668] sm:$0xff]
        %v6333 = vld [vmem:[#allocation2 + $0x670] sm:$0xff]
        %v6334 = vld [vmem:[#allocation2 + $0x678] sm:$0xff]
        %v6335 = vld [vmem:[#allocation2 + $0x680] sm:$0xff]
        %v6336 = vld [vmem:[#allocation2 + $0x688] sm:$0xff]
        %v6337 = vld [vmem:[#allocation2 + $0x690] sm:$0xff]
        %v6338 = vld [vmem:[#allocation2 + $0x698] sm:$0xff]
        %v6339 = vld [vmem:[#allocation2 + $0x6a0] sm:$0xff]
        %v6340 = vld [vmem:[#allocation2 + $0x6a8] sm:$0xff]
        %v6341 = vld [vmem:[#allocation2 + $0x6b0] sm:$0xff]
        %v6342 = vld [vmem:[#allocation2 + $0x6b8] sm:$0xff]
        %v6343 = vld [vmem:[#allocation2 + $0x6c0] sm:$0xff]
        %v6344 = vld [vmem:[#allocation2 + $0x6c8] sm:$0xff]
        %v6345 = vld [vmem:[#allocation2 + $0x6d0] sm:$0xff]
        %v6346 = vld [vmem:[#allocation2 + $0x6d8] sm:$0xff]
        %v6347 = vld [vmem:[#allocation2 + $0x6e0] sm:$0xff]
        %v6348 = vld [vmem:[#allocation2 + $0x6e8] sm:$0xff]
        %v6349 = vld [vmem:[#allocation2 + $0x6f0] sm:$0xff]
        %v6350 = vld [vmem:[#allocation2 + $0x6f8] sm:$0xff]
        %v6351 = vld [vmem:[#allocation2 + $0x700] sm:$0xff]
        %v6352 = vld [vmem:[#allocation2 + $0x708] sm:$0xff]
        %v6353 = vld [vmem:[#allocation2 + $0x710] sm:$0xff]
        %v6354 = vld [vmem:[#allocation2 + $0x718] sm:$0xff]
        %v6355 = vld [vmem:[#allocation2 + $0x720] sm:$0xff]
        %v6356 = vld [vmem:[#allocation2 + $0x728] sm:$0xff]
        %v6357 = vld [vmem:[#allocation2 + $0x730] sm:$0xff]
        %v6358 = vld [vmem:[#allocation2 + $0x738] sm:$0xff]
        %v6359 = vld [vmem:[#allocation2 + $0x740] sm:$0xff]
        %v6360 = vld [vmem:[#allocation2 + $0x748] sm:$0xff]
        %v6361 = vld [vmem:[#allocation2 + $0x750] sm:$0xff]
        %v6362 = vld [vmem:[#allocation2 + $0x758] sm:$0xff]
        %v6363 = vld [vmem:[#allocation2 + $0x760] sm:$0xff]
        %v6364 = vld [vmem:[#allocation2 + $0x768] sm:$0xff]
        %v6365 = vld [vmem:[#allocation2 + $0x770] sm:$0xff]
        %v6366 = vld [vmem:[#allocation2 + $0x778] sm:$0xff]
        %v6367 = vld [vmem:[#allocation2 + $0x780] sm:$0xff]
        %v6368 = vld [vmem:[#allocation2 + $0x788] sm:$0xff]
        %v6369 = vld [vmem:[#allocation2 + $0x790] sm:$0xff]
        %v6370 = vld [vmem:[#allocation2 + $0x798] sm:$0xff]
        %v6371 = vld [vmem:[#allocation2 + $0x7a0] sm:$0xff]
        %v6372 = vld [vmem:[#allocation2 + $0x7a8] sm:$0xff]
        %v6373 = vld [vmem:[#allocation2 + $0x7b0] sm:$0xff]
        %v6374 = vld [vmem:[#allocation2 + $0x7b8] sm:$0xff]
        %v6375 = vld [vmem:[#allocation2 + $0x7c0] sm:$0xff]
        %v6376 = vld [vmem:[#allocation2 + $0x7c8] sm:$0xff]
        %v6377 = vld [vmem:[#allocation2 + $0x7d0] sm:$0xff]
        %v6378 = vld [vmem:[#allocation2 + $0x7d8] sm:$0xff]
        %v6379 = vld [vmem:[#allocation2 + $0x7e0] sm:$0xff]
        %v6380 = vld [vmem:[#allocation2 + $0x7e8] sm:$0xff]
        %v6381 = vld [vmem:[#allocation2 + $0x7f0] sm:$0xff]
        %v6382 = vld [vmem:[#allocation2 + $0x7f8] sm:$0xff]
        %v6383 = vld [vmem:[%s4] sm:$0xf]
        %v6385 = vperm.slane %v6383, 0
        %v6386 = vperm.slane %v6383, 1
        %v6387 = vperm.slane %v6383, 2
        %v6388 = vperm.slane %v6383, 3
        %v6649 = vunpack.c.l.b16 %v6127
        %v6650 = vunpack.c.h.b16 %v6127
        %v6651 = vunpack.c.l.b16 %v6128
        %v6652 = vunpack.c.h.b16 %v6128
        %v6653 = vunpack.c.l.b16 %v6129
        %v6654 = vunpack.c.h.b16 %v6129
        %v6655 = vunpack.c.l.b16 %v6130
        %v6656 = vunpack.c.h.b16 %v6130
        %v6657 = vunpack.c.l.b16 %v6131
        %v6658 = vunpack.c.h.b16 %v6131
        %v6659 = vunpack.c.l.b16 %v6132
        %v6660 = vunpack.c.h.b16 %v6132
        %v6661 = vunpack.c.l.b16 %v6133
        %v6662 = vunpack.c.h.b16 %v6133
        %v6663 = vunpack.c.l.b16 %v6134
        %v6664 = vunpack.c.h.b16 %v6134
        %v6665 = vunpack.c.l.b16 %v6135
        %v6666 = vunpack.c.h.b16 %v6135
        %v6667 = vunpack.c.l.b16 %v6136
        %v6668 = vunpack.c.h.b16 %v6136
        %v6669 = vunpack.c.l.b16 %v6137
        %v6670 = vunpack.c.h.b16 %v6137
        %v6671 = vunpack.c.l.b16 %v6138
        %v6672 = vunpack.c.h.b16 %v6138
        %v6673 = vunpack.c.l.b16 %v6139
        %v6674 = vunpack.c.h.b16 %v6139
        %v6675 = vunpack.c.l.b16 %v6140
        %v6676 = vunpack.c.h.b16 %v6140
        %v6677 = vunpack.c.l.b16 %v6141
        %v6678 = vunpack.c.h.b16 %v6141
        %v6679 = vunpack.c.l.b16 %v6142
        %v6680 = vunpack.c.h.b16 %v6142
        %v6681 = vunpack.c.l.b16 %v6143
        %v6682 = vunpack.c.h.b16 %v6143
        %v6683 = vunpack.c.l.b16 %v6144
        %v6684 = vunpack.c.h.b16 %v6144
        %v6685 = vunpack.c.l.b16 %v6145
        %v6686 = vunpack.c.h.b16 %v6145
        %v6687 = vunpack.c.l.b16 %v6146
        %v6688 = vunpack.c.h.b16 %v6146
        %v6689 = vunpack.c.l.b16 %v6147
        %v6690 = vunpack.c.h.b16 %v6147
        %v6691 = vunpack.c.l.b16 %v6148
        %v6692 = vunpack.c.h.b16 %v6148
        %v6693 = vunpack.c.l.b16 %v6149
        %v6694 = vunpack.c.h.b16 %v6149
        %v6695 = vunpack.c.l.b16 %v6150
        %v6696 = vunpack.c.h.b16 %v6150
        %v6697 = vunpack.c.l.b16 %v6151
        %v6698 = vunpack.c.h.b16 %v6151
        %v6699 = vunpack.c.l.b16 %v6152
        %v6700 = vunpack.c.h.b16 %v6152
        %v6701 = vunpack.c.l.b16 %v6153
        %v6702 = vunpack.c.h.b16 %v6153
        %v6703 = vunpack.c.l.b16 %v6154
        %v6704 = vunpack.c.h.b16 %v6154
        %v6705 = vunpack.c.l.b16 %v6155
        %v6706 = vunpack.c.h.b16 %v6155
        %v6707 = vunpack.c.l.b16 %v6156
        %v6708 = vunpack.c.h.b16 %v6156
        %v6709 = vunpack.c.l.b16 %v6157
        %v6710 = vunpack.c.h.b16 %v6157
        %v6711 = vunpack.c.l.b16 %v6158
        %v6712 = vunpack.c.h.b16 %v6158
        %v6713 = vunpack.c.l.b16 %v6159
        %v6714 = vunpack.c.h.b16 %v6159
        %v6715 = vunpack.c.l.b16 %v6160
        %v6716 = vunpack.c.h.b16 %v6160
        %v6717 = vunpack.c.l.b16 %v6161
        %v6718 = vunpack.c.h.b16 %v6161
        %v6719 = vunpack.c.l.b16 %v6162
        %v6720 = vunpack.c.h.b16 %v6162
        %v6721 = vunpack.c.l.b16 %v6163
        %v6722 = vunpack.c.h.b16 %v6163
        %v6723 = vunpack.c.l.b16 %v6164
        %v6724 = vunpack.c.h.b16 %v6164
        %v6725 = vunpack.c.l.b16 %v6165
        %v6726 = vunpack.c.h.b16 %v6165
        %v6727 = vunpack.c.l.b16 %v6166
        %v6728 = vunpack.c.h.b16 %v6166
        %v6729 = vunpack.c.l.b16 %v6167
        %v6730 = vunpack.c.h.b16 %v6167
        %v6731 = vunpack.c.l.b16 %v6168
        %v6732 = vunpack.c.h.b16 %v6168
        %v6733 = vunpack.c.l.b16 %v6169
        %v6734 = vunpack.c.h.b16 %v6169
        %v6735 = vunpack.c.l.b16 %v6170
        %v6736 = vunpack.c.h.b16 %v6170
        %v6737 = vunpack.c.l.b16 %v6171
        %v6738 = vunpack.c.h.b16 %v6171
        %v6739 = vunpack.c.l.b16 %v6172
        %v6740 = vunpack.c.h.b16 %v6172
        %v6741 = vunpack.c.l.b16 %v6173
        %v6742 = vunpack.c.h.b16 %v6173
        %v6743 = vunpack.c.l.b16 %v6174
        %v6744 = vunpack.c.h.b16 %v6174
        %v6745 = vunpack.c.l.b16 %v6175
        %v6746 = vunpack.c.h.b16 %v6175
        %v6747 = vunpack.c.l.b16 %v6176
        %v6748 = vunpack.c.h.b16 %v6176
        %v6749 = vunpack.c.l.b16 %v6177
        %v6750 = vunpack.c.h.b16 %v6177
        %v6751 = vunpack.c.l.b16 %v6178
        %v6752 = vunpack.c.h.b16 %v6178
        %v6753 = vunpack.c.l.b16 %v6179
        %v6754 = vunpack.c.h.b16 %v6179
        %v6755 = vunpack.c.l.b16 %v6180
        %v6756 = vunpack.c.h.b16 %v6180
        %v6757 = vunpack.c.l.b16 %v6181
        %v6758 = vunpack.c.h.b16 %v6181
        %v6759 = vunpack.c.l.b16 %v6182
        %v6760 = vunpack.c.h.b16 %v6182
        %v6761 = vunpack.c.l.b16 %v6183
        %v6762 = vunpack.c.h.b16 %v6183
        %v6763 = vunpack.c.l.b16 %v6184
        %v6764 = vunpack.c.h.b16 %v6184
        %v6765 = vunpack.c.l.b16 %v6185
        %v6766 = vunpack.c.h.b16 %v6185
        %v6767 = vunpack.c.l.b16 %v6186
        %v6768 = vunpack.c.h.b16 %v6186
        %v6769 = vunpack.c.l.b16 %v6187
        %v6770 = vunpack.c.h.b16 %v6187
        %v6771 = vunpack.c.l.b16 %v6188
        %v6772 = vunpack.c.h.b16 %v6188
        %v6773 = vunpack.c.l.b16 %v6189
        %v6774 = vunpack.c.h.b16 %v6189
        %v6775 = vunpack.c.l.b16 %v6190
        %v6776 = vunpack.c.h.b16 %v6190
        %v6777 = vunpack.c.l.b16 %v6191
        %v6778 = vunpack.c.h.b16 %v6191
        %v6779 = vunpack.c.l.b16 %v6192
        %v6780 = vunpack.c.h.b16 %v6192
        %v6781 = vunpack.c.l.b16 %v6193
        %v6782 = vunpack.c.h.b16 %v6193
        %v6783 = vunpack.c.l.b16 %v6194
        %v6784 = vunpack.c.h.b16 %v6194
        %v6785 = vunpack.c.l.b16 %v6195
        %v6786 = vunpack.c.h.b16 %v6195
        %v6787 = vunpack.c.l.b16 %v6196
        %v6788 = vunpack.c.h.b16 %v6196
        %v6789 = vunpack.c.l.b16 %v6197
        %v6790 = vunpack.c.h.b16 %v6197
        %v6791 = vunpack.c.l.b16 %v6198
        %v6792 = vunpack.c.h.b16 %v6198
        %v6793 = vunpack.c.l.b16 %v6199
        %v6794 = vunpack.c.h.b16 %v6199
        %v6795 = vunpack.c.l.b16 %v6200
        %v6796 = vunpack.c.h.b16 %v6200
        %v6797 = vunpack.c.l.b16 %v6201
        %v6798 = vunpack.c.h.b16 %v6201
        %v6799 = vunpack.c.l.b16 %v6202
        %v6800 = vunpack.c.h.b16 %v6202
        %v6801 = vunpack.c.l.b16 %v6203
        %v6802 = vunpack.c.h.b16 %v6203
        %v6803 = vunpack.c.l.b16 %v6204
        %v6804 = vunpack.c.h.b16 %v6204
        %v6805 = vunpack.c.l.b16 %v6205
        %v6806 = vunpack.c.h.b16 %v6205
        %v6807 = vunpack.c.l.b16 %v6206
        %v6808 = vunpack.c.h.b16 %v6206
        %v6809 = vunpack.c.l.b16 %v6207
        %v6810 = vunpack.c.h.b16 %v6207
        %v6811 = vunpack.c.l.b16 %v6208
        %v6812 = vunpack.c.h.b16 %v6208
        %v6813 = vunpack.c.l.b16 %v6209
        %v6814 = vunpack.c.h.b16 %v6209
        %v6815 = vunpack.c.l.b16 %v6210
        %v6816 = vunpack.c.h.b16 %v6210
        %v6817 = vunpack.c.l.b16 %v6211
        %v6818 = vunpack.c.h.b16 %v6211
        %v6819 = vunpack.c.l.b16 %v6212
        %v6820 = vunpack.c.h.b16 %v6212
        %v6821 = vunpack.c.l.b16 %v6213
        %v6822 = vunpack.c.h.b16 %v6213
        %v6823 = vunpack.c.l.b16 %v6214
        %v6824 = vunpack.c.h.b16 %v6214
        %v6825 = vunpack.c.l.b16 %v6215
        %v6826 = vunpack.c.h.b16 %v6215
        %v6827 = vunpack.c.l.b16 %v6216
        %v6828 = vunpack.c.h.b16 %v6216
        %v6829 = vunpack.c.l.b16 %v6217
        %v6830 = vunpack.c.h.b16 %v6217
        %v6831 = vunpack.c.l.b16 %v6218
        %v6832 = vunpack.c.h.b16 %v6218
        %v6833 = vunpack.c.l.b16 %v6219
        %v6834 = vunpack.c.h.b16 %v6219
        %v6835 = vunpack.c.l.b16 %v6220
        %v6836 = vunpack.c.h.b16 %v6220
        %v6837 = vunpack.c.l.b16 %v6221
        %v6838 = vunpack.c.h.b16 %v6221
        %v6839 = vunpack.c.l.b16 %v6222
        %v6840 = vunpack.c.h.b16 %v6222
        %v6841 = vunpack.c.l.b16 %v6223
        %v6842 = vunpack.c.h.b16 %v6223
        %v6843 = vunpack.c.l.b16 %v6224
        %v6844 = vunpack.c.h.b16 %v6224
        %v6845 = vunpack.c.l.b16 %v6225
        %v6846 = vunpack.c.h.b16 %v6225
        %v6847 = vunpack.c.l.b16 %v6226
        %v6848 = vunpack.c.h.b16 %v6226
        %v6849 = vunpack.c.l.b16 %v6227
        %v6850 = vunpack.c.h.b16 %v6227
        %v6851 = vunpack.c.l.b16 %v6228
        %v6852 = vunpack.c.h.b16 %v6228
        %v6853 = vunpack.c.l.b16 %v6229
        %v6854 = vunpack.c.h.b16 %v6229
        %v6855 = vunpack.c.l.b16 %v6230
        %v6856 = vunpack.c.h.b16 %v6230
        %v6857 = vunpack.c.l.b16 %v6231
        %v6858 = vunpack.c.h.b16 %v6231
        %v6859 = vunpack.c.l.b16 %v6232
        %v6860 = vunpack.c.h.b16 %v6232
        %v6861 = vunpack.c.l.b16 %v6233
        %v6862 = vunpack.c.h.b16 %v6233
        %v6863 = vunpack.c.l.b16 %v6234
        %v6864 = vunpack.c.h.b16 %v6234
        %v6865 = vunpack.c.l.b16 %v6235
        %v6866 = vunpack.c.h.b16 %v6235
        %v6867 = vunpack.c.l.b16 %v6236
        %v6868 = vunpack.c.h.b16 %v6236
        %v6869 = vunpack.c.l.b16 %v6237
        %v6870 = vunpack.c.h.b16 %v6237
        %v6871 = vunpack.c.l.b16 %v6238
        %v6872 = vunpack.c.h.b16 %v6238
        %v6873 = vunpack.c.l.b16 %v6239
        %v6874 = vunpack.c.h.b16 %v6239
        %v6875 = vunpack.c.l.b16 %v6240
        %v6876 = vunpack.c.h.b16 %v6240
        %v6877 = vunpack.c.l.b16 %v6241
        %v6878 = vunpack.c.h.b16 %v6241
        %v6879 = vunpack.c.l.b16 %v6242
        %v6880 = vunpack.c.h.b16 %v6242
        %v6881 = vunpack.c.l.b16 %v6243
        %v6882 = vunpack.c.h.b16 %v6243
        %v6883 = vunpack.c.l.b16 %v6244
        %v6884 = vunpack.c.h.b16 %v6244
        %v6885 = vunpack.c.l.b16 %v6245
        %v6886 = vunpack.c.h.b16 %v6245
        %v6887 = vunpack.c.l.b16 %v6246
        %v6888 = vunpack.c.h.b16 %v6246
        %v6889 = vunpack.c.l.b16 %v6247
        %v6890 = vunpack.c.h.b16 %v6247
        %v6891 = vunpack.c.l.b16 %v6248
        %v6892 = vunpack.c.h.b16 %v6248
        %v6893 = vunpack.c.l.b16 %v6249
        %v6894 = vunpack.c.h.b16 %v6249
        %v6895 = vunpack.c.l.b16 %v6250
        %v6896 = vunpack.c.h.b16 %v6250
        %v6897 = vunpack.c.l.b16 %v6251
        %v6898 = vunpack.c.h.b16 %v6251
        %v6899 = vunpack.c.l.b16 %v6252
        %v6900 = vunpack.c.h.b16 %v6252
        %v6901 = vunpack.c.l.b16 %v6253
        %v6902 = vunpack.c.h.b16 %v6253
        %v6903 = vunpack.c.l.b16 %v6254
        %v6904 = vunpack.c.h.b16 %v6254
        %v6905 = vunpack.c.l.b16 %v6255
        %v6906 = vunpack.c.h.b16 %v6255
        %v6907 = vunpack.c.l.b16 %v6256
        %v6908 = vunpack.c.h.b16 %v6256
        %v6909 = vunpack.c.l.b16 %v6257
        %v6910 = vunpack.c.h.b16 %v6257
        %v6911 = vunpack.c.l.b16 %v6258
        %v6912 = vunpack.c.h.b16 %v6258
        %v6913 = vunpack.c.l.b16 %v6259
        %v6914 = vunpack.c.h.b16 %v6259
        %v6915 = vunpack.c.l.b16 %v6260
        %v6916 = vunpack.c.h.b16 %v6260
        %v6917 = vunpack.c.l.b16 %v6261
        %v6918 = vunpack.c.h.b16 %v6261
        %v6919 = vunpack.c.l.b16 %v6262
        %v6920 = vunpack.c.h.b16 %v6262
        %v6921 = vunpack.c.l.b16 %v6263
        %v6922 = vunpack.c.h.b16 %v6263
        %v6923 = vunpack.c.l.b16 %v6264
        %v6924 = vunpack.c.h.b16 %v6264
        %v6925 = vunpack.c.l.b16 %v6265
        %v6926 = vunpack.c.h.b16 %v6265
        %v6927 = vunpack.c.l.b16 %v6266
        %v6928 = vunpack.c.h.b16 %v6266
        %v6929 = vunpack.c.l.b16 %v6267
        %v6930 = vunpack.c.h.b16 %v6267
        %v6931 = vunpack.c.l.b16 %v6268
        %v6932 = vunpack.c.h.b16 %v6268
        %v6933 = vunpack.c.l.b16 %v6269
        %v6934 = vunpack.c.h.b16 %v6269
        %v6935 = vunpack.c.l.b16 %v6270
        %v6936 = vunpack.c.h.b16 %v6270
        %v6937 = vunpack.c.l.b16 %v6271
        %v6938 = vunpack.c.h.b16 %v6271
        %v6939 = vunpack.c.l.b16 %v6272
        %v6940 = vunpack.c.h.b16 %v6272
        %v6941 = vunpack.c.l.b16 %v6273
        %v6942 = vunpack.c.h.b16 %v6273
        %v6943 = vunpack.c.l.b16 %v6274
        %v6944 = vunpack.c.h.b16 %v6274
        %v6945 = vunpack.c.l.b16 %v6275
        %v6946 = vunpack.c.h.b16 %v6275
        %v6947 = vunpack.c.l.b16 %v6276
        %v6948 = vunpack.c.h.b16 %v6276
        %v6949 = vunpack.c.l.b16 %v6277
        %v6950 = vunpack.c.h.b16 %v6277
        %v6951 = vunpack.c.l.b16 %v6278
        %v6952 = vunpack.c.h.b16 %v6278
        %v6953 = vunpack.c.l.b16 %v6279
        %v6954 = vunpack.c.h.b16 %v6279
        %v6955 = vunpack.c.l.b16 %v6280
        %v6956 = vunpack.c.h.b16 %v6280
        %v6957 = vunpack.c.l.b16 %v6281
        %v6958 = vunpack.c.h.b16 %v6281
        %v6959 = vunpack.c.l.b16 %v6282
        %v6960 = vunpack.c.h.b16 %v6282
        %v6961 = vunpack.c.l.b16 %v6283
        %v6962 = vunpack.c.h.b16 %v6283
        %v6963 = vunpack.c.l.b16 %v6284
        %v6964 = vunpack.c.h.b16 %v6284
        %v6965 = vunpack.c.l.b16 %v6285
        %v6966 = vunpack.c.h.b16 %v6285
        %v6967 = vunpack.c.l.b16 %v6286
        %v6968 = vunpack.c.h.b16 %v6286
        %v6969 = vunpack.c.l.b16 %v6287
        %v6970 = vunpack.c.h.b16 %v6287
        %v6971 = vunpack.c.l.b16 %v6288
        %v6972 = vunpack.c.h.b16 %v6288
        %v6973 = vunpack.c.l.b16 %v6289
        %v6974 = vunpack.c.h.b16 %v6289
        %v6975 = vunpack.c.l.b16 %v6290
        %v6976 = vunpack.c.h.b16 %v6290
        %v6977 = vunpack.c.l.b16 %v6291
        %v6978 = vunpack.c.h.b16 %v6291
        %v6979 = vunpack.c.l.b16 %v6292
        %v6980 = vunpack.c.h.b16 %v6292
        %v6981 = vunpack.c.l.b16 %v6293
        %v6982 = vunpack.c.h.b16 %v6293
        %v6983 = vunpack.c.l.b16 %v6294
        %v6984 = vunpack.c.h.b16 %v6294
        %v6985 = vunpack.c.l.b16 %v6295
        %v6986 = vunpack.c.h.b16 %v6295
        %v6987 = vunpack.c.l.b16 %v6296
        %v6988 = vunpack.c.h.b16 %v6296
        %v6989 = vunpack.c.l.b16 %v6297
        %v6990 = vunpack.c.h.b16 %v6297
        %v6991 = vunpack.c.l.b16 %v6298
        %v6992 = vunpack.c.h.b16 %v6298
        %v6993 = vunpack.c.l.b16 %v6299
        %v6994 = vunpack.c.h.b16 %v6299
        %v6995 = vunpack.c.l.b16 %v6300
        %v6996 = vunpack.c.h.b16 %v6300
        %v6997 = vunpack.c.l.b16 %v6301
        %v6998 = vunpack.c.h.b16 %v6301
        %v6999 = vunpack.c.l.b16 %v6302
        %v7000 = vunpack.c.h.b16 %v6302
        %v7001 = vunpack.c.l.b16 %v6303
        %v7002 = vunpack.c.h.b16 %v6303
        %v7003 = vunpack.c.l.b16 %v6304
        %v7004 = vunpack.c.h.b16 %v6304
        %v7005 = vunpack.c.l.b16 %v6305
        %v7006 = vunpack.c.h.b16 %v6305
        %v7007 = vunpack.c.l.b16 %v6306
        %v7008 = vunpack.c.h.b16 %v6306
        %v7009 = vunpack.c.l.b16 %v6307
        %v7010 = vunpack.c.h.b16 %v6307
        %v7011 = vunpack.c.l.b16 %v6308
        %v7012 = vunpack.c.h.b16 %v6308
        %v7013 = vunpack.c.l.b16 %v6309
        %v7014 = vunpack.c.h.b16 %v6309
        %v7015 = vunpack.c.l.b16 %v6310
        %v7016 = vunpack.c.h.b16 %v6310
        %v7017 = vunpack.c.l.b16 %v6311
        %v7018 = vunpack.c.h.b16 %v6311
        %v7019 = vunpack.c.l.b16 %v6312
        %v7020 = vunpack.c.h.b16 %v6312
        %v7021 = vunpack.c.l.b16 %v6313
        %v7022 = vunpack.c.h.b16 %v6313
        %v7023 = vunpack.c.l.b16 %v6314
        %v7024 = vunpack.c.h.b16 %v6314
        %v7025 = vunpack.c.l.b16 %v6315
        %v7026 = vunpack.c.h.b16 %v6315
        %v7027 = vunpack.c.l.b16 %v6316
        %v7028 = vunpack.c.h.b16 %v6316
        %v7029 = vunpack.c.l.b16 %v6317
        %v7030 = vunpack.c.h.b16 %v6317
        %v7031 = vunpack.c.l.b16 %v6318
        %v7032 = vunpack.c.h.b16 %v6318
        %v7033 = vunpack.c.l.b16 %v6319
        %v7034 = vunpack.c.h.b16 %v6319
        %v7035 = vunpack.c.l.b16 %v6320
        %v7036 = vunpack.c.h.b16 %v6320
        %v7037 = vunpack.c.l.b16 %v6321
        %v7038 = vunpack.c.h.b16 %v6321
        %v7039 = vunpack.c.l.b16 %v6322
        %v7040 = vunpack.c.h.b16 %v6322
        %v7041 = vunpack.c.l.b16 %v6323
        %v7042 = vunpack.c.h.b16 %v6323
        %v7043 = vunpack.c.l.b16 %v6324
        %v7044 = vunpack.c.h.b16 %v6324
        %v7045 = vunpack.c.l.b16 %v6325
        %v7046 = vunpack.c.h.b16 %v6325
        %v7047 = vunpack.c.l.b16 %v6326
        %v7048 = vunpack.c.h.b16 %v6326
        %v7049 = vunpack.c.l.b16 %v6327
        %v7050 = vunpack.c.h.b16 %v6327
        %v7051 = vunpack.c.l.b16 %v6328
        %v7052 = vunpack.c.h.b16 %v6328
        %v7053 = vunpack.c.l.b16 %v6329
        %v7054 = vunpack.c.h.b16 %v6329
        %v7055 = vunpack.c.l.b16 %v6330
        %v7056 = vunpack.c.h.b16 %v6330
        %v7057 = vunpack.c.l.b16 %v6331
        %v7058 = vunpack.c.h.b16 %v6331
        %v7059 = vunpack.c.l.b16 %v6332
        %v7060 = vunpack.c.h.b16 %v6332
        %v7061 = vunpack.c.l.b16 %v6333
        %v7062 = vunpack.c.h.b16 %v6333
        %v7063 = vunpack.c.l.b16 %v6334
        %v7064 = vunpack.c.h.b16 %v6334
        %v7065 = vunpack.c.l.b16 %v6335
        %v7066 = vunpack.c.h.b16 %v6335
        %v7067 = vunpack.c.l.b16 %v6336
        %v7068 = vunpack.c.h.b16 %v6336
        %v7069 = vunpack.c.l.b16 %v6337
        %v7070 = vunpack.c.h.b16 %v6337
        %v7071 = vunpack.c.l.b16 %v6338
        %v7072 = vunpack.c.h.b16 %v6338
        %v7073 = vunpack.c.l.b16 %v6339
        %v7074 = vunpack.c.h.b16 %v6339
        %v7075 = vunpack.c.l.b16 %v6340
        %v7076 = vunpack.c.h.b16 %v6340
        %v7077 = vunpack.c.l.b16 %v6341
        %v7078 = vunpack.c.h.b16 %v6341
        %v7079 = vunpack.c.l.b16 %v6342
        %v7080 = vunpack.c.h.b16 %v6342
        %v7081 = vunpack.c.l.b16 %v6343
        %v7082 = vunpack.c.h.b16 %v6343
        %v7083 = vunpack.c.l.b16 %v6344
        %v7084 = vunpack.c.h.b16 %v6344
        %v7085 = vunpack.c.l.b16 %v6345
        %v7086 = vunpack.c.h.b16 %v6345
        %v7087 = vunpack.c.l.b16 %v6346
        %v7088 = vunpack.c.h.b16 %v6346
        %v7089 = vunpack.c.l.b16 %v6347
        %v7090 = vunpack.c.h.b16 %v6347
        %v7091 = vunpack.c.l.b16 %v6348
        %v7092 = vunpack.c.h.b16 %v6348
        %v7093 = vunpack.c.l.b16 %v6349
        %v7094 = vunpack.c.h.b16 %v6349
        %v7095 = vunpack.c.l.b16 %v6350
        %v7096 = vunpack.c.h.b16 %v6350
        %v7097 = vunpack.c.l.b16 %v6351
        %v7098 = vunpack.c.h.b16 %v6351
        %v7099 = vunpack.c.l.b16 %v6352
        %v7100 = vunpack.c.h.b16 %v6352
        %v7101 = vunpack.c.l.b16 %v6353
        %v7102 = vunpack.c.h.b16 %v6353
        %v7103 = vunpack.c.l.b16 %v6354
        %v7104 = vunpack.c.h.b16 %v6354
        %v7105 = vunpack.c.l.b16 %v6355
        %v7106 = vunpack.c.h.b16 %v6355
        %v7107 = vunpack.c.l.b16 %v6356
        %v7108 = vunpack.c.h.b16 %v6356
        %v7109 = vunpack.c.l.b16 %v6357
        %v7110 = vunpack.c.h.b16 %v6357
        %v7111 = vunpack.c.l.b16 %v6358
        %v7112 = vunpack.c.h.b16 %v6358
        %v7113 = vunpack.c.l.b16 %v6359
        %v7114 = vunpack.c.h.b16 %v6359
        %v7115 = vunpack.c.l.b16 %v6360
        %v7116 = vunpack.c.h.b16 %v6360
        %v7117 = vunpack.c.l.b16 %v6361
        %v7118 = vunpack.c.h.b16 %v6361
        %v7119 = vunpack.c.l.b16 %v6362
        %v7120 = vunpack.c.h.b16 %v6362
        %v7121 = vunpack.c.l.b16 %v6363
        %v7122 = vunpack.c.h.b16 %v6363
        %v7123 = vunpack.c.l.b16 %v6364
        %v7124 = vunpack.c.h.b16 %v6364
        %v7125 = vunpack.c.l.b16 %v6365
        %v7126 = vunpack.c.h.b16 %v6365
        %v7127 = vunpack.c.l.b16 %v6366
        %v7128 = vunpack.c.h.b16 %v6366
        %v7129 = vunpack.c.l.b16 %v6367
        %v7130 = vunpack.c.h.b16 %v6367
        %v7131 = vunpack.c.l.b16 %v6368
        %v7132 = vunpack.c.h.b16 %v6368
        %v7133 = vunpack.c.l.b16 %v6369
        %v7134 = vunpack.c.h.b16 %v6369
        %v7135 = vunpack.c.l.b16 %v6370
        %v7136 = vunpack.c.h.b16 %v6370
        %v7137 = vunpack.c.l.b16 %v6371
        %v7138 = vunpack.c.h.b16 %v6371
        %v7139 = vunpack.c.l.b16 %v6372
        %v7140 = vunpack.c.h.b16 %v6372
        %v7141 = vunpack.c.l.b16 %v6373
        %v7142 = vunpack.c.h.b16 %v6373
        %v7143 = vunpack.c.l.b16 %v6374
        %v7144 = vunpack.c.h.b16 %v6374
        %v7145 = vunpack.c.l.b16 %v6375
        %v7146 = vunpack.c.h.b16 %v6375
        %v7147 = vunpack.c.l.b16 %v6376
        %v7148 = vunpack.c.h.b16 %v6376
        %v7149 = vunpack.c.l.b16 %v6377
        %v7150 = vunpack.c.h.b16 %v6377
        %v7151 = vunpack.c.l.b16 %v6378
        %v7152 = vunpack.c.h.b16 %v6378
        %v7153 = vunpack.c.l.b16 %v6379
        %v7154 = vunpack.c.h.b16 %v6379
        %v7155 = vunpack.c.l.b16 %v6380
        %v7156 = vunpack.c.h.b16 %v6380
        %v7157 = vunpack.c.l.b16 %v6381
        %v7158 = vunpack.c.h.b16 %v6381
        %v7159 = vunpack.c.l.b16 %v6382
        %v7160 = vunpack.c.h.b16 %v6382
        %v7161 = vpack.c.b16 %v6653, %v6649
        %v7162 = vpack.c.b16 %v6654, %v6650
        %v7163 = vpack.c.b16 %v6655, %v6651
        %v7164 = vpack.c.b16 %v6656, %v6652
        %v7165 = vpack.c.b16 %v6661, %v6657
        %v7166 = vpack.c.b16 %v6662, %v6658
        %v7167 = vpack.c.b16 %v6663, %v6659
        %v7168 = vpack.c.b16 %v6664, %v6660
        %v7169 = vpack.c.b16 %v6669, %v6665
        %v7170 = vpack.c.b16 %v6670, %v6666
        %v7171 = vpack.c.b16 %v6671, %v6667
        %v7172 = vpack.c.b16 %v6672, %v6668
        %v7173 = vpack.c.b16 %v6677, %v6673
        %v7174 = vpack.c.b16 %v6678, %v6674
        %v7175 = vpack.c.b16 %v6679, %v6675
        %v7176 = vpack.c.b16 %v6680, %v6676
        %v7177 = vpack.c.b16 %v6685, %v6681
        %v7178 = vpack.c.b16 %v6686, %v6682
        %v7179 = vpack.c.b16 %v6687, %v6683
        %v7180 = vpack.c.b16 %v6688, %v6684
        %v7181 = vpack.c.b16 %v6693, %v6689
        %v7182 = vpack.c.b16 %v6694, %v6690
        %v7183 = vpack.c.b16 %v6695, %v6691
        %v7184 = vpack.c.b16 %v6696, %v6692
        %v7185 = vpack.c.b16 %v6701, %v6697
        %v7186 = vpack.c.b16 %v6702, %v6698
        %v7187 = vpack.c.b16 %v6703, %v6699
        %v7188 = vpack.c.b16 %v6704, %v6700
        %v7189 = vpack.c.b16 %v6709, %v6705
        %v7190 = vpack.c.b16 %v6710, %v6706
        %v7191 = vpack.c.b16 %v6711, %v6707
        %v7192 = vpack.c.b16 %v6712, %v6708
        %v7193 = vpack.c.b16 %v6717, %v6713
        %v7194 = vpack.c.b16 %v6718, %v6714
        %v7195 = vpack.c.b16 %v6719, %v6715
        %v7196 = vpack.c.b16 %v6720, %v6716
        %v7197 = vpack.c.b16 %v6725, %v6721
        %v7198 = vpack.c.b16 %v6726, %v6722
        %v7199 = vpack.c.b16 %v6727, %v6723
        %v7200 = vpack.c.b16 %v6728, %v6724
        %v7201 = vpack.c.b16 %v6733, %v6729
        %v7202 = vpack.c.b16 %v6734, %v6730
        %v7203 = vpack.c.b16 %v6735, %v6731
        %v7204 = vpack.c.b16 %v6736, %v6732
        %v7205 = vpack.c.b16 %v6741, %v6737
        %v7206 = vpack.c.b16 %v6742, %v6738
        %v7207 = vpack.c.b16 %v6743, %v6739
        %v7208 = vpack.c.b16 %v6744, %v6740
        %v7209 = vpack.c.b16 %v6749, %v6745
        %v7210 = vpack.c.b16 %v6750, %v6746
        %v7211 = vpack.c.b16 %v6751, %v6747
        %v7212 = vpack.c.b16 %v6752, %v6748
        %v7213 = vpack.c.b16 %v6757, %v6753
        %v7214 = vpack.c.b16 %v6758, %v6754
        %v7215 = vpack.c.b16 %v6759, %v6755
        %v7216 = vpack.c.b16 %v6760, %v6756
        %v7217 = vpack.c.b16 %v6765, %v6761
        %v7218 = vpack.c.b16 %v6766, %v6762
        %v7219 = vpack.c.b16 %v6767, %v6763
        %v7220 = vpack.c.b16 %v6768, %v6764
        %v7221 = vpack.c.b16 %v6773, %v6769
        %v7222 = vpack.c.b16 %v6774, %v6770
        %v7223 = vpack.c.b16 %v6775, %v6771
        %v7224 = vpack.c.b16 %v6776, %v6772
        %v7225 = vpack.c.b16 %v6781, %v6777
        %v7226 = vpack.c.b16 %v6782, %v6778
        %v7227 = vpack.c.b16 %v6783, %v6779
        %v7228 = vpack.c.b16 %v6784, %v6780
        %v7229 = vpack.c.b16 %v6789, %v6785
        %v7230 = vpack.c.b16 %v6790, %v6786
        %v7231 = vpack.c.b16 %v6791, %v6787
        %v7232 = vpack.c.b16 %v6792, %v6788
        %v7233 = vpack.c.b16 %v6797, %v6793
        %v7234 = vpack.c.b16 %v6798, %v6794
        %v7235 = vpack.c.b16 %v6799, %v6795
        %v7236 = vpack.c.b16 %v6800, %v6796
        %v7237 = vpack.c.b16 %v6805, %v6801
        %v7238 = vpack.c.b16 %v6806, %v6802
        %v7239 = vpack.c.b16 %v6807, %v6803
        %v7240 = vpack.c.b16 %v6808, %v6804
        %v7241 = vpack.c.b16 %v6813, %v6809
        %v7242 = vpack.c.b16 %v6814, %v6810
        %v7243 = vpack.c.b16 %v6815, %v6811
        %v7244 = vpack.c.b16 %v6816, %v6812
        %v7245 = vpack.c.b16 %v6821, %v6817
        %v7246 = vpack.c.b16 %v6822, %v6818
        %v7247 = vpack.c.b16 %v6823, %v6819
        %v7248 = vpack.c.b16 %v6824, %v6820
        %v7249 = vpack.c.b16 %v6829, %v6825
        %v7250 = vpack.c.b16 %v6830, %v6826
        %v7251 = vpack.c.b16 %v6831, %v6827
        %v7252 = vpack.c.b16 %v6832, %v6828
        %v7253 = vpack.c.b16 %v6837, %v6833
        %v7254 = vpack.c.b16 %v6838, %v6834
        %v7255 = vpack.c.b16 %v6839, %v6835
        %v7256 = vpack.c.b16 %v6840, %v6836
        %v7257 = vpack.c.b16 %v6845, %v6841
        %v7258 = vpack.c.b16 %v6846, %v6842
        %v7259 = vpack.c.b16 %v6847, %v6843
        %v7260 = vpack.c.b16 %v6848, %v6844
        %v7261 = vpack.c.b16 %v6853, %v6849
        %v7262 = vpack.c.b16 %v6854, %v6850
        %v7263 = vpack.c.b16 %v6855, %v6851
        %v7264 = vpack.c.b16 %v6856, %v6852
        %v7265 = vpack.c.b16 %v6861, %v6857
        %v7266 = vpack.c.b16 %v6862, %v6858
        %v7267 = vpack.c.b16 %v6863, %v6859
        %v7268 = vpack.c.b16 %v6864, %v6860
        %v7269 = vpack.c.b16 %v6869, %v6865
        %v7270 = vpack.c.b16 %v6870, %v6866
        %v7271 = vpack.c.b16 %v6871, %v6867
        %v7272 = vpack.c.b16 %v6872, %v6868
        %v7273 = vpack.c.b16 %v6877, %v6873
        %v7274 = vpack.c.b16 %v6878, %v6874
        %v7275 = vpack.c.b16 %v6879, %v6875
        %v7276 = vpack.c.b16 %v6880, %v6876
        %v7277 = vpack.c.b16 %v6885, %v6881
        %v7278 = vpack.c.b16 %v6886, %v6882
        %v7279 = vpack.c.b16 %v6887, %v6883
        %v7280 = vpack.c.b16 %v6888, %v6884
        %v7281 = vpack.c.b16 %v6893, %v6889
        %v7282 = vpack.c.b16 %v6894, %v6890
        %v7283 = vpack.c.b16 %v6895, %v6891
        %v7284 = vpack.c.b16 %v6896, %v6892
        %v7285 = vpack.c.b16 %v6901, %v6897
        %v7286 = vpack.c.b16 %v6902, %v6898
        %v7287 = vpack.c.b16 %v6903, %v6899
        %v7288 = vpack.c.b16 %v6904, %v6900
        %v7289 = vpack.c.b16 %v6909, %v6905
        %v7290 = vpack.c.b16 %v6910, %v6906
        %v7291 = vpack.c.b16 %v6911, %v6907
        %v7292 = vpack.c.b16 %v6912, %v6908
        %v7293 = vpack.c.b16 %v6917, %v6913
        %v7294 = vpack.c.b16 %v6918, %v6914
        %v7295 = vpack.c.b16 %v6919, %v6915
        %v7296 = vpack.c.b16 %v6920, %v6916
        %v7297 = vpack.c.b16 %v6925, %v6921
        %v7298 = vpack.c.b16 %v6926, %v6922
        %v7299 = vpack.c.b16 %v6927, %v6923
        %v7300 = vpack.c.b16 %v6928, %v6924
        %v7301 = vpack.c.b16 %v6933, %v6929
        %v7302 = vpack.c.b16 %v6934, %v6930
        %v7303 = vpack.c.b16 %v6935, %v6931
        %v7304 = vpack.c.b16 %v6936, %v6932
        %v7305 = vpack.c.b16 %v6941, %v6937
        %v7306 = vpack.c.b16 %v6942, %v6938
        %v7307 = vpack.c.b16 %v6943, %v6939
        %v7308 = vpack.c.b16 %v6944, %v6940
        %v7309 = vpack.c.b16 %v6949, %v6945
        %v7310 = vpack.c.b16 %v6950, %v6946
        %v7311 = vpack.c.b16 %v6951, %v6947
        %v7312 = vpack.c.b16 %v6952, %v6948
        %v7313 = vpack.c.b16 %v6957, %v6953
        %v7314 = vpack.c.b16 %v6958, %v6954
        %v7315 = vpack.c.b16 %v6959, %v6955
        %v7316 = vpack.c.b16 %v6960, %v6956
        %v7317 = vpack.c.b16 %v6965, %v6961
        %v7318 = vpack.c.b16 %v6966, %v6962
        %v7319 = vpack.c.b16 %v6967, %v6963
        %v7320 = vpack.c.b16 %v6968, %v6964
        %v7321 = vpack.c.b16 %v6973, %v6969
        %v7322 = vpack.c.b16 %v6974, %v6970
        %v7323 = vpack.c.b16 %v6975, %v6971
        %v7324 = vpack.c.b16 %v6976, %v6972
        %v7325 = vpack.c.b16 %v6981, %v6977
        %v7326 = vpack.c.b16 %v6982, %v6978
        %v7327 = vpack.c.b16 %v6983, %v6979
        %v7328 = vpack.c.b16 %v6984, %v6980
        %v7329 = vpack.c.b16 %v6989, %v6985
        %v7330 = vpack.c.b16 %v6990, %v6986
        %v7331 = vpack.c.b16 %v6991, %v6987
        %v7332 = vpack.c.b16 %v6992, %v6988
        %v7333 = vpack.c.b16 %v6997, %v6993
        %v7334 = vpack.c.b16 %v6998, %v6994
        %v7335 = vpack.c.b16 %v6999, %v6995
        %v7336 = vpack.c.b16 %v7000, %v6996
        %v7337 = vpack.c.b16 %v7005, %v7001
        %v7338 = vpack.c.b16 %v7006, %v7002
        %v7339 = vpack.c.b16 %v7007, %v7003
        %v7340 = vpack.c.b16 %v7008, %v7004
        %v7341 = vpack.c.b16 %v7013, %v7009
        %v7342 = vpack.c.b16 %v7014, %v7010
        %v7343 = vpack.c.b16 %v7015, %v7011
        %v7344 = vpack.c.b16 %v7016, %v7012
        %v7345 = vpack.c.b16 %v7021, %v7017
        %v7346 = vpack.c.b16 %v7022, %v7018
        %v7347 = vpack.c.b16 %v7023, %v7019
        %v7348 = vpack.c.b16 %v7024, %v7020
        %v7349 = vpack.c.b16 %v7029, %v7025
        %v7350 = vpack.c.b16 %v7030, %v7026
        %v7351 = vpack.c.b16 %v7031, %v7027
        %v7352 = vpack.c.b16 %v7032, %v7028
        %v7353 = vpack.c.b16 %v7037, %v7033
        %v7354 = vpack.c.b16 %v7038, %v7034
        %v7355 = vpack.c.b16 %v7039, %v7035
        %v7356 = vpack.c.b16 %v7040, %v7036
        %v7357 = vpack.c.b16 %v7045, %v7041
        %v7358 = vpack.c.b16 %v7046, %v7042
        %v7359 = vpack.c.b16 %v7047, %v7043
        %v7360 = vpack.c.b16 %v7048, %v7044
        %v7361 = vpack.c.b16 %v7053, %v7049
        %v7362 = vpack.c.b16 %v7054, %v7050
        %v7363 = vpack.c.b16 %v7055, %v7051
        %v7364 = vpack.c.b16 %v7056, %v7052
        %v7365 = vpack.c.b16 %v7061, %v7057
        %v7366 = vpack.c.b16 %v7062, %v7058
        %v7367 = vpack.c.b16 %v7063, %v7059
        %v7368 = vpack.c.b16 %v7064, %v7060
        %v7369 = vpack.c.b16 %v7069, %v7065
        %v7370 = vpack.c.b16 %v7070, %v7066
        %v7371 = vpack.c.b16 %v7071, %v7067
        %v7372 = vpack.c.b16 %v7072, %v7068
        %v7373 = vpack.c.b16 %v7077, %v7073
        %v7374 = vpack.c.b16 %v7078, %v7074
        %v7375 = vpack.c.b16 %v7079, %v7075
        %v7376 = vpack.c.b16 %v7080, %v7076
        %v7377 = vpack.c.b16 %v7085, %v7081
        %v7378 = vpack.c.b16 %v7086, %v7082
        %v7379 = vpack.c.b16 %v7087, %v7083
        %v7380 = vpack.c.b16 %v7088, %v7084
        %v7381 = vpack.c.b16 %v7093, %v7089
        %v7382 = vpack.c.b16 %v7094, %v7090
        %v7383 = vpack.c.b16 %v7095, %v7091
        %v7384 = vpack.c.b16 %v7096, %v7092
        %v7385 = vpack.c.b16 %v7101, %v7097
        %v7386 = vpack.c.b16 %v7102, %v7098
        %v7387 = vpack.c.b16 %v7103, %v7099
        %v7388 = vpack.c.b16 %v7104, %v7100
        %v7389 = vpack.c.b16 %v7109, %v7105
        %v7390 = vpack.c.b16 %v7110, %v7106
        %v7391 = vpack.c.b16 %v7111, %v7107
        %v7392 = vpack.c.b16 %v7112, %v7108
        %v7393 = vpack.c.b16 %v7117, %v7113
        %v7394 = vpack.c.b16 %v7118, %v7114
        %v7395 = vpack.c.b16 %v7119, %v7115
        %v7396 = vpack.c.b16 %v7120, %v7116
        %v7397 = vpack.c.b16 %v7125, %v7121
        %v7398 = vpack.c.b16 %v7126, %v7122
        %v7399 = vpack.c.b16 %v7127, %v7123
        %v7400 = vpack.c.b16 %v7128, %v7124
        %v7401 = vpack.c.b16 %v7133, %v7129
        %v7402 = vpack.c.b16 %v7134, %v7130
        %v7403 = vpack.c.b16 %v7135, %v7131
        %v7404 = vpack.c.b16 %v7136, %v7132
        %v7405 = vpack.c.b16 %v7141, %v7137
        %v7406 = vpack.c.b16 %v7142, %v7138
        %v7407 = vpack.c.b16 %v7143, %v7139
        %v7408 = vpack.c.b16 %v7144, %v7140
        %v7409 = vpack.c.b16 %v7149, %v7145
        %v7410 = vpack.c.b16 %v7150, %v7146
        %v7411 = vpack.c.b16 %v7151, %v7147
        %v7412 = vpack.c.b16 %v7152, %v7148
        %v7413 = vpack.c.b16 %v7157, %v7153
        %v7414 = vpack.c.b16 %v7158, %v7154
        %v7415 = vpack.c.b16 %v7159, %v7155
        %v7416 = vpack.c.b16 %v7160, %v7156
        %7673 = vmatpush.bf16.msra.mxu0 %v7189
        %7674 = vmatpush.bf16.msra.mxu0 %v7185
        %7675 = vmatpush.bf16.msra.mxu0 %v7181
        %7676 = vmatpush.bf16.msra.mxu0 %v7177
        %7677 = vmatpush.bf16.msra.mxu0 %v7173
        %7678 = vmatpush.bf16.msra.mxu0 %v7169
        %7679 = vmatpush.bf16.msra.mxu0 %v7165
        %7680 = vmatpush.bf16.msra.mxu0 %v7161
        %7681 = vmatmul.bf16.gmra.mxu0 %v6063
        %v7682 = vpop.f32.mrf.mxu0
        %v7683 = vadd.f32 %v6385, %v7682
        %v7684 = vpop.f32.mrf.mxu0
        %v7685 = vadd.f32 %v6385, %v7684
        %7686 = vmatmul.bf16.gmra.mxu0 %v6071
        %v7687 = vpop.f32.mrf.mxu0
        %v7688 = vadd.f32 %v6385, %v7687
        %v7689 = vpop.f32.mrf.mxu0
        %v7690 = vadd.f32 %v6385, %v7689
        %7691 = vmatmul.bf16.gmra.mxu0 %v6079
        %v7692 = vpop.f32.mrf.mxu0
        %v7693 = vadd.f32 %v6385, %v7692
        %v7694 = vpop.f32.mrf.mxu0
        %v7695 = vadd.f32 %v6385, %v7694
        %7696 = vmatmul.bf16.gmra.mxu0 %v6087
        %v7697 = vpop.f32.mrf.mxu0
        %v7698 = vadd.f32 %v6385, %v7697
        %v7699 = vpop.f32.mrf.mxu0
        %v7700 = vadd.f32 %v6385, %v7699
        %7701 = vmatmul.bf16.gmra.mxu0 %v6095
        %v7702 = vpop.f32.mrf.mxu0
        %v7703 = vadd.f32 %v6385, %v7702
        %v7704 = vpop.f32.mrf.mxu0
        %v7705 = vadd.f32 %v6385, %v7704
        %7706 = vmatmul.bf16.gmra.mxu0 %v6103
        %v7707 = vpop.f32.mrf.mxu0
        %v7708 = vadd.f32 %v6385, %v7707
        %v7709 = vpop.f32.mrf.mxu0
        %v7710 = vadd.f32 %v6385, %v7709
        %7711 = vmatmul.bf16.gmra.mxu0 %v6111
        %v7712 = vpop.f32.mrf.mxu0
        %v7713 = vadd.f32 %v6385, %v7712
        %v7714 = vpop.f32.mrf.mxu0
        %v7715 = vadd.f32 %v6385, %v7714
        %7716 = vmatmul.bf16.gmra.mxu0 %v6119
        %v7717 = vpop.f32.mrf.mxu0
        %v7718 = vadd.f32 %v6385, %v7717
        %v7719 = vpop.f32.mrf.mxu0
        %v7720 = vadd.f32 %v6385, %v7719
        %7721 = vdwg.mxu0
        %7722 = vmatpush.bf16.msra.mxu0 %v7221
        %7723 = vmatpush.bf16.msra.mxu0 %v7217
        %7724 = vmatpush.bf16.msra.mxu0 %v7213
        %7725 = vmatpush.bf16.msra.mxu0 %v7209
        %7726 = vmatpush.bf16.msra.mxu0 %v7205
        %7727 = vmatpush.bf16.msra.mxu0 %v7201
        %7728 = vmatpush.bf16.msra.mxu0 %v7197
        %7729 = vmatpush.bf16.msra.mxu0 %v7193
        %7730 = vmatmul.bf16.gmra.mxu0 %v6064
        %v7731 = vpop.f32.mrf.mxu0
        %v7732 = vadd.f32 %v7683, %v7731
        %v7733 = vpop.f32.mrf.mxu0
        %v7734 = vadd.f32 %v7685, %v7733
        %7735 = vmatmul.bf16.gmra.mxu0 %v6072
        %v7736 = vpop.f32.mrf.mxu0
        %v7737 = vadd.f32 %v7688, %v7736
        %v7738 = vpop.f32.mrf.mxu0
        %v7739 = vadd.f32 %v7690, %v7738
        %7740 = vmatmul.bf16.gmra.mxu0 %v6080
        %v7741 = vpop.f32.mrf.mxu0
        %v7742 = vadd.f32 %v7693, %v7741
        %v7743 = vpop.f32.mrf.mxu0
        %v7744 = vadd.f32 %v7695, %v7743
        %7745 = vmatmul.bf16.gmra.mxu0 %v6088
        %v7746 = vpop.f32.mrf.mxu0
        %v7747 = vadd.f32 %v7698, %v7746
        %v7748 = vpop.f32.mrf.mxu0
        %v7749 = vadd.f32 %v7700, %v7748
        %7750 = vmatmul.bf16.gmra.mxu0 %v6096
        %v7751 = vpop.f32.mrf.mxu0
        %v7752 = vadd.f32 %v7703, %v7751
        %v7753 = vpop.f32.mrf.mxu0
        %v7754 = vadd.f32 %v7705, %v7753
        %7755 = vmatmul.bf16.gmra.mxu0 %v6104
        %v7756 = vpop.f32.mrf.mxu0
        %v7757 = vadd.f32 %v7708, %v7756
        %v7758 = vpop.f32.mrf.mxu0
        %v7759 = vadd.f32 %v7710, %v7758
        %7760 = vmatmul.bf16.gmra.mxu0 %v6112
        %v7761 = vpop.f32.mrf.mxu0
        %v7762 = vadd.f32 %v7713, %v7761
        %v7763 = vpop.f32.mrf.mxu0
        %v7764 = vadd.f32 %v7715, %v7763
        %7765 = vmatmul.bf16.gmra.mxu0 %v6120
        %v7766 = vpop.f32.mrf.mxu0
        %v7767 = vadd.f32 %v7718, %v7766
        %v7768 = vpop.f32.mrf.mxu0
        %v7769 = vadd.f32 %v7720, %v7768
        %7770 = vdwg.mxu0
        %7771 = vmatpush.bf16.msra.mxu0 %v7253
        %7772 = vmatpush.bf16.msra.mxu0 %v7249
        %7773 = vmatpush.bf16.msra.mxu0 %v7245
        %7774 = vmatpush.bf16.msra.mxu0 %v7241
        %7775 = vmatpush.bf16.msra.mxu0 %v7237
        %7776 = vmatpush.bf16.msra.mxu0 %v7233
        %7777 = vmatpush.bf16.msra.mxu0 %v7229
        %7778 = vmatpush.bf16.msra.mxu0 %v7225
        %7779 = vmatmul.bf16.gmra.mxu0 %v6065
        %v7780 = vpop.f32.mrf.mxu0
        %v7781 = vadd.f32 %v7732, %v7780
        %v7782 = vpop.f32.mrf.mxu0
        %v7783 = vadd.f32 %v7734, %v7782
        %7784 = vmatmul.bf16.gmra.mxu0 %v6073
        %v7785 = vpop.f32.mrf.mxu0
        %v7786 = vadd.f32 %v7737, %v7785
        %v7787 = vpop.f32.mrf.mxu0
        %v7788 = vadd.f32 %v7739, %v7787
        %7789 = vmatmul.bf16.gmra.mxu0 %v6081
        %v7790 = vpop.f32.mrf.mxu0
        %v7791 = vadd.f32 %v7742, %v7790
        %v7792 = vpop.f32.mrf.mxu0
        %v7793 = vadd.f32 %v7744, %v7792
        %7794 = vmatmul.bf16.gmra.mxu0 %v6089
        %v7795 = vpop.f32.mrf.mxu0
        %v7796 = vadd.f32 %v7747, %v7795
        %v7797 = vpop.f32.mrf.mxu0
        %v7798 = vadd.f32 %v7749, %v7797
        %7799 = vmatmul.bf16.gmra.mxu0 %v6097
        %v7800 = vpop.f32.mrf.mxu0
        %v7801 = vadd.f32 %v7752, %v7800
        %v7802 = vpop.f32.mrf.mxu0
        %v7803 = vadd.f32 %v7754, %v7802
        %7804 = vmatmul.bf16.gmra.mxu0 %v6105
        %v7805 = vpop.f32.mrf.mxu0
        %v7806 = vadd.f32 %v7757, %v7805
        %v7807 = vpop.f32.mrf.mxu0
        %v7808 = vadd.f32 %v7759, %v7807
        %7809 = vmatmul.bf16.gmra.mxu0 %v6113
        %v7810 = vpop.f32.mrf.mxu0
        %v7811 = vadd.f32 %v7762, %v7810
        %v7812 = vpop.f32.mrf.mxu0
        %v7813 = vadd.f32 %v7764, %v7812
        %7814 = vmatmul.bf16.gmra.mxu0 %v6121
        %v7815 = vpop.f32.mrf.mxu0
        %v7816 = vadd.f32 %v7767, %v7815
        %v7817 = vpop.f32.mrf.mxu0
        %v7818 = vadd.f32 %v7769, %v7817
        %7819 = vdwg.mxu0
        %7820 = vmatpush.bf16.msra.mxu0 %v7285
        %7821 = vmatpush.bf16.msra.mxu0 %v7281
        %7822 = vmatpush.bf16.msra.mxu0 %v7277
        %7823 = vmatpush.bf16.msra.mxu0 %v7273
        %7824 = vmatpush.bf16.msra.mxu0 %v7269
        %7825 = vmatpush.bf16.msra.mxu0 %v7265
        %7826 = vmatpush.bf16.msra.mxu0 %v7261
        %7827 = vmatpush.bf16.msra.mxu0 %v7257
        %7828 = vmatmul.bf16.gmra.mxu0 %v6066
        %v7829 = vpop.f32.mrf.mxu0
        %v7830 = vadd.f32 %v7781, %v7829
        %v7831 = vpop.f32.mrf.mxu0
        %v7832 = vadd.f32 %v7783, %v7831
        %7833 = vmatmul.bf16.gmra.mxu0 %v6074
        %v7834 = vpop.f32.mrf.mxu0
        %v7835 = vadd.f32 %v7786, %v7834
        %v7836 = vpop.f32.mrf.mxu0
        %v7837 = vadd.f32 %v7788, %v7836
        %7838 = vmatmul.bf16.gmra.mxu0 %v6082
        %v7839 = vpop.f32.mrf.mxu0
        %v7840 = vadd.f32 %v7791, %v7839
        %v7841 = vpop.f32.mrf.mxu0
        %v7842 = vadd.f32 %v7793, %v7841
        %7843 = vmatmul.bf16.gmra.mxu0 %v6090
        %v7844 = vpop.f32.mrf.mxu0
        %v7845 = vadd.f32 %v7796, %v7844
        %v7846 = vpop.f32.mrf.mxu0
        %v7847 = vadd.f32 %v7798, %v7846
        %7848 = vmatmul.bf16.gmra.mxu0 %v6098
        %v7849 = vpop.f32.mrf.mxu0
        %v7850 = vadd.f32 %v7801, %v7849
        %v7851 = vpop.f32.mrf.mxu0
        %v7852 = vadd.f32 %v7803, %v7851
        %7853 = vmatmul.bf16.gmra.mxu0 %v6106
        %v7854 = vpop.f32.mrf.mxu0
        %v7855 = vadd.f32 %v7806, %v7854
        %v7856 = vpop.f32.mrf.mxu0
        %v7857 = vadd.f32 %v7808, %v7856
        %7858 = vmatmul.bf16.gmra.mxu0 %v6114
        %v7859 = vpop.f32.mrf.mxu0
        %v7860 = vadd.f32 %v7811, %v7859
        %v7861 = vpop.f32.mrf.mxu0
        %v7862 = vadd.f32 %v7813, %v7861
        %7863 = vmatmul.bf16.gmra.mxu0 %v6122
        %v7864 = vpop.f32.mrf.mxu0
        %v7865 = vadd.f32 %v7816, %v7864
        %v7866 = vpop.f32.mrf.mxu0
        %v7867 = vadd.f32 %v7818, %v7866
        %7868 = vdwg.mxu0
        %7869 = vmatpush.bf16.msra.mxu0 %v7317
        %7870 = vmatpush.bf16.msra.mxu0 %v7313
        %7871 = vmatpush.bf16.msra.mxu0 %v7309
        %7872 = vmatpush.bf16.msra.mxu0 %v7305
        %7873 = vmatpush.bf16.msra.mxu0 %v7301
        %7874 = vmatpush.bf16.msra.mxu0 %v7297
        %7875 = vmatpush.bf16.msra.mxu0 %v7293
        %7876 = vmatpush.bf16.msra.mxu0 %v7289
        %7877 = vmatmul.bf16.gmra.mxu0 %v6067
        %v7878 = vpop.f32.mrf.mxu0
        %v7879 = vadd.f32 %v7830, %v7878
        %v7880 = vpop.f32.mrf.mxu0
        %v7881 = vadd.f32 %v7832, %v7880
        %7882 = vmatmul.bf16.gmra.mxu0 %v6075
        %v7883 = vpop.f32.mrf.mxu0
        %v7884 = vadd.f32 %v7835, %v7883
        %v7885 = vpop.f32.mrf.mxu0
        %v7886 = vadd.f32 %v7837, %v7885
        %7887 = vmatmul.bf16.gmra.mxu0 %v6083
        %v7888 = vpop.f32.mrf.mxu0
        %v7889 = vadd.f32 %v7840, %v7888
        %v7890 = vpop.f32.mrf.mxu0
        %v7891 = vadd.f32 %v7842, %v7890
        %7892 = vmatmul.bf16.gmra.mxu0 %v6091
        %v7893 = vpop.f32.mrf.mxu0
        %v7894 = vadd.f32 %v7845, %v7893
        %v7895 = vpop.f32.mrf.mxu0
        %v7896 = vadd.f32 %v7847, %v7895
        %7897 = vmatmul.bf16.gmra.mxu0 %v6099
        %v7898 = vpop.f32.mrf.mxu0
        %v7899 = vadd.f32 %v7850, %v7898
        %v7900 = vpop.f32.mrf.mxu0
        %v7901 = vadd.f32 %v7852, %v7900
        %7902 = vmatmul.bf16.gmra.mxu0 %v6107
        %v7903 = vpop.f32.mrf.mxu0
        %v7904 = vadd.f32 %v7855, %v7903
        %v7905 = vpop.f32.mrf.mxu0
        %v7906 = vadd.f32 %v7857, %v7905
        %7907 = vmatmul.bf16.gmra.mxu0 %v6115
        %v7908 = vpop.f32.mrf.mxu0
        %v7909 = vadd.f32 %v7860, %v7908
        %v7910 = vpop.f32.mrf.mxu0
        %v7911 = vadd.f32 %v7862, %v7910
        %7912 = vmatmul.bf16.gmra.mxu0 %v6123
        %v7913 = vpop.f32.mrf.mxu0
        %v7914 = vadd.f32 %v7865, %v7913
        %v7915 = vpop.f32.mrf.mxu0
        %v7916 = vadd.f32 %v7867, %v7915
        %7917 = vdwg.mxu0
        %7918 = vmatpush.bf16.msra.mxu0 %v7349
        %7919 = vmatpush.bf16.msra.mxu0 %v7345
        %7920 = vmatpush.bf16.msra.mxu0 %v7341
        %7921 = vmatpush.bf16.msra.mxu0 %v7337
        %7922 = vmatpush.bf16.msra.mxu0 %v7333
        %7923 = vmatpush.bf16.msra.mxu0 %v7329
        %7924 = vmatpush.bf16.msra.mxu0 %v7325
        %7925 = vmatpush.bf16.msra.mxu0 %v7321
        %7926 = vmatmul.bf16.gmra.mxu0 %v6068
        %v7927 = vpop.f32.mrf.mxu0
        %v7928 = vadd.f32 %v7879, %v7927
        %v7929 = vpop.f32.mrf.mxu0
        %v7930 = vadd.f32 %v7881, %v7929
        %7931 = vmatmul.bf16.gmra.mxu0 %v6076
        %v7932 = vpop.f32.mrf.mxu0
        %v7933 = vadd.f32 %v7884, %v7932
        %v7934 = vpop.f32.mrf.mxu0
        %v7935 = vadd.f32 %v7886, %v7934
        %7936 = vmatmul.bf16.gmra.mxu0 %v6084
        %v7937 = vpop.f32.mrf.mxu0
        %v7938 = vadd.f32 %v7889, %v7937
        %v7939 = vpop.f32.mrf.mxu0
        %v7940 = vadd.f32 %v7891, %v7939
        %7941 = vmatmul.bf16.gmra.mxu0 %v6092
        %v7942 = vpop.f32.mrf.mxu0
        %v7943 = vadd.f32 %v7894, %v7942
        %v7944 = vpop.f32.mrf.mxu0
        %v7945 = vadd.f32 %v7896, %v7944
        %7946 = vmatmul.bf16.gmra.mxu0 %v6100
        %v7947 = vpop.f32.mrf.mxu0
        %v7948 = vadd.f32 %v7899, %v7947
        %v7949 = vpop.f32.mrf.mxu0
        %v7950 = vadd.f32 %v7901, %v7949
        %7951 = vmatmul.bf16.gmra.mxu0 %v6108
        %v7952 = vpop.f32.mrf.mxu0
        %v7953 = vadd.f32 %v7904, %v7952
        %v7954 = vpop.f32.mrf.mxu0
        %v7955 = vadd.f32 %v7906, %v7954
        %7956 = vmatmul.bf16.gmra.mxu0 %v6116
        %v7957 = vpop.f32.mrf.mxu0
        %v7958 = vadd.f32 %v7909, %v7957
        %v7959 = vpop.f32.mrf.mxu0
        %v7960 = vadd.f32 %v7911, %v7959
        %7961 = vmatmul.bf16.gmra.mxu0 %v6124
        %v7962 = vpop.f32.mrf.mxu0
        %v7963 = vadd.f32 %v7914, %v7962
        %v7964 = vpop.f32.mrf.mxu0
        %v7965 = vadd.f32 %v7916, %v7964
        %7966 = vdwg.mxu0
        %7967 = vmatpush.bf16.msra.mxu0 %v7381
        %7968 = vmatpush.bf16.msra.mxu0 %v7377
        %7969 = vmatpush.bf16.msra.mxu0 %v7373
        %7970 = vmatpush.bf16.msra.mxu0 %v7369
        %7971 = vmatpush.bf16.msra.mxu0 %v7365
        %7972 = vmatpush.bf16.msra.mxu0 %v7361
        %7973 = vmatpush.bf16.msra.mxu0 %v7357
        %7974 = vmatpush.bf16.msra.mxu0 %v7353
        %7975 = vmatmul.bf16.gmra.mxu0 %v6069
        %v7976 = vpop.f32.mrf.mxu0
        %v7977 = vadd.f32 %v7928, %v7976
        %v7978 = vpop.f32.mrf.mxu0
        %v7979 = vadd.f32 %v7930, %v7978
        %7980 = vmatmul.bf16.gmra.mxu0 %v6077
        %v7981 = vpop.f32.mrf.mxu0
        %v7982 = vadd.f32 %v7933, %v7981
        %v7983 = vpop.f32.mrf.mxu0
        %v7984 = vadd.f32 %v7935, %v7983
        %7985 = vmatmul.bf16.gmra.mxu0 %v6085
        %v7986 = vpop.f32.mrf.mxu0
        %v7987 = vadd.f32 %v7938, %v7986
        %v7988 = vpop.f32.mrf.mxu0
        %v7989 = vadd.f32 %v7940, %v7988
        %7990 = vmatmul.bf16.gmra.mxu0 %v6093
        %v7991 = vpop.f32.mrf.mxu0
        %v7992 = vadd.f32 %v7943, %v7991
        %v7993 = vpop.f32.mrf.mxu0
        %v7994 = vadd.f32 %v7945, %v7993
        %7995 = vmatmul.bf16.gmra.mxu0 %v6101
        %v7996 = vpop.f32.mrf.mxu0
        %v7997 = vadd.f32 %v7948, %v7996
        %v7998 = vpop.f32.mrf.mxu0
        %v7999 = vadd.f32 %v7950, %v7998
        %8000 = vmatmul.bf16.gmra.mxu0 %v6109
        %v8001 = vpop.f32.mrf.mxu0
        %v8002 = vadd.f32 %v7953, %v8001
        %v8003 = vpop.f32.mrf.mxu0
        %v8004 = vadd.f32 %v7955, %v8003
        %8005 = vmatmul.bf16.gmra.mxu0 %v6117
        %v8006 = vpop.f32.mrf.mxu0
        %v8007 = vadd.f32 %v7958, %v8006
        %v8008 = vpop.f32.mrf.mxu0
        %v8009 = vadd.f32 %v7960, %v8008
        %8010 = vmatmul.bf16.gmra.mxu0 %v6125
        %v8011 = vpop.f32.mrf.mxu0
        %v8012 = vadd.f32 %v7963, %v8011
        %v8013 = vpop.f32.mrf.mxu0
        %v8014 = vadd.f32 %v7965, %v8013
        %8015 = vdwg.mxu0
        %8016 = vmatpush.bf16.msra.mxu0 %v7413
        %8017 = vmatpush.bf16.msra.mxu0 %v7409
        %8018 = vmatpush.bf16.msra.mxu0 %v7405
        %8019 = vmatpush.bf16.msra.mxu0 %v7401
        %8020 = vmatpush.bf16.msra.mxu0 %v7397
        %8021 = vmatpush.bf16.msra.mxu0 %v7393
        %8022 = vmatpush.bf16.msra.mxu0 %v7389
        %8023 = vmatpush.bf16.msra.mxu0 %v7385
        %8024 = vmatmul.bf16.gmra.mxu0 %v6070
        %v8025 = vpop.f32.mrf.mxu0
        %v8026 = vadd.f32 %v7977, %v8025
        %v8027 = vpop.f32.mrf.mxu0
        %v8028 = vadd.f32 %v7979, %v8027
        %8029 = vmatmul.bf16.gmra.mxu0 %v6078
        %v8030 = vpop.f32.mrf.mxu0
        %v8031 = vadd.f32 %v7982, %v8030
        %v8032 = vpop.f32.mrf.mxu0
        %v8033 = vadd.f32 %v7984, %v8032
        %8034 = vmatmul.bf16.gmra.mxu0 %v6086
        %v8035 = vpop.f32.mrf.mxu0
        %v8036 = vadd.f32 %v7987, %v8035
        %v8037 = vpop.f32.mrf.mxu0
        %v8038 = vadd.f32 %v7989, %v8037
        %8039 = vmatmul.bf16.gmra.mxu0 %v6094
        %v8040 = vpop.f32.mrf.mxu0
        %v8041 = vadd.f32 %v7992, %v8040
        %v8042 = vpop.f32.mrf.mxu0
        %v8043 = vadd.f32 %v7994, %v8042
        %8044 = vmatmul.bf16.gmra.mxu0 %v6102
        %v8045 = vpop.f32.mrf.mxu0
        %v8046 = vadd.f32 %v7997, %v8045
        %v8047 = vpop.f32.mrf.mxu0
        %v8048 = vadd.f32 %v7999, %v8047
        %8049 = vmatmul.bf16.gmra.mxu0 %v6110
        %v8050 = vpop.f32.mrf.mxu0
        %v8051 = vadd.f32 %v8002, %v8050
        %v8052 = vpop.f32.mrf.mxu0
        %v8053 = vadd.f32 %v8004, %v8052
        %8054 = vmatmul.bf16.gmra.mxu0 %v6118
        %v8055 = vpop.f32.mrf.mxu0
        %v8056 = vadd.f32 %v8007, %v8055
        %v8057 = vpop.f32.mrf.mxu0
        %v8058 = vadd.f32 %v8009, %v8057
        %8059 = vmatmul.bf16.gmra.mxu0 %v6126
        %v8060 = vpop.f32.mrf.mxu0
        %v8061 = vadd.f32 %v8012, %v8060
        %v8062 = vpop.f32.mrf.mxu0
        %v8063 = vadd.f32 %v8014, %v8062
        %8064 = vdwg.mxu0
        %8065 = vmatpush.bf16.msra.mxu0 %v7190
        %8066 = vmatpush.bf16.msra.mxu0 %v7186
        %8067 = vmatpush.bf16.msra.mxu0 %v7182
        %8068 = vmatpush.bf16.msra.mxu0 %v7178
        %8069 = vmatpush.bf16.msra.mxu0 %v7174
        %8070 = vmatpush.bf16.msra.mxu0 %v7170
        %8071 = vmatpush.bf16.msra.mxu0 %v7166
        %8072 = vmatpush.bf16.msra.mxu0 %v7162
        %8073 = vmatmul.bf16.gmra.mxu0 %v6063
        %v8074 = vpop.f32.mrf.mxu0
        %v8075 = vadd.f32 %v6386, %v8074
        %v8076 = vpop.f32.mrf.mxu0
        %v8077 = vadd.f32 %v6386, %v8076
        %8078 = vmatmul.bf16.gmra.mxu0 %v6071
        %v8079 = vpop.f32.mrf.mxu0
        %v8080 = vadd.f32 %v6386, %v8079
        %v8081 = vpop.f32.mrf.mxu0
        %v8082 = vadd.f32 %v6386, %v8081
        %8083 = vmatmul.bf16.gmra.mxu0 %v6079
        %v8084 = vpop.f32.mrf.mxu0
        %v8085 = vadd.f32 %v6386, %v8084
        %v8086 = vpop.f32.mrf.mxu0
        %v8087 = vadd.f32 %v6386, %v8086
        %8088 = vmatmul.bf16.gmra.mxu0 %v6087
        %v8089 = vpop.f32.mrf.mxu0
        %v8090 = vadd.f32 %v6386, %v8089
        %v8091 = vpop.f32.mrf.mxu0
        %v8092 = vadd.f32 %v6386, %v8091
        %8093 = vmatmul.bf16.gmra.mxu0 %v6095
        %v8094 = vpop.f32.mrf.mxu0
        %v8095 = vadd.f32 %v6386, %v8094
        %v8096 = vpop.f32.mrf.mxu0
        %v8097 = vadd.f32 %v6386, %v8096
        %8098 = vmatmul.bf16.gmra.mxu0 %v6103
        %v8099 = vpop.f32.mrf.mxu0
        %v8100 = vadd.f32 %v6386, %v8099
        %v8101 = vpop.f32.mrf.mxu0
        %v8102 = vadd.f32 %v6386, %v8101
        %8103 = vmatmul.bf16.gmra.mxu0 %v6111
        %v8104 = vpop.f32.mrf.mxu0
        %v8105 = vadd.f32 %v6386, %v8104
        %v8106 = vpop.f32.mrf.mxu0
        %v8107 = vadd.f32 %v6386, %v8106
        %8108 = vmatmul.bf16.gmra.mxu0 %v6119
        %v8109 = vpop.f32.mrf.mxu0
        %v8110 = vadd.f32 %v6386, %v8109
        %v8111 = vpop.f32.mrf.mxu0
        %v8112 = vadd.f32 %v6386, %v8111
        %8113 = vdwg.mxu0
        %8114 = vmatpush.bf16.msra.mxu0 %v7222
        %8115 = vmatpush.bf16.msra.mxu0 %v7218
        %8116 = vmatpush.bf16.msra.mxu0 %v7214
        %8117 = vmatpush.bf16.msra.mxu0 %v7210
        %8118 = vmatpush.bf16.msra.mxu0 %v7206
        %8119 = vmatpush.bf16.msra.mxu0 %v7202
        %8120 = vmatpush.bf16.msra.mxu0 %v7198
        %8121 = vmatpush.bf16.msra.mxu0 %v7194
        %8122 = vmatmul.bf16.gmra.mxu0 %v6064
        %v8123 = vpop.f32.mrf.mxu0
        %v8124 = vadd.f32 %v8075, %v8123
        %v8125 = vpop.f32.mrf.mxu0
        %v8126 = vadd.f32 %v8077, %v8125
        %8127 = vmatmul.bf16.gmra.mxu0 %v6072
        %v8128 = vpop.f32.mrf.mxu0
        %v8129 = vadd.f32 %v8080, %v8128
        %v8130 = vpop.f32.mrf.mxu0
        %v8131 = vadd.f32 %v8082, %v8130
        %8132 = vmatmul.bf16.gmra.mxu0 %v6080
        %v8133 = vpop.f32.mrf.mxu0
        %v8134 = vadd.f32 %v8085, %v8133
        %v8135 = vpop.f32.mrf.mxu0
        %v8136 = vadd.f32 %v8087, %v8135
        %8137 = vmatmul.bf16.gmra.mxu0 %v6088
        %v8138 = vpop.f32.mrf.mxu0
        %v8139 = vadd.f32 %v8090, %v8138
        %v8140 = vpop.f32.mrf.mxu0
        %v8141 = vadd.f32 %v8092, %v8140
        %8142 = vmatmul.bf16.gmra.mxu0 %v6096
        %v8143 = vpop.f32.mrf.mxu0
        %v8144 = vadd.f32 %v8095, %v8143
        %v8145 = vpop.f32.mrf.mxu0
        %v8146 = vadd.f32 %v8097, %v8145
        %8147 = vmatmul.bf16.gmra.mxu0 %v6104
        %v8148 = vpop.f32.mrf.mxu0
        %v8149 = vadd.f32 %v8100, %v8148
        %v8150 = vpop.f32.mrf.mxu0
        %v8151 = vadd.f32 %v8102, %v8150
        %8152 = vmatmul.bf16.gmra.mxu0 %v6112
        %v8153 = vpop.f32.mrf.mxu0
        %v8154 = vadd.f32 %v8105, %v8153
        %v8155 = vpop.f32.mrf.mxu0
        %v8156 = vadd.f32 %v8107, %v8155
        %8157 = vmatmul.bf16.gmra.mxu0 %v6120
        %v8158 = vpop.f32.mrf.mxu0
        %v8159 = vadd.f32 %v8110, %v8158
        %v8160 = vpop.f32.mrf.mxu0
        %v8161 = vadd.f32 %v8112, %v8160
        %8162 = vdwg.mxu0
        %8163 = vmatpush.bf16.msra.mxu0 %v7254
        %8164 = vmatpush.bf16.msra.mxu0 %v7250
        %8165 = vmatpush.bf16.msra.mxu0 %v7246
        %8166 = vmatpush.bf16.msra.mxu0 %v7242
        %8167 = vmatpush.bf16.msra.mxu0 %v7238
        %8168 = vmatpush.bf16.msra.mxu0 %v7234
        %8169 = vmatpush.bf16.msra.mxu0 %v7230
        %8170 = vmatpush.bf16.msra.mxu0 %v7226
        %8171 = vmatmul.bf16.gmra.mxu0 %v6065
        %v8172 = vpop.f32.mrf.mxu0
        %v8173 = vadd.f32 %v8124, %v8172
        %v8174 = vpop.f32.mrf.mxu0
        %v8175 = vadd.f32 %v8126, %v8174
        %8176 = vmatmul.bf16.gmra.mxu0 %v6073
        %v8177 = vpop.f32.mrf.mxu0
        %v8178 = vadd.f32 %v8129, %v8177
        %v8179 = vpop.f32.mrf.mxu0
        %v8180 = vadd.f32 %v8131, %v8179
        %8181 = vmatmul.bf16.gmra.mxu0 %v6081
        %v8182 = vpop.f32.mrf.mxu0
        %v8183 = vadd.f32 %v8134, %v8182
        %v8184 = vpop.f32.mrf.mxu0
        %v8185 = vadd.f32 %v8136, %v8184
        %8186 = vmatmul.bf16.gmra.mxu0 %v6089
        %v8187 = vpop.f32.mrf.mxu0
        %v8188 = vadd.f32 %v8139, %v8187
        %v8189 = vpop.f32.mrf.mxu0
        %v8190 = vadd.f32 %v8141, %v8189
        %8191 = vmatmul.bf16.gmra.mxu0 %v6097
        %v8192 = vpop.f32.mrf.mxu0
        %v8193 = vadd.f32 %v8144, %v8192
        %v8194 = vpop.f32.mrf.mxu0
        %v8195 = vadd.f32 %v8146, %v8194
        %8196 = vmatmul.bf16.gmra.mxu0 %v6105
        %v8197 = vpop.f32.mrf.mxu0
        %v8198 = vadd.f32 %v8149, %v8197
        %v8199 = vpop.f32.mrf.mxu0
        %v8200 = vadd.f32 %v8151, %v8199
        %8201 = vmatmul.bf16.gmra.mxu0 %v6113
        %v8202 = vpop.f32.mrf.mxu0
        %v8203 = vadd.f32 %v8154, %v8202
        %v8204 = vpop.f32.mrf.mxu0
        %v8205 = vadd.f32 %v8156, %v8204
        %8206 = vmatmul.bf16.gmra.mxu0 %v6121
        %v8207 = vpop.f32.mrf.mxu0
        %v8208 = vadd.f32 %v8159, %v8207
        %v8209 = vpop.f32.mrf.mxu0
        %v8210 = vadd.f32 %v8161, %v8209
        %8211 = vdwg.mxu0
        %8212 = vmatpush.bf16.msra.mxu0 %v7286
        %8213 = vmatpush.bf16.msra.mxu0 %v7282
        %8214 = vmatpush.bf16.msra.mxu0 %v7278
        %8215 = vmatpush.bf16.msra.mxu0 %v7274
        %8216 = vmatpush.bf16.msra.mxu0 %v7270
        %8217 = vmatpush.bf16.msra.mxu0 %v7266
        %8218 = vmatpush.bf16.msra.mxu0 %v7262
        %8219 = vmatpush.bf16.msra.mxu0 %v7258
        %8220 = vmatmul.bf16.gmra.mxu0 %v6066
        %v8221 = vpop.f32.mrf.mxu0
        %v8222 = vadd.f32 %v8173, %v8221
        %v8223 = vpop.f32.mrf.mxu0
        %v8224 = vadd.f32 %v8175, %v8223
        %8225 = vmatmul.bf16.gmra.mxu0 %v6074
        %v8226 = vpop.f32.mrf.mxu0
        %v8227 = vadd.f32 %v8178, %v8226
        %v8228 = vpop.f32.mrf.mxu0
        %v8229 = vadd.f32 %v8180, %v8228
        %8230 = vmatmul.bf16.gmra.mxu0 %v6082
        %v8231 = vpop.f32.mrf.mxu0
        %v8232 = vadd.f32 %v8183, %v8231
        %v8233 = vpop.f32.mrf.mxu0
        %v8234 = vadd.f32 %v8185, %v8233
        %8235 = vmatmul.bf16.gmra.mxu0 %v6090
        %v8236 = vpop.f32.mrf.mxu0
        %v8237 = vadd.f32 %v8188, %v8236
        %v8238 = vpop.f32.mrf.mxu0
        %v8239 = vadd.f32 %v8190, %v8238
        %8240 = vmatmul.bf16.gmra.mxu0 %v6098
        %v8241 = vpop.f32.mrf.mxu0
        %v8242 = vadd.f32 %v8193, %v8241
        %v8243 = vpop.f32.mrf.mxu0
        %v8244 = vadd.f32 %v8195, %v8243
        %8245 = vmatmul.bf16.gmra.mxu0 %v6106
        %v8246 = vpop.f32.mrf.mxu0
        %v8247 = vadd.f32 %v8198, %v8246
        %v8248 = vpop.f32.mrf.mxu0
        %v8249 = vadd.f32 %v8200, %v8248
        %8250 = vmatmul.bf16.gmra.mxu0 %v6114
        %v8251 = vpop.f32.mrf.mxu0
        %v8252 = vadd.f32 %v8203, %v8251
        %v8253 = vpop.f32.mrf.mxu0
        %v8254 = vadd.f32 %v8205, %v8253
        %8255 = vmatmul.bf16.gmra.mxu0 %v6122
        %v8256 = vpop.f32.mrf.mxu0
        %v8257 = vadd.f32 %v8208, %v8256
        %v8258 = vpop.f32.mrf.mxu0
        %v8259 = vadd.f32 %v8210, %v8258
        %8260 = vdwg.mxu0
        %8261 = vmatpush.bf16.msra.mxu0 %v7318
        %8262 = vmatpush.bf16.msra.mxu0 %v7314
        %8263 = vmatpush.bf16.msra.mxu0 %v7310
        %8264 = vmatpush.bf16.msra.mxu0 %v7306
        %8265 = vmatpush.bf16.msra.mxu0 %v7302
        %8266 = vmatpush.bf16.msra.mxu0 %v7298
        %8267 = vmatpush.bf16.msra.mxu0 %v7294
        %8268 = vmatpush.bf16.msra.mxu0 %v7290
        %8269 = vmatmul.bf16.gmra.mxu0 %v6067
        %v8270 = vpop.f32.mrf.mxu0
        %v8271 = vadd.f32 %v8222, %v8270
        %v8272 = vpop.f32.mrf.mxu0
        %v8273 = vadd.f32 %v8224, %v8272
        %8274 = vmatmul.bf16.gmra.mxu0 %v6075
        %v8275 = vpop.f32.mrf.mxu0
        %v8276 = vadd.f32 %v8227, %v8275
        %v8277 = vpop.f32.mrf.mxu0
        %v8278 = vadd.f32 %v8229, %v8277
        %8279 = vmatmul.bf16.gmra.mxu0 %v6083
        %v8280 = vpop.f32.mrf.mxu0
        %v8281 = vadd.f32 %v8232, %v8280
        %v8282 = vpop.f32.mrf.mxu0
        %v8283 = vadd.f32 %v8234, %v8282
        %8284 = vmatmul.bf16.gmra.mxu0 %v6091
        %v8285 = vpop.f32.mrf.mxu0
        %v8286 = vadd.f32 %v8237, %v8285
        %v8287 = vpop.f32.mrf.mxu0
        %v8288 = vadd.f32 %v8239, %v8287
        %8289 = vmatmul.bf16.gmra.mxu0 %v6099
        %v8290 = vpop.f32.mrf.mxu0
        %v8291 = vadd.f32 %v8242, %v8290
        %v8292 = vpop.f32.mrf.mxu0
        %v8293 = vadd.f32 %v8244, %v8292
        %8294 = vmatmul.bf16.gmra.mxu0 %v6107
        %v8295 = vpop.f32.mrf.mxu0
        %v8296 = vadd.f32 %v8247, %v8295
        %v8297 = vpop.f32.mrf.mxu0
        %v8298 = vadd.f32 %v8249, %v8297
        %8299 = vmatmul.bf16.gmra.mxu0 %v6115
        %v8300 = vpop.f32.mrf.mxu0
        %v8301 = vadd.f32 %v8252, %v8300
        %v8302 = vpop.f32.mrf.mxu0
        %v8303 = vadd.f32 %v8254, %v8302
        %8304 = vmatmul.bf16.gmra.mxu0 %v6123
        %v8305 = vpop.f32.mrf.mxu0
        %v8306 = vadd.f32 %v8257, %v8305
        %v8307 = vpop.f32.mrf.mxu0
        %v8308 = vadd.f32 %v8259, %v8307
        %8309 = vdwg.mxu0
        %8310 = vmatpush.bf16.msra.mxu0 %v7350
        %8311 = vmatpush.bf16.msra.mxu0 %v7346
        %8312 = vmatpush.bf16.msra.mxu0 %v7342
        %8313 = vmatpush.bf16.msra.mxu0 %v7338
        %8314 = vmatpush.bf16.msra.mxu0 %v7334
        %8315 = vmatpush.bf16.msra.mxu0 %v7330
        %8316 = vmatpush.bf16.msra.mxu0 %v7326
        %8317 = vmatpush.bf16.msra.mxu0 %v7322
        %8318 = vmatmul.bf16.gmra.mxu0 %v6068
        %v8319 = vpop.f32.mrf.mxu0
        %v8320 = vadd.f32 %v8271, %v8319
        %v8321 = vpop.f32.mrf.mxu0
        %v8322 = vadd.f32 %v8273, %v8321
        %8323 = vmatmul.bf16.gmra.mxu0 %v6076
        %v8324 = vpop.f32.mrf.mxu0
        %v8325 = vadd.f32 %v8276, %v8324
        %v8326 = vpop.f32.mrf.mxu0
        %v8327 = vadd.f32 %v8278, %v8326
        %8328 = vmatmul.bf16.gmra.mxu0 %v6084
        %v8329 = vpop.f32.mrf.mxu0
        %v8330 = vadd.f32 %v8281, %v8329
        %v8331 = vpop.f32.mrf.mxu0
        %v8332 = vadd.f32 %v8283, %v8331
        %8333 = vmatmul.bf16.gmra.mxu0 %v6092
        %v8334 = vpop.f32.mrf.mxu0
        %v8335 = vadd.f32 %v8286, %v8334
        %v8336 = vpop.f32.mrf.mxu0
        %v8337 = vadd.f32 %v8288, %v8336
        %8338 = vmatmul.bf16.gmra.mxu0 %v6100
        %v8339 = vpop.f32.mrf.mxu0
        %v8340 = vadd.f32 %v8291, %v8339
        %v8341 = vpop.f32.mrf.mxu0
        %v8342 = vadd.f32 %v8293, %v8341
        %8343 = vmatmul.bf16.gmra.mxu0 %v6108
        %v8344 = vpop.f32.mrf.mxu0
        %v8345 = vadd.f32 %v8296, %v8344
        %v8346 = vpop.f32.mrf.mxu0
        %v8347 = vadd.f32 %v8298, %v8346
        %8348 = vmatmul.bf16.gmra.mxu0 %v6116
        %v8349 = vpop.f32.mrf.mxu0
        %v8350 = vadd.f32 %v8301, %v8349
        %v8351 = vpop.f32.mrf.mxu0
        %v8352 = vadd.f32 %v8303, %v8351
        %8353 = vmatmul.bf16.gmra.mxu0 %v6124
        %v8354 = vpop.f32.mrf.mxu0
        %v8355 = vadd.f32 %v8306, %v8354
        %v8356 = vpop.f32.mrf.mxu0
        %v8357 = vadd.f32 %v8308, %v8356
        %8358 = vdwg.mxu0
        %8359 = vmatpush.bf16.msra.mxu0 %v7382
        %8360 = vmatpush.bf16.msra.mxu0 %v7378
        %8361 = vmatpush.bf16.msra.mxu0 %v7374
        %8362 = vmatpush.bf16.msra.mxu0 %v7370
        %8363 = vmatpush.bf16.msra.mxu0 %v7366
        %8364 = vmatpush.bf16.msra.mxu0 %v7362
        %8365 = vmatpush.bf16.msra.mxu0 %v7358
        %8366 = vmatpush.bf16.msra.mxu0 %v7354
        %8367 = vmatmul.bf16.gmra.mxu0 %v6069
        %v8368 = vpop.f32.mrf.mxu0
        %v8369 = vadd.f32 %v8320, %v8368
        %v8370 = vpop.f32.mrf.mxu0
        %v8371 = vadd.f32 %v8322, %v8370
        %8372 = vmatmul.bf16.gmra.mxu0 %v6077
        %v8373 = vpop.f32.mrf.mxu0
        %v8374 = vadd.f32 %v8325, %v8373
        %v8375 = vpop.f32.mrf.mxu0
        %v8376 = vadd.f32 %v8327, %v8375
        %8377 = vmatmul.bf16.gmra.mxu0 %v6085
        %v8378 = vpop.f32.mrf.mxu0
        %v8379 = vadd.f32 %v8330, %v8378
        %v8380 = vpop.f32.mrf.mxu0
        %v8381 = vadd.f32 %v8332, %v8380
        %8382 = vmatmul.bf16.gmra.mxu0 %v6093
        %v8383 = vpop.f32.mrf.mxu0
        %v8384 = vadd.f32 %v8335, %v8383
        %v8385 = vpop.f32.mrf.mxu0
        %v8386 = vadd.f32 %v8337, %v8385
        %8387 = vmatmul.bf16.gmra.mxu0 %v6101
        %v8388 = vpop.f32.mrf.mxu0
        %v8389 = vadd.f32 %v8340, %v8388
        %v8390 = vpop.f32.mrf.mxu0
        %v8391 = vadd.f32 %v8342, %v8390
        %8392 = vmatmul.bf16.gmra.mxu0 %v6109
        %v8393 = vpop.f32.mrf.mxu0
        %v8394 = vadd.f32 %v8345, %v8393
        %v8395 = vpop.f32.mrf.mxu0
        %v8396 = vadd.f32 %v8347, %v8395
        %8397 = vmatmul.bf16.gmra.mxu0 %v6117
        %v8398 = vpop.f32.mrf.mxu0
        %v8399 = vadd.f32 %v8350, %v8398
        %v8400 = vpop.f32.mrf.mxu0
        %v8401 = vadd.f32 %v8352, %v8400
        %8402 = vmatmul.bf16.gmra.mxu0 %v6125
        %v8403 = vpop.f32.mrf.mxu0
        %v8404 = vadd.f32 %v8355, %v8403
        %v8405 = vpop.f32.mrf.mxu0
        %v8406 = vadd.f32 %v8357, %v8405
        %8407 = vdwg.mxu0
        %8408 = vmatpush.bf16.msra.mxu0 %v7414
        %8409 = vmatpush.bf16.msra.mxu0 %v7410
        %8410 = vmatpush.bf16.msra.mxu0 %v7406
        %8411 = vmatpush.bf16.msra.mxu0 %v7402
        %8412 = vmatpush.bf16.msra.mxu0 %v7398
        %8413 = vmatpush.bf16.msra.mxu0 %v7394
        %8414 = vmatpush.bf16.msra.mxu0 %v7390
        %8415 = vmatpush.bf16.msra.mxu0 %v7386
        %8416 = vmatmul.bf16.gmra.mxu0 %v6070
        %v8417 = vpop.f32.mrf.mxu0
        %v8418 = vadd.f32 %v8369, %v8417
        %v8419 = vpop.f32.mrf.mxu0
        %v8420 = vadd.f32 %v8371, %v8419
        %8421 = vmatmul.bf16.gmra.mxu0 %v6078
        %v8422 = vpop.f32.mrf.mxu0
        %v8423 = vadd.f32 %v8374, %v8422
        %v8424 = vpop.f32.mrf.mxu0
        %v8425 = vadd.f32 %v8376, %v8424
        %8426 = vmatmul.bf16.gmra.mxu0 %v6086
        %v8427 = vpop.f32.mrf.mxu0
        %v8428 = vadd.f32 %v8379, %v8427
        %v8429 = vpop.f32.mrf.mxu0
        %v8430 = vadd.f32 %v8381, %v8429
        %8431 = vmatmul.bf16.gmra.mxu0 %v6094
        %v8432 = vpop.f32.mrf.mxu0
        %v8433 = vadd.f32 %v8384, %v8432
        %v8434 = vpop.f32.mrf.mxu0
        %v8435 = vadd.f32 %v8386, %v8434
        %8436 = vmatmul.bf16.gmra.mxu0 %v6102
        %v8437 = vpop.f32.mrf.mxu0
        %v8438 = vadd.f32 %v8389, %v8437
        %v8439 = vpop.f32.mrf.mxu0
        %v8440 = vadd.f32 %v8391, %v8439
        %8441 = vmatmul.bf16.gmra.mxu0 %v6110
        %v8442 = vpop.f32.mrf.mxu0
        %v8443 = vadd.f32 %v8394, %v8442
        %v8444 = vpop.f32.mrf.mxu0
        %v8445 = vadd.f32 %v8396, %v8444
        %8446 = vmatmul.bf16.gmra.mxu0 %v6118
        %v8447 = vpop.f32.mrf.mxu0
        %v8448 = vadd.f32 %v8399, %v8447
        %v8449 = vpop.f32.mrf.mxu0
        %v8450 = vadd.f32 %v8401, %v8449
        %8451 = vmatmul.bf16.gmra.mxu0 %v6126
        %v8452 = vpop.f32.mrf.mxu0
        %v8453 = vadd.f32 %v8404, %v8452
        %v8454 = vpop.f32.mrf.mxu0
        %v8455 = vadd.f32 %v8406, %v8454
        %8456 = vdwg.mxu0
        %8457 = vmatpush.bf16.msra.mxu0 %v7191
        %8458 = vmatpush.bf16.msra.mxu0 %v7187
        %8459 = vmatpush.bf16.msra.mxu0 %v7183
        %8460 = vmatpush.bf16.msra.mxu0 %v7179
        %8461 = vmatpush.bf16.msra.mxu0 %v7175
        %8462 = vmatpush.bf16.msra.mxu0 %v7171
        %8463 = vmatpush.bf16.msra.mxu0 %v7167
        %8464 = vmatpush.bf16.msra.mxu0 %v7163
        %8465 = vmatmul.bf16.gmra.mxu0 %v6063
        %v8466 = vpop.f32.mrf.mxu0
        %v8467 = vadd.f32 %v6387, %v8466
        %v8468 = vpop.f32.mrf.mxu0
        %v8469 = vadd.f32 %v6387, %v8468
        %8470 = vmatmul.bf16.gmra.mxu0 %v6071
        %v8471 = vpop.f32.mrf.mxu0
        %v8472 = vadd.f32 %v6387, %v8471
        %v8473 = vpop.f32.mrf.mxu0
        %v8474 = vadd.f32 %v6387, %v8473
        %8475 = vmatmul.bf16.gmra.mxu0 %v6079
        %v8476 = vpop.f32.mrf.mxu0
        %v8477 = vadd.f32 %v6387, %v8476
        %v8478 = vpop.f32.mrf.mxu0
        %v8479 = vadd.f32 %v6387, %v8478
        %8480 = vmatmul.bf16.gmra.mxu0 %v6087
        %v8481 = vpop.f32.mrf.mxu0
        %v8482 = vadd.f32 %v6387, %v8481
        %v8483 = vpop.f32.mrf.mxu0
        %v8484 = vadd.f32 %v6387, %v8483
        %8485 = vmatmul.bf16.gmra.mxu0 %v6095
        %v8486 = vpop.f32.mrf.mxu0
        %v8487 = vadd.f32 %v6387, %v8486
        %v8488 = vpop.f32.mrf.mxu0
        %v8489 = vadd.f32 %v6387, %v8488
        %8490 = vmatmul.bf16.gmra.mxu0 %v6103
        %v8491 = vpop.f32.mrf.mxu0
        %v8492 = vadd.f32 %v6387, %v8491
        %v8493 = vpop.f32.mrf.mxu0
        %v8494 = vadd.f32 %v6387, %v8493
        %8495 = vmatmul.bf16.gmra.mxu0 %v6111
        %v8496 = vpop.f32.mrf.mxu0
        %v8497 = vadd.f32 %v6387, %v8496
        %v8498 = vpop.f32.mrf.mxu0
        %v8499 = vadd.f32 %v6387, %v8498
        %8500 = vmatmul.bf16.gmra.mxu0 %v6119
        %v8501 = vpop.f32.mrf.mxu0
        %v8502 = vadd.f32 %v6387, %v8501
        %v8503 = vpop.f32.mrf.mxu0
        %v8504 = vadd.f32 %v6387, %v8503
        %8505 = vdwg.mxu0
        %8506 = vmatpush.bf16.msra.mxu0 %v7223
        %8507 = vmatpush.bf16.msra.mxu0 %v7219
        %8508 = vmatpush.bf16.msra.mxu0 %v7215
        %8509 = vmatpush.bf16.msra.mxu0 %v7211
        %8510 = vmatpush.bf16.msra.mxu0 %v7207
        %8511 = vmatpush.bf16.msra.mxu0 %v7203
        %8512 = vmatpush.bf16.msra.mxu0 %v7199
        %8513 = vmatpush.bf16.msra.mxu0 %v7195
        %8514 = vmatmul.bf16.gmra.mxu0 %v6064
        %v8515 = vpop.f32.mrf.mxu0
        %v8516 = vadd.f32 %v8467, %v8515
        %v8517 = vpop.f32.mrf.mxu0
        %v8518 = vadd.f32 %v8469, %v8517
        %8519 = vmatmul.bf16.gmra.mxu0 %v6072
        %v8520 = vpop.f32.mrf.mxu0
        %v8521 = vadd.f32 %v8472, %v8520
        %v8522 = vpop.f32.mrf.mxu0
        %v8523 = vadd.f32 %v8474, %v8522
        %8524 = vmatmul.bf16.gmra.mxu0 %v6080
        %v8525 = vpop.f32.mrf.mxu0
        %v8526 = vadd.f32 %v8477, %v8525
        %v8527 = vpop.f32.mrf.mxu0
        %v8528 = vadd.f32 %v8479, %v8527
        %8529 = vmatmul.bf16.gmra.mxu0 %v6088
        %v8530 = vpop.f32.mrf.mxu0
        %v8531 = vadd.f32 %v8482, %v8530
        %v8532 = vpop.f32.mrf.mxu0
        %v8533 = vadd.f32 %v8484, %v8532
        %8534 = vmatmul.bf16.gmra.mxu0 %v6096
        %v8535 = vpop.f32.mrf.mxu0
        %v8536 = vadd.f32 %v8487, %v8535
        %v8537 = vpop.f32.mrf.mxu0
        %v8538 = vadd.f32 %v8489, %v8537
        %8539 = vmatmul.bf16.gmra.mxu0 %v6104
        %v8540 = vpop.f32.mrf.mxu0
        %v8541 = vadd.f32 %v8492, %v8540
        %v8542 = vpop.f32.mrf.mxu0
        %v8543 = vadd.f32 %v8494, %v8542
        %8544 = vmatmul.bf16.gmra.mxu0 %v6112
        %v8545 = vpop.f32.mrf.mxu0
        %v8546 = vadd.f32 %v8497, %v8545
        %v8547 = vpop.f32.mrf.mxu0
        %v8548 = vadd.f32 %v8499, %v8547
        %8549 = vmatmul.bf16.gmra.mxu0 %v6120
        %v8550 = vpop.f32.mrf.mxu0
        %v8551 = vadd.f32 %v8502, %v8550
        %v8552 = vpop.f32.mrf.mxu0
        %v8553 = vadd.f32 %v8504, %v8552
        %8554 = vdwg.mxu0
        %8555 = vmatpush.bf16.msra.mxu0 %v7255
        %8556 = vmatpush.bf16.msra.mxu0 %v7251
        %8557 = vmatpush.bf16.msra.mxu0 %v7247
        %8558 = vmatpush.bf16.msra.mxu0 %v7243
        %8559 = vmatpush.bf16.msra.mxu0 %v7239
        %8560 = vmatpush.bf16.msra.mxu0 %v7235
        %8561 = vmatpush.bf16.msra.mxu0 %v7231
        %8562 = vmatpush.bf16.msra.mxu0 %v7227
        %8563 = vmatmul.bf16.gmra.mxu0 %v6065
        %v8564 = vpop.f32.mrf.mxu0
        %v8565 = vadd.f32 %v8516, %v8564
        %v8566 = vpop.f32.mrf.mxu0
        %v8567 = vadd.f32 %v8518, %v8566
        %8568 = vmatmul.bf16.gmra.mxu0 %v6073
        %v8569 = vpop.f32.mrf.mxu0
        %v8570 = vadd.f32 %v8521, %v8569
        %v8571 = vpop.f32.mrf.mxu0
        %v8572 = vadd.f32 %v8523, %v8571
        %8573 = vmatmul.bf16.gmra.mxu0 %v6081
        %v8574 = vpop.f32.mrf.mxu0
        %v8575 = vadd.f32 %v8526, %v8574
        %v8576 = vpop.f32.mrf.mxu0
        %v8577 = vadd.f32 %v8528, %v8576
        %8578 = vmatmul.bf16.gmra.mxu0 %v6089
        %v8579 = vpop.f32.mrf.mxu0
        %v8580 = vadd.f32 %v8531, %v8579
        %v8581 = vpop.f32.mrf.mxu0
        %v8582 = vadd.f32 %v8533, %v8581
        %8583 = vmatmul.bf16.gmra.mxu0 %v6097
        %v8584 = vpop.f32.mrf.mxu0
        %v8585 = vadd.f32 %v8536, %v8584
        %v8586 = vpop.f32.mrf.mxu0
        %v8587 = vadd.f32 %v8538, %v8586
        %8588 = vmatmul.bf16.gmra.mxu0 %v6105
        %v8589 = vpop.f32.mrf.mxu0
        %v8590 = vadd.f32 %v8541, %v8589
        %v8591 = vpop.f32.mrf.mxu0
        %v8592 = vadd.f32 %v8543, %v8591
        %8593 = vmatmul.bf16.gmra.mxu0 %v6113
        %v8594 = vpop.f32.mrf.mxu0
        %v8595 = vadd.f32 %v8546, %v8594
        %v8596 = vpop.f32.mrf.mxu0
        %v8597 = vadd.f32 %v8548, %v8596
        %8598 = vmatmul.bf16.gmra.mxu0 %v6121
        %v8599 = vpop.f32.mrf.mxu0
        %v8600 = vadd.f32 %v8551, %v8599
        %v8601 = vpop.f32.mrf.mxu0
        %v8602 = vadd.f32 %v8553, %v8601
        %8603 = vdwg.mxu0
        %8604 = vmatpush.bf16.msra.mxu0 %v7287
        %8605 = vmatpush.bf16.msra.mxu0 %v7283
        %8606 = vmatpush.bf16.msra.mxu0 %v7279
        %8607 = vmatpush.bf16.msra.mxu0 %v7275
        %8608 = vmatpush.bf16.msra.mxu0 %v7271
        %8609 = vmatpush.bf16.msra.mxu0 %v7267
        %8610 = vmatpush.bf16.msra.mxu0 %v7263
        %8611 = vmatpush.bf16.msra.mxu0 %v7259
        %8612 = vmatmul.bf16.gmra.mxu0 %v6066
        %v8613 = vpop.f32.mrf.mxu0
        %v8614 = vadd.f32 %v8565, %v8613
        %v8615 = vpop.f32.mrf.mxu0
        %v8616 = vadd.f32 %v8567, %v8615
        %8617 = vmatmul.bf16.gmra.mxu0 %v6074
        %v8618 = vpop.f32.mrf.mxu0
        %v8619 = vadd.f32 %v8570, %v8618
        %v8620 = vpop.f32.mrf.mxu0
        %v8621 = vadd.f32 %v8572, %v8620
        %8622 = vmatmul.bf16.gmra.mxu0 %v6082
        %v8623 = vpop.f32.mrf.mxu0
        %v8624 = vadd.f32 %v8575, %v8623
        %v8625 = vpop.f32.mrf.mxu0
        %v8626 = vadd.f32 %v8577, %v8625
        %8627 = vmatmul.bf16.gmra.mxu0 %v6090
        %v8628 = vpop.f32.mrf.mxu0
        %v8629 = vadd.f32 %v8580, %v8628
        %v8630 = vpop.f32.mrf.mxu0
        %v8631 = vadd.f32 %v8582, %v8630
        %8632 = vmatmul.bf16.gmra.mxu0 %v6098
        %v8633 = vpop.f32.mrf.mxu0
        %v8634 = vadd.f32 %v8585, %v8633
        %v8635 = vpop.f32.mrf.mxu0
        %v8636 = vadd.f32 %v8587, %v8635
        %8637 = vmatmul.bf16.gmra.mxu0 %v6106
        %v8638 = vpop.f32.mrf.mxu0
        %v8639 = vadd.f32 %v8590, %v8638
        %v8640 = vpop.f32.mrf.mxu0
        %v8641 = vadd.f32 %v8592, %v8640
        %8642 = vmatmul.bf16.gmra.mxu0 %v6114
        %v8643 = vpop.f32.mrf.mxu0
        %v8644 = vadd.f32 %v8595, %v8643
        %v8645 = vpop.f32.mrf.mxu0
        %v8646 = vadd.f32 %v8597, %v8645
        %8647 = vmatmul.bf16.gmra.mxu0 %v6122
        %v8648 = vpop.f32.mrf.mxu0
        %v8649 = vadd.f32 %v8600, %v8648
        %v8650 = vpop.f32.mrf.mxu0
        %v8651 = vadd.f32 %v8602, %v8650
        %8652 = vdwg.mxu0
        %8653 = vmatpush.bf16.msra.mxu0 %v7319
        %8654 = vmatpush.bf16.msra.mxu0 %v7315
        %8655 = vmatpush.bf16.msra.mxu0 %v7311
        %8656 = vmatpush.bf16.msra.mxu0 %v7307
        %8657 = vmatpush.bf16.msra.mxu0 %v7303
        %8658 = vmatpush.bf16.msra.mxu0 %v7299
        %8659 = vmatpush.bf16.msra.mxu0 %v7295
        %8660 = vmatpush.bf16.msra.mxu0 %v7291
        %8661 = vmatmul.bf16.gmra.mxu0 %v6067
        %v8662 = vpop.f32.mrf.mxu0
        %v8663 = vadd.f32 %v8614, %v8662
        %v8664 = vpop.f32.mrf.mxu0
        %v8665 = vadd.f32 %v8616, %v8664
        %8666 = vmatmul.bf16.gmra.mxu0 %v6075
        %v8667 = vpop.f32.mrf.mxu0
        %v8668 = vadd.f32 %v8619, %v8667
        %v8669 = vpop.f32.mrf.mxu0
        %v8670 = vadd.f32 %v8621, %v8669
        %8671 = vmatmul.bf16.gmra.mxu0 %v6083
        %v8672 = vpop.f32.mrf.mxu0
        %v8673 = vadd.f32 %v8624, %v8672
        %v8674 = vpop.f32.mrf.mxu0
        %v8675 = vadd.f32 %v8626, %v8674
        %8676 = vmatmul.bf16.gmra.mxu0 %v6091
        %v8677 = vpop.f32.mrf.mxu0
        %v8678 = vadd.f32 %v8629, %v8677
        %v8679 = vpop.f32.mrf.mxu0
        %v8680 = vadd.f32 %v8631, %v8679
        %8681 = vmatmul.bf16.gmra.mxu0 %v6099
        %v8682 = vpop.f32.mrf.mxu0
        %v8683 = vadd.f32 %v8634, %v8682
        %v8684 = vpop.f32.mrf.mxu0
        %v8685 = vadd.f32 %v8636, %v8684
        %8686 = vmatmul.bf16.gmra.mxu0 %v6107
        %v8687 = vpop.f32.mrf.mxu0
        %v8688 = vadd.f32 %v8639, %v8687
        %v8689 = vpop.f32.mrf.mxu0
        %v8690 = vadd.f32 %v8641, %v8689
        %8691 = vmatmul.bf16.gmra.mxu0 %v6115
        %v8692 = vpop.f32.mrf.mxu0
        %v8693 = vadd.f32 %v8644, %v8692
        %v8694 = vpop.f32.mrf.mxu0
        %v8695 = vadd.f32 %v8646, %v8694
        %8696 = vmatmul.bf16.gmra.mxu0 %v6123
        %v8697 = vpop.f32.mrf.mxu0
        %v8698 = vadd.f32 %v8649, %v8697
        %v8699 = vpop.f32.mrf.mxu0
        %v8700 = vadd.f32 %v8651, %v8699
        %8701 = vdwg.mxu0
        %8702 = vmatpush.bf16.msra.mxu0 %v7351
        %8703 = vmatpush.bf16.msra.mxu0 %v7347
        %8704 = vmatpush.bf16.msra.mxu0 %v7343
        %8705 = vmatpush.bf16.msra.mxu0 %v7339
        %8706 = vmatpush.bf16.msra.mxu0 %v7335
        %8707 = vmatpush.bf16.msra.mxu0 %v7331
        %8708 = vmatpush.bf16.msra.mxu0 %v7327
        %8709 = vmatpush.bf16.msra.mxu0 %v7323
        %8710 = vmatmul.bf16.gmra.mxu0 %v6068
        %v8711 = vpop.f32.mrf.mxu0
        %v8712 = vadd.f32 %v8663, %v8711
        %v8713 = vpop.f32.mrf.mxu0
        %v8714 = vadd.f32 %v8665, %v8713
        %8715 = vmatmul.bf16.gmra.mxu0 %v6076
        %v8716 = vpop.f32.mrf.mxu0
        %v8717 = vadd.f32 %v8668, %v8716
        %v8718 = vpop.f32.mrf.mxu0
        %v8719 = vadd.f32 %v8670, %v8718
        %8720 = vmatmul.bf16.gmra.mxu0 %v6084
        %v8721 = vpop.f32.mrf.mxu0
        %v8722 = vadd.f32 %v8673, %v8721
        %v8723 = vpop.f32.mrf.mxu0
        %v8724 = vadd.f32 %v8675, %v8723
        %8725 = vmatmul.bf16.gmra.mxu0 %v6092
        %v8726 = vpop.f32.mrf.mxu0
        %v8727 = vadd.f32 %v8678, %v8726
        %v8728 = vpop.f32.mrf.mxu0
        %v8729 = vadd.f32 %v8680, %v8728
        %8730 = vmatmul.bf16.gmra.mxu0 %v6100
        %v8731 = vpop.f32.mrf.mxu0
        %v8732 = vadd.f32 %v8683, %v8731
        %v8733 = vpop.f32.mrf.mxu0
        %v8734 = vadd.f32 %v8685, %v8733
        %8735 = vmatmul.bf16.gmra.mxu0 %v6108
        %v8736 = vpop.f32.mrf.mxu0
        %v8737 = vadd.f32 %v8688, %v8736
        %v8738 = vpop.f32.mrf.mxu0
        %v8739 = vadd.f32 %v8690, %v8738
        %8740 = vmatmul.bf16.gmra.mxu0 %v6116
        %v8741 = vpop.f32.mrf.mxu0
        %v8742 = vadd.f32 %v8693, %v8741
        %v8743 = vpop.f32.mrf.mxu0
        %v8744 = vadd.f32 %v8695, %v8743
        %8745 = vmatmul.bf16.gmra.mxu0 %v6124
        %v8746 = vpop.f32.mrf.mxu0
        %v8747 = vadd.f32 %v8698, %v8746
        %v8748 = vpop.f32.mrf.mxu0
        %v8749 = vadd.f32 %v8700, %v8748
        %8750 = vdwg.mxu0
        %8751 = vmatpush.bf16.msra.mxu0 %v7383
        %8752 = vmatpush.bf16.msra.mxu0 %v7379
        %8753 = vmatpush.bf16.msra.mxu0 %v7375
        %8754 = vmatpush.bf16.msra.mxu0 %v7371
        %8755 = vmatpush.bf16.msra.mxu0 %v7367
        %8756 = vmatpush.bf16.msra.mxu0 %v7363
        %8757 = vmatpush.bf16.msra.mxu0 %v7359
        %8758 = vmatpush.bf16.msra.mxu0 %v7355
        %8759 = vmatmul.bf16.gmra.mxu0 %v6069
        %v8760 = vpop.f32.mrf.mxu0
        %v8761 = vadd.f32 %v8712, %v8760
        %v8762 = vpop.f32.mrf.mxu0
        %v8763 = vadd.f32 %v8714, %v8762
        %8764 = vmatmul.bf16.gmra.mxu0 %v6077
        %v8765 = vpop.f32.mrf.mxu0
        %v8766 = vadd.f32 %v8717, %v8765
        %v8767 = vpop.f32.mrf.mxu0
        %v8768 = vadd.f32 %v8719, %v8767
        %8769 = vmatmul.bf16.gmra.mxu0 %v6085
        %v8770 = vpop.f32.mrf.mxu0
        %v8771 = vadd.f32 %v8722, %v8770
        %v8772 = vpop.f32.mrf.mxu0
        %v8773 = vadd.f32 %v8724, %v8772
        %8774 = vmatmul.bf16.gmra.mxu0 %v6093
        %v8775 = vpop.f32.mrf.mxu0
        %v8776 = vadd.f32 %v8727, %v8775
        %v8777 = vpop.f32.mrf.mxu0
        %v8778 = vadd.f32 %v8729, %v8777
        %8779 = vmatmul.bf16.gmra.mxu0 %v6101
        %v8780 = vpop.f32.mrf.mxu0
        %v8781 = vadd.f32 %v8732, %v8780
        %v8782 = vpop.f32.mrf.mxu0
        %v8783 = vadd.f32 %v8734, %v8782
        %8784 = vmatmul.bf16.gmra.mxu0 %v6109
        %v8785 = vpop.f32.mrf.mxu0
        %v8786 = vadd.f32 %v8737, %v8785
        %v8787 = vpop.f32.mrf.mxu0
        %v8788 = vadd.f32 %v8739, %v8787
        %8789 = vmatmul.bf16.gmra.mxu0 %v6117
        %v8790 = vpop.f32.mrf.mxu0
        %v8791 = vadd.f32 %v8742, %v8790
        %v8792 = vpop.f32.mrf.mxu0
        %v8793 = vadd.f32 %v8744, %v8792
        %8794 = vmatmul.bf16.gmra.mxu0 %v6125
        %v8795 = vpop.f32.mrf.mxu0
        %v8796 = vadd.f32 %v8747, %v8795
        %v8797 = vpop.f32.mrf.mxu0
        %v8798 = vadd.f32 %v8749, %v8797
        %8799 = vdwg.mxu0
        %8800 = vmatpush.bf16.msra.mxu0 %v7415
        %8801 = vmatpush.bf16.msra.mxu0 %v7411
        %8802 = vmatpush.bf16.msra.mxu0 %v7407
        %8803 = vmatpush.bf16.msra.mxu0 %v7403
        %8804 = vmatpush.bf16.msra.mxu0 %v7399
        %8805 = vmatpush.bf16.msra.mxu0 %v7395
        %8806 = vmatpush.bf16.msra.mxu0 %v7391
        %8807 = vmatpush.bf16.msra.mxu0 %v7387
        %8808 = vmatmul.bf16.gmra.mxu0 %v6070
        %v8809 = vpop.f32.mrf.mxu0
        %v8810 = vadd.f32 %v8761, %v8809
        %v8811 = vpop.f32.mrf.mxu0
        %v8812 = vadd.f32 %v8763, %v8811
        %8813 = vmatmul.bf16.gmra.mxu0 %v6078
        %v8814 = vpop.f32.mrf.mxu0
        %v8815 = vadd.f32 %v8766, %v8814
        %v8816 = vpop.f32.mrf.mxu0
        %v8817 = vadd.f32 %v8768, %v8816
        %8818 = vmatmul.bf16.gmra.mxu0 %v6086
        %v8819 = vpop.f32.mrf.mxu0
        %v8820 = vadd.f32 %v8771, %v8819
        %v8821 = vpop.f32.mrf.mxu0
        %v8822 = vadd.f32 %v8773, %v8821
        %8823 = vmatmul.bf16.gmra.mxu0 %v6094
        %v8824 = vpop.f32.mrf.mxu0
        %v8825 = vadd.f32 %v8776, %v8824
        %v8826 = vpop.f32.mrf.mxu0
        %v8827 = vadd.f32 %v8778, %v8826
        %8828 = vmatmul.bf16.gmra.mxu0 %v6102
        %v8829 = vpop.f32.mrf.mxu0
        %v8830 = vadd.f32 %v8781, %v8829
        %v8831 = vpop.f32.mrf.mxu0
        %v8832 = vadd.f32 %v8783, %v8831
        %8833 = vmatmul.bf16.gmra.mxu0 %v6110
        %v8834 = vpop.f32.mrf.mxu0
        %v8835 = vadd.f32 %v8786, %v8834
        %v8836 = vpop.f32.mrf.mxu0
        %v8837 = vadd.f32 %v8788, %v8836
        %8838 = vmatmul.bf16.gmra.mxu0 %v6118
        %v8839 = vpop.f32.mrf.mxu0
        %v8840 = vadd.f32 %v8791, %v8839
        %v8841 = vpop.f32.mrf.mxu0
        %v8842 = vadd.f32 %v8793, %v8841
        %8843 = vmatmul.bf16.gmra.mxu0 %v6126
        %v8844 = vpop.f32.mrf.mxu0
        %v8845 = vadd.f32 %v8796, %v8844
        %v8846 = vpop.f32.mrf.mxu0
        %v8847 = vadd.f32 %v8798, %v8846
        %8848 = vdwg.mxu0
        %8849 = vmatpush.bf16.msra.mxu0 %v7192
        %8850 = vmatpush.bf16.msra.mxu0 %v7188
        %8851 = vmatpush.bf16.msra.mxu0 %v7184
        %8852 = vmatpush.bf16.msra.mxu0 %v7180
        %8853 = vmatpush.bf16.msra.mxu0 %v7176
        %8854 = vmatpush.bf16.msra.mxu0 %v7172
        %8855 = vmatpush.bf16.msra.mxu0 %v7168
        %8856 = vmatpush.bf16.msra.mxu0 %v7164
        %8857 = vmatmul.bf16.gmra.mxu0 %v6063
        %v8858 = vpop.f32.mrf.mxu0
        %v8859 = vadd.f32 %v6388, %v8858
        %v8860 = vpop.f32.mrf.mxu0
        %v8861 = vadd.f32 %v6388, %v8860
        %8862 = vmatmul.bf16.gmra.mxu0 %v6071
        %v8863 = vpop.f32.mrf.mxu0
        %v8864 = vadd.f32 %v6388, %v8863
        %v8865 = vpop.f32.mrf.mxu0
        %v8866 = vadd.f32 %v6388, %v8865
        %8867 = vmatmul.bf16.gmra.mxu0 %v6079
        %v8868 = vpop.f32.mrf.mxu0
        %v8869 = vadd.f32 %v6388, %v8868
        %v8870 = vpop.f32.mrf.mxu0
        %v8871 = vadd.f32 %v6388, %v8870
        %8872 = vmatmul.bf16.gmra.mxu0 %v6087
        %v8873 = vpop.f32.mrf.mxu0
        %v8874 = vadd.f32 %v6388, %v8873
        %v8875 = vpop.f32.mrf.mxu0
        %v8876 = vadd.f32 %v6388, %v8875
        %8877 = vmatmul.bf16.gmra.mxu0 %v6095
        %v8878 = vpop.f32.mrf.mxu0
        %v8879 = vadd.f32 %v6388, %v8878
        %v8880 = vpop.f32.mrf.mxu0
        %v8881 = vadd.f32 %v6388, %v8880
        %8882 = vmatmul.bf16.gmra.mxu0 %v6103
        %v8883 = vpop.f32.mrf.mxu0
        %v8884 = vadd.f32 %v6388, %v8883
        %v8885 = vpop.f32.mrf.mxu0
        %v8886 = vadd.f32 %v6388, %v8885
        %8887 = vmatmul.bf16.gmra.mxu0 %v6111
        %v8888 = vpop.f32.mrf.mxu0
        %v8889 = vadd.f32 %v6388, %v8888
        %v8890 = vpop.f32.mrf.mxu0
        %v8891 = vadd.f32 %v6388, %v8890
        %8892 = vmatmul.bf16.gmra.mxu0 %v6119
        %v8893 = vpop.f32.mrf.mxu0
        %v8894 = vadd.f32 %v6388, %v8893
        %v8895 = vpop.f32.mrf.mxu0
        %v8896 = vadd.f32 %v6388, %v8895
        %8897 = vdwg.mxu0
        %8898 = vmatpush.bf16.msra.mxu0 %v7224
        %8899 = vmatpush.bf16.msra.mxu0 %v7220
        %8900 = vmatpush.bf16.msra.mxu0 %v7216
        %8901 = vmatpush.bf16.msra.mxu0 %v7212
        %8902 = vmatpush.bf16.msra.mxu0 %v7208
        %8903 = vmatpush.bf16.msra.mxu0 %v7204
        %8904 = vmatpush.bf16.msra.mxu0 %v7200
        %8905 = vmatpush.bf16.msra.mxu0 %v7196
        %8906 = vmatmul.bf16.gmra.mxu0 %v6064
        %v8907 = vpop.f32.mrf.mxu0
        %v8908 = vadd.f32 %v8859, %v8907
        %v8909 = vpop.f32.mrf.mxu0
        %v8910 = vadd.f32 %v8861, %v8909
        %8911 = vmatmul.bf16.gmra.mxu0 %v6072
        %v8912 = vpop.f32.mrf.mxu0
        %v8913 = vadd.f32 %v8864, %v8912
        %v8914 = vpop.f32.mrf.mxu0
        %v8915 = vadd.f32 %v8866, %v8914
        %8916 = vmatmul.bf16.gmra.mxu0 %v6080
        %v8917 = vpop.f32.mrf.mxu0
        %v8918 = vadd.f32 %v8869, %v8917
        %v8919 = vpop.f32.mrf.mxu0
        %v8920 = vadd.f32 %v8871, %v8919
        %8921 = vmatmul.bf16.gmra.mxu0 %v6088
        %v8922 = vpop.f32.mrf.mxu0
        %v8923 = vadd.f32 %v8874, %v8922
        %v8924 = vpop.f32.mrf.mxu0
        %v8925 = vadd.f32 %v8876, %v8924
        %8926 = vmatmul.bf16.gmra.mxu0 %v6096
        %v8927 = vpop.f32.mrf.mxu0
        %v8928 = vadd.f32 %v8879, %v8927
        %v8929 = vpop.f32.mrf.mxu0
        %v8930 = vadd.f32 %v8881, %v8929
        %8931 = vmatmul.bf16.gmra.mxu0 %v6104
        %v8932 = vpop.f32.mrf.mxu0
        %v8933 = vadd.f32 %v8884, %v8932
        %v8934 = vpop.f32.mrf.mxu0
        %v8935 = vadd.f32 %v8886, %v8934
        %8936 = vmatmul.bf16.gmra.mxu0 %v6112
        %v8937 = vpop.f32.mrf.mxu0
        %v8938 = vadd.f32 %v8889, %v8937
        %v8939 = vpop.f32.mrf.mxu0
        %v8940 = vadd.f32 %v8891, %v8939
        %8941 = vmatmul.bf16.gmra.mxu0 %v6120
        %v8942 = vpop.f32.mrf.mxu0
        %v8943 = vadd.f32 %v8894, %v8942
        %v8944 = vpop.f32.mrf.mxu0
        %v8945 = vadd.f32 %v8896, %v8944
        %8946 = vdwg.mxu0
        %8947 = vmatpush.bf16.msra.mxu0 %v7256
        %8948 = vmatpush.bf16.msra.mxu0 %v7252
        %8949 = vmatpush.bf16.msra.mxu0 %v7248
        %8950 = vmatpush.bf16.msra.mxu0 %v7244
        %8951 = vmatpush.bf16.msra.mxu0 %v7240
        %8952 = vmatpush.bf16.msra.mxu0 %v7236
        %8953 = vmatpush.bf16.msra.mxu0 %v7232
        %8954 = vmatpush.bf16.msra.mxu0 %v7228
        %8955 = vmatmul.bf16.gmra.mxu0 %v6065
        %v8956 = vpop.f32.mrf.mxu0
        %v8957 = vadd.f32 %v8908, %v8956
        %v8958 = vpop.f32.mrf.mxu0
        %v8959 = vadd.f32 %v8910, %v8958
        %8960 = vmatmul.bf16.gmra.mxu0 %v6073
        %v8961 = vpop.f32.mrf.mxu0
        %v8962 = vadd.f32 %v8913, %v8961
        %v8963 = vpop.f32.mrf.mxu0
        %v8964 = vadd.f32 %v8915, %v8963
        %8965 = vmatmul.bf16.gmra.mxu0 %v6081
        %v8966 = vpop.f32.mrf.mxu0
        %v8967 = vadd.f32 %v8918, %v8966
        %v8968 = vpop.f32.mrf.mxu0
        %v8969 = vadd.f32 %v8920, %v8968
        %8970 = vmatmul.bf16.gmra.mxu0 %v6089
        %v8971 = vpop.f32.mrf.mxu0
        %v8972 = vadd.f32 %v8923, %v8971
        %v8973 = vpop.f32.mrf.mxu0
        %v8974 = vadd.f32 %v8925, %v8973
        %8975 = vmatmul.bf16.gmra.mxu0 %v6097
        %v8976 = vpop.f32.mrf.mxu0
        %v8977 = vadd.f32 %v8928, %v8976
        %v8978 = vpop.f32.mrf.mxu0
        %v8979 = vadd.f32 %v8930, %v8978
        %8980 = vmatmul.bf16.gmra.mxu0 %v6105
        %v8981 = vpop.f32.mrf.mxu0
        %v8982 = vadd.f32 %v8933, %v8981
        %v8983 = vpop.f32.mrf.mxu0
        %v8984 = vadd.f32 %v8935, %v8983
        %8985 = vmatmul.bf16.gmra.mxu0 %v6113
        %v8986 = vpop.f32.mrf.mxu0
        %v8987 = vadd.f32 %v8938, %v8986
        %v8988 = vpop.f32.mrf.mxu0
        %v8989 = vadd.f32 %v8940, %v8988
        %8990 = vmatmul.bf16.gmra.mxu0 %v6121
        %v8991 = vpop.f32.mrf.mxu0
        %v8992 = vadd.f32 %v8943, %v8991
        %v8993 = vpop.f32.mrf.mxu0
        %v8994 = vadd.f32 %v8945, %v8993
        %8995 = vdwg.mxu0
        %8996 = vmatpush.bf16.msra.mxu0 %v7288
        %8997 = vmatpush.bf16.msra.mxu0 %v7284
        %8998 = vmatpush.bf16.msra.mxu0 %v7280
        %8999 = vmatpush.bf16.msra.mxu0 %v7276
        %9000 = vmatpush.bf16.msra.mxu0 %v7272
        %9001 = vmatpush.bf16.msra.mxu0 %v7268
        %9002 = vmatpush.bf16.msra.mxu0 %v7264
        %9003 = vmatpush.bf16.msra.mxu0 %v7260
        %9004 = vmatmul.bf16.gmra.mxu0 %v6066
        %v9005 = vpop.f32.mrf.mxu0
        %v9006 = vadd.f32 %v8957, %v9005
        %v9007 = vpop.f32.mrf.mxu0
        %v9008 = vadd.f32 %v8959, %v9007
        %9009 = vmatmul.bf16.gmra.mxu0 %v6074
        %v9010 = vpop.f32.mrf.mxu0
        %v9011 = vadd.f32 %v8962, %v9010
        %v9012 = vpop.f32.mrf.mxu0
        %v9013 = vadd.f32 %v8964, %v9012
        %9014 = vmatmul.bf16.gmra.mxu0 %v6082
        %v9015 = vpop.f32.mrf.mxu0
        %v9016 = vadd.f32 %v8967, %v9015
        %v9017 = vpop.f32.mrf.mxu0
        %v9018 = vadd.f32 %v8969, %v9017
        %9019 = vmatmul.bf16.gmra.mxu0 %v6090
        %v9020 = vpop.f32.mrf.mxu0
        %v9021 = vadd.f32 %v8972, %v9020
        %v9022 = vpop.f32.mrf.mxu0
        %v9023 = vadd.f32 %v8974, %v9022
        %9024 = vmatmul.bf16.gmra.mxu0 %v6098
        %v9025 = vpop.f32.mrf.mxu0
        %v9026 = vadd.f32 %v8977, %v9025
        %v9027 = vpop.f32.mrf.mxu0
        %v9028 = vadd.f32 %v8979, %v9027
        %9029 = vmatmul.bf16.gmra.mxu0 %v6106
        %v9030 = vpop.f32.mrf.mxu0
        %v9031 = vadd.f32 %v8982, %v9030
        %v9032 = vpop.f32.mrf.mxu0
        %v9033 = vadd.f32 %v8984, %v9032
        %9034 = vmatmul.bf16.gmra.mxu0 %v6114
        %v9035 = vpop.f32.mrf.mxu0
        %v9036 = vadd.f32 %v8987, %v9035
        %v9037 = vpop.f32.mrf.mxu0
        %v9038 = vadd.f32 %v8989, %v9037
        %9039 = vmatmul.bf16.gmra.mxu0 %v6122
        %v9040 = vpop.f32.mrf.mxu0
        %v9041 = vadd.f32 %v8992, %v9040
        %v9042 = vpop.f32.mrf.mxu0
        %v9043 = vadd.f32 %v8994, %v9042
        %9044 = vdwg.mxu0
        %9045 = vmatpush.bf16.msra.mxu0 %v7320
        %9046 = vmatpush.bf16.msra.mxu0 %v7316
        %9047 = vmatpush.bf16.msra.mxu0 %v7312
        %9048 = vmatpush.bf16.msra.mxu0 %v7308
        %9049 = vmatpush.bf16.msra.mxu0 %v7304
        %9050 = vmatpush.bf16.msra.mxu0 %v7300
        %9051 = vmatpush.bf16.msra.mxu0 %v7296
        %9052 = vmatpush.bf16.msra.mxu0 %v7292
        %9053 = vmatmul.bf16.gmra.mxu0 %v6067
        %v9054 = vpop.f32.mrf.mxu0
        %v9055 = vadd.f32 %v9006, %v9054
        %v9056 = vpop.f32.mrf.mxu0
        %v9057 = vadd.f32 %v9008, %v9056
        %9058 = vmatmul.bf16.gmra.mxu0 %v6075
        %v9059 = vpop.f32.mrf.mxu0
        %v9060 = vadd.f32 %v9011, %v9059
        %v9061 = vpop.f32.mrf.mxu0
        %v9062 = vadd.f32 %v9013, %v9061
        %9063 = vmatmul.bf16.gmra.mxu0 %v6083
        %v9064 = vpop.f32.mrf.mxu0
        %v9065 = vadd.f32 %v9016, %v9064
        %v9066 = vpop.f32.mrf.mxu0
        %v9067 = vadd.f32 %v9018, %v9066
        %9068 = vmatmul.bf16.gmra.mxu0 %v6091
        %v9069 = vpop.f32.mrf.mxu0
        %v9070 = vadd.f32 %v9021, %v9069
        %v9071 = vpop.f32.mrf.mxu0
        %v9072 = vadd.f32 %v9023, %v9071
        %9073 = vmatmul.bf16.gmra.mxu0 %v6099
        %v9074 = vpop.f32.mrf.mxu0
        %v9075 = vadd.f32 %v9026, %v9074
        %v9076 = vpop.f32.mrf.mxu0
        %v9077 = vadd.f32 %v9028, %v9076
        %9078 = vmatmul.bf16.gmra.mxu0 %v6107
        %v9079 = vpop.f32.mrf.mxu0
        %v9080 = vadd.f32 %v9031, %v9079
        %v9081 = vpop.f32.mrf.mxu0
        %v9082 = vadd.f32 %v9033, %v9081
        %9083 = vmatmul.bf16.gmra.mxu0 %v6115
        %v9084 = vpop.f32.mrf.mxu0
        %v9085 = vadd.f32 %v9036, %v9084
        %v9086 = vpop.f32.mrf.mxu0
        %v9087 = vadd.f32 %v9038, %v9086
        %9088 = vmatmul.bf16.gmra.mxu0 %v6123
        %v9089 = vpop.f32.mrf.mxu0
        %v9090 = vadd.f32 %v9041, %v9089
        %v9091 = vpop.f32.mrf.mxu0
        %v9092 = vadd.f32 %v9043, %v9091
        %9093 = vdwg.mxu0
        %9094 = vmatpush.bf16.msra.mxu0 %v7352
        %9095 = vmatpush.bf16.msra.mxu0 %v7348
        %9096 = vmatpush.bf16.msra.mxu0 %v7344
        %9097 = vmatpush.bf16.msra.mxu0 %v7340
        %9098 = vmatpush.bf16.msra.mxu0 %v7336
        %9099 = vmatpush.bf16.msra.mxu0 %v7332
        %9100 = vmatpush.bf16.msra.mxu0 %v7328
        %9101 = vmatpush.bf16.msra.mxu0 %v7324
        %9102 = vmatmul.bf16.gmra.mxu0 %v6068
        %v9103 = vpop.f32.mrf.mxu0
        %v9104 = vadd.f32 %v9055, %v9103
        %v9105 = vpop.f32.mrf.mxu0
        %v9106 = vadd.f32 %v9057, %v9105
        %9107 = vmatmul.bf16.gmra.mxu0 %v6076
        %v9108 = vpop.f32.mrf.mxu0
        %v9109 = vadd.f32 %v9060, %v9108
        %v9110 = vpop.f32.mrf.mxu0
        %v9111 = vadd.f32 %v9062, %v9110
        %9112 = vmatmul.bf16.gmra.mxu0 %v6084
        %v9113 = vpop.f32.mrf.mxu0
        %v9114 = vadd.f32 %v9065, %v9113
        %v9115 = vpop.f32.mrf.mxu0
        %v9116 = vadd.f32 %v9067, %v9115
        %9117 = vmatmul.bf16.gmra.mxu0 %v6092
        %v9118 = vpop.f32.mrf.mxu0
        %v9119 = vadd.f32 %v9070, %v9118
        %v9120 = vpop.f32.mrf.mxu0
        %v9121 = vadd.f32 %v9072, %v9120
        %9122 = vmatmul.bf16.gmra.mxu0 %v6100
        %v9123 = vpop.f32.mrf.mxu0
        %v9124 = vadd.f32 %v9075, %v9123
        %v9125 = vpop.f32.mrf.mxu0
        %v9126 = vadd.f32 %v9077, %v9125
        %9127 = vmatmul.bf16.gmra.mxu0 %v6108
        %v9128 = vpop.f32.mrf.mxu0
        %v9129 = vadd.f32 %v9080, %v9128
        %v9130 = vpop.f32.mrf.mxu0
        %v9131 = vadd.f32 %v9082, %v9130
        %9132 = vmatmul.bf16.gmra.mxu0 %v6116
        %v9133 = vpop.f32.mrf.mxu0
        %v9134 = vadd.f32 %v9085, %v9133
        %v9135 = vpop.f32.mrf.mxu0
        %v9136 = vadd.f32 %v9087, %v9135
        %9137 = vmatmul.bf16.gmra.mxu0 %v6124
        %v9138 = vpop.f32.mrf.mxu0
        %v9139 = vadd.f32 %v9090, %v9138
        %v9140 = vpop.f32.mrf.mxu0
        %v9141 = vadd.f32 %v9092, %v9140
        %9142 = vdwg.mxu0
        %9143 = vmatpush.bf16.msra.mxu0 %v7384
        %9144 = vmatpush.bf16.msra.mxu0 %v7380
        %9145 = vmatpush.bf16.msra.mxu0 %v7376
        %9146 = vmatpush.bf16.msra.mxu0 %v7372
        %9147 = vmatpush.bf16.msra.mxu0 %v7368
        %9148 = vmatpush.bf16.msra.mxu0 %v7364
        %9149 = vmatpush.bf16.msra.mxu0 %v7360
        %9150 = vmatpush.bf16.msra.mxu0 %v7356
        %9151 = vmatmul.bf16.gmra.mxu0 %v6069
        %v9152 = vpop.f32.mrf.mxu0
        %v9153 = vadd.f32 %v9104, %v9152
        %v9154 = vpop.f32.mrf.mxu0
        %v9155 = vadd.f32 %v9106, %v9154
        %9156 = vmatmul.bf16.gmra.mxu0 %v6077
        %v9157 = vpop.f32.mrf.mxu0
        %v9158 = vadd.f32 %v9109, %v9157
        %v9159 = vpop.f32.mrf.mxu0
        %v9160 = vadd.f32 %v9111, %v9159
        %9161 = vmatmul.bf16.gmra.mxu0 %v6085
        %v9162 = vpop.f32.mrf.mxu0
        %v9163 = vadd.f32 %v9114, %v9162
        %v9164 = vpop.f32.mrf.mxu0
        %v9165 = vadd.f32 %v9116, %v9164
        %9166 = vmatmul.bf16.gmra.mxu0 %v6093
        %v9167 = vpop.f32.mrf.mxu0
        %v9168 = vadd.f32 %v9119, %v9167
        %v9169 = vpop.f32.mrf.mxu0
        %v9170 = vadd.f32 %v9121, %v9169
        %9171 = vmatmul.bf16.gmra.mxu0 %v6101
        %v9172 = vpop.f32.mrf.mxu0
        %v9173 = vadd.f32 %v9124, %v9172
        %v9174 = vpop.f32.mrf.mxu0
        %v9175 = vadd.f32 %v9126, %v9174
        %9176 = vmatmul.bf16.gmra.mxu0 %v6109
        %v9177 = vpop.f32.mrf.mxu0
        %v9178 = vadd.f32 %v9129, %v9177
        %v9179 = vpop.f32.mrf.mxu0
        %v9180 = vadd.f32 %v9131, %v9179
        %9181 = vmatmul.bf16.gmra.mxu0 %v6117
        %v9182 = vpop.f32.mrf.mxu0
        %v9183 = vadd.f32 %v9134, %v9182
        %v9184 = vpop.f32.mrf.mxu0
        %v9185 = vadd.f32 %v9136, %v9184
        %9186 = vmatmul.bf16.gmra.mxu0 %v6125
        %v9187 = vpop.f32.mrf.mxu0
        %v9188 = vadd.f32 %v9139, %v9187
        %v9189 = vpop.f32.mrf.mxu0
        %v9190 = vadd.f32 %v9141, %v9189
        %9191 = vdwg.mxu0
        %9192 = vmatpush.bf16.msra.mxu0 %v7416
        %9193 = vmatpush.bf16.msra.mxu0 %v7412
        %9194 = vmatpush.bf16.msra.mxu0 %v7408
        %9195 = vmatpush.bf16.msra.mxu0 %v7404
        %9196 = vmatpush.bf16.msra.mxu0 %v7400
        %9197 = vmatpush.bf16.msra.mxu0 %v7396
        %9198 = vmatpush.bf16.msra.mxu0 %v7392
        %9199 = vmatpush.bf16.msra.mxu0 %v7388
        %9200 = vmatmul.bf16.gmra.mxu0 %v6070
        %v9201 = vpop.f32.mrf.mxu0
        %v9202 = vadd.f32 %v9153, %v9201
        %v9203 = vpop.f32.mrf.mxu0
        %v9204 = vadd.f32 %v9155, %v9203
        %9205 = vmatmul.bf16.gmra.mxu0 %v6078
        %v9206 = vpop.f32.mrf.mxu0
        %v9207 = vadd.f32 %v9158, %v9206
        %v9208 = vpop.f32.mrf.mxu0
        %v9209 = vadd.f32 %v9160, %v9208
        %9210 = vmatmul.bf16.gmra.mxu0 %v6086
        %v9211 = vpop.f32.mrf.mxu0
        %v9212 = vadd.f32 %v9163, %v9211
        %v9213 = vpop.f32.mrf.mxu0
        %v9214 = vadd.f32 %v9165, %v9213
        %9215 = vmatmul.bf16.gmra.mxu0 %v6094
        %v9216 = vpop.f32.mrf.mxu0
        %v9217 = vadd.f32 %v9168, %v9216
        %v9218 = vpop.f32.mrf.mxu0
        %v9219 = vadd.f32 %v9170, %v9218
        %9220 = vmatmul.bf16.gmra.mxu0 %v6102
        %v9221 = vpop.f32.mrf.mxu0
        %v9222 = vadd.f32 %v9173, %v9221
        %v9223 = vpop.f32.mrf.mxu0
        %v9224 = vadd.f32 %v9175, %v9223
        %9225 = vmatmul.bf16.gmra.mxu0 %v6110
        %v9226 = vpop.f32.mrf.mxu0
        %v9227 = vadd.f32 %v9178, %v9226
        %v9228 = vpop.f32.mrf.mxu0
        %v9229 = vadd.f32 %v9180, %v9228
        %9230 = vmatmul.bf16.gmra.mxu0 %v6118
        %v9231 = vpop.f32.mrf.mxu0
        %v9232 = vadd.f32 %v9183, %v9231
        %v9233 = vpop.f32.mrf.mxu0
        %v9234 = vadd.f32 %v9185, %v9233
        %9235 = vmatmul.bf16.gmra.mxu0 %v6126
        %v9236 = vpop.f32.mrf.mxu0
        %v9237 = vadd.f32 %v9188, %v9236
        %v9238 = vpop.f32.mrf.mxu0
        %v9239 = vadd.f32 %v9190, %v9238
        %9240 = vdwg.mxu0
        %vm9241 = vcmp.gt.f32.partialorder %v8026, 0.0
        %vm9242 = vcmp.gt.f32.partialorder %v8418, 0.0
        %vm9243 = vcmp.gt.f32.partialorder %v8810, 0.0
        %vm9244 = vcmp.gt.f32.partialorder %v9202, 0.0
        %vm9245 = vcmp.gt.f32.partialorder %v8028, 0.0
        %vm9246 = vcmp.gt.f32.partialorder %v8420, 0.0
        %vm9247 = vcmp.gt.f32.partialorder %v8812, 0.0
        %vm9248 = vcmp.gt.f32.partialorder %v9204, 0.0
        %vm9249 = vcmp.gt.f32.partialorder %v8031, 0.0
        %vm9250 = vcmp.gt.f32.partialorder %v8423, 0.0
        %vm9251 = vcmp.gt.f32.partialorder %v8815, 0.0
        %vm9252 = vcmp.gt.f32.partialorder %v9207, 0.0
        %vm9253 = vcmp.gt.f32.partialorder %v8033, 0.0
        %vm9254 = vcmp.gt.f32.partialorder %v8425, 0.0
        %vm9255 = vcmp.gt.f32.partialorder %v8817, 0.0
        %vm9256 = vcmp.gt.f32.partialorder %v9209, 0.0
        %vm9257 = vcmp.gt.f32.partialorder %v8036, 0.0
        %vm9258 = vcmp.gt.f32.partialorder %v8428, 0.0
        %vm9259 = vcmp.gt.f32.partialorder %v8820, 0.0
        %vm9260 = vcmp.gt.f32.partialorder %v9212, 0.0
        %vm9261 = vcmp.gt.f32.partialorder %v8038, 0.0
        %vm9262 = vcmp.gt.f32.partialorder %v8430, 0.0
        %vm9263 = vcmp.gt.f32.partialorder %v8822, 0.0
        %vm9264 = vcmp.gt.f32.partialorder %v9214, 0.0
        %vm9265 = vcmp.gt.f32.partialorder %v8041, 0.0
        %vm9266 = vcmp.gt.f32.partialorder %v8433, 0.0
        %vm9267 = vcmp.gt.f32.partialorder %v8825, 0.0
        %vm9268 = vcmp.gt.f32.partialorder %v9217, 0.0
        %vm9269 = vcmp.gt.f32.partialorder %v8043, 0.0
        %vm9270 = vcmp.gt.f32.partialorder %v8435, 0.0
        %vm9271 = vcmp.gt.f32.partialorder %v8827, 0.0
        %vm9272 = vcmp.gt.f32.partialorder %v9219, 0.0
        %vm9273 = vcmp.gt.f32.partialorder %v8046, 0.0
        %vm9274 = vcmp.gt.f32.partialorder %v8438, 0.0
        %vm9275 = vcmp.gt.f32.partialorder %v8830, 0.0
        %vm9276 = vcmp.gt.f32.partialorder %v9222, 0.0
        %vm9277 = vcmp.gt.f32.partialorder %v8048, 0.0
        %vm9278 = vcmp.gt.f32.partialorder %v8440, 0.0
        %vm9279 = vcmp.gt.f32.partialorder %v8832, 0.0
        %vm9280 = vcmp.gt.f32.partialorder %v9224, 0.0
        %vm9281 = vcmp.gt.f32.partialorder %v8051, 0.0
        %vm9282 = vcmp.gt.f32.partialorder %v8443, 0.0
        %vm9283 = vcmp.gt.f32.partialorder %v8835, 0.0
        %vm9284 = vcmp.gt.f32.partialorder %v9227, 0.0
        %vm9285 = vcmp.gt.f32.partialorder %v8053, 0.0
        %vm9286 = vcmp.gt.f32.partialorder %v8445, 0.0
        %vm9287 = vcmp.gt.f32.partialorder %v8837, 0.0
        %vm9288 = vcmp.gt.f32.partialorder %v9229, 0.0
        %vm9289 = vcmp.gt.f32.partialorder %v8056, 0.0
        %vm9290 = vcmp.gt.f32.partialorder %v8448, 0.0
        %vm9291 = vcmp.gt.f32.partialorder %v8840, 0.0
        %vm9292 = vcmp.gt.f32.partialorder %v9232, 0.0
        %vm9293 = vcmp.gt.f32.partialorder %v8058, 0.0
        %vm9294 = vcmp.gt.f32.partialorder %v8450, 0.0
        %vm9295 = vcmp.gt.f32.partialorder %v8842, 0.0
        %vm9296 = vcmp.gt.f32.partialorder %v9234, 0.0
        %vm9297 = vcmp.gt.f32.partialorder %v8061, 0.0
        %vm9298 = vcmp.gt.f32.partialorder %v8453, 0.0
        %vm9299 = vcmp.gt.f32.partialorder %v8845, 0.0
        %vm9300 = vcmp.gt.f32.partialorder %v9237, 0.0
        %vm9301 = vcmp.gt.f32.partialorder %v8063, 0.0
        %vm9302 = vcmp.gt.f32.partialorder %v8455, 0.0
        %vm9303 = vcmp.gt.f32.partialorder %v8847, 0.0
        %vm9304 = vcmp.gt.f32.partialorder %v9239, 0.0
        %v9305 = vmul.f32 %v8026, 0.2
        %v9306 = vmul.f32 %v8418, 0.2
        %v9307 = vmul.f32 %v8810, 0.2
        %v9308 = vmul.f32 %v9202, 0.2
        %v9309 = vmul.f32 %v8028, 0.2
        %v9310 = vmul.f32 %v8420, 0.2
        %v9311 = vmul.f32 %v8812, 0.2
        %v9312 = vmul.f32 %v9204, 0.2
        %v9313 = vmul.f32 %v8031, 0.2
        %v9314 = vmul.f32 %v8423, 0.2
        %v9315 = vmul.f32 %v8815, 0.2
        %v9316 = vmul.f32 %v9207, 0.2
        %v9317 = vmul.f32 %v8033, 0.2
        %v9318 = vmul.f32 %v8425, 0.2
        %v9319 = vmul.f32 %v8817, 0.2
        %v9320 = vmul.f32 %v9209, 0.2
        %v9321 = vmul.f32 %v8036, 0.2
        %v9322 = vmul.f32 %v8428, 0.2
        %v9323 = vmul.f32 %v8820, 0.2
        %v9324 = vmul.f32 %v9212, 0.2
        %v9325 = vmul.f32 %v8038, 0.2
        %v9326 = vmul.f32 %v8430, 0.2
        %v9327 = vmul.f32 %v8822, 0.2
        %v9328 = vmul.f32 %v9214, 0.2
        %v9329 = vmul.f32 %v8041, 0.2
        %v9330 = vmul.f32 %v8433, 0.2
        %v9331 = vmul.f32 %v8825, 0.2
        %v9332 = vmul.f32 %v9217, 0.2
        %v9333 = vmul.f32 %v8043, 0.2
        %v9334 = vmul.f32 %v8435, 0.2
        %v9335 = vmul.f32 %v8827, 0.2
        %v9336 = vmul.f32 %v9219, 0.2
        %v9337 = vmul.f32 %v8046, 0.2
        %v9338 = vmul.f32 %v8438, 0.2
        %v9339 = vmul.f32 %v8830, 0.2
        %v9340 = vmul.f32 %v9222, 0.2
        %v9341 = vmul.f32 %v8048, 0.2
        %v9342 = vmul.f32 %v8440, 0.2
        %v9343 = vmul.f32 %v8832, 0.2
        %v9344 = vmul.f32 %v9224, 0.2
        %v9345 = vmul.f32 %v8051, 0.2
        %v9346 = vmul.f32 %v8443, 0.2
        %v9347 = vmul.f32 %v8835, 0.2
        %v9348 = vmul.f32 %v9227, 0.2
        %v9349 = vmul.f32 %v8053, 0.2
        %v9350 = vmul.f32 %v8445, 0.2
        %v9351 = vmul.f32 %v8837, 0.2
        %v9352 = vmul.f32 %v9229, 0.2
        %v9353 = vmul.f32 %v8056, 0.2
        %v9354 = vmul.f32 %v8448, 0.2
        %v9355 = vmul.f32 %v8840, 0.2
        %v9356 = vmul.f32 %v9232, 0.2
        %v9357 = vmul.f32 %v8058, 0.2
        %v9358 = vmul.f32 %v8450, 0.2
        %v9359 = vmul.f32 %v8842, 0.2
        %v9360 = vmul.f32 %v9234, 0.2
        %v9361 = vmul.f32 %v8061, 0.2
        %v9362 = vmul.f32 %v8453, 0.2
        %v9363 = vmul.f32 %v8845, 0.2
        %v9364 = vmul.f32 %v9237, 0.2
        %v9365 = vmul.f32 %v8063, 0.2
        %v9366 = vmul.f32 %v8455, 0.2
        %v9367 = vmul.f32 %v8847, 0.2
        %v9368 = vmul.f32 %v9239, 0.2
        %v9369 = vsel %vm9241, %v8026, %v9305
        %v9370 = vsel %vm9242, %v8418, %v9306
        %v9371 = vsel %vm9243, %v8810, %v9307
        %v9372 = vsel %vm9244, %v9202, %v9308
        %v9373 = vsel %vm9245, %v8028, %v9309
        %v9374 = vsel %vm9246, %v8420, %v9310
        %v9375 = vsel %vm9247, %v8812, %v9311
        %v9376 = vsel %vm9248, %v9204, %v9312
        %v9377 = vsel %vm9249, %v8031, %v9313
        %v9378 = vsel %vm9250, %v8423, %v9314
        %v9379 = vsel %vm9251, %v8815, %v9315
        %v9380 = vsel %vm9252, %v9207, %v9316
        %v9381 = vsel %vm9253, %v8033, %v9317
        %v9382 = vsel %vm9254, %v8425, %v9318
        %v9383 = vsel %vm9255, %v8817, %v9319
        %v9384 = vsel %vm9256, %v9209, %v9320
        %v9385 = vsel %vm9257, %v8036, %v9321
        %v9386 = vsel %vm9258, %v8428, %v9322
        %v9387 = vsel %vm9259, %v8820, %v9323
        %v9388 = vsel %vm9260, %v9212, %v9324
        %v9389 = vsel %vm9261, %v8038, %v9325
        %v9390 = vsel %vm9262, %v8430, %v9326
        %v9391 = vsel %vm9263, %v8822, %v9327
        %v9392 = vsel %vm9264, %v9214, %v9328
        %v9393 = vsel %vm9265, %v8041, %v9329
        %v9394 = vsel %vm9266, %v8433, %v9330
        %v9395 = vsel %vm9267, %v8825, %v9331
        %v9396 = vsel %vm9268, %v9217, %v9332
        %v9397 = vsel %vm9269, %v8043, %v9333
        %v9398 = vsel %vm9270, %v8435, %v9334
        %v9399 = vsel %vm9271, %v8827, %v9335
        %v9400 = vsel %vm9272, %v9219, %v9336
        %v9401 = vsel %vm9273, %v8046, %v9337
        %v9402 = vsel %vm9274, %v8438, %v9338
        %v9403 = vsel %vm9275, %v8830, %v9339
        %v9404 = vsel %vm9276, %v9222, %v9340
        %v9405 = vsel %vm9277, %v8048, %v9341
        %v9406 = vsel %vm9278, %v8440, %v9342
        %v9407 = vsel %vm9279, %v8832, %v9343
        %v9408 = vsel %vm9280, %v9224, %v9344
        %v9409 = vsel %vm9281, %v8051, %v9345
        %v9410 = vsel %vm9282, %v8443, %v9346
        %v9411 = vsel %vm9283, %v8835, %v9347
        %v9412 = vsel %vm9284, %v9227, %v9348
        %v9413 = vsel %vm9285, %v8053, %v9349
        %v9414 = vsel %vm9286, %v8445, %v9350
        %v9415 = vsel %vm9287, %v8837, %v9351
        %v9416 = vsel %vm9288, %v9229, %v9352
        %v9417 = vsel %vm9289, %v8056, %v9353
        %v9418 = vsel %vm9290, %v8448, %v9354
        %v9419 = vsel %vm9291, %v8840, %v9355
        %v9420 = vsel %vm9292, %v9232, %v9356
        %v9421 = vsel %vm9293, %v8058, %v9357
        %v9422 = vsel %vm9294, %v8450, %v9358
        %v9423 = vsel %vm9295, %v8842, %v9359
        %v9424 = vsel %vm9296, %v9234, %v9360
        %v9425 = vsel %vm9297, %v8061, %v9361
        %v9426 = vsel %vm9298, %v8453, %v9362
        %v9427 = vsel %vm9299, %v8845, %v9363
        %v9428 = vsel %vm9300, %v9237, %v9364
        %v9429 = vsel %vm9301, %v8063, %v9365
        %v9430 = vsel %vm9302, %v8455, %v9366
        %v9431 = vsel %vm9303, %v8847, %v9367
        %v9432 = vsel %vm9304, %v9239, %v9368
        %v9433 = vpack.c.bf16 %v9373, %v9369
        %v9434 = vpack.c.bf16 %v9374, %v9370
        %v9435 = vpack.c.bf16 %v9375, %v9371
        %v9436 = vpack.c.bf16 %v9376, %v9372
        %v9437 = vpack.c.bf16 %v9381, %v9377
        %v9438 = vpack.c.bf16 %v9382, %v9378
        %v9439 = vpack.c.bf16 %v9383, %v9379
        %v9440 = vpack.c.bf16 %v9384, %v9380
        %v9441 = vpack.c.bf16 %v9389, %v9385
        %v9442 = vpack.c.bf16 %v9390, %v9386
        %v9443 = vpack.c.bf16 %v9391, %v9387
        %v9444 = vpack.c.bf16 %v9392, %v9388
        %v9445 = vpack.c.bf16 %v9397, %v9393
        %v9446 = vpack.c.bf16 %v9398, %v9394
        %v9447 = vpack.c.bf16 %v9399, %v9395
        %v9448 = vpack.c.bf16 %v9400, %v9396
        %v9449 = vpack.c.bf16 %v9405, %v9401
        %v9450 = vpack.c.bf16 %v9406, %v9402
        %v9451 = vpack.c.bf16 %v9407, %v9403
        %v9452 = vpack.c.bf16 %v9408, %v9404
        %v9453 = vpack.c.bf16 %v9413, %v9409
        %v9454 = vpack.c.bf16 %v9414, %v9410
        %v9455 = vpack.c.bf16 %v9415, %v9411
        %v9456 = vpack.c.bf16 %v9416, %v9412
        %v9457 = vpack.c.bf16 %v9421, %v9417
        %v9458 = vpack.c.bf16 %v9422, %v9418
        %v9459 = vpack.c.bf16 %v9423, %v9419
        %v9460 = vpack.c.bf16 %v9424, %v9420
        %v9461 = vpack.c.bf16 %v9429, %v9425
        %v9462 = vpack.c.bf16 %v9430, %v9426
        %v9463 = vpack.c.bf16 %v9431, %v9427
        %v9464 = vpack.c.bf16 %v9432, %v9428
        %v9465 = vld [vmem:[#allocation5] sm:$0xff]
        %v9466 = vld [vmem:[#allocation5 + $0x8] sm:$0xff]
        %v9467 = vld [vmem:[#allocation5 + $0x10] sm:$0xff]
        %v9468 = vld [vmem:[#allocation5 + $0x18] sm:$0xff]
        %v9469 = vld [vmem:[#allocation5 + $0x20] sm:$0xff]
        %v9470 = vld [vmem:[#allocation5 + $0x28] sm:$0xff]
        %v9471 = vld [vmem:[#allocation5 + $0x30] sm:$0xff]
        %v9472 = vld [vmem:[#allocation5 + $0x38] sm:$0xff]
        %v9473 = vld [vmem:[#allocation5 + $0x40] sm:$0xff]
        %v9474 = vld [vmem:[#allocation5 + $0x48] sm:$0xff]
        %v9475 = vld [vmem:[#allocation5 + $0x50] sm:$0xff]
        %v9476 = vld [vmem:[#allocation5 + $0x58] sm:$0xff]
        %v9477 = vld [vmem:[#allocation5 + $0x60] sm:$0xff]
        %v9478 = vld [vmem:[#allocation5 + $0x68] sm:$0xff]
        %v9479 = vld [vmem:[#allocation5 + $0x70] sm:$0xff]
        %v9480 = vld [vmem:[#allocation5 + $0x78] sm:$0xff]
        %v9481 = vld [vmem:[#allocation5 + $0x80] sm:$0xff]
        %v9482 = vld [vmem:[#allocation5 + $0x88] sm:$0xff]
        %v9483 = vld [vmem:[#allocation5 + $0x90] sm:$0xff]
        %v9484 = vld [vmem:[#allocation5 + $0x98] sm:$0xff]
        %v9485 = vld [vmem:[#allocation5 + $0xa0] sm:$0xff]
        %v9486 = vld [vmem:[#allocation5 + $0xa8] sm:$0xff]
        %v9487 = vld [vmem:[#allocation5 + $0xb0] sm:$0xff]
        %v9488 = vld [vmem:[#allocation5 + $0xb8] sm:$0xff]
        %v9489 = vld [vmem:[#allocation5 + $0xc0] sm:$0xff]
        %v9490 = vld [vmem:[#allocation5 + $0xc8] sm:$0xff]
        %v9491 = vld [vmem:[#allocation5 + $0xd0] sm:$0xff]
        %v9492 = vld [vmem:[#allocation5 + $0xd8] sm:$0xff]
        %v9493 = vld [vmem:[#allocation5 + $0xe0] sm:$0xff]
        %v9494 = vld [vmem:[#allocation5 + $0xe8] sm:$0xff]
        %v9495 = vld [vmem:[#allocation5 + $0xf0] sm:$0xff]
        %v9496 = vld [vmem:[#allocation5 + $0xf8] sm:$0xff]
        %v9497 = vld [vmem:[#allocation5 + $0x100] sm:$0xff]
        %v9498 = vld [vmem:[#allocation5 + $0x108] sm:$0xff]
        %v9499 = vld [vmem:[#allocation5 + $0x110] sm:$0xff]
        %v9500 = vld [vmem:[#allocation5 + $0x118] sm:$0xff]
        %v9501 = vld [vmem:[#allocation5 + $0x120] sm:$0xff]
        %v9502 = vld [vmem:[#allocation5 + $0x128] sm:$0xff]
        %v9503 = vld [vmem:[#allocation5 + $0x130] sm:$0xff]
        %v9504 = vld [vmem:[#allocation5 + $0x138] sm:$0xff]
        %v9505 = vld [vmem:[#allocation5 + $0x140] sm:$0xff]
        %v9506 = vld [vmem:[#allocation5 + $0x148] sm:$0xff]
        %v9507 = vld [vmem:[#allocation5 + $0x150] sm:$0xff]
        %v9508 = vld [vmem:[#allocation5 + $0x158] sm:$0xff]
        %v9509 = vld [vmem:[#allocation5 + $0x160] sm:$0xff]
        %v9510 = vld [vmem:[#allocation5 + $0x168] sm:$0xff]
        %v9511 = vld [vmem:[#allocation5 + $0x170] sm:$0xff]
        %v9512 = vld [vmem:[#allocation5 + $0x178] sm:$0xff]
        %v9513 = vld [vmem:[#allocation5 + $0x180] sm:$0xff]
        %v9514 = vld [vmem:[#allocation5 + $0x188] sm:$0xff]
        %v9515 = vld [vmem:[#allocation5 + $0x190] sm:$0xff]
        %v9516 = vld [vmem:[#allocation5 + $0x198] sm:$0xff]
        %v9517 = vld [vmem:[#allocation5 + $0x1a0] sm:$0xff]
        %v9518 = vld [vmem:[#allocation5 + $0x1a8] sm:$0xff]
        %v9519 = vld [vmem:[#allocation5 + $0x1b0] sm:$0xff]
        %v9520 = vld [vmem:[#allocation5 + $0x1b8] sm:$0xff]
        %v9521 = vld [vmem:[#allocation5 + $0x1c0] sm:$0xff]
        %v9522 = vld [vmem:[#allocation5 + $0x1c8] sm:$0xff]
        %v9523 = vld [vmem:[#allocation5 + $0x1d0] sm:$0xff]
        %v9524 = vld [vmem:[#allocation5 + $0x1d8] sm:$0xff]
        %v9525 = vld [vmem:[#allocation5 + $0x1e0] sm:$0xff]
        %v9526 = vld [vmem:[#allocation5 + $0x1e8] sm:$0xff]
        %v9527 = vld [vmem:[#allocation5 + $0x1f0] sm:$0xff]
        %v9528 = vld [vmem:[#allocation5 + $0x1f8] sm:$0xff]
        %v9529 = vld [vmem:[%s6] sm:$0x3]
        %v9531 = vperm.slane %v9529, 0
        %v9532 = vperm.slane %v9529, 1
        %v9599 = vunpack.c.l.b16 %v9465
        %v9600 = vunpack.c.h.b16 %v9465
        %v9601 = vunpack.c.l.b16 %v9466
        %v9602 = vunpack.c.h.b16 %v9466
        %v9603 = vunpack.c.l.b16 %v9467
        %v9604 = vunpack.c.h.b16 %v9467
        %v9605 = vunpack.c.l.b16 %v9468
        %v9606 = vunpack.c.h.b16 %v9468
        %v9607 = vunpack.c.l.b16 %v9469
        %v9608 = vunpack.c.h.b16 %v9469
        %v9609 = vunpack.c.l.b16 %v9470
        %v9610 = vunpack.c.h.b16 %v9470
        %v9611 = vunpack.c.l.b16 %v9471
        %v9612 = vunpack.c.h.b16 %v9471
        %v9613 = vunpack.c.l.b16 %v9472
        %v9614 = vunpack.c.h.b16 %v9472
        %v9615 = vunpack.c.l.b16 %v9473
        %v9616 = vunpack.c.h.b16 %v9473
        %v9617 = vunpack.c.l.b16 %v9474
        %v9618 = vunpack.c.h.b16 %v9474
        %v9619 = vunpack.c.l.b16 %v9475
        %v9620 = vunpack.c.h.b16 %v9475
        %v9621 = vunpack.c.l.b16 %v9476
        %v9622 = vunpack.c.h.b16 %v9476
        %v9623 = vunpack.c.l.b16 %v9477
        %v9624 = vunpack.c.h.b16 %v9477
        %v9625 = vunpack.c.l.b16 %v9478
        %v9626 = vunpack.c.h.b16 %v9478
        %v9627 = vunpack.c.l.b16 %v9479
        %v9628 = vunpack.c.h.b16 %v9479
        %v9629 = vunpack.c.l.b16 %v9480
        %v9630 = vunpack.c.h.b16 %v9480
        %v9631 = vunpack.c.l.b16 %v9481
        %v9632 = vunpack.c.h.b16 %v9481
        %v9633 = vunpack.c.l.b16 %v9482
        %v9634 = vunpack.c.h.b16 %v9482
        %v9635 = vunpack.c.l.b16 %v9483
        %v9636 = vunpack.c.h.b16 %v9483
        %v9637 = vunpack.c.l.b16 %v9484
        %v9638 = vunpack.c.h.b16 %v9484
        %v9639 = vunpack.c.l.b16 %v9485
        %v9640 = vunpack.c.h.b16 %v9485
        %v9641 = vunpack.c.l.b16 %v9486
        %v9642 = vunpack.c.h.b16 %v9486
        %v9643 = vunpack.c.l.b16 %v9487
        %v9644 = vunpack.c.h.b16 %v9487
        %v9645 = vunpack.c.l.b16 %v9488
        %v9646 = vunpack.c.h.b16 %v9488
        %v9647 = vunpack.c.l.b16 %v9489
        %v9648 = vunpack.c.h.b16 %v9489
        %v9649 = vunpack.c.l.b16 %v9490
        %v9650 = vunpack.c.h.b16 %v9490
        %v9651 = vunpack.c.l.b16 %v9491
        %v9652 = vunpack.c.h.b16 %v9491
        %v9653 = vunpack.c.l.b16 %v9492
        %v9654 = vunpack.c.h.b16 %v9492
        %v9655 = vunpack.c.l.b16 %v9493
        %v9656 = vunpack.c.h.b16 %v9493
        %v9657 = vunpack.c.l.b16 %v9494
        %v9658 = vunpack.c.h.b16 %v9494
        %v9659 = vunpack.c.l.b16 %v9495
        %v9660 = vunpack.c.h.b16 %v9495
        %v9661 = vunpack.c.l.b16 %v9496
        %v9662 = vunpack.c.h.b16 %v9496
        %v9663 = vunpack.c.l.b16 %v9497
        %v9664 = vunpack.c.h.b16 %v9497
        %v9665 = vunpack.c.l.b16 %v9498
        %v9666 = vunpack.c.h.b16 %v9498
        %v9667 = vunpack.c.l.b16 %v9499
        %v9668 = vunpack.c.h.b16 %v9499
        %v9669 = vunpack.c.l.b16 %v9500
        %v9670 = vunpack.c.h.b16 %v9500
        %v9671 = vunpack.c.l.b16 %v9501
        %v9672 = vunpack.c.h.b16 %v9501
        %v9673 = vunpack.c.l.b16 %v9502
        %v9674 = vunpack.c.h.b16 %v9502
        %v9675 = vunpack.c.l.b16 %v9503
        %v9676 = vunpack.c.h.b16 %v9503
        %v9677 = vunpack.c.l.b16 %v9504
        %v9678 = vunpack.c.h.b16 %v9504
        %v9679 = vunpack.c.l.b16 %v9505
        %v9680 = vunpack.c.h.b16 %v9505
        %v9681 = vunpack.c.l.b16 %v9506
        %v9682 = vunpack.c.h.b16 %v9506
        %v9683 = vunpack.c.l.b16 %v9507
        %v9684 = vunpack.c.h.b16 %v9507
        %v9685 = vunpack.c.l.b16 %v9508
        %v9686 = vunpack.c.h.b16 %v9508
        %v9687 = vunpack.c.l.b16 %v9509
        %v9688 = vunpack.c.h.b16 %v9509
        %v9689 = vunpack.c.l.b16 %v9510
        %v9690 = vunpack.c.h.b16 %v9510
        %v9691 = vunpack.c.l.b16 %v9511
        %v9692 = vunpack.c.h.b16 %v9511
        %v9693 = vunpack.c.l.b16 %v9512
        %v9694 = vunpack.c.h.b16 %v9512
        %v9695 = vunpack.c.l.b16 %v9513
        %v9696 = vunpack.c.h.b16 %v9513
        %v9697 = vunpack.c.l.b16 %v9514
        %v9698 = vunpack.c.h.b16 %v9514
        %v9699 = vunpack.c.l.b16 %v9515
        %v9700 = vunpack.c.h.b16 %v9515
        %v9701 = vunpack.c.l.b16 %v9516
        %v9702 = vunpack.c.h.b16 %v9516
        %v9703 = vunpack.c.l.b16 %v9517
        %v9704 = vunpack.c.h.b16 %v9517
        %v9705 = vunpack.c.l.b16 %v9518
        %v9706 = vunpack.c.h.b16 %v9518
        %v9707 = vunpack.c.l.b16 %v9519
        %v9708 = vunpack.c.h.b16 %v9519
        %v9709 = vunpack.c.l.b16 %v9520
        %v9710 = vunpack.c.h.b16 %v9520
        %v9711 = vunpack.c.l.b16 %v9521
        %v9712 = vunpack.c.h.b16 %v9521
        %v9713 = vunpack.c.l.b16 %v9522
        %v9714 = vunpack.c.h.b16 %v9522
        %v9715 = vunpack.c.l.b16 %v9523
        %v9716 = vunpack.c.h.b16 %v9523
        %v9717 = vunpack.c.l.b16 %v9524
        %v9718 = vunpack.c.h.b16 %v9524
        %v9719 = vunpack.c.l.b16 %v9525
        %v9720 = vunpack.c.h.b16 %v9525
        %v9721 = vunpack.c.l.b16 %v9526
        %v9722 = vunpack.c.h.b16 %v9526
        %v9723 = vunpack.c.l.b16 %v9527
        %v9724 = vunpack.c.h.b16 %v9527
        %v9725 = vunpack.c.l.b16 %v9528
        %v9726 = vunpack.c.h.b16 %v9528
        %v9727 = vpack.c.b16 %v9601, %v9599
        %v9728 = vpack.c.b16 %v9602, %v9600
        %v9729 = vpack.c.b16 %v9605, %v9603
        %v9730 = vpack.c.b16 %v9606, %v9604
        %v9731 = vpack.c.b16 %v9609, %v9607
        %v9732 = vpack.c.b16 %v9610, %v9608
        %v9733 = vpack.c.b16 %v9613, %v9611
        %v9734 = vpack.c.b16 %v9614, %v9612
        %v9735 = vpack.c.b16 %v9617, %v9615
        %v9736 = vpack.c.b16 %v9618, %v9616
        %v9737 = vpack.c.b16 %v9621, %v9619
        %v9738 = vpack.c.b16 %v9622, %v9620
        %v9739 = vpack.c.b16 %v9625, %v9623
        %v9740 = vpack.c.b16 %v9626, %v9624
        %v9741 = vpack.c.b16 %v9629, %v9627
        %v9742 = vpack.c.b16 %v9630, %v9628
        %v9743 = vpack.c.b16 %v9633, %v9631
        %v9744 = vpack.c.b16 %v9634, %v9632
        %v9745 = vpack.c.b16 %v9637, %v9635
        %v9746 = vpack.c.b16 %v9638, %v9636
        %v9747 = vpack.c.b16 %v9641, %v9639
        %v9748 = vpack.c.b16 %v9642, %v9640
        %v9749 = vpack.c.b16 %v9645, %v9643
        %v9750 = vpack.c.b16 %v9646, %v9644
        %v9751 = vpack.c.b16 %v9649, %v9647
        %v9752 = vpack.c.b16 %v9650, %v9648
        %v9753 = vpack.c.b16 %v9653, %v9651
        %v9754 = vpack.c.b16 %v9654, %v9652
        %v9755 = vpack.c.b16 %v9657, %v9655
        %v9756 = vpack.c.b16 %v9658, %v9656
        %v9757 = vpack.c.b16 %v9661, %v9659
        %v9758 = vpack.c.b16 %v9662, %v9660
        %v9759 = vpack.c.b16 %v9665, %v9663
        %v9760 = vpack.c.b16 %v9666, %v9664
        %v9761 = vpack.c.b16 %v9669, %v9667
        %v9762 = vpack.c.b16 %v9670, %v9668
        %v9763 = vpack.c.b16 %v9673, %v9671
        %v9764 = vpack.c.b16 %v9674, %v9672
        %v9765 = vpack.c.b16 %v9677, %v9675
        %v9766 = vpack.c.b16 %v9678, %v9676
        %v9767 = vpack.c.b16 %v9681, %v9679
        %v9768 = vpack.c.b16 %v9682, %v9680
        %v9769 = vpack.c.b16 %v9685, %v9683
        %v9770 = vpack.c.b16 %v9686, %v9684
        %v9771 = vpack.c.b16 %v9689, %v9687
        %v9772 = vpack.c.b16 %v9690, %v9688
        %v9773 = vpack.c.b16 %v9693, %v9691
        %v9774 = vpack.c.b16 %v9694, %v9692
        %v9775 = vpack.c.b16 %v9697, %v9695
        %v9776 = vpack.c.b16 %v9698, %v9696
        %v9777 = vpack.c.b16 %v9701, %v9699
        %v9778 = vpack.c.b16 %v9702, %v9700
        %v9779 = vpack.c.b16 %v9705, %v9703
        %v9780 = vpack.c.b16 %v9706, %v9704
        %v9781 = vpack.c.b16 %v9709, %v9707
        %v9782 = vpack.c.b16 %v9710, %v9708
        %v9783 = vpack.c.b16 %v9713, %v9711
        %v9784 = vpack.c.b16 %v9714, %v9712
        %v9785 = vpack.c.b16 %v9717, %v9715
        %v9786 = vpack.c.b16 %v9718, %v9716
        %v9787 = vpack.c.b16 %v9721, %v9719
        %v9788 = vpack.c.b16 %v9722, %v9720
        %v9789 = vpack.c.b16 %v9725, %v9723
        %v9790 = vpack.c.b16 %v9726, %v9724
        %9855 = vmatpush.bf16.msra.mxu0 %v9741
        %9856 = vmatpush.bf16.msra.mxu0 %v9739
        %9857 = vmatpush.bf16.msra.mxu0 %v9737
        %9858 = vmatpush.bf16.msra.mxu0 %v9735
        %9859 = vmatpush.bf16.msra.mxu0 %v9733
        %9860 = vmatpush.bf16.msra.mxu0 %v9731
        %9861 = vmatpush.bf16.msra.mxu0 %v9729
        %9862 = vmatpush.bf16.msra.mxu0 %v9727
        %9863 = vmatmul.bf16.gmra.mxu0 %v9433
        %v9864 = vpop.f32.mrf.mxu0
        %v9865 = vadd.f32 %v9531, %v9864
        %v9866 = vpop.f32.mrf.mxu0
        %v9867 = vadd.f32 %v9531, %v9866
        %9868 = vmatmul.bf16.gmra.mxu0 %v9437
        %v9869 = vpop.f32.mrf.mxu0
        %v9870 = vadd.f32 %v9531, %v9869
        %v9871 = vpop.f32.mrf.mxu0
        %v9872 = vadd.f32 %v9531, %v9871
        %9873 = vmatmul.bf16.gmra.mxu0 %v9441
        %v9874 = vpop.f32.mrf.mxu0
        %v9875 = vadd.f32 %v9531, %v9874
        %v9876 = vpop.f32.mrf.mxu0
        %v9877 = vadd.f32 %v9531, %v9876
        %9878 = vmatmul.bf16.gmra.mxu0 %v9445
        %v9879 = vpop.f32.mrf.mxu0
        %v9880 = vadd.f32 %v9531, %v9879
        %v9881 = vpop.f32.mrf.mxu0
        %v9882 = vadd.f32 %v9531, %v9881
        %9883 = vmatmul.bf16.gmra.mxu0 %v9449
        %v9884 = vpop.f32.mrf.mxu0
        %v9885 = vadd.f32 %v9531, %v9884
        %v9886 = vpop.f32.mrf.mxu0
        %v9887 = vadd.f32 %v9531, %v9886
        %9888 = vmatmul.bf16.gmra.mxu0 %v9453
        %v9889 = vpop.f32.mrf.mxu0
        %v9890 = vadd.f32 %v9531, %v9889
        %v9891 = vpop.f32.mrf.mxu0
        %v9892 = vadd.f32 %v9531, %v9891
        %9893 = vmatmul.bf16.gmra.mxu0 %v9457
        %v9894 = vpop.f32.mrf.mxu0
        %v9895 = vadd.f32 %v9531, %v9894
        %v9896 = vpop.f32.mrf.mxu0
        %v9897 = vadd.f32 %v9531, %v9896
        %9898 = vmatmul.bf16.gmra.mxu0 %v9461
        %v9899 = vpop.f32.mrf.mxu0
        %v9900 = vadd.f32 %v9531, %v9899
        %v9901 = vpop.f32.mrf.mxu0
        %v9902 = vadd.f32 %v9531, %v9901
        %9903 = vdwg.mxu0
        %9904 = vmatpush.bf16.msra.mxu0 %v9757
        %9905 = vmatpush.bf16.msra.mxu0 %v9755
        %9906 = vmatpush.bf16.msra.mxu0 %v9753
        %9907 = vmatpush.bf16.msra.mxu0 %v9751
        %9908 = vmatpush.bf16.msra.mxu0 %v9749
        %9909 = vmatpush.bf16.msra.mxu0 %v9747
        %9910 = vmatpush.bf16.msra.mxu0 %v9745
        %9911 = vmatpush.bf16.msra.mxu0 %v9743
        %9912 = vmatmul.bf16.gmra.mxu0 %v9434
        %v9913 = vpop.f32.mrf.mxu0
        %v9914 = vadd.f32 %v9865, %v9913
        %v9915 = vpop.f32.mrf.mxu0
        %v9916 = vadd.f32 %v9867, %v9915
        %9917 = vmatmul.bf16.gmra.mxu0 %v9438
        %v9918 = vpop.f32.mrf.mxu0
        %v9919 = vadd.f32 %v9870, %v9918
        %v9920 = vpop.f32.mrf.mxu0
        %v9921 = vadd.f32 %v9872, %v9920
        %9922 = vmatmul.bf16.gmra.mxu0 %v9442
        %v9923 = vpop.f32.mrf.mxu0
        %v9924 = vadd.f32 %v9875, %v9923
        %v9925 = vpop.f32.mrf.mxu0
        %v9926 = vadd.f32 %v9877, %v9925
        %9927 = vmatmul.bf16.gmra.mxu0 %v9446
        %v9928 = vpop.f32.mrf.mxu0
        %v9929 = vadd.f32 %v9880, %v9928
        %v9930 = vpop.f32.mrf.mxu0
        %v9931 = vadd.f32 %v9882, %v9930
        %9932 = vmatmul.bf16.gmra.mxu0 %v9450
        %v9933 = vpop.f32.mrf.mxu0
        %v9934 = vadd.f32 %v9885, %v9933
        %v9935 = vpop.f32.mrf.mxu0
        %v9936 = vadd.f32 %v9887, %v9935
        %9937 = vmatmul.bf16.gmra.mxu0 %v9454
        %v9938 = vpop.f32.mrf.mxu0
        %v9939 = vadd.f32 %v9890, %v9938
        %v9940 = vpop.f32.mrf.mxu0
        %v9941 = vadd.f32 %v9892, %v9940
        %9942 = vmatmul.bf16.gmra.mxu0 %v9458
        %v9943 = vpop.f32.mrf.mxu0
        %v9944 = vadd.f32 %v9895, %v9943
        %v9945 = vpop.f32.mrf.mxu0
        %v9946 = vadd.f32 %v9897, %v9945
        %9947 = vmatmul.bf16.gmra.mxu0 %v9462
        %v9948 = vpop.f32.mrf.mxu0
        %v9949 = vadd.f32 %v9900, %v9948
        %v9950 = vpop.f32.mrf.mxu0
        %v9951 = vadd.f32 %v9902, %v9950
        %9952 = vdwg.mxu0
        %9953 = vmatpush.bf16.msra.mxu0 %v9773
        %9954 = vmatpush.bf16.msra.mxu0 %v9771
        %9955 = vmatpush.bf16.msra.mxu0 %v9769
        %9956 = vmatpush.bf16.msra.mxu0 %v9767
        %9957 = vmatpush.bf16.msra.mxu0 %v9765
        %9958 = vmatpush.bf16.msra.mxu0 %v9763
        %9959 = vmatpush.bf16.msra.mxu0 %v9761
        %9960 = vmatpush.bf16.msra.mxu0 %v9759
        %9961 = vmatmul.bf16.gmra.mxu0 %v9435
        %v9962 = vpop.f32.mrf.mxu0
        %v9963 = vadd.f32 %v9914, %v9962
        %v9964 = vpop.f32.mrf.mxu0
        %v9965 = vadd.f32 %v9916, %v9964
        %9966 = vmatmul.bf16.gmra.mxu0 %v9439
        %v9967 = vpop.f32.mrf.mxu0
        %v9968 = vadd.f32 %v9919, %v9967
        %v9969 = vpop.f32.mrf.mxu0
        %v9970 = vadd.f32 %v9921, %v9969
        %9971 = vmatmul.bf16.gmra.mxu0 %v9443
        %v9972 = vpop.f32.mrf.mxu0
        %v9973 = vadd.f32 %v9924, %v9972
        %v9974 = vpop.f32.mrf.mxu0
        %v9975 = vadd.f32 %v9926, %v9974
        %9976 = vmatmul.bf16.gmra.mxu0 %v9447
        %v9977 = vpop.f32.mrf.mxu0
        %v9978 = vadd.f32 %v9929, %v9977
        %v9979 = vpop.f32.mrf.mxu0
        %v9980 = vadd.f32 %v9931, %v9979
        %9981 = vmatmul.bf16.gmra.mxu0 %v9451
        %v9982 = vpop.f32.mrf.mxu0
        %v9983 = vadd.f32 %v9934, %v9982
        %v9984 = vpop.f32.mrf.mxu0
        %v9985 = vadd.f32 %v9936, %v9984
        %9986 = vmatmul.bf16.gmra.mxu0 %v9455
        %v9987 = vpop.f32.mrf.mxu0
        %v9988 = vadd.f32 %v9939, %v9987
        %v9989 = vpop.f32.mrf.mxu0
        %v9990 = vadd.f32 %v9941, %v9989
        %9991 = vmatmul.bf16.gmra.mxu0 %v9459
        %v9992 = vpop.f32.mrf.mxu0
        %v9993 = vadd.f32 %v9944, %v9992
        %v9994 = vpop.f32.mrf.mxu0
        %v9995 = vadd.f32 %v9946, %v9994
        %9996 = vmatmul.bf16.gmra.mxu0 %v9463
        %v9997 = vpop.f32.mrf.mxu0
        %v9998 = vadd.f32 %v9949, %v9997
        %v9999 = vpop.f32.mrf.mxu0
        %v10000 = vadd.f32 %v9951, %v9999
        %10001 = vdwg.mxu0
        %10002 = vmatpush.bf16.msra.mxu0 %v9789
        %10003 = vmatpush.bf16.msra.mxu0 %v9787
        %10004 = vmatpush.bf16.msra.mxu0 %v9785
        %10005 = vmatpush.bf16.msra.mxu0 %v9783
        %10006 = vmatpush.bf16.msra.mxu0 %v9781
        %10007 = vmatpush.bf16.msra.mxu0 %v9779
        %10008 = vmatpush.bf16.msra.mxu0 %v9777
        %10009 = vmatpush.bf16.msra.mxu0 %v9775
        %10010 = vmatmul.bf16.gmra.mxu0 %v9436
        %v10011 = vpop.f32.mrf.mxu0
        %v10012 = vadd.f32 %v9963, %v10011
        %v10013 = vpop.f32.mrf.mxu0
        %v10014 = vadd.f32 %v9965, %v10013
        %10015 = vmatmul.bf16.gmra.mxu0 %v9440
        %v10016 = vpop.f32.mrf.mxu0
        %v10017 = vadd.f32 %v9968, %v10016
        %v10018 = vpop.f32.mrf.mxu0
        %v10019 = vadd.f32 %v9970, %v10018
        %10020 = vmatmul.bf16.gmra.mxu0 %v9444
        %v10021 = vpop.f32.mrf.mxu0
        %v10022 = vadd.f32 %v9973, %v10021
        %v10023 = vpop.f32.mrf.mxu0
        %v10024 = vadd.f32 %v9975, %v10023
        %10025 = vmatmul.bf16.gmra.mxu0 %v9448
        %v10026 = vpop.f32.mrf.mxu0
        %v10027 = vadd.f32 %v9978, %v10026
        %v10028 = vpop.f32.mrf.mxu0
        %v10029 = vadd.f32 %v9980, %v10028
        %10030 = vmatmul.bf16.gmra.mxu0 %v9452
        %v10031 = vpop.f32.mrf.mxu0
        %v10032 = vadd.f32 %v9983, %v10031
        %v10033 = vpop.f32.mrf.mxu0
        %v10034 = vadd.f32 %v9985, %v10033
        %10035 = vmatmul.bf16.gmra.mxu0 %v9456
        %v10036 = vpop.f32.mrf.mxu0
        %v10037 = vadd.f32 %v9988, %v10036
        %v10038 = vpop.f32.mrf.mxu0
        %v10039 = vadd.f32 %v9990, %v10038
        %10040 = vmatmul.bf16.gmra.mxu0 %v9460
        %v10041 = vpop.f32.mrf.mxu0
        %v10042 = vadd.f32 %v9993, %v10041
        %v10043 = vpop.f32.mrf.mxu0
        %v10044 = vadd.f32 %v9995, %v10043
        %10045 = vmatmul.bf16.gmra.mxu0 %v9464
        %v10046 = vpop.f32.mrf.mxu0
        %v10047 = vadd.f32 %v9998, %v10046
        %v10048 = vpop.f32.mrf.mxu0
        %v10049 = vadd.f32 %v10000, %v10048
        %10050 = vdwg.mxu0
        %10051 = vmatpush.bf16.msra.mxu0 %v9742
        %10052 = vmatpush.bf16.msra.mxu0 %v9740
        %10053 = vmatpush.bf16.msra.mxu0 %v9738
        %10054 = vmatpush.bf16.msra.mxu0 %v9736
        %10055 = vmatpush.bf16.msra.mxu0 %v9734
        %10056 = vmatpush.bf16.msra.mxu0 %v9732
        %10057 = vmatpush.bf16.msra.mxu0 %v9730
        %10058 = vmatpush.bf16.msra.mxu0 %v9728
        %10059 = vmatmul.bf16.gmra.mxu0 %v9433
        %v10060 = vpop.f32.mrf.mxu0
        %v10061 = vadd.f32 %v9532, %v10060
        %v10062 = vpop.f32.mrf.mxu0
        %v10063 = vadd.f32 %v9532, %v10062
        %10064 = vmatmul.bf16.gmra.mxu0 %v9437
        %v10065 = vpop.f32.mrf.mxu0
        %v10066 = vadd.f32 %v9532, %v10065
        %v10067 = vpop.f32.mrf.mxu0
        %v10068 = vadd.f32 %v9532, %v10067
        %10069 = vmatmul.bf16.gmra.mxu0 %v9441
        %v10070 = vpop.f32.mrf.mxu0
        %v10071 = vadd.f32 %v9532, %v10070
        %v10072 = vpop.f32.mrf.mxu0
        %v10073 = vadd.f32 %v9532, %v10072
        %10074 = vmatmul.bf16.gmra.mxu0 %v9445
        %v10075 = vpop.f32.mrf.mxu0
        %v10076 = vadd.f32 %v9532, %v10075
        %v10077 = vpop.f32.mrf.mxu0
        %v10078 = vadd.f32 %v9532, %v10077
        %10079 = vmatmul.bf16.gmra.mxu0 %v9449
        %v10080 = vpop.f32.mrf.mxu0
        %v10081 = vadd.f32 %v9532, %v10080
        %v10082 = vpop.f32.mrf.mxu0
        %v10083 = vadd.f32 %v9532, %v10082
        %10084 = vmatmul.bf16.gmra.mxu0 %v9453
        %v10085 = vpop.f32.mrf.mxu0
        %v10086 = vadd.f32 %v9532, %v10085
        %v10087 = vpop.f32.mrf.mxu0
        %v10088 = vadd.f32 %v9532, %v10087
        %10089 = vmatmul.bf16.gmra.mxu0 %v9457
        %v10090 = vpop.f32.mrf.mxu0
        %v10091 = vadd.f32 %v9532, %v10090
        %v10092 = vpop.f32.mrf.mxu0
        %v10093 = vadd.f32 %v9532, %v10092
        %10094 = vmatmul.bf16.gmra.mxu0 %v9461
        %v10095 = vpop.f32.mrf.mxu0
        %v10096 = vadd.f32 %v9532, %v10095
        %v10097 = vpop.f32.mrf.mxu0
        %v10098 = vadd.f32 %v9532, %v10097
        %10099 = vdwg.mxu0
        %10100 = vmatpush.bf16.msra.mxu0 %v9758
        %10101 = vmatpush.bf16.msra.mxu0 %v9756
        %10102 = vmatpush.bf16.msra.mxu0 %v9754
        %10103 = vmatpush.bf16.msra.mxu0 %v9752
        %10104 = vmatpush.bf16.msra.mxu0 %v9750
        %10105 = vmatpush.bf16.msra.mxu0 %v9748
        %10106 = vmatpush.bf16.msra.mxu0 %v9746
        %10107 = vmatpush.bf16.msra.mxu0 %v9744
        %10108 = vmatmul.bf16.gmra.mxu0 %v9434
        %v10109 = vpop.f32.mrf.mxu0
        %v10110 = vadd.f32 %v10061, %v10109
        %v10111 = vpop.f32.mrf.mxu0
        %v10112 = vadd.f32 %v10063, %v10111
        %10113 = vmatmul.bf16.gmra.mxu0 %v9438
        %v10114 = vpop.f32.mrf.mxu0
        %v10115 = vadd.f32 %v10066, %v10114
        %v10116 = vpop.f32.mrf.mxu0
        %v10117 = vadd.f32 %v10068, %v10116
        %10118 = vmatmul.bf16.gmra.mxu0 %v9442
        %v10119 = vpop.f32.mrf.mxu0
        %v10120 = vadd.f32 %v10071, %v10119
        %v10121 = vpop.f32.mrf.mxu0
        %v10122 = vadd.f32 %v10073, %v10121
        %10123 = vmatmul.bf16.gmra.mxu0 %v9446
        %v10124 = vpop.f32.mrf.mxu0
        %v10125 = vadd.f32 %v10076, %v10124
        %v10126 = vpop.f32.mrf.mxu0
        %v10127 = vadd.f32 %v10078, %v10126
        %10128 = vmatmul.bf16.gmra.mxu0 %v9450
        %v10129 = vpop.f32.mrf.mxu0
        %v10130 = vadd.f32 %v10081, %v10129
        %v10131 = vpop.f32.mrf.mxu0
        %v10132 = vadd.f32 %v10083, %v10131
        %10133 = vmatmul.bf16.gmra.mxu0 %v9454
        %v10134 = vpop.f32.mrf.mxu0
        %v10135 = vadd.f32 %v10086, %v10134
        %v10136 = vpop.f32.mrf.mxu0
        %v10137 = vadd.f32 %v10088, %v10136
        %10138 = vmatmul.bf16.gmra.mxu0 %v9458
        %v10139 = vpop.f32.mrf.mxu0
        %v10140 = vadd.f32 %v10091, %v10139
        %v10141 = vpop.f32.mrf.mxu0
        %v10142 = vadd.f32 %v10093, %v10141
        %10143 = vmatmul.bf16.gmra.mxu0 %v9462
        %v10144 = vpop.f32.mrf.mxu0
        %v10145 = vadd.f32 %v10096, %v10144
        %v10146 = vpop.f32.mrf.mxu0
        %v10147 = vadd.f32 %v10098, %v10146
        %10148 = vdwg.mxu0
        %10149 = vmatpush.bf16.msra.mxu0 %v9774
        %10150 = vmatpush.bf16.msra.mxu0 %v9772
        %10151 = vmatpush.bf16.msra.mxu0 %v9770
        %10152 = vmatpush.bf16.msra.mxu0 %v9768
        %10153 = vmatpush.bf16.msra.mxu0 %v9766
        %10154 = vmatpush.bf16.msra.mxu0 %v9764
        %10155 = vmatpush.bf16.msra.mxu0 %v9762
        %10156 = vmatpush.bf16.msra.mxu0 %v9760
        %10157 = vmatmul.bf16.gmra.mxu0 %v9435
        %v10158 = vpop.f32.mrf.mxu0
        %v10159 = vadd.f32 %v10110, %v10158
        %v10160 = vpop.f32.mrf.mxu0
        %v10161 = vadd.f32 %v10112, %v10160
        %10162 = vmatmul.bf16.gmra.mxu0 %v9439
        %v10163 = vpop.f32.mrf.mxu0
        %v10164 = vadd.f32 %v10115, %v10163
        %v10165 = vpop.f32.mrf.mxu0
        %v10166 = vadd.f32 %v10117, %v10165
        %10167 = vmatmul.bf16.gmra.mxu0 %v9443
        %v10168 = vpop.f32.mrf.mxu0
        %v10169 = vadd.f32 %v10120, %v10168
        %v10170 = vpop.f32.mrf.mxu0
        %v10171 = vadd.f32 %v10122, %v10170
        %10172 = vmatmul.bf16.gmra.mxu0 %v9447
        %v10173 = vpop.f32.mrf.mxu0
        %v10174 = vadd.f32 %v10125, %v10173
        %v10175 = vpop.f32.mrf.mxu0
        %v10176 = vadd.f32 %v10127, %v10175
        %10177 = vmatmul.bf16.gmra.mxu0 %v9451
        %v10178 = vpop.f32.mrf.mxu0
        %v10179 = vadd.f32 %v10130, %v10178
        %v10180 = vpop.f32.mrf.mxu0
        %v10181 = vadd.f32 %v10132, %v10180
        %10182 = vmatmul.bf16.gmra.mxu0 %v9455
        %v10183 = vpop.f32.mrf.mxu0
        %v10184 = vadd.f32 %v10135, %v10183
        %v10185 = vpop.f32.mrf.mxu0
        %v10186 = vadd.f32 %v10137, %v10185
        %10187 = vmatmul.bf16.gmra.mxu0 %v9459
        %v10188 = vpop.f32.mrf.mxu0
        %v10189 = vadd.f32 %v10140, %v10188
        %v10190 = vpop.f32.mrf.mxu0
        %v10191 = vadd.f32 %v10142, %v10190
        %10192 = vmatmul.bf16.gmra.mxu0 %v9463
        %v10193 = vpop.f32.mrf.mxu0
        %v10194 = vadd.f32 %v10145, %v10193
        %v10195 = vpop.f32.mrf.mxu0
        %v10196 = vadd.f32 %v10147, %v10195
        %10197 = vdwg.mxu0
        %10198 = vmatpush.bf16.msra.mxu0 %v9790
        %10199 = vmatpush.bf16.msra.mxu0 %v9788
        %10200 = vmatpush.bf16.msra.mxu0 %v9786
        %10201 = vmatpush.bf16.msra.mxu0 %v9784
        %10202 = vmatpush.bf16.msra.mxu0 %v9782
        %10203 = vmatpush.bf16.msra.mxu0 %v9780
        %10204 = vmatpush.bf16.msra.mxu0 %v9778
        %10205 = vmatpush.bf16.msra.mxu0 %v9776
        %10206 = vmatmul.bf16.gmra.mxu0 %v9436
        %v10207 = vpop.f32.mrf.mxu0
        %v10208 = vadd.f32 %v10159, %v10207
        %v10209 = vpop.f32.mrf.mxu0
        %v10210 = vadd.f32 %v10161, %v10209
        %10211 = vmatmul.bf16.gmra.mxu0 %v9440
        %v10212 = vpop.f32.mrf.mxu0
        %v10213 = vadd.f32 %v10164, %v10212
        %v10214 = vpop.f32.mrf.mxu0
        %v10215 = vadd.f32 %v10166, %v10214
        %10216 = vmatmul.bf16.gmra.mxu0 %v9444
        %v10217 = vpop.f32.mrf.mxu0
        %v10218 = vadd.f32 %v10169, %v10217
        %v10219 = vpop.f32.mrf.mxu0
        %v10220 = vadd.f32 %v10171, %v10219
        %10221 = vmatmul.bf16.gmra.mxu0 %v9448
        %v10222 = vpop.f32.mrf.mxu0
        %v10223 = vadd.f32 %v10174, %v10222
        %v10224 = vpop.f32.mrf.mxu0
        %v10225 = vadd.f32 %v10176, %v10224
        %10226 = vmatmul.bf16.gmra.mxu0 %v9452
        %v10227 = vpop.f32.mrf.mxu0
        %v10228 = vadd.f32 %v10179, %v10227
        %v10229 = vpop.f32.mrf.mxu0
        %v10230 = vadd.f32 %v10181, %v10229
        %10231 = vmatmul.bf16.gmra.mxu0 %v9456
        %v10232 = vpop.f32.mrf.mxu0
        %v10233 = vadd.f32 %v10184, %v10232
        %v10234 = vpop.f32.mrf.mxu0
        %v10235 = vadd.f32 %v10186, %v10234
        %10236 = vmatmul.bf16.gmra.mxu0 %v9460
        %v10237 = vpop.f32.mrf.mxu0
        %v10238 = vadd.f32 %v10189, %v10237
        %v10239 = vpop.f32.mrf.mxu0
        %v10240 = vadd.f32 %v10191, %v10239
        %10241 = vmatmul.bf16.gmra.mxu0 %v9464
        %v10242 = vpop.f32.mrf.mxu0
        %v10243 = vadd.f32 %v10194, %v10242
        %v10244 = vpop.f32.mrf.mxu0
        %v10245 = vadd.f32 %v10196, %v10244
        %10246 = vdwg.mxu0
        %vm10247 = vcmp.gt.f32.partialorder %v10012, 0.0
        %vm10248 = vcmp.gt.f32.partialorder %v10208, 0.0
        %vm10249 = vcmp.gt.f32.partialorder %v10014, 0.0
        %vm10250 = vcmp.gt.f32.partialorder %v10210, 0.0
        %vm10251 = vcmp.gt.f32.partialorder %v10017, 0.0
        %vm10252 = vcmp.gt.f32.partialorder %v10213, 0.0
        %vm10253 = vcmp.gt.f32.partialorder %v10019, 0.0
        %vm10254 = vcmp.gt.f32.partialorder %v10215, 0.0
        %vm10255 = vcmp.gt.f32.partialorder %v10022, 0.0
        %vm10256 = vcmp.gt.f32.partialorder %v10218, 0.0
        %vm10257 = vcmp.gt.f32.partialorder %v10024, 0.0
        %vm10258 = vcmp.gt.f32.partialorder %v10220, 0.0
        %vm10259 = vcmp.gt.f32.partialorder %v10027, 0.0
        %vm10260 = vcmp.gt.f32.partialorder %v10223, 0.0
        %vm10261 = vcmp.gt.f32.partialorder %v10029, 0.0
        %vm10262 = vcmp.gt.f32.partialorder %v10225, 0.0
        %vm10263 = vcmp.gt.f32.partialorder %v10032, 0.0
        %vm10264 = vcmp.gt.f32.partialorder %v10228, 0.0
        %vm10265 = vcmp.gt.f32.partialorder %v10034, 0.0
        %vm10266 = vcmp.gt.f32.partialorder %v10230, 0.0
        %vm10267 = vcmp.gt.f32.partialorder %v10037, 0.0
        %vm10268 = vcmp.gt.f32.partialorder %v10233, 0.0
        %vm10269 = vcmp.gt.f32.partialorder %v10039, 0.0
        %vm10270 = vcmp.gt.f32.partialorder %v10235, 0.0
        %vm10271 = vcmp.gt.f32.partialorder %v10042, 0.0
        %vm10272 = vcmp.gt.f32.partialorder %v10238, 0.0
        %vm10273 = vcmp.gt.f32.partialorder %v10044, 0.0
        %vm10274 = vcmp.gt.f32.partialorder %v10240, 0.0
        %vm10275 = vcmp.gt.f32.partialorder %v10047, 0.0
        %vm10276 = vcmp.gt.f32.partialorder %v10243, 0.0
        %vm10277 = vcmp.gt.f32.partialorder %v10049, 0.0
        %vm10278 = vcmp.gt.f32.partialorder %v10245, 0.0
        %v10279 = vmul.f32 %v10012, 0.2
        %v10280 = vmul.f32 %v10208, 0.2
        %v10281 = vmul.f32 %v10014, 0.2
        %v10282 = vmul.f32 %v10210, 0.2
        %v10283 = vmul.f32 %v10017, 0.2
        %v10284 = vmul.f32 %v10213, 0.2
        %v10285 = vmul.f32 %v10019, 0.2
        %v10286 = vmul.f32 %v10215, 0.2
        %v10287 = vmul.f32 %v10022, 0.2
        %v10288 = vmul.f32 %v10218, 0.2
        %v10289 = vmul.f32 %v10024, 0.2
        %v10290 = vmul.f32 %v10220, 0.2
        %v10291 = vmul.f32 %v10027, 0.2
        %v10292 = vmul.f32 %v10223, 0.2
        %v10293 = vmul.f32 %v10029, 0.2
        %v10294 = vmul.f32 %v10225, 0.2
        %v10295 = vmul.f32 %v10032, 0.2
        %v10296 = vmul.f32 %v10228, 0.2
        %v10297 = vmul.f32 %v10034, 0.2
        %v10298 = vmul.f32 %v10230, 0.2
        %v10299 = vmul.f32 %v10037, 0.2
        %v10300 = vmul.f32 %v10233, 0.2
        %v10301 = vmul.f32 %v10039, 0.2
        %v10302 = vmul.f32 %v10235, 0.2
        %v10303 = vmul.f32 %v10042, 0.2
        %v10304 = vmul.f32 %v10238, 0.2
        %v10305 = vmul.f32 %v10044, 0.2
        %v10306 = vmul.f32 %v10240, 0.2
        %v10307 = vmul.f32 %v10047, 0.2
        %v10308 = vmul.f32 %v10243, 0.2
        %v10309 = vmul.f32 %v10049, 0.2
        %v10310 = vmul.f32 %v10245, 0.2
        %v10311 = vsel %vm10247, %v10012, %v10279
        %v10312 = vsel %vm10248, %v10208, %v10280
        %v10313 = vsel %vm10249, %v10014, %v10281
        %v10314 = vsel %vm10250, %v10210, %v10282
        %v10315 = vsel %vm10251, %v10017, %v10283
        %v10316 = vsel %vm10252, %v10213, %v10284
        %v10317 = vsel %vm10253, %v10019, %v10285
        %v10318 = vsel %vm10254, %v10215, %v10286
        %v10319 = vsel %vm10255, %v10022, %v10287
        %v10320 = vsel %vm10256, %v10218, %v10288
        %v10321 = vsel %vm10257, %v10024, %v10289
        %v10322 = vsel %vm10258, %v10220, %v10290
        %v10323 = vsel %vm10259, %v10027, %v10291
        %v10324 = vsel %vm10260, %v10223, %v10292
        %v10325 = vsel %vm10261, %v10029, %v10293
        %v10326 = vsel %vm10262, %v10225, %v10294
        %v10327 = vsel %vm10263, %v10032, %v10295
        %v10328 = vsel %vm10264, %v10228, %v10296
        %v10329 = vsel %vm10265, %v10034, %v10297
        %v10330 = vsel %vm10266, %v10230, %v10298
        %v10331 = vsel %vm10267, %v10037, %v10299
        %v10332 = vsel %vm10268, %v10233, %v10300
        %v10333 = vsel %vm10269, %v10039, %v10301
        %v10334 = vsel %vm10270, %v10235, %v10302
        %v10335 = vsel %vm10271, %v10042, %v10303
        %v10336 = vsel %vm10272, %v10238, %v10304
        %v10337 = vsel %vm10273, %v10044, %v10305
        %v10338 = vsel %vm10274, %v10240, %v10306
        %v10339 = vsel %vm10275, %v10047, %v10307
        %v10340 = vsel %vm10276, %v10243, %v10308
        %v10341 = vsel %vm10277, %v10049, %v10309
        %v10342 = vsel %vm10278, %v10245, %v10310
        %v10343 = vpack.c.bf16 %v10313, %v10311
        %v10344 = vpack.c.bf16 %v10314, %v10312
        %v10345 = vpack.c.bf16 %v10317, %v10315
        %v10346 = vpack.c.bf16 %v10318, %v10316
        %v10347 = vpack.c.bf16 %v10321, %v10319
        %v10348 = vpack.c.bf16 %v10322, %v10320
        %v10349 = vpack.c.bf16 %v10325, %v10323
        %v10350 = vpack.c.bf16 %v10326, %v10324
        %v10351 = vpack.c.bf16 %v10329, %v10327
        %v10352 = vpack.c.bf16 %v10330, %v10328
        %v10353 = vpack.c.bf16 %v10333, %v10331
        %v10354 = vpack.c.bf16 %v10334, %v10332
        %v10355 = vpack.c.bf16 %v10337, %v10335
        %v10356 = vpack.c.bf16 %v10338, %v10336
        %v10357 = vpack.c.bf16 %v10341, %v10339
        %v10358 = vpack.c.bf16 %v10342, %v10340
        %v10359 = vld [vmem:[%s7] sm:$0xf]
        %v10360 = vld [vmem:[%s7 + $0x4] sm:$0xf]
        %v10361 = vld [vmem:[%s7 + $0x8] sm:$0xf]
        %v10362 = vld [vmem:[%s7 + $0xc] sm:$0xf]
        %v10363 = vld [vmem:[%s7 + $0x10] sm:$0xf]
        %v10364 = vld [vmem:[%s7 + $0x14] sm:$0xf]
        %v10365 = vld [vmem:[%s7 + $0x18] sm:$0xf]
        %v10366 = vld [vmem:[%s7 + $0x1c] sm:$0xf]
        %v10367 = vld [vmem:[%s7 + $0x20] sm:$0xf]
        %v10368 = vld [vmem:[%s7 + $0x24] sm:$0xf]
        %v10369 = vld [vmem:[%s7 + $0x28] sm:$0xf]
        %v10370 = vld [vmem:[%s7 + $0x2c] sm:$0xf]
        %v10371 = vld [vmem:[%s7 + $0x30] sm:$0xf]
        %v10372 = vld [vmem:[%s7 + $0x34] sm:$0xf]
        %v10373 = vld [vmem:[%s7 + $0x38] sm:$0xf]
        %v10374 = vld [vmem:[%s7 + $0x3c] sm:$0xf]
        %v10375 = vld [vmem:[%s7 + $0x40] sm:$0xf]
        %v10376 = vld [vmem:[%s7 + $0x44] sm:$0xf]
        %v10377 = vld [vmem:[%s7 + $0x48] sm:$0xf]
        %v10378 = vld [vmem:[%s7 + $0x4c] sm:$0xf]
        %v10379 = vld [vmem:[%s7 + $0x50] sm:$0xf]
        %v10380 = vld [vmem:[%s7 + $0x54] sm:$0xf]
        %v10381 = vld [vmem:[%s7 + $0x58] sm:$0xf]
        %v10382 = vld [vmem:[%s7 + $0x5c] sm:$0xf]
        %v10383 = vld [vmem:[%s7 + $0x60] sm:$0xf]
        %v10384 = vld [vmem:[%s7 + $0x64] sm:$0xf]
        %v10385 = vld [vmem:[%s7 + $0x68] sm:$0xf]
        %v10386 = vld [vmem:[%s7 + $0x6c] sm:$0xf]
        %v10387 = vld [vmem:[%s7 + $0x70] sm:$0xf]
        %v10388 = vld [vmem:[%s7 + $0x74] sm:$0xf]
        %v10389 = vld [vmem:[%s7 + $0x78] sm:$0xf]
        %v10390 = vld [vmem:[%s7 + $0x7c] sm:$0xf]
        %v10391 = vld [vmem:[%s8] sm:$0x1]
        %v10393 = vperm.slane %v10391, 0
        %v10427 = vunpack.c.l.b16 %v10359
        %v10428 = vunpack.c.l.b16 %v10360
        %v10429 = vunpack.c.l.b16 %v10361
        %v10430 = vunpack.c.l.b16 %v10362
        %v10431 = vunpack.c.l.b16 %v10363
        %v10432 = vunpack.c.l.b16 %v10364
        %v10433 = vunpack.c.l.b16 %v10365
        %v10434 = vunpack.c.l.b16 %v10366
        %v10435 = vunpack.c.l.b16 %v10367
        %v10436 = vunpack.c.l.b16 %v10368
        %v10437 = vunpack.c.l.b16 %v10369
        %v10438 = vunpack.c.l.b16 %v10370
        %v10439 = vunpack.c.l.b16 %v10371
        %v10440 = vunpack.c.l.b16 %v10372
        %v10441 = vunpack.c.l.b16 %v10373
        %v10442 = vunpack.c.l.b16 %v10374
        %v10443 = vunpack.c.l.b16 %v10375
        %v10444 = vunpack.c.l.b16 %v10376
        %v10445 = vunpack.c.l.b16 %v10377
        %v10446 = vunpack.c.l.b16 %v10378
        %v10447 = vunpack.c.l.b16 %v10379
        %v10448 = vunpack.c.l.b16 %v10380
        %v10449 = vunpack.c.l.b16 %v10381
        %v10450 = vunpack.c.l.b16 %v10382
        %v10451 = vunpack.c.l.b16 %v10383
        %v10452 = vunpack.c.l.b16 %v10384
        %v10453 = vunpack.c.l.b16 %v10385
        %v10454 = vunpack.c.l.b16 %v10386
        %v10455 = vunpack.c.l.b16 %v10387
        %v10456 = vunpack.c.l.b16 %v10388
        %v10457 = vunpack.c.l.b16 %v10389
        %v10458 = vunpack.c.l.b16 %v10390
        %v10459 = vpack.c.b16 %v10428, %v10427
        %v10460 = vpack.c.b16 %v10430, %v10429
        %v10461 = vpack.c.b16 %v10432, %v10431
        %v10462 = vpack.c.b16 %v10434, %v10433
        %v10463 = vpack.c.b16 %v10436, %v10435
        %v10464 = vpack.c.b16 %v10438, %v10437
        %v10465 = vpack.c.b16 %v10440, %v10439
        %v10466 = vpack.c.b16 %v10442, %v10441
        %v10467 = vpack.c.b16 %v10444, %v10443
        %v10468 = vpack.c.b16 %v10446, %v10445
        %v10469 = vpack.c.b16 %v10448, %v10447
        %v10470 = vpack.c.b16 %v10450, %v10449
        %v10471 = vpack.c.b16 %v10452, %v10451
        %v10472 = vpack.c.b16 %v10454, %v10453
        %v10473 = vpack.c.b16 %v10456, %v10455
        %v10474 = vpack.c.b16 %v10458, %v10457
        %10491 = vmatpush.bf16.msra.mxu0 %v10466
        %10492 = vmatpush.bf16.msra.mxu0 %v10465
        %10493 = vmatpush.bf16.msra.mxu0 %v10464
        %10494 = vmatpush.bf16.msra.mxu0 %v10463
        %10495 = vmatpush.bf16.msra.mxu0 %v10462
        %10496 = vmatpush.bf16.msra.mxu0 %v10461
        %10497 = vmatpush.bf16.msra.mxu0 %v10460
        %10498 = vmatpush.bf16.msra.mxu0 %v10459
        %10499 = vmatmul.bf16.gmra.mxu0 %v10343
        %v10500 = vpop.f32.mrf.mxu0
        %v10501 = vadd.f32 %v10393, %v10500
        %v10502 = vpop.f32.mrf.mxu0
        %v10503 = vadd.f32 %v10393, %v10502
        %10504 = vmatmul.bf16.gmra.mxu0 %v10345
        %v10505 = vpop.f32.mrf.mxu0
        %v10506 = vadd.f32 %v10393, %v10505
        %v10507 = vpop.f32.mrf.mxu0
        %v10508 = vadd.f32 %v10393, %v10507
        %10509 = vmatmul.bf16.gmra.mxu0 %v10347
        %v10510 = vpop.f32.mrf.mxu0
        %v10511 = vadd.f32 %v10393, %v10510
        %v10512 = vpop.f32.mrf.mxu0
        %v10513 = vadd.f32 %v10393, %v10512
        %10514 = vmatmul.bf16.gmra.mxu0 %v10349
        %v10515 = vpop.f32.mrf.mxu0
        %v10516 = vadd.f32 %v10393, %v10515
        %v10517 = vpop.f32.mrf.mxu0
        %v10518 = vadd.f32 %v10393, %v10517
        %10519 = vmatmul.bf16.gmra.mxu0 %v10351
        %v10520 = vpop.f32.mrf.mxu0
        %v10521 = vadd.f32 %v10393, %v10520
        %v10522 = vpop.f32.mrf.mxu0
        %v10523 = vadd.f32 %v10393, %v10522
        %10524 = vmatmul.bf16.gmra.mxu0 %v10353
        %v10525 = vpop.f32.mrf.mxu0
        %v10526 = vadd.f32 %v10393, %v10525
        %v10527 = vpop.f32.mrf.mxu0
        %v10528 = vadd.f32 %v10393, %v10527
        %10529 = vmatmul.bf16.gmra.mxu0 %v10355
        %v10530 = vpop.f32.mrf.mxu0
        %v10531 = vadd.f32 %v10393, %v10530
        %v10532 = vpop.f32.mrf.mxu0
        %v10533 = vadd.f32 %v10393, %v10532
        %10534 = vmatmul.bf16.gmra.mxu0 %v10357
        %v10535 = vpop.f32.mrf.mxu0
        %v10536 = vadd.f32 %v10393, %v10535
        %v10537 = vpop.f32.mrf.mxu0
        %v10538 = vadd.f32 %v10393, %v10537
        %10539 = vdwg.mxu0
        %10540 = vmatpush.bf16.msra.mxu0 %v10474
        %10541 = vmatpush.bf16.msra.mxu0 %v10473
        %10542 = vmatpush.bf16.msra.mxu0 %v10472
        %10543 = vmatpush.bf16.msra.mxu0 %v10471
        %10544 = vmatpush.bf16.msra.mxu0 %v10470
        %10545 = vmatpush.bf16.msra.mxu0 %v10469
        %10546 = vmatpush.bf16.msra.mxu0 %v10468
        %10547 = vmatpush.bf16.msra.mxu0 %v10467
        %10548 = vmatmul.bf16.gmra.mxu0 %v10344
        %v10549 = vpop.f32.mrf.mxu0
        %v10550 = vadd.f32 %v10501, %v10549
        %v10551 = vpop.f32.mrf.mxu0
        %v10552 = vadd.f32 %v10503, %v10551
        %10553 = vmatmul.bf16.gmra.mxu0 %v10346
        %v10554 = vpop.f32.mrf.mxu0
        %v10555 = vadd.f32 %v10506, %v10554
        %v10556 = vpop.f32.mrf.mxu0
        %v10557 = vadd.f32 %v10508, %v10556
        %10558 = vmatmul.bf16.gmra.mxu0 %v10348
        %v10559 = vpop.f32.mrf.mxu0
        %v10560 = vadd.f32 %v10511, %v10559
        %v10561 = vpop.f32.mrf.mxu0
        %v10562 = vadd.f32 %v10513, %v10561
        %10563 = vmatmul.bf16.gmra.mxu0 %v10350
        %v10564 = vpop.f32.mrf.mxu0
        %v10565 = vadd.f32 %v10516, %v10564
        %v10566 = vpop.f32.mrf.mxu0
        %v10567 = vadd.f32 %v10518, %v10566
        %10568 = vmatmul.bf16.gmra.mxu0 %v10352
        %v10569 = vpop.f32.mrf.mxu0
        %v10570 = vadd.f32 %v10521, %v10569
        %v10571 = vpop.f32.mrf.mxu0
        %v10572 = vadd.f32 %v10523, %v10571
        %10573 = vmatmul.bf16.gmra.mxu0 %v10354
        %v10574 = vpop.f32.mrf.mxu0
        %v10575 = vadd.f32 %v10526, %v10574
        %v10576 = vpop.f32.mrf.mxu0
        %v10577 = vadd.f32 %v10528, %v10576
        %10578 = vmatmul.bf16.gmra.mxu0 %v10356
        %v10579 = vpop.f32.mrf.mxu0
        %v10580 = vadd.f32 %v10531, %v10579
        %v10581 = vpop.f32.mrf.mxu0
        %v10582 = vadd.f32 %v10533, %v10581
        %10583 = vmatmul.bf16.gmra.mxu0 %v10358
        %v10584 = vpop.f32.mrf.mxu0
        %v10585 = vadd.f32 %v10536, %v10584
        %v10586 = vpop.f32.mrf.mxu0
        %v10587 = vadd.f32 %v10538, %v10586
        %10588 = vdwg.mxu0
        %v10589 = vpack.c.bf16 %v10550, %v10550
        %v10590 = vpack.c.bf16 %v10552, %v10552
        %v10591 = vpack.c.bf16 %v10555, %v10555
        %v10592 = vpack.c.bf16 %v10557, %v10557
        %v10593 = vpack.c.bf16 %v10560, %v10560
        %v10594 = vpack.c.bf16 %v10562, %v10562
        %v10595 = vpack.c.bf16 %v10565, %v10565
        %v10596 = vpack.c.bf16 %v10567, %v10567
        %v10597 = vpack.c.bf16 %v10570, %v10570
        %v10598 = vpack.c.bf16 %v10572, %v10572
        %v10599 = vpack.c.bf16 %v10575, %v10575
        %v10600 = vpack.c.bf16 %v10577, %v10577
        %v10601 = vpack.c.bf16 %v10580, %v10580
        %v10602 = vpack.c.bf16 %v10582, %v10582
        %v10603 = vpack.c.bf16 %v10585, %v10585
        %v10604 = vpack.c.bf16 %v10587, %v10587
        %10605 = vst [vmem:[%s362] sm:$0xf] %v10589
        %10606 = vst [vmem:[%s362 + $0x4] sm:$0xf] %v10590
        %10607 = vst [vmem:[%s362 + $0x8] sm:$0xf] %v10591
        %10608 = vst [vmem:[%s362 + $0xc] sm:$0xf] %v10592
        %10609 = vst [vmem:[%s362 + $0x10] sm:$0xf] %v10593
        %10610 = vst [vmem:[%s362 + $0x14] sm:$0xf] %v10594
        %10611 = vst [vmem:[%s362 + $0x18] sm:$0xf] %v10595
        %10612 = vst [vmem:[%s362 + $0x1c] sm:$0xf] %v10596
        %10613 = vst [vmem:[%s362 + $0x20] sm:$0xf] %v10597
        %10614 = vst [vmem:[%s362 + $0x24] sm:$0xf] %v10598
        %10615 = vst [vmem:[%s362 + $0x28] sm:$0xf] %v10599
        %10616 = vst [vmem:[%s362 + $0x2c] sm:$0xf] %v10600
        %10617 = vst [vmem:[%s362 + $0x30] sm:$0xf] %v10601
        %10618 = vst [vmem:[%s362 + $0x34] sm:$0xf] %v10602
        %10619 = vst [vmem:[%s362 + $0x38] sm:$0xf] %v10603
        %10620 = vst [vmem:[%s362 + $0x3c] sm:$0xf] %v10604
        %s10621 = sand.u32 %s227, 1
        %s10622 = scalar_lea.sflag [#allocation4], %s10621
        %s10623 = sand.u32 %s227, 1
        %s10624 = smul.addr %s10623, 64
        %s10625 = scalar_lea.vmem [#allocation7], %s10624
        // Predicated region
        $region65: #{tpu_custom_call.1} parent=55 // pred_check
          %p10626 = pneg %p237
        $region66: #{tpu_custom_call.1} parent=55 // pred_check_branch
          %10628 = sbr.rel (%p10626) target = $region68
        $region67: #{tpu_custom_call.1} parent=55 // pred_region
          %s10629 = smul.u32 16, %s25
          %10631 = vsyncadd %s10622, 0
          %s10632 = smul.addr %s10629, 4
          %s10633 = scalar_lea.hbm %s9, %s10632
          %s10634 = sshll.u32 %s10625, 4
          %s10635 = int_to_ptr.vmem [resolvable:$true] %s10634
          %s10636 = sshll.u32 %s10633, 4
          %s10637 = int_to_ptr.hbm [resolvable:$true] %s10636
          %10642 = dma.vmem_to_hbm [thread:$0]  %s10635, 1024, %s10637, %s10622, 64, 64, 4
        $region68: #{tpu_custom_call.1} parent=55 // pred_fallthru
          _
      $region56: #{tpu_custom_call.1} parent=5 // pred_fallthru
        _
      %p10643 = scmp.le.s32.totalorder 2, %s20
      // Predicated region
      $region69: #{tpu_custom_call.1} parent=5 // pred_check
        %p10644 = pneg %p10643
      $region70: #{tpu_custom_call.1} parent=5 // pred_check_branch
        %10646 = sbr.rel (%p10644) target = $region72
      $region71: #{tpu_custom_call.1} parent=5 // pred_region
        %s10647 = ssub.s32 %s20, 2
        // Predicated region
        $region73: #{tpu_custom_call.1} parent=71 // pred_check
          %p10648 = pneg %p243
        $region74: #{tpu_custom_call.1} parent=71 // pred_check_branch
          %10650 = sbr.rel (%p10648) target = $region76
        $region75: #{tpu_custom_call.1} parent=71 // pred_region
          %s10651 = sand.u32 %s228, 1
          %s10652 = scalar_lea.sflag [#allocation4], %s10651
          %s10653 = sand.u32 %s228, 1
          %s10654 = smul.addr %s10653, 64
          %s10655 = scalar_lea.vmem [#allocation7], %s10654
          %10657 = dma.done %s10652, 1024
        $region76: #{tpu_custom_call.1} parent=71 // pred_fallthru
          _
      $region72: #{tpu_custom_call.1} parent=5 // pred_fallthru
        _
    $region6: #{tpu_custom_call.1} parent=1 // loop_footer
      %s24 = sadd.s32 1, %s20
    $region7: #{tpu_custom_call.1} parent=1 // loop_footer_branch
      %19 = sbr.rel target = $region3
    $region8: #{tpu_custom_call.1} parent=1 // loop_exit
      _
    %10658 = vsyncpa [#allocation3], 1
    %s10659 = scalar_lea.sflag [#allocation3], 1
    %10660 = vsyncpa %s10659, 1
    %10661 = vsyncpa [#allocation6], 1
    %10662 = vsyncpa [#allocation4], 1
    %s10663 = scalar_lea.sflag [#allocation4], 1
    %10664 = vsyncpa %s10663, 1

</llo_original>
